<compile_context>
chip_gen: v7x
topology: tpu7x:2x2x1
jax: 0.10.0
libtpu: 0.0.40
codegen_flags: <defaults>
</compile_context>

<pallas_src>
import functools

import jax
import jax.numpy as jnp
from jax.experimental import pallas as pl
from jax.experimental.pallas import tpu as pltpu

_C = 64          # internal channel width; every level is zero-padded to this
_ROLL_OK = None  # cached result of the pltpu.roll probe


def _roll_matches_numpy():
    """True iff pltpu.roll lowers on this backend and matches jnp.roll.

    pltpu.roll is specified to follow jnp.roll semantics; this one-off probe
    guards the fused kernel against backend/version differences and falls
    back to unaligned output slices if anything is off.  Must be called
    outside jit (it executes a tiny pallas_call eagerly).
    """
    global _ROLL_OK
    if _ROLL_OK is None:
        try:
            def probe(o_ref):
                rows = jax.lax.broadcasted_iota(jnp.float32, (8, 128), 0)
                o_ref[...] = pltpu.roll(rows, shift=1, axis=0)

            out = pl.pallas_call(
                probe,
                out_shape=jax.ShapeDtypeStruct((8, 128), jnp.float32))()
            _ROLL_OK = bool(float(jax.device_get(out)[0, 0]) == 7.0)
        except Exception:  # conservative fallback to the slice path
            _ROLL_OK = False
    return _ROLL_OK


# ----------------------------------------------------------------------------
# Fused kernel: all levels for one batch element.
# ----------------------------------------------------------------------------
def _fused_dncnn_kernel(x_ref, w_ref, scale_ref, shift_ref, o_ref, buf_ref,
                        *, H, W, Wb, Cin, num_levels, use_roll):
    # x_ref    : (1, H, W, Cin)      bf16  input image (real channel count)
    # w_ref    : (3*L, _C, 3*_C)     bf16  [lvl*3+dh] -> dw-concat (Cin, 3*Cout)
    # scale_ref: (L, 1, _C) f32, shift_ref: (L, 1, _C) f32  folded BN + bias
    # o_ref    : (1, H, W, 1)        f32   channel 0 of the last level
    # buf_ref  : (2, H+2, Wb, _C)    bf16  ping-pong zero-padded activations
    C = _C
    rows = H * Wb
    dt = buf_ref.dtype

    # --- zero init (per grid step; scratch is per-core, so unconditional) ---
    # Buffer 0 is zeroed in full: besides the halo border this also clears
    # interior channels Cin.._C-1, which level 0's zero-padded weights must
    # see as exact zeros (uninitialised VMEM could hold NaN/Inf garbage).
    buf_ref[0] = jnp.zeros((H + 2, Wb, C), dt)
    # Buffer 1 only needs its halo border zeroed: every level fully rewrites
    # its (1:H+1, 1:W+1) interior with all _C channels.
    buf_ref[1, 0] = jnp.zeros((Wb, C), dt)
    buf_ref[1, H + 1] = jnp.zeros((Wb, C), dt)
    buf_ref[1, :, 0:1] = jnp.zeros((H + 2, 1, C), dt)
    buf_ref[1, :, W + 1:Wb] = jnp.zeros((H + 2, Wb - W - 1, C), dt)

    # Input image -> interior of buffer 0 (only the real Cin channels).
    buf_ref[0, 1:H + 1, 1:W + 1, :Cin] = x_ref[0]

    def conv_level(lvl, src):
        """3x3 'same' conv of buf[src] + folded scale/shift -> (H, W, C) f32."""
        # 3 MXU matmuls per level: (H*Wb, 64) @ (64, 192); the three dw taps
        # are concatenated along the matmul N dim.
        acc = None
        for dh in range(3):
            lhs = buf_ref[src, dh:dh + H].reshape(rows, C)
            part = jnp.dot(lhs, w_ref[lvl * 3 + dh],
                           preferred_element_type=jnp.float32)
            acc = part if dh == 0 else acc + part
        if use_roll:
            # dw shift applied to the accumulated output via XLU sublane rolls
            # on the fused (H*Wb) axis; columns >= W (including any row
            # wrap-around) are dropped by the aligned [:, :W] slice below.
            y = acc[:, 0:C]
            y = y + pltpu.roll(acc[:, C:2 * C], shift=rows - 1, axis=0)
            y = y + pltpu.roll(acc[:, 2 * C:3 * C], shift=rows - 2, axis=0)
            y = y.reshape(H, Wb, C)[:, :W, :]
        else:
            # Fallback: sublane-unaligned output slices (previous formulation).
            a3 = acc.reshape(H, Wb, 3 * C)
            y = (a3[:, 0:W, 0:C] + a3[:, 1:W + 1, C:2 * C]
                 + a3[:, 2:W + 2, 2 * C:3 * C])
        return y * scale_ref[lvl] + shift_ref[lvl]

    # Levels 0 .. L-2 are structurally identical (conv -> scale/shift -> ReLU).
    # Run two levels per fori_loop iteration so the ping-pong buffer indices
    # stay static; only the weight/scale reads use a dynamic leading index.
    num_mid = num_levels - 1
    pairs = num_mid // 2

    def mid_pair(t, carry):
        lvl0 = 2 * t
        y0 = jnp.maximum(conv_level(lvl0, 0), 0.0)
        buf_ref[1, 1:H + 1, 1:W + 1, :] = y0.astype(dt)
        y1 = jnp.maximum(conv_level(lvl0 + 1, 1), 0.0)
        buf_ref[0, 1:H + 1, 1:W + 1, :] = y1.astype(dt)
        return carry

    jax.lax.fori_loop(0, pairs, mid_pair, 0)

    if num_mid % 2 == 1:
        # Odd number of ReLU levels: one more, statically (reads buffer 0).
        y = jnp.maximum(conv_level(num_mid - 1, 0), 0.0)
        buf_ref[1, 1:H + 1, 1:W + 1, :] = y.astype(dt)
        last_src = 1
    else:
        last_src = 0

    # Last level: no ReLU; store only the real output channel.
    y = conv_level(num_levels - 1, last_src)
    o_ref[0] = y[:, :, 0:1].astype(o_ref.dtype)


# ----------------------------------------------------------------------------
# Parameter construction (deterministic; mirrors DnCnnNp.__init__ shapes).
# ----------------------------------------------------------------------------
def make_params(in_channels, num_levels=17, seed=0):
    f_num = [64] * (num_levels - 1) + [1]
    f_in = [in_channels] + f_num[:-1]
    bnorm = [False] + [True] * (num_levels - 2) + [False]
    eps = 1e-5

    key = jax.random.PRNGKey(seed)
    params = []
    for i in range(num_levels):
        key, wk = jax.random.split(key)
        cin, cout = f_in[i], f_num[i]
        # conv weight (HWIO), deterministic random init
        w = 0.05 * jax.random.normal(wk, (3, 3, cin, cout), jnp.float32)
        # nn.BatchNorm2d defaults: gamma=1, beta=0, running_mean=0, running_var=1
        # Bias module init: zeros
        bias = jnp.zeros((cout,), jnp.float32)
        if bnorm[i]:
            gamma = jnp.ones((cout,), jnp.float32)
            beta = jnp.zeros((cout,), jnp.float32)
            r_mean = jnp.zeros((cout,), jnp.float32)
            r_var = jnp.ones((cout,), jnp.float32)
            scale = gamma / jnp.sqrt(r_var + eps)
            shift = beta - r_mean * scale + bias
        else:
            scale = jnp.ones((cout,), jnp.float32)
            shift = bias
        params.append(dict(w=w, scale=scale, shift=shift,
                           relu=(i != num_levels - 1)))
    return params


def _pack_params(params):
    """Stack per-level weights/scales (channel-padded, dw-concat) for the kernel."""
    w_all, scale_all, shift_all = [], [], []
    for p in params:
        w = p["w"]                                  # (3, 3, cin, cout) HWIO
        cin, cout = w.shape[2], w.shape[3]
        wp = jnp.zeros((3, 3, _C, _C), jnp.float32).at[:, :, :cin, :cout].set(w)
        # dw-concat along the OUTPUT dim -> (3, _C, 3*_C); lane block dw holds
        # the weights of horizontal tap dw.
        w_all.append(jnp.concatenate([wp[:, 0], wp[:, 1], wp[:, 2]], axis=-1))
        scale_all.append(
            jnp.zeros((1, _C), jnp.float32).at[0, :cout].set(p["scale"]))
        shift_all.append(
            jnp.zeros((1, _C), jnp.float32).at[0, :cout].set(p["shift"]))
    L = len(params)
    w_all = jnp.stack(w_all).reshape(3 * L, _C, 3 * _C).astype(jnp.bfloat16)
    scale_all = jnp.stack(scale_all)                # (L, 1, _C) f32
    shift_all = jnp.stack(shift_all)                # (L, 1, _C) f32
    return w_all, scale_all, shift_all


# ----------------------------------------------------------------------------
# Forward pass (NCHW in / NCHW out, matching the PyTorch module).
# ----------------------------------------------------------------------------
def dncnn_forward(x_nchw, params, use_roll=None):
    if use_roll is None:
        use_roll = _roll_matches_numpy()
    N, Cin, H, W = x_nchw.shape
    assert Cin <= _C
    L = len(params)

    x = jnp.transpose(x_nchw, (0, 2, 3, 1)).astype(jnp.bfloat16)   # NHWC, real Cin

    w_all, scale_all, shift_all = _pack_params(params)

    # Padded buffer width: W + 2 halo columns, rounded up to a multiple of 16
    # (bf16 sublane packing) so the in-kernel reshapes are layout preserving.
    Wb = ((W + 2 + 15) // 16) * 16

    kernel = functools.partial(_fused_dncnn_kernel, H=H, W=W, Wb=Wb, Cin=Cin,
                               num_levels=L, use_roll=use_roll)

    out = pl.pallas_call(
        kernel,
        out_shape=jax.ShapeDtypeStruct((N, H, W, 1), jnp.float32),
        grid=(N,),
        in_specs=[
            pl.BlockSpec((1, H, W, Cin), lambda n: (n, 0, 0, 0)),
            pl.BlockSpec((3 * L, _C, 3 * _C), lambda n: (0, 0, 0)),
            pl.BlockSpec((L, 1, _C), lambda n: (0, 0, 0)),
            pl.BlockSpec((L, 1, _C), lambda n: (0, 0, 0)),
        ],
        out_specs=pl.BlockSpec((1, H, W, 1), lambda n: (n, 0, 0, 0)),
        scratch_shapes=[pltpu.VMEM((2, H + 2, Wb, _C), jnp.bfloat16)],
        compiler_params=pltpu.CompilerParams(
            dimension_semantics=("parallel",),
            # Raise the scoped-VMEM ceiling above the 16/32 MiB defaults while
            # staying under v7x's 64 MiB physical VMEM.
            vmem_limit_bytes=56 * 1024 * 1024),
    )(x, w_all, scale_all, shift_all)

    return jnp.transpose(out, (0, 3, 1, 2))                        # (N, 1, H, W)


# Pure-JAX reference with matching numerics (bf16 conv inputs, f32 accumulate).
def dncnn_reference(x_nchw, params):
    x = jnp.transpose(x_nchw, (0, 2, 3, 1)).astype(jnp.float32)
    for p in params:
        y = jax.lax.conv_general_dilated(
            x.astype(jnp.bfloat16), p["w"].astype(jnp.bfloat16),
            window_strides=(1, 1), padding="SAME",
            dimension_numbers=("NHWC", "HWIO", "NHWC"),
            preferred_element_type=jnp.float32)
        y = y * p["scale"] + p["shift"]
        if p["relu"]:
            y = jnp.maximum(y, 0.0)
        x = y
    return jnp.transpose(x, (0, 3, 1, 2))


if __name__ == "__main__":
    N, Cin, H, W = 2, 4, 16, 16     # DnCnnNp(images=4), small spatial size
    key = jax.random.PRNGKey(0)
    x = jax.random.normal(key, (N, Cin, H, W), jnp.float32)

    params = make_params(in_channels=Cin, num_levels=17, seed=0)

    use_roll = _roll_matches_numpy()          # resolve the probe outside jit
    fwd = jax.jit(lambda xx: dncnn_forward(xx, params, use_roll=use_roll))
    out = jax.block_until_ready(fwd(x))
    assert out.shape == (N, 1, H, W), out.shape

    ref = jax.block_until_ready(
        jax.jit(lambda xx: dncnn_reference(xx, params))(x))
    max_err = float(jnp.max(jnp.abs(out - ref)))
    assert jnp.allclose(out, ref, rtol=3e-2, atol=3e-2), max_err

    print("KERNEL_OK")
</pallas_src>

<mosaic_0001>
module attributes {stable_mosaic.version = 11 : i64} {
  func.func @_fused_dncnn_kernel(%arg0: i32, %arg1: memref<1x16x16x4xbf16, #tpu.memory_space<vmem>>, %arg2: memref<51x64x192xbf16, #tpu.memory_space<vmem>>, %arg3: memref<17x1x64xf32, #tpu.memory_space<vmem>>, %arg4: memref<17x1x64xf32, #tpu.memory_space<vmem>>, %arg5: memref<1x16x16x1xf32, #tpu.memory_space<vmem>>, %arg6: memref<2x18x32x64xbf16, #tpu.memory_space<vmem>>) attributes {dimension_semantics = [#tpu.dimension_semantics<parallel>], iteration_bounds = array<i64: 2>, scalar_prefetch = 0 : i64, scratch_operands = 1 : i64, tpu.core_type = #tpu.core_type<tc>, window_params = [{transform_indices = @transform_0, window_bounds = array<i64: 1, 16, 16, 4>}, {pipeline_mode = #tpu.pipeline_mode<synchronous>, transform_indices = @transform_1, window_bounds = array<i64: 51, 64, 192>}, {pipeline_mode = #tpu.pipeline_mode<synchronous>, transform_indices = @transform_2, window_bounds = array<i64: 17, 1, 64>}, {pipeline_mode = #tpu.pipeline_mode<synchronous>, transform_indices = @transform_3, window_bounds = array<i64: 17, 1, 64>}, {transform_indices = @transform_4, window_bounds = array<i64: 1, 16, 16, 1>}]} {
    %cst = arith.constant 0.000000e+00 : bf16
    %0 = vector.broadcast %cst : bf16 to vector<18x32x64xbf16>
    %c0 = arith.constant 0 : index
    %c0_0 = arith.constant 0 : index
    %c0_1 = arith.constant 0 : index
    %c0_2 = arith.constant 0 : index
    %1 = vector.load %arg6[%c0, %c0_0, %c0_1, %c0_2] : memref<2x18x32x64xbf16, #tpu.memory_space<vmem>>, vector<1x18x32x64xbf16>
    %2 = vector.shape_cast %1 : vector<1x18x32x64xbf16> to vector<18x32x64xbf16>
    %3 = vector.shape_cast %0 : vector<18x32x64xbf16> to vector<1x18x32x64xbf16>
    tpu.vector_store %arg6[%c0, %c0_0, %c0_1, %c0_2], %3 {strides = array<i32>} : memref<2x18x32x64xbf16, #tpu.memory_space<vmem>>, vector<1x18x32x64xbf16>,
    %cst_3 = arith.constant 0.000000e+00 : bf16
    %4 = vector.broadcast %cst_3 : bf16 to vector<32x64xbf16>
    %c1 = arith.constant 1 : index
    %c0_4 = arith.constant 0 : index
    %c0_5 = arith.constant 0 : index
    %c0_6 = arith.constant 0 : index
    %5 = vector.load %arg6[%c1, %c0_4, %c0_5, %c0_6] : memref<2x18x32x64xbf16, #tpu.memory_space<vmem>>, vector<1x1x32x64xbf16>
    %6 = vector.shape_cast %5 : vector<1x1x32x64xbf16> to vector<32x64xbf16>
    %7 = vector.shape_cast %4 : vector<32x64xbf16> to vector<1x1x32x64xbf16>
    tpu.vector_store %arg6[%c1, %c0_4, %c0_5, %c0_6], %7 {strides = array<i32>} : memref<2x18x32x64xbf16, #tpu.memory_space<vmem>>, vector<1x1x32x64xbf16>,
    %cst_7 = arith.constant 0.000000e+00 : bf16
    %8 = vector.broadcast %cst_7 : bf16 to vector<32x64xbf16>
    %c1_8 = arith.constant 1 : index
    %c17 = arith.constant 17 : index
    %c0_9 = arith.constant 0 : index
    %c0_10 = arith.constant 0 : index
    %9 = vector.load %arg6[%c1_8, %c17, %c0_9, %c0_10] : memref<2x18x32x64xbf16, #tpu.memory_space<vmem>>, vector<1x1x32x64xbf16>
    %10 = vector.shape_cast %9 : vector<1x1x32x64xbf16> to vector<32x64xbf16>
    %11 = vector.shape_cast %8 : vector<32x64xbf16> to vector<1x1x32x64xbf16>
    tpu.vector_store %arg6[%c1_8, %c17, %c0_9, %c0_10], %11 {strides = array<i32>} : memref<2x18x32x64xbf16, #tpu.memory_space<vmem>>, vector<1x1x32x64xbf16>,
    %cst_11 = arith.constant 0.000000e+00 : bf16
    %12 = vector.broadcast %cst_11 : bf16 to vector<18x1x64xbf16>
    %c1_12 = arith.constant 1 : index
    %c0_13 = arith.constant 0 : index
    %c0_14 = arith.constant 0 : index
    %c0_15 = arith.constant 0 : index
    %13 = vector.load %arg6[%c1_12, %c0_13, %c0_14, %c0_15] : memref<2x18x32x64xbf16, #tpu.memory_space<vmem>>, vector<1x18x1x64xbf16>
    %14 = vector.shape_cast %13 : vector<1x18x1x64xbf16> to vector<18x1x64xbf16>
    %15 = vector.shape_cast %12 : vector<18x1x64xbf16> to vector<1x18x1x64xbf16>
    tpu.vector_store %arg6[%c1_12, %c0_13, %c0_14, %c0_15], %15 {strides = array<i32>} : memref<2x18x32x64xbf16, #tpu.memory_space<vmem>>, vector<1x18x1x64xbf16>,
    %cst_16 = arith.constant 0.000000e+00 : bf16
    %16 = vector.broadcast %cst_16 : bf16 to vector<18x15x64xbf16>
    %c1_17 = arith.constant 1 : index
    %c0_18 = arith.constant 0 : index
    %c17_19 = arith.constant 17 : index
    %c0_20 = arith.constant 0 : index
    %17 = vector.load %arg6[%c1_17, %c0_18, %c17_19, %c0_20] : memref<2x18x32x64xbf16, #tpu.memory_space<vmem>>, vector<1x18x15x64xbf16>
    %18 = vector.shape_cast %17 : vector<1x18x15x64xbf16> to vector<18x15x64xbf16>
    %19 = vector.shape_cast %16 : vector<18x15x64xbf16> to vector<1x18x15x64xbf16>
    tpu.vector_store %arg6[%c1_17, %c0_18, %c17_19, %c0_20], %19 {strides = array<i32>} : memref<2x18x32x64xbf16, #tpu.memory_space<vmem>>, vector<1x18x15x64xbf16>,
    %c0_21 = arith.constant 0 : index
    %c0_22 = arith.constant 0 : index
    %c0_23 = arith.constant 0 : index
    %c0_24 = arith.constant 0 : index
    %20 = vector.load %arg1[%c0_21, %c0_22, %c0_23, %c0_24] : memref<1x16x16x4xbf16, #tpu.memory_space<vmem>>, vector<1x16x16x4xbf16>
    %21 = vector.shape_cast %20 : vector<1x16x16x4xbf16> to vector<16x16x4xbf16>
    %c0_25 = arith.constant 0 : index
    %c1_26 = arith.constant 1 : index
    %c1_27 = arith.constant 1 : index
    %c0_28 = arith.constant 0 : index
    %22 = vector.load %arg6[%c0_25, %c1_26, %c1_27, %c0_28] : memref<2x18x32x64xbf16, #tpu.memory_space<vmem>>, vector<1x16x16x4xbf16>
    %23 = vector.shape_cast %22 : vector<1x16x16x4xbf16> to vector<16x16x4xbf16>
    %24 = vector.shape_cast %21 : vector<16x16x4xbf16> to vector<1x16x16x4xbf16>
    tpu.vector_store %arg6[%c0_25, %c1_26, %c1_27, %c0_28], %24 {strides = array<i32>} : memref<2x18x32x64xbf16, #tpu.memory_space<vmem>>, vector<1x16x16x4xbf16>,
    %c0_i32 = arith.constant 0 : i32
    %c8_i32 = arith.constant 8 : i32
    %25 = arith.addi %c0_i32, %c8_i32 : i32
    %c1_i32 = arith.constant 1 : i32
    scf.for %arg7 = %c0_i32 to %25 step %c1_i32  : i32 {
      %c2_i32 = arith.constant 2 : i32
      %66 = arith.muli %c2_i32, %arg7 : i32
      %c0_59 = arith.constant 0 : index
      %c0_60 = arith.constant 0 : index
      %c0_61 = arith.constant 0 : index
      %c0_62 = arith.constant 0 : index
      %67 = vector.load %arg6[%c0_59, %c0_60, %c0_61, %c0_62] : memref<2x18x32x64xbf16, #tpu.memory_space<vmem>>, vector<1x16x32x64xbf16>
      %68 = vector.shape_cast %67 : vector<1x16x32x64xbf16> to vector<16x32x64xbf16>
      %69 = vector.shape_cast %68 : vector<16x32x64xbf16> to vector<512x64xbf16>
      %c3_i32 = arith.constant 3 : i32
      %70 = arith.muli %66, %c3_i32 : i32
      %c0_i32_63 = arith.constant 0 : i32
      %71 = arith.addi %70, %c0_i32_63 : i32
      %72 = arith.index_cast %71 : i32 to index
      %c0_64 = arith.constant 0 : index
      %c0_65 = arith.constant 0 : index
      %73 = vector.load %arg2[%72, %c0_64, %c0_65] : memref<51x64x192xbf16, #tpu.memory_space<vmem>>, vector<1x64x192xbf16>
      %74 = vector.shape_cast %73 : vector<1x64x192xbf16> to vector<64x192xbf16>
      %cst_66 = arith.constant dense<0.000000e+00> : vector<512x192xf32>
      %75 = tpu.matmul %69, %74, %cst_66 {dimension_numbers = #tpu.dot_dimension_numbers<[1], [0], [0], [1], [0, 0, 1, 1], [], []>} : vector<512x64xbf16>, vector<64x192xbf16>, vector<512x192xf32> -> vector<512x192xf32>
      %c0_67 = arith.constant 0 : index
      %c1_68 = arith.constant 1 : index
      %c0_69 = arith.constant 0 : index
      %c0_70 = arith.constant 0 : index
      %76 = vector.load %arg6[%c0_67, %c1_68, %c0_69, %c0_70] : memref<2x18x32x64xbf16, #tpu.memory_space<vmem>>, vector<1x16x32x64xbf16>
      %77 = vector.shape_cast %76 : vector<1x16x32x64xbf16> to vector<16x32x64xbf16>
      %78 = vector.shape_cast %77 : vector<16x32x64xbf16> to vector<512x64xbf16>
      %c3_i32_71 = arith.constant 3 : i32
      %79 = arith.muli %66, %c3_i32_71 : i32
      %c1_i32_72 = arith.constant 1 : i32
      %80 = arith.addi %79, %c1_i32_72 : i32
      %81 = arith.index_cast %80 : i32 to index
      %c0_73 = arith.constant 0 : index
      %c0_74 = arith.constant 0 : index
      %82 = vector.load %arg2[%81, %c0_73, %c0_74] : memref<51x64x192xbf16, #tpu.memory_space<vmem>>, vector<1x64x192xbf16>
      %83 = vector.shape_cast %82 : vector<1x64x192xbf16> to vector<64x192xbf16>
      %cst_75 = arith.constant dense<0.000000e+00> : vector<512x192xf32>
      %84 = tpu.matmul %78, %83, %cst_75 {dimension_numbers = #tpu.dot_dimension_numbers<[1], [0], [0], [1], [0, 0, 1, 1], [], []>} : vector<512x64xbf16>, vector<64x192xbf16>, vector<512x192xf32> -> vector<512x192xf32>
      %85 = arith.addf %75, %84 : vector<512x192xf32>
      %c0_76 = arith.constant 0 : index
      %c2_77 = arith.constant 2 : index
      %c0_78 = arith.constant 0 : index
      %c0_79 = arith.constant 0 : index
      %86 = vector.load %arg6[%c0_76, %c2_77, %c0_78, %c0_79] : memref<2x18x32x64xbf16, #tpu.memory_space<vmem>>, vector<1x16x32x64xbf16>
      %87 = vector.shape_cast %86 : vector<1x16x32x64xbf16> to vector<16x32x64xbf16>
      %88 = vector.shape_cast %87 : vector<16x32x64xbf16> to vector<512x64xbf16>
      %c3_i32_80 = arith.constant 3 : i32
      %89 = arith.muli %66, %c3_i32_80 : i32
      %c2_i32_81 = arith.constant 2 : i32
      %90 = arith.addi %89, %c2_i32_81 : i32
      %91 = arith.index_cast %90 : i32 to index
      %c0_82 = arith.constant 0 : index
      %c0_83 = arith.constant 0 : index
      %92 = vector.load %arg2[%91, %c0_82, %c0_83] : memref<51x64x192xbf16, #tpu.memory_space<vmem>>, vector<1x64x192xbf16>
      %93 = vector.shape_cast %92 : vector<1x64x192xbf16> to vector<64x192xbf16>
      %cst_84 = arith.constant dense<0.000000e+00> : vector<512x192xf32>
      %94 = tpu.matmul %88, %93, %cst_84 {dimension_numbers = #tpu.dot_dimension_numbers<[1], [0], [0], [1], [0, 0, 1, 1], [], []>} : vector<512x64xbf16>, vector<64x192xbf16>, vector<512x192xf32> -> vector<512x192xf32>
      %95 = arith.addf %85, %94 : vector<512x192xf32>
      %96 = vector.shape_cast %95 : vector<512x192xf32> to vector<16x32x192xf32>
      %97 = vector.extract_strided_slice %96 {offsets = [0, 0, 0], sizes = [16, 16, 64], strides = [1, 1, 1]} : vector<16x32x192xf32> to vector<16x16x64xf32>
      %98 = vector.extract_strided_slice %96 {offsets = [0, 1, 64], sizes = [16, 16, 64], strides = [1, 1, 1]} : vector<16x32x192xf32> to vector<16x16x64xf32>
      %99 = arith.addf %97, %98 : vector<16x16x64xf32>
      %100 = vector.extract_strided_slice %96 {offsets = [0, 2, 128], sizes = [16, 16, 64], strides = [1, 1, 1]} : vector<16x32x192xf32> to vector<16x16x64xf32>
      %101 = arith.addf %99, %100 : vector<16x16x64xf32>
      %102 = arith.index_cast %66 : i32 to index
      %c0_85 = arith.constant 0 : index
      %c0_86 = arith.constant 0 : index
      %103 = vector.load %arg3[%102, %c0_85, %c0_86] : memref<17x1x64xf32, #tpu.memory_space<vmem>>, vector<1x1x64xf32>
      %104 = vector.shape_cast %103 : vector<1x1x64xf32> to vector<1x64xf32>
      %105 = vector.shape_cast %104 : vector<1x64xf32> to vector<1x1x64xf32>
      %106 = vector.broadcast %105 : vector<1x1x64xf32> to vector<16x16x64xf32>
      %107 = arith.mulf %101, %106 : vector<16x16x64xf32>
      %108 = arith.index_cast %66 : i32 to index
      %c0_87 = arith.constant 0 : index
      %c0_88 = arith.constant 0 : index
      %109 = vector.load %arg4[%108, %c0_87, %c0_88] : memref<17x1x64xf32, #tpu.memory_space<vmem>>, vector<1x1x64xf32>
      %110 = vector.shape_cast %109 : vector<1x1x64xf32> to vector<1x64xf32>
      %111 = vector.shape_cast %110 : vector<1x64xf32> to vector<1x1x64xf32>
      %112 = vector.broadcast %111 : vector<1x1x64xf32> to vector<16x16x64xf32>
      %113 = arith.addf %107, %112 : vector<16x16x64xf32>
      %cst_89 = arith.constant 0.000000e+00 : f32
      %114 = vector.broadcast %cst_89 : f32 to vector<16x16x64xf32>
      %115 = arith.maximumf %113, %114 : vector<16x16x64xf32>
      %116 = arith.truncf %115 : vector<16x16x64xf32> to vector<16x16x64xbf16>
      %c1_90 = arith.constant 1 : index
      %c1_91 = arith.constant 1 : index
      %c1_92 = arith.constant 1 : index
      %c0_93 = arith.constant 0 : index
      %117 = vector.load %arg6[%c1_90, %c1_91, %c1_92, %c0_93] : memref<2x18x32x64xbf16, #tpu.memory_space<vmem>>, vector<1x16x16x64xbf16>
      %118 = vector.shape_cast %117 : vector<1x16x16x64xbf16> to vector<16x16x64xbf16>
      %119 = vector.shape_cast %116 : vector<16x16x64xbf16> to vector<1x16x16x64xbf16>
      tpu.vector_store %arg6[%c1_90, %c1_91, %c1_92, %c0_93], %119 {strides = array<i32>} : memref<2x18x32x64xbf16, #tpu.memory_space<vmem>>, vector<1x16x16x64xbf16>,
      %c1_i32_94 = arith.constant 1 : i32
      %120 = arith.addi %66, %c1_i32_94 : i32
      %c1_95 = arith.constant 1 : index
      %c0_96 = arith.constant 0 : index
      %c0_97 = arith.constant 0 : index
      %c0_98 = arith.constant 0 : index
      %121 = vector.load %arg6[%c1_95, %c0_96, %c0_97, %c0_98] : memref<2x18x32x64xbf16, #tpu.memory_space<vmem>>, vector<1x16x32x64xbf16>
      %122 = vector.shape_cast %121 : vector<1x16x32x64xbf16> to vector<16x32x64xbf16>
      %123 = vector.shape_cast %122 : vector<16x32x64xbf16> to vector<512x64xbf16>
      %c3_i32_99 = arith.constant 3 : i32
      %124 = arith.muli %120, %c3_i32_99 : i32
      %c0_i32_100 = arith.constant 0 : i32
      %125 = arith.addi %124, %c0_i32_100 : i32
      %126 = arith.index_cast %125 : i32 to index
      %c0_101 = arith.constant 0 : index
      %c0_102 = arith.constant 0 : index
      %127 = vector.load %arg2[%126, %c0_101, %c0_102] : memref<51x64x192xbf16, #tpu.memory_space<vmem>>, vector<1x64x192xbf16>
      %128 = vector.shape_cast %127 : vector<1x64x192xbf16> to vector<64x192xbf16>
      %cst_103 = arith.constant dense<0.000000e+00> : vector<512x192xf32>
      %129 = tpu.matmul %123, %128, %cst_103 {dimension_numbers = #tpu.dot_dimension_numbers<[1], [0], [0], [1], [0, 0, 1, 1], [], []>} : vector<512x64xbf16>, vector<64x192xbf16>, vector<512x192xf32> -> vector<512x192xf32>
      %c1_104 = arith.constant 1 : index
      %c1_105 = arith.constant 1 : index
      %c0_106 = arith.constant 0 : index
      %c0_107 = arith.constant 0 : index
      %130 = vector.load %arg6[%c1_104, %c1_105, %c0_106, %c0_107] : memref<2x18x32x64xbf16, #tpu.memory_space<vmem>>, vector<1x16x32x64xbf16>
      %131 = vector.shape_cast %130 : vector<1x16x32x64xbf16> to vector<16x32x64xbf16>
      %132 = vector.shape_cast %131 : vector<16x32x64xbf16> to vector<512x64xbf16>
      %c3_i32_108 = arith.constant 3 : i32
      %133 = arith.muli %120, %c3_i32_108 : i32
      %c1_i32_109 = arith.constant 1 : i32
      %134 = arith.addi %133, %c1_i32_109 : i32
      %135 = arith.index_cast %134 : i32 to index
      %c0_110 = arith.constant 0 : index
      %c0_111 = arith.constant 0 : index
      %136 = vector.load %arg2[%135, %c0_110, %c0_111] : memref<51x64x192xbf16, #tpu.memory_space<vmem>>, vector<1x64x192xbf16>
      %137 = vector.shape_cast %136 : vector<1x64x192xbf16> to vector<64x192xbf16>
      %cst_112 = arith.constant dense<0.000000e+00> : vector<512x192xf32>
      %138 = tpu.matmul %132, %137, %cst_112 {dimension_numbers = #tpu.dot_dimension_numbers<[1], [0], [0], [1], [0, 0, 1, 1], [], []>} : vector<512x64xbf16>, vector<64x192xbf16>, vector<512x192xf32> -> vector<512x192xf32>
      %139 = arith.addf %129, %138 : vector<512x192xf32>
      %c1_113 = arith.constant 1 : index
      %c2_114 = arith.constant 2 : index
      %c0_115 = arith.constant 0 : index
      %c0_116 = arith.constant 0 : index
      %140 = vector.load %arg6[%c1_113, %c2_114, %c0_115, %c0_116] : memref<2x18x32x64xbf16, #tpu.memory_space<vmem>>, vector<1x16x32x64xbf16>
      %141 = vector.shape_cast %140 : vector<1x16x32x64xbf16> to vector<16x32x64xbf16>
      %142 = vector.shape_cast %141 : vector<16x32x64xbf16> to vector<512x64xbf16>
      %c3_i32_117 = arith.constant 3 : i32
      %143 = arith.muli %120, %c3_i32_117 : i32
      %c2_i32_118 = arith.constant 2 : i32
      %144 = arith.addi %143, %c2_i32_118 : i32
      %145 = arith.index_cast %144 : i32 to index
      %c0_119 = arith.constant 0 : index
      %c0_120 = arith.constant 0 : index
      %146 = vector.load %arg2[%145, %c0_119, %c0_120] : memref<51x64x192xbf16, #tpu.memory_space<vmem>>, vector<1x64x192xbf16>
      %147 = vector.shape_cast %146 : vector<1x64x192xbf16> to vector<64x192xbf16>
      %cst_121 = arith.constant dense<0.000000e+00> : vector<512x192xf32>
      %148 = tpu.matmul %142, %147, %cst_121 {dimension_numbers = #tpu.dot_dimension_numbers<[1], [0], [0], [1], [0, 0, 1, 1], [], []>} : vector<512x64xbf16>, vector<64x192xbf16>, vector<512x192xf32> -> vector<512x192xf32>
      %149 = arith.addf %139, %148 : vector<512x192xf32>
      %150 = vector.shape_cast %149 : vector<512x192xf32> to vector<16x32x192xf32>
      %151 = vector.extract_strided_slice %150 {offsets = [0, 0, 0], sizes = [16, 16, 64], strides = [1, 1, 1]} : vector<16x32x192xf32> to vector<16x16x64xf32>
      %152 = vector.extract_strided_slice %150 {offsets = [0, 1, 64], sizes = [16, 16, 64], strides = [1, 1, 1]} : vector<16x32x192xf32> to vector<16x16x64xf32>
      %153 = arith.addf %151, %152 : vector<16x16x64xf32>
      %154 = vector.extract_strided_slice %150 {offsets = [0, 2, 128], sizes = [16, 16, 64], strides = [1, 1, 1]} : vector<16x32x192xf32> to vector<16x16x64xf32>
      %155 = arith.addf %153, %154 : vector<16x16x64xf32>
      %156 = arith.index_cast %120 : i32 to index
      %c0_122 = arith.constant 0 : index
      %c0_123 = arith.constant 0 : index
      %157 = vector.load %arg3[%156, %c0_122, %c0_123] : memref<17x1x64xf32, #tpu.memory_space<vmem>>, vector<1x1x64xf32>
      %158 = vector.shape_cast %157 : vector<1x1x64xf32> to vector<1x64xf32>
      %159 = vector.shape_cast %158 : vector<1x64xf32> to vector<1x1x64xf32>
      %160 = vector.broadcast %159 : vector<1x1x64xf32> to vector<16x16x64xf32>
      %161 = arith.mulf %155, %160 : vector<16x16x64xf32>
      %162 = arith.index_cast %120 : i32 to index
      %c0_124 = arith.constant 0 : index
      %c0_125 = arith.constant 0 : index
      %163 = vector.load %arg4[%162, %c0_124, %c0_125] : memref<17x1x64xf32, #tpu.memory_space<vmem>>, vector<1x1x64xf32>
      %164 = vector.shape_cast %163 : vector<1x1x64xf32> to vector<1x64xf32>
      %165 = vector.shape_cast %164 : vector<1x64xf32> to vector<1x1x64xf32>
      %166 = vector.broadcast %165 : vector<1x1x64xf32> to vector<16x16x64xf32>
      %167 = arith.addf %161, %166 : vector<16x16x64xf32>
      %cst_126 = arith.constant 0.000000e+00 : f32
      %168 = vector.broadcast %cst_126 : f32 to vector<16x16x64xf32>
      %169 = arith.maximumf %167, %168 : vector<16x16x64xf32>
      %170 = arith.truncf %169 : vector<16x16x64xf32> to vector<16x16x64xbf16>
      %c0_127 = arith.constant 0 : index
      %c1_128 = arith.constant 1 : index
      %c1_129 = arith.constant 1 : index
      %c0_130 = arith.constant 0 : index
      %171 = vector.load %arg6[%c0_127, %c1_128, %c1_129, %c0_130] : memref<2x18x32x64xbf16, #tpu.memory_space<vmem>>, vector<1x16x16x64xbf16>
      %172 = vector.shape_cast %171 : vector<1x16x16x64xbf16> to vector<16x16x64xbf16>
      %173 = vector.shape_cast %170 : vector<16x16x64xbf16> to vector<1x16x16x64xbf16>
      tpu.vector_store %arg6[%c0_127, %c1_128, %c1_129, %c0_130], %173 {strides = array<i32>} : memref<2x18x32x64xbf16, #tpu.memory_space<vmem>>, vector<1x16x16x64xbf16>,
    }
    %c8_i32_29 = arith.constant 8 : i32
    %c0_30 = arith.constant 0 : index
    %c0_31 = arith.constant 0 : index
    %c0_32 = arith.constant 0 : index
    %c0_33 = arith.constant 0 : index
    %26 = vector.load %arg6[%c0_30, %c0_31, %c0_32, %c0_33] : memref<2x18x32x64xbf16, #tpu.memory_space<vmem>>, vector<1x16x32x64xbf16>
    %27 = vector.shape_cast %26 : vector<1x16x32x64xbf16> to vector<16x32x64xbf16>
    %28 = vector.shape_cast %27 : vector<16x32x64xbf16> to vector<512x64xbf16>
    %c48 = arith.constant 48 : index
    %c0_34 = arith.constant 0 : index
    %c0_35 = arith.constant 0 : index
    %29 = vector.load %arg2[%c48, %c0_34, %c0_35] : memref<51x64x192xbf16, #tpu.memory_space<vmem>>, vector<1x64x192xbf16>
    %30 = vector.shape_cast %29 : vector<1x64x192xbf16> to vector<64x192xbf16>
    %cst_36 = arith.constant dense<0.000000e+00> : vector<512x192xf32>
    %31 = tpu.matmul %28, %30, %cst_36 {dimension_numbers = #tpu.dot_dimension_numbers<[1], [0], [0], [1], [0, 0, 1, 1], [], []>} : vector<512x64xbf16>, vector<64x192xbf16>, vector<512x192xf32> -> vector<512x192xf32>
    %c0_37 = arith.constant 0 : index
    %c1_38 = arith.constant 1 : index
    %c0_39 = arith.constant 0 : index
    %c0_40 = arith.constant 0 : index
    %32 = vector.load %arg6[%c0_37, %c1_38, %c0_39, %c0_40] : memref<2x18x32x64xbf16, #tpu.memory_space<vmem>>, vector<1x16x32x64xbf16>
    %33 = vector.shape_cast %32 : vector<1x16x32x64xbf16> to vector<16x32x64xbf16>
    %34 = vector.shape_cast %33 : vector<16x32x64xbf16> to vector<512x64xbf16>
    %c49 = arith.constant 49 : index
    %c0_41 = arith.constant 0 : index
    %c0_42 = arith.constant 0 : index
    %35 = vector.load %arg2[%c49, %c0_41, %c0_42] : memref<51x64x192xbf16, #tpu.memory_space<vmem>>, vector<1x64x192xbf16>
    %36 = vector.shape_cast %35 : vector<1x64x192xbf16> to vector<64x192xbf16>
    %cst_43 = arith.constant dense<0.000000e+00> : vector<512x192xf32>
    %37 = tpu.matmul %34, %36, %cst_43 {dimension_numbers = #tpu.dot_dimension_numbers<[1], [0], [0], [1], [0, 0, 1, 1], [], []>} : vector<512x64xbf16>, vector<64x192xbf16>, vector<512x192xf32> -> vector<512x192xf32>
    %38 = arith.addf %31, %37 : vector<512x192xf32>
    %c0_44 = arith.constant 0 : index
    %c2 = arith.constant 2 : index
    %c0_45 = arith.constant 0 : index
    %c0_46 = arith.constant 0 : index
    %39 = vector.load %arg6[%c0_44, %c2, %c0_45, %c0_46] : memref<2x18x32x64xbf16, #tpu.memory_space<vmem>>, vector<1x16x32x64xbf16>
    %40 = vector.shape_cast %39 : vector<1x16x32x64xbf16> to vector<16x32x64xbf16>
    %41 = vector.shape_cast %40 : vector<16x32x64xbf16> to vector<512x64xbf16>
    %c50 = arith.constant 50 : index
    %c0_47 = arith.constant 0 : index
    %c0_48 = arith.constant 0 : index
    %42 = vector.load %arg2[%c50, %c0_47, %c0_48] : memref<51x64x192xbf16, #tpu.memory_space<vmem>>, vector<1x64x192xbf16>
    %43 = vector.shape_cast %42 : vector<1x64x192xbf16> to vector<64x192xbf16>
    %cst_49 = arith.constant dense<0.000000e+00> : vector<512x192xf32>
    %44 = tpu.matmul %41, %43, %cst_49 {dimension_numbers = #tpu.dot_dimension_numbers<[1], [0], [0], [1], [0, 0, 1, 1], [], []>} : vector<512x64xbf16>, vector<64x192xbf16>, vector<512x192xf32> -> vector<512x192xf32>
    %45 = arith.addf %38, %44 : vector<512x192xf32>
    %46 = vector.shape_cast %45 : vector<512x192xf32> to vector<16x32x192xf32>
    %47 = vector.extract_strided_slice %46 {offsets = [0, 0, 0], sizes = [16, 16, 64], strides = [1, 1, 1]} : vector<16x32x192xf32> to vector<16x16x64xf32>
    %48 = vector.extract_strided_slice %46 {offsets = [0, 1, 64], sizes = [16, 16, 64], strides = [1, 1, 1]} : vector<16x32x192xf32> to vector<16x16x64xf32>
    %49 = arith.addf %47, %48 : vector<16x16x64xf32>
    %50 = vector.extract_strided_slice %46 {offsets = [0, 2, 128], sizes = [16, 16, 64], strides = [1, 1, 1]} : vector<16x32x192xf32> to vector<16x16x64xf32>
    %51 = arith.addf %49, %50 : vector<16x16x64xf32>
    %c16 = arith.constant 16 : index
    %c0_50 = arith.constant 0 : index
    %c0_51 = arith.constant 0 : index
    %52 = vector.load %arg3[%c16, %c0_50, %c0_51] : memref<17x1x64xf32, #tpu.memory_space<vmem>>, vector<1x1x64xf32>
    %53 = vector.shape_cast %52 : vector<1x1x64xf32> to vector<1x64xf32>
    %54 = vector.shape_cast %53 : vector<1x64xf32> to vector<1x1x64xf32>
    %55 = vector.broadcast %54 : vector<1x1x64xf32> to vector<16x16x64xf32>
    %56 = arith.mulf %51, %55 : vector<16x16x64xf32>
    %c16_52 = arith.constant 16 : index
    %c0_53 = arith.constant 0 : index
    %c0_54 = arith.constant 0 : index
    %57 = vector.load %arg4[%c16_52, %c0_53, %c0_54] : memref<17x1x64xf32, #tpu.memory_space<vmem>>, vector<1x1x64xf32>
    %58 = vector.shape_cast %57 : vector<1x1x64xf32> to vector<1x64xf32>
    %59 = vector.shape_cast %58 : vector<1x64xf32> to vector<1x1x64xf32>
    %60 = vector.broadcast %59 : vector<1x1x64xf32> to vector<16x16x64xf32>
    %61 = arith.addf %56, %60 : vector<16x16x64xf32>
    %62 = vector.extract_strided_slice %61 {offsets = [0, 0, 0], sizes = [16, 16, 1], strides = [1, 1, 1]} : vector<16x16x64xf32> to vector<16x16x1xf32>
    %c0_55 = arith.constant 0 : index
    %c0_56 = arith.constant 0 : index
    %c0_57 = arith.constant 0 : index
    %c0_58 = arith.constant 0 : index
    %63 = vector.load %arg5[%c0_55, %c0_56, %c0_57, %c0_58] : memref<1x16x16x1xf32, #tpu.memory_space<vmem>>, vector<1x16x16x1xf32>
    %64 = vector.shape_cast %63 : vector<1x16x16x1xf32> to vector<16x16x1xf32>
    %65 = vector.shape_cast %62 : vector<16x16x1xf32> to vector<1x16x16x1xf32>
    tpu.vector_store %arg5[%c0_55, %c0_56, %c0_57, %c0_58], %65 {strides = array<i32>} : memref<1x16x16x1xf32, #tpu.memory_space<vmem>>, vector<1x16x16x1xf32>,
    return
  }
  func.func @transform_0(%arg0: i32) -> (i32, i32, i32, i32) {
    %c0_i32 = arith.constant 0 : i32
    %c0_i32_0 = arith.constant 0 : i32
    %c0_i32_1 = arith.constant 0 : i32
    %c0_i32_2 = arith.constant 0 : i32
    return %arg0, %c0_i32, %c0_i32_0, %c0_i32_1 : i32, i32, i32, i32
  }
  func.func @transform_1(%arg0: i32) -> (i32, i32, i32) {
    %c0_i32 = arith.constant 0 : i32
    %c0_i32_0 = arith.constant 0 : i32
    %c0_i32_1 = arith.constant 0 : i32
    %c0_i32_2 = arith.constant 0 : i32
    return %c0_i32, %c0_i32_0, %c0_i32_1 : i32, i32, i32
  }
  func.func @transform_2(%arg0: i32) -> (i32, i32, i32) {
    %c0_i32 = arith.constant 0 : i32
    %c0_i32_0 = arith.constant 0 : i32
    %c0_i32_1 = arith.constant 0 : i32
    %c0_i32_2 = arith.constant 0 : i32
    return %c0_i32, %c0_i32_0, %c0_i32_1 : i32, i32, i32
  }
  func.func @transform_3(%arg0: i32) -> (i32, i32, i32) {
    %c0_i32 = arith.constant 0 : i32
    %c0_i32_0 = arith.constant 0 : i32
    %c0_i32_1 = arith.constant 0 : i32
    %c0_i32_2 = arith.constant 0 : i32
    return %c0_i32, %c0_i32_0, %c0_i32_1 : i32, i32, i32
  }
  func.func @transform_4(%arg0: i32) -> (i32, i32, i32, i32) {
    %c0_i32 = arith.constant 0 : i32
    %c0_i32_0 = arith.constant 0 : i32
    %c0_i32_1 = arith.constant 0 : i32
    %c0_i32_2 = arith.constant 0 : i32
    return %arg0, %c0_i32, %c0_i32_0, %c0_i32_1 : i32, i32, i32, i32
  }
}

</mosaic_0001>

<llo_original>
// kernel: _lambda_.1
$region0: #{_lambda_.1}
  #allocation0 [shape = 'u32[]', space=smem, size = 0x4, offset = 0x4, fixed_abs, tag = 'smem constant byte address 0x4 - core index']
  #allocation1 [shape = 'u32[144,128]{1,0:T(1,128)}', space=vmem, size = 0x12000, scoped, tag = 'internal scratch']
  #allocation2 [shape = 'bf16[2,18,32,64]{3,2,1,0:T(16,128)(2,1)}', space=vmem, size = 0x48000, scoped, tag = 'scratch operand']
  %s0 = inlined_call_operand.vmem [shape: bf16[2,16,16,4], index: 0, kind: input, shape index: {}]
  %s1 = inlined_call_operand.vmem [shape: bf16[51,64,192], index: 1, kind: input, shape index: {}]
  %s2 = inlined_call_operand.vmem [shape: f32[17,1,64], index: 2, kind: input, shape index: {}]
  %s3 = inlined_call_operand.vmem [shape: f32[17,1,64], index: 3, kind: input, shape index: {}]
  %s4 = inlined_call_operand.vmem [shape: f32[2,16,16,1], index: 4, kind: output, shape index: {}]
  %s5 = sld [smem:[#allocation0]]
  $region56: #{_lambda_.1} parent=0
    _
  %s7 = ssub.s32 1, %s5
  %s8 = scalar_select 0, %s7, %s5
  loop: start=0, step=1, limit=4
  $region2: #{_lambda_.1} parent=0 // loop_pre_header
    _
  $region3: #{_lambda_.1} parent=0 // loop_header
    %s10 = sphi 0, %s14
    %p11 = scmp.ge.s32.totalorder %s10, 4
    %s20 = sphi 0, %s22
    %s23 = sphi 0, %s20
    %s24 = sphi 0, %s23
    %s40 = sphi 0, %s24
    %s44 = sphi 0, %s44
    %s46 = sphi 0, %s44
    %s47 = sphi 0, %s46
    %s61 = sphi 0, %s47
    %s65 = sphi 0, %s65
    %s67 = sphi 0, %s65
    %s68 = sphi 0, %s67
    %s82 = sphi 0, %s68
    %s86 = sphi 0, %s86
    %s88 = sphi 0, %s86
    %s89 = sphi 0, %s88
    %s103 = sphi 0, %s89
    %s109 = sphi 0, %s111
    %s112 = sphi 0, %s109
    %s113 = sphi 0, %s112
    %s129 = sphi 0, %s113
  $region4: #{_lambda_.1} parent=0 // loop_header_branch
    %13 = sbr.rel (%p11) target = $region8
  $region5: #{_lambda_.1} parent=0 // loop_body
    %s15 = ssub.s32 %s10, 1
    %s16 = ssub.s32 %s10, 2
    %s17 = sadd.s32 %s10, 1
    %s18 = ssub.s32 %s10, %s17
    %p19 = scmp.eq.s32.totalorder %s18, 0
    %s21 = sadd.s32 %s20, 1
    %s22 = scalar_select %p19, %s20, %s21
    %p25 = pneg %p19
    %p26 = scmp.eq.s32.totalorder %s10, 1
    %p27 = por %p25, %p26
    %p28 = scmp.ne.s32.totalorder %s20, %s23
    %p29 = scmp.eq.s32.totalorder %s10, 0
    %p30 = por %p28, %p29
    %p31 = scmp.ne.s32.totalorder %s20, %s23
    %p32 = scmp.eq.s32.totalorder %s15, 1
    %p33 = por %p31, %p32
    %p34 = scmp.ne.s32.totalorder %s23, %s24
    %p35 = scmp.eq.s32.totalorder %s15, 0
    %p36 = por %p34, %p35
    %p37 = scmp.ne.s32.totalorder %s23, %s24
    %p38 = scmp.eq.s32.totalorder %s16, 1
    %p39 = por %p37, %p38
    %p41 = scmp.ne.s32.totalorder %s24, %s40
    %p42 = scmp.eq.s32.totalorder %s16, 0
    %p43 = por %p41, %p42
    %s45 = sadd.s32 %s44, 1
    %p48 = scmp.eq.s32.totalorder %s10, 1
    %p49 = scmp.ne.s32.totalorder %s44, %s46
    %p50 = scmp.eq.s32.totalorder %s10, 0
    %p51 = por %p49, %p50
    %p52 = scmp.ne.s32.totalorder %s44, %s46
    %p53 = scmp.eq.s32.totalorder %s15, 1
    %p54 = por %p52, %p53
    %p55 = scmp.ne.s32.totalorder %s46, %s47
    %p56 = scmp.eq.s32.totalorder %s15, 0
    %p57 = por %p55, %p56
    %p58 = scmp.ne.s32.totalorder %s46, %s47
    %p59 = scmp.eq.s32.totalorder %s16, 1
    %p60 = por %p58, %p59
    %p62 = scmp.ne.s32.totalorder %s47, %s61
    %p63 = scmp.eq.s32.totalorder %s16, 0
    %p64 = por %p62, %p63
    %s66 = sadd.s32 %s65, 1
    %p69 = scmp.eq.s32.totalorder %s10, 1
    %p70 = scmp.ne.s32.totalorder %s65, %s67
    %p71 = scmp.eq.s32.totalorder %s10, 0
    %p72 = por %p70, %p71
    %p73 = scmp.ne.s32.totalorder %s65, %s67
    %p74 = scmp.eq.s32.totalorder %s15, 1
    %p75 = por %p73, %p74
    %p76 = scmp.ne.s32.totalorder %s67, %s68
    %p77 = scmp.eq.s32.totalorder %s15, 0
    %p78 = por %p76, %p77
    %p79 = scmp.ne.s32.totalorder %s67, %s68
    %p80 = scmp.eq.s32.totalorder %s16, 1
    %p81 = por %p79, %p80
    %p83 = scmp.ne.s32.totalorder %s68, %s82
    %p84 = scmp.eq.s32.totalorder %s16, 0
    %p85 = por %p83, %p84
    %s87 = sadd.s32 %s86, 1
    %p90 = scmp.eq.s32.totalorder %s10, 1
    %p91 = scmp.ne.s32.totalorder %s86, %s88
    %p92 = scmp.eq.s32.totalorder %s10, 0
    %p93 = por %p91, %p92
    %p94 = scmp.ne.s32.totalorder %s86, %s88
    %p95 = scmp.eq.s32.totalorder %s15, 1
    %p96 = por %p94, %p95
    %p97 = scmp.ne.s32.totalorder %s88, %s89
    %p98 = scmp.eq.s32.totalorder %s15, 0
    %p99 = por %p97, %p98
    %p100 = scmp.ne.s32.totalorder %s88, %s89
    %p101 = scmp.eq.s32.totalorder %s16, 1
    %p102 = por %p100, %p101
    %p104 = scmp.ne.s32.totalorder %s89, %s103
    %p105 = scmp.eq.s32.totalorder %s16, 0
    %p106 = por %p104, %p105
    %s107 = ssub.s32 %s10, %s17
    %p108 = scmp.eq.s32.totalorder %s107, 0
    %s110 = sadd.s32 %s109, 1
    %s111 = scalar_select %p108, %s109, %s110
    %p114 = pneg %p108
    %p115 = scmp.eq.s32.totalorder %s10, 1
    %p116 = por %p114, %p115
    %p117 = scmp.ne.s32.totalorder %s109, %s112
    %p118 = scmp.eq.s32.totalorder %s10, 0
    %p119 = por %p117, %p118
    %p120 = scmp.ne.s32.totalorder %s109, %s112
    %p121 = scmp.eq.s32.totalorder %s15, 1
    %p122 = por %p120, %p121
    %p123 = scmp.ne.s32.totalorder %s112, %s113
    %p124 = scmp.eq.s32.totalorder %s15, 0
    %p125 = por %p123, %p124
    %p126 = scmp.ne.s32.totalorder %s112, %s113
    %p127 = scmp.eq.s32.totalorder %s16, 1
    %p128 = por %p126, %p127
    %p130 = scmp.ne.s32.totalorder %s113, %s129
    %p131 = scmp.eq.s32.totalorder %s16, 0
    %p132 = por %p130, %p131
    %p133 = scmp.le.s32.totalorder 1, %s10
    %p134 = scmp.lt.s32.totalorder %s10, 3
    %p135 = pnand %p133, %p134
    %p136 = pneg %p135
    // Predicated region
    $region9: #{_lambda_.1} parent=5 // pred_check
      _
    $region10: #{_lambda_.1} parent=5 // pred_check_branch
      %138 = sbr.rel (%p135) target = $region12
    $region11: #{_lambda_.1} parent=5 // pred_region
      %s139 = ssub.s32 %s10, 1
      // Predicated region
      $region13: #{_lambda_.1} parent=11 // pred_check
        %p140 = pneg %p57
      $region14: #{_lambda_.1} parent=11 // pred_check_branch
        %142 = sbr.rel (%p140) target = $region16
      $region15: #{_lambda_.1} parent=11 // pred_region
        _
      $region16: #{_lambda_.1} parent=11 // pred_fallthru
        _
      // Predicated region
      $region17: #{_lambda_.1} parent=11 // pred_check
        %p143 = pneg %p78
      $region18: #{_lambda_.1} parent=11 // pred_check_branch
        %145 = sbr.rel (%p143) target = $region20
      $region19: #{_lambda_.1} parent=11 // pred_region
        _
      $region20: #{_lambda_.1} parent=11 // pred_fallthru
        _
      // Predicated region
      $region21: #{_lambda_.1} parent=11 // pred_check
        %p146 = pneg %p99
      $region22: #{_lambda_.1} parent=11 // pred_check_branch
        %148 = sbr.rel (%p146) target = $region24
      $region23: #{_lambda_.1} parent=11 // pred_region
        _
      $region24: #{_lambda_.1} parent=11 // pred_fallthru
        _
    $region12: #{_lambda_.1} parent=5 // pred_fallthru
      _
    %p149 = scmp.lt.s32.totalorder %s10, 2
    // Predicated region
    $region25: #{_lambda_.1} parent=5 // pred_check
      %p150 = pneg %p149
    $region26: #{_lambda_.1} parent=5 // pred_check_branch
      %152 = sbr.rel (%p150) target = $region28
    $region27: #{_lambda_.1} parent=5 // pred_region
      // Predicated region
      $region29: #{_lambda_.1} parent=27 // pred_check
        %p153 = pneg %p30
      $region30: #{_lambda_.1} parent=27 // pred_check_branch
        %155 = sbr.rel (%p153) target = $region32
      $region31: #{_lambda_.1} parent=27 // pred_region
        %p156 = scmp.lt.s32.totalorder %s10, 1
        %s157 = scalar_select %p156, %s10, 1
        %s158 = smul.addr %s157, 32
        %s159 = smul.addr %s158, 4
        %s160 = scalar_lea.vmem %s0, %s159
      $region32: #{_lambda_.1} parent=27 // pred_fallthru
        _
    $region28: #{_lambda_.1} parent=5 // pred_fallthru
      _
    %p161 = scmp.le.s32.totalorder 1, %s10
    %p162 = scmp.lt.s32.totalorder %s10, 3
    %p163 = pnand %p161, %p162
    %p164 = pneg %p163
    // Predicated region
    $region33: #{_lambda_.1} parent=5 // pred_check
      _
    $region34: #{_lambda_.1} parent=5 // pred_check_branch
      %166 = sbr.rel (%p163) target = $region36
    $region35: #{_lambda_.1} parent=5 // pred_region
      %s167 = ssub.s32 %s10, 1
      %p168 = scmp.lt.s32.totalorder %s15, 1
      %s169 = scalar_select %p168, %s15, 1
      %s170 = smul.addr %s169, 32
      %s171 = smul.addr %s170, 4
      %s172 = scalar_lea.vmem %s0, %s171
      %p173 = pneg %p36
      %p174 = pneg %p33
      %p175 = pneg %p57
      %p176 = pneg %p54
      %p177 = pneg %p78
      %p178 = pneg %p75
      %p179 = pneg %p99
      %p180 = pneg %p96
      %p181 = pneg %p125
      %p182 = pneg %p122
      %p183 = scmp.lt.s32.totalorder %s15, 1
      %s184 = scalar_select %p183, %s15, 1
      %s185 = smul.addr %s184, 32
      %s186 = smul.addr %s185, 8
      %s187 = scalar_lea.vmem %s4, %s186
      %p188 = scmp.lt.s32.totalorder %s15, 1
      %s189 = scalar_select %p188, %s15, 1
      %s190 = smul.addr %s189, 32
      %s191 = smul.addr %s190, 4
      %s192 = scalar_lea.vmem %s0, %s191
      %p193 = scmp.lt.s32.totalorder %s15, 1
      %s194 = scalar_select %p193, %s15, 1
      %s195 = smul.addr %s194, 32
      %s196 = smul.addr %s195, 8
      %s197 = scalar_lea.vmem %s4, %s196
      %vm199 = vcmask 523264
      %200 = vst.msk [vmem:[#allocation2] sm:$0xff] %vm199, 0
      %201 = vst.msk [vmem:[#allocation2 + $0x8] sm:$0xff] %vm199, 0
      %202 = vst.msk [vmem:[#allocation2 + $0x10] sm:$0xff] %vm199, 0
      %203 = vst.msk [vmem:[#allocation2 + $0x18] sm:$0xff] %vm199, 0
      %204 = vst.msk [vmem:[#allocation2 + $0x20] sm:$0xff] %vm199, 0
      %205 = vst.msk [vmem:[#allocation2 + $0x28] sm:$0xff] %vm199, 0
      %206 = vst.msk [vmem:[#allocation2 + $0x30] sm:$0xff] %vm199, 0
      %207 = vst.msk [vmem:[#allocation2 + $0x38] sm:$0xff] %vm199, 0
      %208 = vst.msk [vmem:[#allocation2 + $0x40] sm:$0xff] %vm199, 0
      %209 = vst.msk [vmem:[#allocation2 + $0x48] sm:$0xff] %vm199, 0
      %210 = vst.msk [vmem:[#allocation2 + $0x50] sm:$0xff] %vm199, 0
      %211 = vst.msk [vmem:[#allocation2 + $0x58] sm:$0xff] %vm199, 0
      %212 = vst.msk [vmem:[#allocation2 + $0x60] sm:$0xff] %vm199, 0
      %213 = vst.msk [vmem:[#allocation2 + $0x68] sm:$0xff] %vm199, 0
      %214 = vst.msk [vmem:[#allocation2 + $0x70] sm:$0xff] %vm199, 0
      %215 = vst.msk [vmem:[#allocation2 + $0x78] sm:$0xff] %vm199, 0
      %216 = vst.msk [vmem:[#allocation2 + $0x80] sm:$0xff] %vm199, 0
      %217 = vst.msk [vmem:[#allocation2 + $0x88] sm:$0xff] %vm199, 0
      %218 = vst.msk [vmem:[#allocation2 + $0x90] sm:$0xff] %vm199, 0
      %219 = vst.msk [vmem:[#allocation2 + $0x98] sm:$0xff] %vm199, 0
      %220 = vst.msk [vmem:[#allocation2 + $0xa0] sm:$0xff] %vm199, 0
      %221 = vst.msk [vmem:[#allocation2 + $0xa8] sm:$0xff] %vm199, 0
      %222 = vst.msk [vmem:[#allocation2 + $0xb0] sm:$0xff] %vm199, 0
      %223 = vst.msk [vmem:[#allocation2 + $0xb8] sm:$0xff] %vm199, 0
      %224 = vst.msk [vmem:[#allocation2 + $0xc0] sm:$0xff] %vm199, 0
      %225 = vst.msk [vmem:[#allocation2 + $0xc8] sm:$0xff] %vm199, 0
      %226 = vst.msk [vmem:[#allocation2 + $0xd0] sm:$0xff] %vm199, 0
      %227 = vst.msk [vmem:[#allocation2 + $0xd8] sm:$0xff] %vm199, 0
      %228 = vst.msk [vmem:[#allocation2 + $0xe0] sm:$0xff] %vm199, 0
      %229 = vst.msk [vmem:[#allocation2 + $0xe8] sm:$0xff] %vm199, 0
      %230 = vst.msk [vmem:[#allocation2 + $0xf0] sm:$0xff] %vm199, 0
      %231 = vst.msk [vmem:[#allocation2 + $0xf8] sm:$0xff] %vm199, 0
      %232 = vst.msk [vmem:[#allocation2 + $0x100] sm:$0xff] %vm199, 0
      %233 = vst.msk [vmem:[#allocation2 + $0x108] sm:$0xff] %vm199, 0
      %234 = vst.msk [vmem:[#allocation2 + $0x110] sm:$0xff] %vm199, 0
      %235 = vst.msk [vmem:[#allocation2 + $0x118] sm:$0xff] %vm199, 0
      %s236 = scalar_lea.vmem [#allocation2], 288
      %237 = vst.msk [vmem:[%s236] sm:$0xff] %vm199, 0
      %238 = vst.msk [vmem:[%s236 + $0x8] sm:$0xff] %vm199, 0
      %s239 = scalar_lea.vmem [#allocation2], 560
      %240 = vst.msk [vmem:[%s239] sm:$0xff] %vm199, 0
      %241 = vst.msk [vmem:[%s239 + $0x8] sm:$0xff] %vm199, 0
      %vm242 = vcmask 516096
      %vm243 = vsmask.f32 256
      %vm244 = vmand %vm242, %vm243
      %v245 = vld [vmem:[%s236] sm:$0x1]
      %v246 = vsel %vm244, 0, %v245
      %247 = vst [vmem:[%s236] sm:$0x1] %v246
      %v248 = vld [vmem:[%s236 + $0x10] sm:$0x1]
      %v249 = vsel %vm244, 0, %v248
      %250 = vst [vmem:[%s236 + $0x10] sm:$0x1] %v249
      %v251 = vld [vmem:[%s236 + $0x20] sm:$0x1]
      %v252 = vsel %vm244, 0, %v251
      %253 = vst [vmem:[%s236 + $0x20] sm:$0x1] %v252
      %v254 = vld [vmem:[%s236 + $0x30] sm:$0x1]
      %v255 = vsel %vm244, 0, %v254
      %256 = vst [vmem:[%s236 + $0x30] sm:$0x1] %v255
      %v257 = vld [vmem:[%s236 + $0x40] sm:$0x1]
      %v258 = vsel %vm244, 0, %v257
      %259 = vst [vmem:[%s236 + $0x40] sm:$0x1] %v258
      %v260 = vld [vmem:[%s236 + $0x50] sm:$0x1]
      %v261 = vsel %vm244, 0, %v260
      %262 = vst [vmem:[%s236 + $0x50] sm:$0x1] %v261
      %v263 = vld [vmem:[%s236 + $0x60] sm:$0x1]
      %v264 = vsel %vm244, 0, %v263
      %265 = vst [vmem:[%s236 + $0x60] sm:$0x1] %v264
      %v266 = vld [vmem:[%s236 + $0x70] sm:$0x1]
      %v267 = vsel %vm244, 0, %v266
      %268 = vst [vmem:[%s236 + $0x70] sm:$0x1] %v267
      %v269 = vld [vmem:[%s236 + $0x80] sm:$0x1]
      %v270 = vsel %vm244, 0, %v269
      %271 = vst [vmem:[%s236 + $0x80] sm:$0x1] %v270
      %v272 = vld [vmem:[%s236 + $0x90] sm:$0x1]
      %v273 = vsel %vm244, 0, %v272
      %274 = vst [vmem:[%s236 + $0x90] sm:$0x1] %v273
      %v275 = vld [vmem:[%s236 + $0xa0] sm:$0x1]
      %v276 = vsel %vm244, 0, %v275
      %277 = vst [vmem:[%s236 + $0xa0] sm:$0x1] %v276
      %v278 = vld [vmem:[%s236 + $0xb0] sm:$0x1]
      %v279 = vsel %vm244, 0, %v278
      %280 = vst [vmem:[%s236 + $0xb0] sm:$0x1] %v279
      %v281 = vld [vmem:[%s236 + $0xc0] sm:$0x1]
      %v282 = vsel %vm244, 0, %v281
      %283 = vst [vmem:[%s236 + $0xc0] sm:$0x1] %v282
      %v284 = vld [vmem:[%s236 + $0xd0] sm:$0x1]
      %v285 = vsel %vm244, 0, %v284
      %286 = vst [vmem:[%s236 + $0xd0] sm:$0x1] %v285
      %v287 = vld [vmem:[%s236 + $0xe0] sm:$0x1]
      %v288 = vsel %vm244, 0, %v287
      %289 = vst [vmem:[%s236 + $0xe0] sm:$0x1] %v288
      %v290 = vld [vmem:[%s236 + $0xf0] sm:$0x1]
      %v291 = vsel %vm244, 0, %v290
      %292 = vst [vmem:[%s236 + $0xf0] sm:$0x1] %v291
      %v293 = vld [vmem:[%s236 + $0x100] sm:$0x1]
      %v294 = vsel %vm244, 0, %v293
      %295 = vst [vmem:[%s236 + $0x100] sm:$0x1] %v294
      %v296 = vld [vmem:[%s236 + $0x110] sm:$0x1]
      %v297 = vsel %vm244, 0, %v296
      %298 = vst [vmem:[%s236 + $0x110] sm:$0x1] %v297
      %vm299 = vcmask 523264
      %vm300 = vsmask.f32 7938
      %vm301 = vmand %vm299, %vm300
      %v302 = vld [vmem:[%s236 + $0x8] sm:$0xff]
      %v303 = vsel %vm301, 0, %v302
      %304 = vst [vmem:[%s236 + $0x8] sm:$0xff] %v303
      %v305 = vld [vmem:[%s236 + $0x18] sm:$0xff]
      %v306 = vsel %vm301, 0, %v305
      %307 = vst [vmem:[%s236 + $0x18] sm:$0xff] %v306
      %v308 = vld [vmem:[%s236 + $0x28] sm:$0xff]
      %v309 = vsel %vm301, 0, %v308
      %310 = vst [vmem:[%s236 + $0x28] sm:$0xff] %v309
      %v311 = vld [vmem:[%s236 + $0x38] sm:$0xff]
      %v312 = vsel %vm301, 0, %v311
      %313 = vst [vmem:[%s236 + $0x38] sm:$0xff] %v312
      %v314 = vld [vmem:[%s236 + $0x48] sm:$0xff]
      %v315 = vsel %vm301, 0, %v314
      %316 = vst [vmem:[%s236 + $0x48] sm:$0xff] %v315
      %v317 = vld [vmem:[%s236 + $0x58] sm:$0xff]
      %v318 = vsel %vm301, 0, %v317
      %319 = vst [vmem:[%s236 + $0x58] sm:$0xff] %v318
      %v320 = vld [vmem:[%s236 + $0x68] sm:$0xff]
      %v321 = vsel %vm301, 0, %v320
      %322 = vst [vmem:[%s236 + $0x68] sm:$0xff] %v321
      %v323 = vld [vmem:[%s236 + $0x78] sm:$0xff]
      %v324 = vsel %vm301, 0, %v323
      %325 = vst [vmem:[%s236 + $0x78] sm:$0xff] %v324
      %v326 = vld [vmem:[%s236 + $0x88] sm:$0xff]
      %v327 = vsel %vm301, 0, %v326
      %328 = vst [vmem:[%s236 + $0x88] sm:$0xff] %v327
      %v329 = vld [vmem:[%s236 + $0x98] sm:$0xff]
      %v330 = vsel %vm301, 0, %v329
      %331 = vst [vmem:[%s236 + $0x98] sm:$0xff] %v330
      %v332 = vld [vmem:[%s236 + $0xa8] sm:$0xff]
      %v333 = vsel %vm301, 0, %v332
      %334 = vst [vmem:[%s236 + $0xa8] sm:$0xff] %v333
      %v335 = vld [vmem:[%s236 + $0xb8] sm:$0xff]
      %v336 = vsel %vm301, 0, %v335
      %337 = vst [vmem:[%s236 + $0xb8] sm:$0xff] %v336
      %v338 = vld [vmem:[%s236 + $0xc8] sm:$0xff]
      %v339 = vsel %vm301, 0, %v338
      %340 = vst [vmem:[%s236 + $0xc8] sm:$0xff] %v339
      %v341 = vld [vmem:[%s236 + $0xd8] sm:$0xff]
      %v342 = vsel %vm301, 0, %v341
      %343 = vst [vmem:[%s236 + $0xd8] sm:$0xff] %v342
      %v344 = vld [vmem:[%s236 + $0xe8] sm:$0xff]
      %v345 = vsel %vm301, 0, %v344
      %346 = vst [vmem:[%s236 + $0xe8] sm:$0xff] %v345
      %v347 = vld [vmem:[%s236 + $0xf8] sm:$0xff]
      %v348 = vsel %vm301, 0, %v347
      %349 = vst [vmem:[%s236 + $0xf8] sm:$0xff] %v348
      %v350 = vld [vmem:[%s236 + $0x108] sm:$0xff]
      %v351 = vsel %vm301, 0, %v350
      %352 = vst [vmem:[%s236 + $0x108] sm:$0xff] %v351
      %v353 = vld [vmem:[%s236 + $0x118] sm:$0xff]
      %v354 = vsel %vm301, 0, %v353
      %355 = vst [vmem:[%s236 + $0x118] sm:$0xff] %v354
      %v356 = vld [vmem:[%s192] sm:$0xf]
      %v357 = vld [vmem:[%s192 + $0x4] sm:$0xf]
      %v358 = vld [vmem:[%s192 + $0x8] sm:$0xf]
      %v359 = vld [vmem:[%s192 + $0xc] sm:$0xf]
      %v360 = vld [vmem:[%s192 + $0x10] sm:$0xf]
      %v361 = vld [vmem:[%s192 + $0x14] sm:$0xf]
      %v362 = vld [vmem:[%s192 + $0x18] sm:$0xf]
      %v363 = vld [vmem:[%s192 + $0x1c] sm:$0xf]
      %v364 = vld [vmem:[%s192 + $0x20] sm:$0xf]
      %v365 = vld [vmem:[%s192 + $0x24] sm:$0xf]
      %v366 = vld [vmem:[%s192 + $0x28] sm:$0xf]
      %v367 = vld [vmem:[%s192 + $0x2c] sm:$0xf]
      %v368 = vld [vmem:[%s192 + $0x30] sm:$0xf]
      %v369 = vld [vmem:[%s192 + $0x34] sm:$0xf]
      %v370 = vld [vmem:[%s192 + $0x38] sm:$0xf]
      %v371 = vld [vmem:[%s192 + $0x3c] sm:$0xf]
      %v372 = vld [vmem:[%s192 + $0x40] sm:$0xf]
      %v373 = vld [vmem:[%s192 + $0x44] sm:$0xf]
      %v374 = vld [vmem:[%s192 + $0x48] sm:$0xf]
      %v375 = vld [vmem:[%s192 + $0x4c] sm:$0xf]
      %v376 = vld [vmem:[%s192 + $0x50] sm:$0xf]
      %v377 = vld [vmem:[%s192 + $0x54] sm:$0xf]
      %v378 = vld [vmem:[%s192 + $0x58] sm:$0xf]
      %v379 = vld [vmem:[%s192 + $0x5c] sm:$0xf]
      %v380 = vld [vmem:[%s192 + $0x60] sm:$0xf]
      %v381 = vld [vmem:[%s192 + $0x64] sm:$0xf]
      %v382 = vld [vmem:[%s192 + $0x68] sm:$0xf]
      %v383 = vld [vmem:[%s192 + $0x6c] sm:$0xf]
      %v384 = vld [vmem:[%s192 + $0x70] sm:$0xf]
      %v385 = vld [vmem:[%s192 + $0x74] sm:$0xf]
      %v386 = vld [vmem:[%s192 + $0x78] sm:$0xf]
      %v387 = vld [vmem:[%s192 + $0x7c] sm:$0xf]
      %v420 = vunpack.c.l.b16 %v356
      %v421 = vunpack.c.l.b16 %v357
      %v422 = vunpack.c.l.b16 %v358
      %v423 = vunpack.c.l.b16 %v359
      %v424 = vunpack.c.l.b16 %v360
      %v425 = vunpack.c.l.b16 %v361
      %v426 = vunpack.c.l.b16 %v362
      %v427 = vunpack.c.l.b16 %v363
      %v428 = vunpack.c.l.b16 %v364
      %v429 = vunpack.c.l.b16 %v365
      %v430 = vunpack.c.l.b16 %v366
      %v431 = vunpack.c.l.b16 %v367
      %v432 = vunpack.c.l.b16 %v368
      %v433 = vunpack.c.l.b16 %v369
      %v434 = vunpack.c.l.b16 %v370
      %v435 = vunpack.c.l.b16 %v371
      %v436 = vunpack.c.l.b16 %v372
      %v437 = vunpack.c.l.b16 %v373
      %v438 = vunpack.c.l.b16 %v374
      %v439 = vunpack.c.l.b16 %v375
      %v440 = vunpack.c.l.b16 %v376
      %v441 = vunpack.c.l.b16 %v377
      %v442 = vunpack.c.l.b16 %v378
      %v443 = vunpack.c.l.b16 %v379
      %v444 = vunpack.c.l.b16 %v380
      %v445 = vunpack.c.l.b16 %v381
      %v446 = vunpack.c.l.b16 %v382
      %v447 = vunpack.c.l.b16 %v383
      %v448 = vunpack.c.l.b16 %v384
      %v449 = vunpack.c.l.b16 %v385
      %v450 = vunpack.c.l.b16 %v386
      %v451 = vunpack.c.l.b16 %v387
      %v452 = vpack.c.b16 %v421, %v420
      %v453 = vpack.c.b16 %v423, %v422
      %v454 = vpack.c.b16 %v425, %v424
      %v455 = vpack.c.b16 %v427, %v426
      %v456 = vpack.c.b16 %v429, %v428
      %v457 = vpack.c.b16 %v431, %v430
      %v458 = vpack.c.b16 %v433, %v432
      %v459 = vpack.c.b16 %v435, %v434
      %v460 = vpack.c.b16 %v437, %v436
      %v461 = vpack.c.b16 %v439, %v438
      %v462 = vpack.c.b16 %v441, %v440
      %v463 = vpack.c.b16 %v443, %v442
      %v464 = vpack.c.b16 %v445, %v444
      %v465 = vpack.c.b16 %v447, %v446
      %v466 = vpack.c.b16 %v449, %v448
      %v467 = vpack.c.b16 %v451, %v450
      %v469 = vshrl.u32 %v452, 16
      %v471 = vrot.slane %v469, 7
      %v472 = vshll.u32 %v452, 16
      %v474 = vor.u32 %v471, %v472
      %v476 = vshrl.u32 %v453, 16
      %v478 = vrot.slane %v476, 7
      %v479 = vshll.u32 %v453, 16
      %v481 = vor.u32 %v478, %v479
      %v483 = vshrl.u32 %v454, 16
      %v485 = vrot.slane %v483, 7
      %v486 = vshll.u32 %v454, 16
      %v488 = vor.u32 %v485, %v486
      %v490 = vshrl.u32 %v455, 16
      %v492 = vrot.slane %v490, 7
      %v493 = vshll.u32 %v455, 16
      %v495 = vor.u32 %v492, %v493
      %v497 = vshrl.u32 %v456, 16
      %v499 = vrot.slane %v497, 7
      %v500 = vshll.u32 %v456, 16
      %v502 = vor.u32 %v499, %v500
      %v504 = vshrl.u32 %v457, 16
      %v506 = vrot.slane %v504, 7
      %v507 = vshll.u32 %v457, 16
      %v509 = vor.u32 %v506, %v507
      %v511 = vshrl.u32 %v458, 16
      %v513 = vrot.slane %v511, 7
      %v514 = vshll.u32 %v458, 16
      %v516 = vor.u32 %v513, %v514
      %v518 = vshrl.u32 %v459, 16
      %v520 = vrot.slane %v518, 7
      %v521 = vshll.u32 %v459, 16
      %v523 = vor.u32 %v520, %v521
      %v525 = vshrl.u32 %v460, 16
      %v527 = vrot.slane %v525, 7
      %v528 = vshll.u32 %v460, 16
      %v530 = vor.u32 %v527, %v528
      %v532 = vshrl.u32 %v461, 16
      %v534 = vrot.slane %v532, 7
      %v535 = vshll.u32 %v461, 16
      %v537 = vor.u32 %v534, %v535
      %v539 = vshrl.u32 %v462, 16
      %v541 = vrot.slane %v539, 7
      %v542 = vshll.u32 %v462, 16
      %v544 = vor.u32 %v541, %v542
      %v546 = vshrl.u32 %v463, 16
      %v548 = vrot.slane %v546, 7
      %v549 = vshll.u32 %v463, 16
      %v551 = vor.u32 %v548, %v549
      %v553 = vshrl.u32 %v464, 16
      %v555 = vrot.slane %v553, 7
      %v556 = vshll.u32 %v464, 16
      %v558 = vor.u32 %v555, %v556
      %v560 = vshrl.u32 %v465, 16
      %v562 = vrot.slane %v560, 7
      %v563 = vshll.u32 %v465, 16
      %v565 = vor.u32 %v562, %v563
      %v567 = vshrl.u32 %v466, 16
      %v569 = vrot.slane %v567, 7
      %v570 = vshll.u32 %v466, 16
      %v572 = vor.u32 %v569, %v570
      %v574 = vshrl.u32 %v467, 16
      %v576 = vrot.slane %v574, 7
      %v577 = vshll.u32 %v467, 16
      %v579 = vor.u32 %v576, %v577
      %s612 = scalar_lea.vmem [#allocation2], 16
      %vm613 = vcmask 31744
      %vm614 = vmand %vm613, %vm300
      %v615 = vld [vmem:[%s612] sm:$0xff]
      %v616 = vsel %vm614, %v474, %v615
      %617 = vst [vmem:[%s612] sm:$0xff] %v616
      %vm618 = vcmask 24576
      %vm619 = vmand %vm618, %vm243
      %v620 = vld [vmem:[%s612 + $0x8] sm:$0x1]
      %v621 = vsel %vm619, %v471, %v620
      %622 = vst [vmem:[%s612 + $0x8] sm:$0x1] %v621
      %v623 = vld [vmem:[%s612 + $0x10] sm:$0xff]
      %v624 = vsel %vm614, %v481, %v623
      %625 = vst [vmem:[%s612 + $0x10] sm:$0xff] %v624
      %v626 = vld [vmem:[%s612 + $0x18] sm:$0x1]
      %v627 = vsel %vm619, %v478, %v626
      %628 = vst [vmem:[%s612 + $0x18] sm:$0x1] %v627
      %v629 = vld [vmem:[%s612 + $0x20] sm:$0xff]
      %v630 = vsel %vm614, %v488, %v629
      %631 = vst [vmem:[%s612 + $0x20] sm:$0xff] %v630
      %v632 = vld [vmem:[%s612 + $0x28] sm:$0x1]
      %v633 = vsel %vm619, %v485, %v632
      %634 = vst [vmem:[%s612 + $0x28] sm:$0x1] %v633
      %v635 = vld [vmem:[%s612 + $0x30] sm:$0xff]
      %v636 = vsel %vm614, %v495, %v635
      %637 = vst [vmem:[%s612 + $0x30] sm:$0xff] %v636
      %v638 = vld [vmem:[%s612 + $0x38] sm:$0x1]
      %v639 = vsel %vm619, %v492, %v638
      %640 = vst [vmem:[%s612 + $0x38] sm:$0x1] %v639
      %v641 = vld [vmem:[%s612 + $0x40] sm:$0xff]
      %v642 = vsel %vm614, %v502, %v641
      %643 = vst [vmem:[%s612 + $0x40] sm:$0xff] %v642
      %v644 = vld [vmem:[%s612 + $0x48] sm:$0x1]
      %v645 = vsel %vm619, %v499, %v644
      %646 = vst [vmem:[%s612 + $0x48] sm:$0x1] %v645
      %v647 = vld [vmem:[%s612 + $0x50] sm:$0xff]
      %v648 = vsel %vm614, %v509, %v647
      %649 = vst [vmem:[%s612 + $0x50] sm:$0xff] %v648
      %v650 = vld [vmem:[%s612 + $0x58] sm:$0x1]
      %v651 = vsel %vm619, %v506, %v650
      %652 = vst [vmem:[%s612 + $0x58] sm:$0x1] %v651
      %v653 = vld [vmem:[%s612 + $0x60] sm:$0xff]
      %v654 = vsel %vm614, %v516, %v653
      %655 = vst [vmem:[%s612 + $0x60] sm:$0xff] %v654
      %v656 = vld [vmem:[%s612 + $0x68] sm:$0x1]
      %v657 = vsel %vm619, %v513, %v656
      %658 = vst [vmem:[%s612 + $0x68] sm:$0x1] %v657
      %v659 = vld [vmem:[%s612 + $0x70] sm:$0xff]
      %v660 = vsel %vm614, %v523, %v659
      %661 = vst [vmem:[%s612 + $0x70] sm:$0xff] %v660
      %v662 = vld [vmem:[%s612 + $0x78] sm:$0x1]
      %v663 = vsel %vm619, %v520, %v662
      %664 = vst [vmem:[%s612 + $0x78] sm:$0x1] %v663
      %v665 = vld [vmem:[%s612 + $0x80] sm:$0xff]
      %v666 = vsel %vm614, %v530, %v665
      %667 = vst [vmem:[%s612 + $0x80] sm:$0xff] %v666
      %v668 = vld [vmem:[%s612 + $0x88] sm:$0x1]
      %v669 = vsel %vm619, %v527, %v668
      %670 = vst [vmem:[%s612 + $0x88] sm:$0x1] %v669
      %v671 = vld [vmem:[%s612 + $0x90] sm:$0xff]
      %v672 = vsel %vm614, %v537, %v671
      %673 = vst [vmem:[%s612 + $0x90] sm:$0xff] %v672
      %v674 = vld [vmem:[%s612 + $0x98] sm:$0x1]
      %v675 = vsel %vm619, %v534, %v674
      %676 = vst [vmem:[%s612 + $0x98] sm:$0x1] %v675
      %v677 = vld [vmem:[%s612 + $0xa0] sm:$0xff]
      %v678 = vsel %vm614, %v544, %v677
      %679 = vst [vmem:[%s612 + $0xa0] sm:$0xff] %v678
      %v680 = vld [vmem:[%s612 + $0xa8] sm:$0x1]
      %v681 = vsel %vm619, %v541, %v680
      %682 = vst [vmem:[%s612 + $0xa8] sm:$0x1] %v681
      %v683 = vld [vmem:[%s612 + $0xb0] sm:$0xff]
      %v684 = vsel %vm614, %v551, %v683
      %685 = vst [vmem:[%s612 + $0xb0] sm:$0xff] %v684
      %v686 = vld [vmem:[%s612 + $0xb8] sm:$0x1]
      %v687 = vsel %vm619, %v548, %v686
      %688 = vst [vmem:[%s612 + $0xb8] sm:$0x1] %v687
      %v689 = vld [vmem:[%s612 + $0xc0] sm:$0xff]
      %v690 = vsel %vm614, %v558, %v689
      %691 = vst [vmem:[%s612 + $0xc0] sm:$0xff] %v690
      %v692 = vld [vmem:[%s612 + $0xc8] sm:$0x1]
      %v693 = vsel %vm619, %v555, %v692
      %694 = vst [vmem:[%s612 + $0xc8] sm:$0x1] %v693
      %v695 = vld [vmem:[%s612 + $0xd0] sm:$0xff]
      %v696 = vsel %vm614, %v565, %v695
      %697 = vst [vmem:[%s612 + $0xd0] sm:$0xff] %v696
      %v698 = vld [vmem:[%s612 + $0xd8] sm:$0x1]
      %v699 = vsel %vm619, %v562, %v698
      %700 = vst [vmem:[%s612 + $0xd8] sm:$0x1] %v699
      %v701 = vld [vmem:[%s612 + $0xe0] sm:$0xff]
      %v702 = vsel %vm614, %v572, %v701
      %703 = vst [vmem:[%s612 + $0xe0] sm:$0xff] %v702
      %v704 = vld [vmem:[%s612 + $0xe8] sm:$0x1]
      %v705 = vsel %vm619, %v569, %v704
      %706 = vst [vmem:[%s612 + $0xe8] sm:$0x1] %v705
      %v707 = vld [vmem:[%s612 + $0xf0] sm:$0xff]
      %v708 = vsel %vm614, %v579, %v707
      %709 = vst [vmem:[%s612 + $0xf0] sm:$0xff] %v708
      %v710 = vld [vmem:[%s612 + $0xf8] sm:$0x1]
      %v711 = vsel %vm619, %v576, %v710
      %712 = vst [vmem:[%s612 + $0xf8] sm:$0x1] %v711
      loop: start=0, step=1, limit=8
      $region37: #{_lambda_.1} parent=35 // loop_pre_header
        _
      $region38: #{_lambda_.1} parent=35 // loop_header
        %s714 = sphi 0, %s718
        %p715 = scmp.ge.s32.totalorder %s714, 8
      $region39: #{_lambda_.1} parent=35 // loop_header_branch
        %717 = sbr.rel (%p715) target = $region43
      $region40: #{_lambda_.1} parent=35 // loop_body
        %s719 = smul.u32 %s714, 2
        %v720 = vld [vmem:[#allocation2] sm:$0xff]
        %v721 = vld [vmem:[#allocation2 + $0x8] sm:$0xff]
        %v722 = vld [vmem:[#allocation2 + $0x10] sm:$0xff]
        %v723 = vld [vmem:[#allocation2 + $0x18] sm:$0xff]
        %v724 = vld [vmem:[#allocation2 + $0x20] sm:$0xff]
        %v725 = vld [vmem:[#allocation2 + $0x28] sm:$0xff]
        %v726 = vld [vmem:[#allocation2 + $0x30] sm:$0xff]
        %v727 = vld [vmem:[#allocation2 + $0x38] sm:$0xff]
        %v728 = vld [vmem:[#allocation2 + $0x40] sm:$0xff]
        %v729 = vld [vmem:[#allocation2 + $0x48] sm:$0xff]
        %v730 = vld [vmem:[#allocation2 + $0x50] sm:$0xff]
        %v731 = vld [vmem:[#allocation2 + $0x58] sm:$0xff]
        %v732 = vld [vmem:[#allocation2 + $0x60] sm:$0xff]
        %v733 = vld [vmem:[#allocation2 + $0x68] sm:$0xff]
        %v734 = vld [vmem:[#allocation2 + $0x70] sm:$0xff]
        %v735 = vld [vmem:[#allocation2 + $0x78] sm:$0xff]
        %v736 = vld [vmem:[#allocation2 + $0x80] sm:$0xff]
        %v737 = vld [vmem:[#allocation2 + $0x88] sm:$0xff]
        %v738 = vld [vmem:[#allocation2 + $0x90] sm:$0xff]
        %v739 = vld [vmem:[#allocation2 + $0x98] sm:$0xff]
        %v740 = vld [vmem:[#allocation2 + $0xa0] sm:$0xff]
        %v741 = vld [vmem:[#allocation2 + $0xa8] sm:$0xff]
        %v742 = vld [vmem:[#allocation2 + $0xb0] sm:$0xff]
        %v743 = vld [vmem:[#allocation2 + $0xb8] sm:$0xff]
        %v744 = vld [vmem:[#allocation2 + $0xc0] sm:$0xff]
        %v745 = vld [vmem:[#allocation2 + $0xc8] sm:$0xff]
        %v746 = vld [vmem:[#allocation2 + $0xd0] sm:$0xff]
        %v747 = vld [vmem:[#allocation2 + $0xd8] sm:$0xff]
        %v748 = vld [vmem:[#allocation2 + $0xe0] sm:$0xff]
        %v749 = vld [vmem:[#allocation2 + $0xe8] sm:$0xff]
        %v750 = vld [vmem:[#allocation2 + $0xf0] sm:$0xff]
        %v751 = vld [vmem:[#allocation2 + $0xf8] sm:$0xff]
        %s752 = smul.u32 %s714, 6
        %s753 = smul.u32 %s752, 16
        %s754 = smul.addr %s753, 4
        %s755 = scalar_lea.vmem %s1, %s754
        %v756 = vld [vmem:[%s755] sm:$0xff]
        %v757 = vld [vmem:[%s755 + $0x8] sm:$0xff]
        %v758 = vld [vmem:[%s755 + $0x10] sm:$0xff]
        %v759 = vld [vmem:[%s755 + $0x18] sm:$0xff]
        %v760 = vld [vmem:[%s755 + $0x20] sm:$0xff]
        %v761 = vld [vmem:[%s755 + $0x28] sm:$0xff]
        %v762 = vld [vmem:[%s755 + $0x30] sm:$0xff]
        %v763 = vld [vmem:[%s755 + $0x38] sm:$0xff]
        %v764 = vld [vmem:[%s612] sm:$0xff]
        %v765 = vld [vmem:[%s612 + $0x8] sm:$0xff]
        %v766 = vld [vmem:[%s612 + $0x10] sm:$0xff]
        %v767 = vld [vmem:[%s612 + $0x18] sm:$0xff]
        %v768 = vld [vmem:[%s612 + $0x20] sm:$0xff]
        %v769 = vld [vmem:[%s612 + $0x28] sm:$0xff]
        %v770 = vld [vmem:[%s612 + $0x30] sm:$0xff]
        %v771 = vld [vmem:[%s612 + $0x38] sm:$0xff]
        %v772 = vld [vmem:[%s612 + $0x40] sm:$0xff]
        %v773 = vld [vmem:[%s612 + $0x48] sm:$0xff]
        %v774 = vld [vmem:[%s612 + $0x50] sm:$0xff]
        %v775 = vld [vmem:[%s612 + $0x58] sm:$0xff]
        %v776 = vld [vmem:[%s612 + $0x60] sm:$0xff]
        %v777 = vld [vmem:[%s612 + $0x68] sm:$0xff]
        %v778 = vld [vmem:[%s612 + $0x70] sm:$0xff]
        %v779 = vld [vmem:[%s612 + $0x78] sm:$0xff]
        %v780 = vld [vmem:[%s612 + $0x80] sm:$0xff]
        %v781 = vld [vmem:[%s612 + $0x88] sm:$0xff]
        %v782 = vld [vmem:[%s612 + $0x90] sm:$0xff]
        %v783 = vld [vmem:[%s612 + $0x98] sm:$0xff]
        %v784 = vld [vmem:[%s612 + $0xa0] sm:$0xff]
        %v785 = vld [vmem:[%s612 + $0xa8] sm:$0xff]
        %v786 = vld [vmem:[%s612 + $0xb0] sm:$0xff]
        %v787 = vld [vmem:[%s612 + $0xb8] sm:$0xff]
        %v788 = vld [vmem:[%s612 + $0xc0] sm:$0xff]
        %v789 = vld [vmem:[%s612 + $0xc8] sm:$0xff]
        %v790 = vld [vmem:[%s612 + $0xd0] sm:$0xff]
        %v791 = vld [vmem:[%s612 + $0xd8] sm:$0xff]
        %v792 = vld [vmem:[%s612 + $0xe0] sm:$0xff]
        %v793 = vld [vmem:[%s612 + $0xe8] sm:$0xff]
        %v794 = vld [vmem:[%s612 + $0xf0] sm:$0xff]
        %v795 = vld [vmem:[%s612 + $0xf8] sm:$0xff]
        %s796 = sadd.s32 %s752, 1
        %s797 = smul.u32 %s796, 16
        %s798 = smul.addr %s797, 4
        %s799 = scalar_lea.vmem %s1, %s798
        %v800 = vld [vmem:[%s799] sm:$0xff]
        %v801 = vld [vmem:[%s799 + $0x8] sm:$0xff]
        %v802 = vld [vmem:[%s799 + $0x10] sm:$0xff]
        %v803 = vld [vmem:[%s799 + $0x18] sm:$0xff]
        %v804 = vld [vmem:[%s799 + $0x20] sm:$0xff]
        %v805 = vld [vmem:[%s799 + $0x28] sm:$0xff]
        %v806 = vld [vmem:[%s799 + $0x30] sm:$0xff]
        %v807 = vld [vmem:[%s799 + $0x38] sm:$0xff]
        %v816 = vunpack.c.l.b16 %v800
        %v817 = vunpack.c.h.b16 %v800
        %v818 = vunpack.c.l.b16 %v801
        %v819 = vunpack.c.h.b16 %v801
        %v820 = vunpack.c.l.b16 %v802
        %v821 = vunpack.c.h.b16 %v802
        %v822 = vunpack.c.l.b16 %v803
        %v823 = vunpack.c.h.b16 %v803
        %v824 = vunpack.c.l.b16 %v804
        %v825 = vunpack.c.h.b16 %v804
        %v826 = vunpack.c.l.b16 %v805
        %v827 = vunpack.c.h.b16 %v805
        %v828 = vunpack.c.l.b16 %v806
        %v829 = vunpack.c.h.b16 %v806
        %v830 = vunpack.c.l.b16 %v807
        %v831 = vunpack.c.h.b16 %v807
        %v832 = vpack.c.b16 %v818, %v816
        %v833 = vpack.c.b16 %v819, %v817
        %v834 = vpack.c.b16 %v822, %v820
        %v835 = vpack.c.b16 %v823, %v821
        %v836 = vpack.c.b16 %v826, %v824
        %v837 = vpack.c.b16 %v827, %v825
        %v838 = vpack.c.b16 %v830, %v828
        %v839 = vpack.c.b16 %v831, %v829
        %v849 = vsel %vm199, %v764, 0
        %v852 = vsel %vm199, %v765, 0
        %v855 = vsel %vm199, %v766, 0
        %v858 = vsel %vm199, %v767, 0
        %v861 = vsel %vm199, %v768, 0
        %v864 = vsel %vm199, %v769, 0
        %v867 = vsel %vm199, %v770, 0
        %v870 = vsel %vm199, %v771, 0
        %v873 = vsel %vm199, %v772, 0
        %v876 = vsel %vm199, %v773, 0
        %v879 = vsel %vm199, %v774, 0
        %v882 = vsel %vm199, %v775, 0
        %v885 = vsel %vm199, %v776, 0
        %v888 = vsel %vm199, %v777, 0
        %v891 = vsel %vm199, %v778, 0
        %v894 = vsel %vm199, %v779, 0
        %v897 = vsel %vm199, %v780, 0
        %v900 = vsel %vm199, %v781, 0
        %v903 = vsel %vm199, %v782, 0
        %v906 = vsel %vm199, %v783, 0
        %v909 = vsel %vm199, %v784, 0
        %v912 = vsel %vm199, %v785, 0
        %v915 = vsel %vm199, %v786, 0
        %v918 = vsel %vm199, %v787, 0
        %v921 = vsel %vm199, %v788, 0
        %v924 = vsel %vm199, %v789, 0
        %v927 = vsel %vm199, %v790, 0
        %v930 = vsel %vm199, %v791, 0
        %v933 = vsel %vm199, %v792, 0
        %v936 = vsel %vm199, %v793, 0
        %v939 = vsel %vm199, %v794, 0
        %v942 = vsel %vm199, %v795, 0
        %944 = vmatprep.subr.bf16.mxu0 %v833
        %945 = vmatpush1.bf16.msra.mxu0 %v832
        %946 = vmatprep.subr.bf16.mxu0 %v835
        %947 = vmatpush1.bf16.msra.mxu0 %v834
        %948 = vmatprep.subr.bf16.mxu0 %v837
        %949 = vmatpush1.bf16.msra.mxu0 %v836
        %950 = vmatprep.subr.bf16.mxu0 %v839
        %951 = vmatpush1.bf16.msra.mxu0 %v838
        %952 = vmatprep.subr.bf16.mxu0 0
        %953 = vmatpush1.bf16.msra.mxu0 0
        %954 = vmatprep.subr.bf16.mxu0 0
        %955 = vmatpush1.bf16.msra.mxu0 0
        %956 = vmatprep.subr.bf16.mxu0 0
        %957 = vmatpush1.bf16.msra.mxu0 0
        %958 = vmatprep.subr.bf16.mxu0 0
        %959 = vmatpush1.bf16.msra.mxu0 0
        %960 = vmatprep.subr.bf16.mxu0 0
        %961 = vmatpush1.bf16.msra.mxu0 0
        %962 = vmatprep.subr.bf16.mxu0 0
        %963 = vmatpush1.bf16.msra.mxu0 0
        %964 = vmatprep.subr.bf16.mxu0 0
        %965 = vmatpush1.bf16.msra.mxu0 0
        %966 = vmatprep.subr.bf16.mxu0 0
        %967 = vmatpush1.bf16.msra.mxu0 0
        %968 = vmatprep.subr.bf16.mxu0 0
        %969 = vmatpush1.bf16.msra.mxu0 0
        %970 = vmatprep.subr.bf16.mxu0 0
        %971 = vmatpush1.bf16.msra.mxu0 0
        %972 = vmatprep.subr.bf16.mxu0 0
        %973 = vmatpush1.bf16.msra.mxu0 0
        %974 = vmatprep.subr.bf16.mxu0 0
        %975 = vmatpush1.bf16.msra.mxu0 0
        %976 = vmatprep.mubr.bf16.mxu0 0
        %977 = vmatmul.mubr.bf16.gmra.mrb[0].mxu0 %v849
        %v978 = vpop.f32.mrb[0].mxu0
        %v979 = vadd.f32 0.0, %v978
        %v980 = vpop.f32.mrb[0].mxu0
        %v981 = vadd.f32 0.0, %v980
        %v982 = vpop.f32.mrb[0].mxu0
        %v983 = vadd.f32 0.0, %v982
        %v984 = vpop.f32.mrb[0].mxu0
        %v985 = vadd.f32 0.0, %v984
        %986 = vmatprep.mubr.bf16.mxu0 0
        %987 = vmatmul.mubr.bf16.gmra.mrb[0].mxu0 %v852
        %v988 = vpop.f32.mrb[0].mxu0
        %v989 = vadd.f32 0.0, %v988
        %v990 = vpop.f32.mrb[0].mxu0
        %v991 = vadd.f32 0.0, %v990
        %v992 = vpop.f32.mrb[0].mxu0
        %v993 = vpop.f32.mrb[0].mxu0
        %994 = vmatprep.mubr.bf16.mxu0 0
        %995 = vmatmul.mubr.bf16.gmra.mrb[0].mxu0 %v855
        %v996 = vpop.f32.mrb[0].mxu0
        %v997 = vadd.f32 0.0, %v996
        %v998 = vpop.f32.mrb[0].mxu0
        %v999 = vadd.f32 0.0, %v998
        %v1000 = vpop.f32.mrb[0].mxu0
        %v1001 = vadd.f32 0.0, %v1000
        %v1002 = vpop.f32.mrb[0].mxu0
        %v1003 = vadd.f32 0.0, %v1002
        %1004 = vmatprep.mubr.bf16.mxu0 0
        %1005 = vmatmul.mubr.bf16.gmra.mrb[0].mxu0 %v858
        %v1006 = vpop.f32.mrb[0].mxu0
        %v1007 = vadd.f32 0.0, %v1006
        %v1008 = vpop.f32.mrb[0].mxu0
        %v1009 = vadd.f32 0.0, %v1008
        %v1010 = vpop.f32.mrb[0].mxu0
        %v1011 = vpop.f32.mrb[0].mxu0
        %1012 = vmatprep.mubr.bf16.mxu0 0
        %1013 = vmatmul.mubr.bf16.gmra.mrb[0].mxu0 %v861
        %v1014 = vpop.f32.mrb[0].mxu0
        %v1015 = vadd.f32 0.0, %v1014
        %v1016 = vpop.f32.mrb[0].mxu0
        %v1017 = vadd.f32 0.0, %v1016
        %v1018 = vpop.f32.mrb[0].mxu0
        %v1019 = vadd.f32 0.0, %v1018
        %v1020 = vpop.f32.mrb[0].mxu0
        %v1021 = vadd.f32 0.0, %v1020
        %1022 = vmatprep.mubr.bf16.mxu0 0
        %1023 = vmatmul.mubr.bf16.gmra.mrb[0].mxu0 %v864
        %v1024 = vpop.f32.mrb[0].mxu0
        %v1025 = vadd.f32 0.0, %v1024
        %v1026 = vpop.f32.mrb[0].mxu0
        %v1027 = vadd.f32 0.0, %v1026
        %v1028 = vpop.f32.mrb[0].mxu0
        %v1029 = vpop.f32.mrb[0].mxu0
        %1030 = vmatprep.mubr.bf16.mxu0 0
        %1031 = vmatmul.mubr.bf16.gmra.mrb[0].mxu0 %v867
        %v1032 = vpop.f32.mrb[0].mxu0
        %v1033 = vadd.f32 0.0, %v1032
        %v1034 = vpop.f32.mrb[0].mxu0
        %v1035 = vadd.f32 0.0, %v1034
        %v1036 = vpop.f32.mrb[0].mxu0
        %v1037 = vadd.f32 0.0, %v1036
        %v1038 = vpop.f32.mrb[0].mxu0
        %v1039 = vadd.f32 0.0, %v1038
        %1040 = vmatprep.mubr.bf16.mxu0 0
        %1041 = vmatmul.mubr.bf16.gmra.mrb[0].mxu0 %v870
        %v1042 = vpop.f32.mrb[0].mxu0
        %v1043 = vadd.f32 0.0, %v1042
        %v1044 = vpop.f32.mrb[0].mxu0
        %v1045 = vadd.f32 0.0, %v1044
        %v1046 = vpop.f32.mrb[0].mxu0
        %v1047 = vpop.f32.mrb[0].mxu0
        %1048 = vmatprep.mubr.bf16.mxu0 0
        %1049 = vmatmul.mubr.bf16.gmra.mrb[0].mxu0 %v873
        %v1050 = vpop.f32.mrb[0].mxu0
        %v1051 = vadd.f32 0.0, %v1050
        %v1052 = vpop.f32.mrb[0].mxu0
        %v1053 = vadd.f32 0.0, %v1052
        %v1054 = vpop.f32.mrb[0].mxu0
        %v1055 = vadd.f32 0.0, %v1054
        %v1056 = vpop.f32.mrb[0].mxu0
        %v1057 = vadd.f32 0.0, %v1056
        %1058 = vmatprep.mubr.bf16.mxu0 0
        %1059 = vmatmul.mubr.bf16.gmra.mrb[0].mxu0 %v876
        %v1060 = vpop.f32.mrb[0].mxu0
        %v1061 = vadd.f32 0.0, %v1060
        %v1062 = vpop.f32.mrb[0].mxu0
        %v1063 = vadd.f32 0.0, %v1062
        %v1064 = vpop.f32.mrb[0].mxu0
        %v1065 = vpop.f32.mrb[0].mxu0
        %1066 = vmatprep.mubr.bf16.mxu0 0
        %1067 = vmatmul.mubr.bf16.gmra.mrb[0].mxu0 %v879
        %v1068 = vpop.f32.mrb[0].mxu0
        %v1069 = vadd.f32 0.0, %v1068
        %v1070 = vpop.f32.mrb[0].mxu0
        %v1071 = vadd.f32 0.0, %v1070
        %v1072 = vpop.f32.mrb[0].mxu0
        %v1073 = vadd.f32 0.0, %v1072
        %v1074 = vpop.f32.mrb[0].mxu0
        %v1075 = vadd.f32 0.0, %v1074
        %1076 = vmatprep.mubr.bf16.mxu0 0
        %1077 = vmatmul.mubr.bf16.gmra.mrb[0].mxu0 %v882
        %v1078 = vpop.f32.mrb[0].mxu0
        %v1079 = vadd.f32 0.0, %v1078
        %v1080 = vpop.f32.mrb[0].mxu0
        %v1081 = vadd.f32 0.0, %v1080
        %v1082 = vpop.f32.mrb[0].mxu0
        %v1083 = vpop.f32.mrb[0].mxu0
        %1084 = vmatprep.mubr.bf16.mxu0 0
        %1085 = vmatmul.mubr.bf16.gmra.mrb[0].mxu0 %v885
        %v1086 = vpop.f32.mrb[0].mxu0
        %v1087 = vadd.f32 0.0, %v1086
        %v1088 = vpop.f32.mrb[0].mxu0
        %v1089 = vadd.f32 0.0, %v1088
        %v1090 = vpop.f32.mrb[0].mxu0
        %v1091 = vadd.f32 0.0, %v1090
        %v1092 = vpop.f32.mrb[0].mxu0
        %v1093 = vadd.f32 0.0, %v1092
        %1094 = vmatprep.mubr.bf16.mxu0 0
        %1095 = vmatmul.mubr.bf16.gmra.mrb[0].mxu0 %v888
        %v1096 = vpop.f32.mrb[0].mxu0
        %v1097 = vadd.f32 0.0, %v1096
        %v1098 = vpop.f32.mrb[0].mxu0
        %v1099 = vadd.f32 0.0, %v1098
        %v1100 = vpop.f32.mrb[0].mxu0
        %v1101 = vpop.f32.mrb[0].mxu0
        %1102 = vmatprep.mubr.bf16.mxu0 0
        %1103 = vmatmul.mubr.bf16.gmra.mrb[0].mxu0 %v891
        %v1104 = vpop.f32.mrb[0].mxu0
        %v1105 = vadd.f32 0.0, %v1104
        %v1106 = vpop.f32.mrb[0].mxu0
        %v1107 = vadd.f32 0.0, %v1106
        %v1108 = vpop.f32.mrb[0].mxu0
        %v1109 = vadd.f32 0.0, %v1108
        %v1110 = vpop.f32.mrb[0].mxu0
        %v1111 = vadd.f32 0.0, %v1110
        %1112 = vmatprep.mubr.bf16.mxu0 0
        %1113 = vmatmul.mubr.bf16.gmra.mrb[0].mxu0 %v894
        %v1114 = vpop.f32.mrb[0].mxu0
        %v1115 = vadd.f32 0.0, %v1114
        %v1116 = vpop.f32.mrb[0].mxu0
        %v1117 = vadd.f32 0.0, %v1116
        %v1118 = vpop.f32.mrb[0].mxu0
        %v1119 = vpop.f32.mrb[0].mxu0
        %1120 = vmatprep.mubr.bf16.mxu0 0
        %1121 = vmatmul.mubr.bf16.gmra.mrb[0].mxu0 %v897
        %v1122 = vpop.f32.mrb[0].mxu0
        %v1123 = vadd.f32 0.0, %v1122
        %v1124 = vpop.f32.mrb[0].mxu0
        %v1125 = vadd.f32 0.0, %v1124
        %v1126 = vpop.f32.mrb[0].mxu0
        %v1127 = vadd.f32 0.0, %v1126
        %v1128 = vpop.f32.mrb[0].mxu0
        %v1129 = vadd.f32 0.0, %v1128
        %1130 = vmatprep.mubr.bf16.mxu0 0
        %1131 = vmatmul.mubr.bf16.gmra.mrb[0].mxu0 %v900
        %v1132 = vpop.f32.mrb[0].mxu0
        %v1133 = vadd.f32 0.0, %v1132
        %v1134 = vpop.f32.mrb[0].mxu0
        %v1135 = vadd.f32 0.0, %v1134
        %v1136 = vpop.f32.mrb[0].mxu0
        %v1137 = vpop.f32.mrb[0].mxu0
        %1138 = vmatprep.mubr.bf16.mxu0 0
        %1139 = vmatmul.mubr.bf16.gmra.mrb[0].mxu0 %v903
        %v1140 = vpop.f32.mrb[0].mxu0
        %v1141 = vadd.f32 0.0, %v1140
        %v1142 = vpop.f32.mrb[0].mxu0
        %v1143 = vadd.f32 0.0, %v1142
        %v1144 = vpop.f32.mrb[0].mxu0
        %v1145 = vadd.f32 0.0, %v1144
        %v1146 = vpop.f32.mrb[0].mxu0
        %v1147 = vadd.f32 0.0, %v1146
        %1148 = vmatprep.mubr.bf16.mxu0 0
        %1149 = vmatmul.mubr.bf16.gmra.mrb[0].mxu0 %v906
        %v1150 = vpop.f32.mrb[0].mxu0
        %v1151 = vadd.f32 0.0, %v1150
        %v1152 = vpop.f32.mrb[0].mxu0
        %v1153 = vadd.f32 0.0, %v1152
        %v1154 = vpop.f32.mrb[0].mxu0
        %v1155 = vpop.f32.mrb[0].mxu0
        %1156 = vmatprep.mubr.bf16.mxu0 0
        %1157 = vmatmul.mubr.bf16.gmra.mrb[0].mxu0 %v909
        %v1158 = vpop.f32.mrb[0].mxu0
        %v1159 = vadd.f32 0.0, %v1158
        %v1160 = vpop.f32.mrb[0].mxu0
        %v1161 = vadd.f32 0.0, %v1160
        %v1162 = vpop.f32.mrb[0].mxu0
        %v1163 = vadd.f32 0.0, %v1162
        %v1164 = vpop.f32.mrb[0].mxu0
        %v1165 = vadd.f32 0.0, %v1164
        %1166 = vmatprep.mubr.bf16.mxu0 0
        %1167 = vmatmul.mubr.bf16.gmra.mrb[0].mxu0 %v912
        %v1168 = vpop.f32.mrb[0].mxu0
        %v1169 = vadd.f32 0.0, %v1168
        %v1170 = vpop.f32.mrb[0].mxu0
        %v1171 = vadd.f32 0.0, %v1170
        %v1172 = vpop.f32.mrb[0].mxu0
        %v1173 = vpop.f32.mrb[0].mxu0
        %1174 = vmatprep.mubr.bf16.mxu0 0
        %1175 = vmatmul.mubr.bf16.gmra.mrb[0].mxu0 %v915
        %v1176 = vpop.f32.mrb[0].mxu0
        %v1177 = vadd.f32 0.0, %v1176
        %v1178 = vpop.f32.mrb[0].mxu0
        %v1179 = vadd.f32 0.0, %v1178
        %v1180 = vpop.f32.mrb[0].mxu0
        %v1181 = vadd.f32 0.0, %v1180
        %v1182 = vpop.f32.mrb[0].mxu0
        %v1183 = vadd.f32 0.0, %v1182
        %1184 = vmatprep.mubr.bf16.mxu0 0
        %1185 = vmatmul.mubr.bf16.gmra.mrb[0].mxu0 %v918
        %v1186 = vpop.f32.mrb[0].mxu0
        %v1187 = vadd.f32 0.0, %v1186
        %v1188 = vpop.f32.mrb[0].mxu0
        %v1189 = vadd.f32 0.0, %v1188
        %v1190 = vpop.f32.mrb[0].mxu0
        %v1191 = vpop.f32.mrb[0].mxu0
        %1192 = vmatprep.mubr.bf16.mxu0 0
        %1193 = vmatmul.mubr.bf16.gmra.mrb[0].mxu0 %v921
        %v1194 = vpop.f32.mrb[0].mxu0
        %v1195 = vadd.f32 0.0, %v1194
        %v1196 = vpop.f32.mrb[0].mxu0
        %v1197 = vadd.f32 0.0, %v1196
        %v1198 = vpop.f32.mrb[0].mxu0
        %v1199 = vadd.f32 0.0, %v1198
        %v1200 = vpop.f32.mrb[0].mxu0
        %v1201 = vadd.f32 0.0, %v1200
        %1202 = vmatprep.mubr.bf16.mxu0 0
        %1203 = vmatmul.mubr.bf16.gmra.mrb[0].mxu0 %v924
        %v1204 = vpop.f32.mrb[0].mxu0
        %v1205 = vadd.f32 0.0, %v1204
        %v1206 = vpop.f32.mrb[0].mxu0
        %v1207 = vadd.f32 0.0, %v1206
        %v1208 = vpop.f32.mrb[0].mxu0
        %v1209 = vpop.f32.mrb[0].mxu0
        %1210 = vmatprep.mubr.bf16.mxu0 0
        %1211 = vmatmul.mubr.bf16.gmra.mrb[0].mxu0 %v927
        %v1212 = vpop.f32.mrb[0].mxu0
        %v1213 = vadd.f32 0.0, %v1212
        %v1214 = vpop.f32.mrb[0].mxu0
        %v1215 = vadd.f32 0.0, %v1214
        %v1216 = vpop.f32.mrb[0].mxu0
        %v1217 = vadd.f32 0.0, %v1216
        %v1218 = vpop.f32.mrb[0].mxu0
        %v1219 = vadd.f32 0.0, %v1218
        %1220 = vmatprep.mubr.bf16.mxu0 0
        %1221 = vmatmul.mubr.bf16.gmra.mrb[0].mxu0 %v930
        %v1222 = vpop.f32.mrb[0].mxu0
        %v1223 = vadd.f32 0.0, %v1222
        %v1224 = vpop.f32.mrb[0].mxu0
        %v1225 = vadd.f32 0.0, %v1224
        %v1226 = vpop.f32.mrb[0].mxu0
        %v1227 = vpop.f32.mrb[0].mxu0
        %1228 = vmatprep.mubr.bf16.mxu0 0
        %1229 = vmatmul.mubr.bf16.gmra.mrb[0].mxu0 %v933
        %v1230 = vpop.f32.mrb[0].mxu0
        %v1231 = vadd.f32 0.0, %v1230
        %v1232 = vpop.f32.mrb[0].mxu0
        %v1233 = vadd.f32 0.0, %v1232
        %v1234 = vpop.f32.mrb[0].mxu0
        %v1235 = vadd.f32 0.0, %v1234
        %v1236 = vpop.f32.mrb[0].mxu0
        %v1237 = vadd.f32 0.0, %v1236
        %1238 = vmatprep.mubr.bf16.mxu0 0
        %1239 = vmatmul.mubr.bf16.gmra.mrb[0].mxu0 %v936
        %v1240 = vpop.f32.mrb[0].mxu0
        %v1241 = vadd.f32 0.0, %v1240
        %v1242 = vpop.f32.mrb[0].mxu0
        %v1243 = vadd.f32 0.0, %v1242
        %v1244 = vpop.f32.mrb[0].mxu0
        %v1245 = vpop.f32.mrb[0].mxu0
        %1246 = vmatprep.mubr.bf16.mxu0 0
        %1247 = vmatmul.mubr.bf16.gmra.mrb[0].mxu0 %v939
        %v1248 = vpop.f32.mrb[0].mxu0
        %v1249 = vadd.f32 0.0, %v1248
        %v1250 = vpop.f32.mrb[0].mxu0
        %v1251 = vadd.f32 0.0, %v1250
        %v1252 = vpop.f32.mrb[0].mxu0
        %v1253 = vadd.f32 0.0, %v1252
        %v1254 = vpop.f32.mrb[0].mxu0
        %v1255 = vadd.f32 0.0, %v1254
        %1256 = vmatprep.mubr.bf16.mxu0 0
        %1257 = vmatmul.mubr.bf16.gmra.mrb[0].mxu0 %v942
        %v1258 = vpop.f32.mrb[0].mxu0
        %v1259 = vadd.f32 0.0, %v1258
        %v1260 = vpop.f32.mrb[0].mxu0
        %v1261 = vadd.f32 0.0, %v1260
        %v1262 = vpop.f32.mrb[0].mxu0
        %v1263 = vpop.f32.mrb[0].mxu0
        %1264 = vdwg.mxu0
        %v1273 = vunpack.c.l.b16 %v756
        %v1274 = vunpack.c.h.b16 %v756
        %v1275 = vunpack.c.l.b16 %v757
        %v1276 = vunpack.c.h.b16 %v757
        %v1277 = vunpack.c.l.b16 %v758
        %v1278 = vunpack.c.h.b16 %v758
        %v1279 = vunpack.c.l.b16 %v759
        %v1280 = vunpack.c.h.b16 %v759
        %v1281 = vunpack.c.l.b16 %v760
        %v1282 = vunpack.c.h.b16 %v760
        %v1283 = vunpack.c.l.b16 %v761
        %v1284 = vunpack.c.h.b16 %v761
        %v1285 = vunpack.c.l.b16 %v762
        %v1286 = vunpack.c.h.b16 %v762
        %v1287 = vunpack.c.l.b16 %v763
        %v1288 = vunpack.c.h.b16 %v763
        %v1289 = vpack.c.b16 %v1275, %v1273
        %v1290 = vpack.c.b16 %v1276, %v1274
        %v1291 = vpack.c.b16 %v1279, %v1277
        %v1292 = vpack.c.b16 %v1280, %v1278
        %v1293 = vpack.c.b16 %v1283, %v1281
        %v1294 = vpack.c.b16 %v1284, %v1282
        %v1295 = vpack.c.b16 %v1287, %v1285
        %v1296 = vpack.c.b16 %v1288, %v1286
        %v1306 = vsel %vm199, %v720, 0
        %v1309 = vsel %vm199, %v721, 0
        %v1312 = vsel %vm199, %v722, 0
        %v1315 = vsel %vm199, %v723, 0
        %v1318 = vsel %vm199, %v724, 0
        %v1321 = vsel %vm199, %v725, 0
        %v1324 = vsel %vm199, %v726, 0
        %v1327 = vsel %vm199, %v727, 0
        %v1330 = vsel %vm199, %v728, 0
        %v1333 = vsel %vm199, %v729, 0
        %v1336 = vsel %vm199, %v730, 0
        %v1339 = vsel %vm199, %v731, 0
        %v1342 = vsel %vm199, %v732, 0
        %v1345 = vsel %vm199, %v733, 0
        %v1348 = vsel %vm199, %v734, 0
        %v1351 = vsel %vm199, %v735, 0
        %v1354 = vsel %vm199, %v736, 0
        %v1357 = vsel %vm199, %v737, 0
        %v1360 = vsel %vm199, %v738, 0
        %v1363 = vsel %vm199, %v739, 0
        %v1366 = vsel %vm199, %v740, 0
        %v1369 = vsel %vm199, %v741, 0
        %v1372 = vsel %vm199, %v742, 0
        %v1375 = vsel %vm199, %v743, 0
        %v1378 = vsel %vm199, %v744, 0
        %v1381 = vsel %vm199, %v745, 0
        %v1384 = vsel %vm199, %v746, 0
        %v1387 = vsel %vm199, %v747, 0
        %v1390 = vsel %vm199, %v748, 0
        %v1393 = vsel %vm199, %v749, 0
        %v1396 = vsel %vm199, %v750, 0
        %v1399 = vsel %vm199, %v751, 0
        %1401 = vmatprep.subr.bf16.mxu0 %v1290
        %1402 = vmatpush1.bf16.msra.mxu0 %v1289
        %1403 = vmatprep.subr.bf16.mxu0 %v1292
        %1404 = vmatpush1.bf16.msra.mxu0 %v1291
        %1405 = vmatprep.subr.bf16.mxu0 %v1294
        %1406 = vmatpush1.bf16.msra.mxu0 %v1293
        %1407 = vmatprep.subr.bf16.mxu0 %v1296
        %1408 = vmatpush1.bf16.msra.mxu0 %v1295
        %1409 = vmatprep.subr.bf16.mxu0 0
        %1410 = vmatpush1.bf16.msra.mxu0 0
        %1411 = vmatprep.subr.bf16.mxu0 0
        %1412 = vmatpush1.bf16.msra.mxu0 0
        %1413 = vmatprep.subr.bf16.mxu0 0
        %1414 = vmatpush1.bf16.msra.mxu0 0
        %1415 = vmatprep.subr.bf16.mxu0 0
        %1416 = vmatpush1.bf16.msra.mxu0 0
        %1417 = vmatprep.subr.bf16.mxu0 0
        %1418 = vmatpush1.bf16.msra.mxu0 0
        %1419 = vmatprep.subr.bf16.mxu0 0
        %1420 = vmatpush1.bf16.msra.mxu0 0
        %1421 = vmatprep.subr.bf16.mxu0 0
        %1422 = vmatpush1.bf16.msra.mxu0 0
        %1423 = vmatprep.subr.bf16.mxu0 0
        %1424 = vmatpush1.bf16.msra.mxu0 0
        %1425 = vmatprep.subr.bf16.mxu0 0
        %1426 = vmatpush1.bf16.msra.mxu0 0
        %1427 = vmatprep.subr.bf16.mxu0 0
        %1428 = vmatpush1.bf16.msra.mxu0 0
        %1429 = vmatprep.subr.bf16.mxu0 0
        %1430 = vmatpush1.bf16.msra.mxu0 0
        %1431 = vmatprep.subr.bf16.mxu0 0
        %1432 = vmatpush1.bf16.msra.mxu0 0
        %1433 = vmatprep.mubr.bf16.mxu0 0
        %1434 = vmatmul.mubr.bf16.gmra.mrb[0].mxu0 %v1306
        %v1435 = vpop.f32.mrb[0].mxu0
        %v1436 = vadd.f32 %v979, %v1435
        %v1437 = vpop.f32.mrb[0].mxu0
        %v1438 = vadd.f32 %v981, %v1437
        %v1439 = vpop.f32.mrb[0].mxu0
        %v1440 = vadd.f32 %v983, %v1439
        %v1441 = vpop.f32.mrb[0].mxu0
        %v1442 = vadd.f32 %v985, %v1441
        %1443 = vmatprep.mubr.bf16.mxu0 0
        %1444 = vmatmul.mubr.bf16.gmra.mrb[0].mxu0 %v1309
        %v1445 = vpop.f32.mrb[0].mxu0
        %v1446 = vadd.f32 %v989, %v1445
        %v1447 = vpop.f32.mrb[0].mxu0
        %v1448 = vadd.f32 %v991, %v1447
        %v1449 = vpop.f32.mrb[0].mxu0
        %v1450 = vpop.f32.mrb[0].mxu0
        %1451 = vmatprep.mubr.bf16.mxu0 0
        %1452 = vmatmul.mubr.bf16.gmra.mrb[0].mxu0 %v1312
        %v1453 = vpop.f32.mrb[0].mxu0
        %v1454 = vadd.f32 %v997, %v1453
        %v1455 = vpop.f32.mrb[0].mxu0
        %v1456 = vadd.f32 %v999, %v1455
        %v1457 = vpop.f32.mrb[0].mxu0
        %v1458 = vadd.f32 %v1001, %v1457
        %v1459 = vpop.f32.mrb[0].mxu0
        %v1460 = vadd.f32 %v1003, %v1459
        %1461 = vmatprep.mubr.bf16.mxu0 0
        %1462 = vmatmul.mubr.bf16.gmra.mrb[0].mxu0 %v1315
        %v1463 = vpop.f32.mrb[0].mxu0
        %v1464 = vadd.f32 %v1007, %v1463
        %v1465 = vpop.f32.mrb[0].mxu0
        %v1466 = vadd.f32 %v1009, %v1465
        %v1467 = vpop.f32.mrb[0].mxu0
        %v1468 = vpop.f32.mrb[0].mxu0
        %1469 = vmatprep.mubr.bf16.mxu0 0
        %1470 = vmatmul.mubr.bf16.gmra.mrb[0].mxu0 %v1318
        %v1471 = vpop.f32.mrb[0].mxu0
        %v1472 = vadd.f32 %v1015, %v1471
        %v1473 = vpop.f32.mrb[0].mxu0
        %v1474 = vadd.f32 %v1017, %v1473
        %v1475 = vpop.f32.mrb[0].mxu0
        %v1476 = vadd.f32 %v1019, %v1475
        %v1477 = vpop.f32.mrb[0].mxu0
        %v1478 = vadd.f32 %v1021, %v1477
        %1479 = vmatprep.mubr.bf16.mxu0 0
        %1480 = vmatmul.mubr.bf16.gmra.mrb[0].mxu0 %v1321
        %v1481 = vpop.f32.mrb[0].mxu0
        %v1482 = vadd.f32 %v1025, %v1481
        %v1483 = vpop.f32.mrb[0].mxu0
        %v1484 = vadd.f32 %v1027, %v1483
        %v1485 = vpop.f32.mrb[0].mxu0
        %v1486 = vpop.f32.mrb[0].mxu0
        %1487 = vmatprep.mubr.bf16.mxu0 0
        %1488 = vmatmul.mubr.bf16.gmra.mrb[0].mxu0 %v1324
        %v1489 = vpop.f32.mrb[0].mxu0
        %v1490 = vadd.f32 %v1033, %v1489
        %v1491 = vpop.f32.mrb[0].mxu0
        %v1492 = vadd.f32 %v1035, %v1491
        %v1493 = vpop.f32.mrb[0].mxu0
        %v1494 = vadd.f32 %v1037, %v1493
        %v1495 = vpop.f32.mrb[0].mxu0
        %v1496 = vadd.f32 %v1039, %v1495
        %1497 = vmatprep.mubr.bf16.mxu0 0
        %1498 = vmatmul.mubr.bf16.gmra.mrb[0].mxu0 %v1327
        %v1499 = vpop.f32.mrb[0].mxu0
        %v1500 = vadd.f32 %v1043, %v1499
        %v1501 = vpop.f32.mrb[0].mxu0
        %v1502 = vadd.f32 %v1045, %v1501
        %v1503 = vpop.f32.mrb[0].mxu0
        %v1504 = vpop.f32.mrb[0].mxu0
        %1505 = vmatprep.mubr.bf16.mxu0 0
        %1506 = vmatmul.mubr.bf16.gmra.mrb[0].mxu0 %v1330
        %v1507 = vpop.f32.mrb[0].mxu0
        %v1508 = vadd.f32 %v1051, %v1507
        %v1509 = vpop.f32.mrb[0].mxu0
        %v1510 = vadd.f32 %v1053, %v1509
        %v1511 = vpop.f32.mrb[0].mxu0
        %v1512 = vadd.f32 %v1055, %v1511
        %v1513 = vpop.f32.mrb[0].mxu0
        %v1514 = vadd.f32 %v1057, %v1513
        %1515 = vmatprep.mubr.bf16.mxu0 0
        %1516 = vmatmul.mubr.bf16.gmra.mrb[0].mxu0 %v1333
        %v1517 = vpop.f32.mrb[0].mxu0
        %v1518 = vadd.f32 %v1061, %v1517
        %v1519 = vpop.f32.mrb[0].mxu0
        %v1520 = vadd.f32 %v1063, %v1519
        %v1521 = vpop.f32.mrb[0].mxu0
        %v1522 = vpop.f32.mrb[0].mxu0
        %1523 = vmatprep.mubr.bf16.mxu0 0
        %1524 = vmatmul.mubr.bf16.gmra.mrb[0].mxu0 %v1336
        %v1525 = vpop.f32.mrb[0].mxu0
        %v1526 = vadd.f32 %v1069, %v1525
        %v1527 = vpop.f32.mrb[0].mxu0
        %v1528 = vadd.f32 %v1071, %v1527
        %v1529 = vpop.f32.mrb[0].mxu0
        %v1530 = vadd.f32 %v1073, %v1529
        %v1531 = vpop.f32.mrb[0].mxu0
        %v1532 = vadd.f32 %v1075, %v1531
        %1533 = vmatprep.mubr.bf16.mxu0 0
        %1534 = vmatmul.mubr.bf16.gmra.mrb[0].mxu0 %v1339
        %v1535 = vpop.f32.mrb[0].mxu0
        %v1536 = vadd.f32 %v1079, %v1535
        %v1537 = vpop.f32.mrb[0].mxu0
        %v1538 = vadd.f32 %v1081, %v1537
        %v1539 = vpop.f32.mrb[0].mxu0
        %v1540 = vpop.f32.mrb[0].mxu0
        %1541 = vmatprep.mubr.bf16.mxu0 0
        %1542 = vmatmul.mubr.bf16.gmra.mrb[0].mxu0 %v1342
        %v1543 = vpop.f32.mrb[0].mxu0
        %v1544 = vadd.f32 %v1087, %v1543
        %v1545 = vpop.f32.mrb[0].mxu0
        %v1546 = vadd.f32 %v1089, %v1545
        %v1547 = vpop.f32.mrb[0].mxu0
        %v1548 = vadd.f32 %v1091, %v1547
        %v1549 = vpop.f32.mrb[0].mxu0
        %v1550 = vadd.f32 %v1093, %v1549
        %1551 = vmatprep.mubr.bf16.mxu0 0
        %1552 = vmatmul.mubr.bf16.gmra.mrb[0].mxu0 %v1345
        %v1553 = vpop.f32.mrb[0].mxu0
        %v1554 = vadd.f32 %v1097, %v1553
        %v1555 = vpop.f32.mrb[0].mxu0
        %v1556 = vadd.f32 %v1099, %v1555
        %v1557 = vpop.f32.mrb[0].mxu0
        %v1558 = vpop.f32.mrb[0].mxu0
        %1559 = vmatprep.mubr.bf16.mxu0 0
        %1560 = vmatmul.mubr.bf16.gmra.mrb[0].mxu0 %v1348
        %v1561 = vpop.f32.mrb[0].mxu0
        %v1562 = vadd.f32 %v1105, %v1561
        %v1563 = vpop.f32.mrb[0].mxu0
        %v1564 = vadd.f32 %v1107, %v1563
        %v1565 = vpop.f32.mrb[0].mxu0
        %v1566 = vadd.f32 %v1109, %v1565
        %v1567 = vpop.f32.mrb[0].mxu0
        %v1568 = vadd.f32 %v1111, %v1567
        %1569 = vmatprep.mubr.bf16.mxu0 0
        %1570 = vmatmul.mubr.bf16.gmra.mrb[0].mxu0 %v1351
        %v1571 = vpop.f32.mrb[0].mxu0
        %v1572 = vadd.f32 %v1115, %v1571
        %v1573 = vpop.f32.mrb[0].mxu0
        %v1574 = vadd.f32 %v1117, %v1573
        %v1575 = vpop.f32.mrb[0].mxu0
        %v1576 = vpop.f32.mrb[0].mxu0
        %1577 = vmatprep.mubr.bf16.mxu0 0
        %1578 = vmatmul.mubr.bf16.gmra.mrb[0].mxu0 %v1354
        %v1579 = vpop.f32.mrb[0].mxu0
        %v1580 = vadd.f32 %v1123, %v1579
        %v1581 = vpop.f32.mrb[0].mxu0
        %v1582 = vadd.f32 %v1125, %v1581
        %v1583 = vpop.f32.mrb[0].mxu0
        %v1584 = vadd.f32 %v1127, %v1583
        %v1585 = vpop.f32.mrb[0].mxu0
        %v1586 = vadd.f32 %v1129, %v1585
        %1587 = vmatprep.mubr.bf16.mxu0 0
        %1588 = vmatmul.mubr.bf16.gmra.mrb[0].mxu0 %v1357
        %v1589 = vpop.f32.mrb[0].mxu0
        %v1590 = vadd.f32 %v1133, %v1589
        %v1591 = vpop.f32.mrb[0].mxu0
        %v1592 = vadd.f32 %v1135, %v1591
        %v1593 = vpop.f32.mrb[0].mxu0
        %v1594 = vpop.f32.mrb[0].mxu0
        %1595 = vmatprep.mubr.bf16.mxu0 0
        %1596 = vmatmul.mubr.bf16.gmra.mrb[0].mxu0 %v1360
        %v1597 = vpop.f32.mrb[0].mxu0
        %v1598 = vadd.f32 %v1141, %v1597
        %v1599 = vpop.f32.mrb[0].mxu0
        %v1600 = vadd.f32 %v1143, %v1599
        %v1601 = vpop.f32.mrb[0].mxu0
        %v1602 = vadd.f32 %v1145, %v1601
        %v1603 = vpop.f32.mrb[0].mxu0
        %v1604 = vadd.f32 %v1147, %v1603
        %1605 = vmatprep.mubr.bf16.mxu0 0
        %1606 = vmatmul.mubr.bf16.gmra.mrb[0].mxu0 %v1363
        %v1607 = vpop.f32.mrb[0].mxu0
        %v1608 = vadd.f32 %v1151, %v1607
        %v1609 = vpop.f32.mrb[0].mxu0
        %v1610 = vadd.f32 %v1153, %v1609
        %v1611 = vpop.f32.mrb[0].mxu0
        %v1612 = vpop.f32.mrb[0].mxu0
        %1613 = vmatprep.mubr.bf16.mxu0 0
        %1614 = vmatmul.mubr.bf16.gmra.mrb[0].mxu0 %v1366
        %v1615 = vpop.f32.mrb[0].mxu0
        %v1616 = vadd.f32 %v1159, %v1615
        %v1617 = vpop.f32.mrb[0].mxu0
        %v1618 = vadd.f32 %v1161, %v1617
        %v1619 = vpop.f32.mrb[0].mxu0
        %v1620 = vadd.f32 %v1163, %v1619
        %v1621 = vpop.f32.mrb[0].mxu0
        %v1622 = vadd.f32 %v1165, %v1621
        %1623 = vmatprep.mubr.bf16.mxu0 0
        %1624 = vmatmul.mubr.bf16.gmra.mrb[0].mxu0 %v1369
        %v1625 = vpop.f32.mrb[0].mxu0
        %v1626 = vadd.f32 %v1169, %v1625
        %v1627 = vpop.f32.mrb[0].mxu0
        %v1628 = vadd.f32 %v1171, %v1627
        %v1629 = vpop.f32.mrb[0].mxu0
        %v1630 = vpop.f32.mrb[0].mxu0
        %1631 = vmatprep.mubr.bf16.mxu0 0
        %1632 = vmatmul.mubr.bf16.gmra.mrb[0].mxu0 %v1372
        %v1633 = vpop.f32.mrb[0].mxu0
        %v1634 = vadd.f32 %v1177, %v1633
        %v1635 = vpop.f32.mrb[0].mxu0
        %v1636 = vadd.f32 %v1179, %v1635
        %v1637 = vpop.f32.mrb[0].mxu0
        %v1638 = vadd.f32 %v1181, %v1637
        %v1639 = vpop.f32.mrb[0].mxu0
        %v1640 = vadd.f32 %v1183, %v1639
        %1641 = vmatprep.mubr.bf16.mxu0 0
        %1642 = vmatmul.mubr.bf16.gmra.mrb[0].mxu0 %v1375
        %v1643 = vpop.f32.mrb[0].mxu0
        %v1644 = vadd.f32 %v1187, %v1643
        %v1645 = vpop.f32.mrb[0].mxu0
        %v1646 = vadd.f32 %v1189, %v1645
        %v1647 = vpop.f32.mrb[0].mxu0
        %v1648 = vpop.f32.mrb[0].mxu0
        %1649 = vmatprep.mubr.bf16.mxu0 0
        %1650 = vmatmul.mubr.bf16.gmra.mrb[0].mxu0 %v1378
        %v1651 = vpop.f32.mrb[0].mxu0
        %v1652 = vadd.f32 %v1195, %v1651
        %v1653 = vpop.f32.mrb[0].mxu0
        %v1654 = vadd.f32 %v1197, %v1653
        %v1655 = vpop.f32.mrb[0].mxu0
        %v1656 = vadd.f32 %v1199, %v1655
        %v1657 = vpop.f32.mrb[0].mxu0
        %v1658 = vadd.f32 %v1201, %v1657
        %1659 = vmatprep.mubr.bf16.mxu0 0
        %1660 = vmatmul.mubr.bf16.gmra.mrb[0].mxu0 %v1381
        %v1661 = vpop.f32.mrb[0].mxu0
        %v1662 = vadd.f32 %v1205, %v1661
        %v1663 = vpop.f32.mrb[0].mxu0
        %v1664 = vadd.f32 %v1207, %v1663
        %v1665 = vpop.f32.mrb[0].mxu0
        %v1666 = vpop.f32.mrb[0].mxu0
        %1667 = vmatprep.mubr.bf16.mxu0 0
        %1668 = vmatmul.mubr.bf16.gmra.mrb[0].mxu0 %v1384
        %v1669 = vpop.f32.mrb[0].mxu0
        %v1670 = vadd.f32 %v1213, %v1669
        %v1671 = vpop.f32.mrb[0].mxu0
        %v1672 = vadd.f32 %v1215, %v1671
        %v1673 = vpop.f32.mrb[0].mxu0
        %v1674 = vadd.f32 %v1217, %v1673
        %v1675 = vpop.f32.mrb[0].mxu0
        %v1676 = vadd.f32 %v1219, %v1675
        %1677 = vmatprep.mubr.bf16.mxu0 0
        %1678 = vmatmul.mubr.bf16.gmra.mrb[0].mxu0 %v1387
        %v1679 = vpop.f32.mrb[0].mxu0
        %v1680 = vadd.f32 %v1223, %v1679
        %v1681 = vpop.f32.mrb[0].mxu0
        %v1682 = vadd.f32 %v1225, %v1681
        %v1683 = vpop.f32.mrb[0].mxu0
        %v1684 = vpop.f32.mrb[0].mxu0
        %1685 = vmatprep.mubr.bf16.mxu0 0
        %1686 = vmatmul.mubr.bf16.gmra.mrb[0].mxu0 %v1390
        %v1687 = vpop.f32.mrb[0].mxu0
        %v1688 = vadd.f32 %v1231, %v1687
        %v1689 = vpop.f32.mrb[0].mxu0
        %v1690 = vadd.f32 %v1233, %v1689
        %v1691 = vpop.f32.mrb[0].mxu0
        %v1692 = vadd.f32 %v1235, %v1691
        %v1693 = vpop.f32.mrb[0].mxu0
        %v1694 = vadd.f32 %v1237, %v1693
        %1695 = vmatprep.mubr.bf16.mxu0 0
        %1696 = vmatmul.mubr.bf16.gmra.mrb[0].mxu0 %v1393
        %v1697 = vpop.f32.mrb[0].mxu0
        %v1698 = vadd.f32 %v1241, %v1697
        %v1699 = vpop.f32.mrb[0].mxu0
        %v1700 = vadd.f32 %v1243, %v1699
        %v1701 = vpop.f32.mrb[0].mxu0
        %v1702 = vpop.f32.mrb[0].mxu0
        %1703 = vmatprep.mubr.bf16.mxu0 0
        %1704 = vmatmul.mubr.bf16.gmra.mrb[0].mxu0 %v1396
        %v1705 = vpop.f32.mrb[0].mxu0
        %v1706 = vadd.f32 %v1249, %v1705
        %v1707 = vpop.f32.mrb[0].mxu0
        %v1708 = vadd.f32 %v1251, %v1707
        %v1709 = vpop.f32.mrb[0].mxu0
        %v1710 = vadd.f32 %v1253, %v1709
        %v1711 = vpop.f32.mrb[0].mxu0
        %v1712 = vadd.f32 %v1255, %v1711
        %1713 = vmatprep.mubr.bf16.mxu0 0
        %1714 = vmatmul.mubr.bf16.gmra.mrb[0].mxu0 %v1399
        %v1715 = vpop.f32.mrb[0].mxu0
        %v1716 = vadd.f32 %v1259, %v1715
        %v1717 = vpop.f32.mrb[0].mxu0
        %v1718 = vadd.f32 %v1261, %v1717
        %v1719 = vpop.f32.mrb[0].mxu0
        %v1720 = vpop.f32.mrb[0].mxu0
        %1721 = vdwg.mxu0
        %s1722 = scalar_lea.vmem [#allocation2], 32
        %v1723 = vld [vmem:[%s1722] sm:$0xff]
        %v1724 = vld [vmem:[%s1722 + $0x8] sm:$0xff]
        %v1725 = vld [vmem:[%s1722 + $0x10] sm:$0xff]
        %v1726 = vld [vmem:[%s1722 + $0x18] sm:$0xff]
        %v1727 = vld [vmem:[%s1722 + $0x20] sm:$0xff]
        %v1728 = vld [vmem:[%s1722 + $0x28] sm:$0xff]
        %v1729 = vld [vmem:[%s1722 + $0x30] sm:$0xff]
        %v1730 = vld [vmem:[%s1722 + $0x38] sm:$0xff]
        %v1731 = vld [vmem:[%s1722 + $0x40] sm:$0xff]
        %v1732 = vld [vmem:[%s1722 + $0x48] sm:$0xff]
        %v1733 = vld [vmem:[%s1722 + $0x50] sm:$0xff]
        %v1734 = vld [vmem:[%s1722 + $0x58] sm:$0xff]
        %v1735 = vld [vmem:[%s1722 + $0x60] sm:$0xff]
        %v1736 = vld [vmem:[%s1722 + $0x68] sm:$0xff]
        %v1737 = vld [vmem:[%s1722 + $0x70] sm:$0xff]
        %v1738 = vld [vmem:[%s1722 + $0x78] sm:$0xff]
        %v1739 = vld [vmem:[%s1722 + $0x80] sm:$0xff]
        %v1740 = vld [vmem:[%s1722 + $0x88] sm:$0xff]
        %v1741 = vld [vmem:[%s1722 + $0x90] sm:$0xff]
        %v1742 = vld [vmem:[%s1722 + $0x98] sm:$0xff]
        %v1743 = vld [vmem:[%s1722 + $0xa0] sm:$0xff]
        %v1744 = vld [vmem:[%s1722 + $0xa8] sm:$0xff]
        %v1745 = vld [vmem:[%s1722 + $0xb0] sm:$0xff]
        %v1746 = vld [vmem:[%s1722 + $0xb8] sm:$0xff]
        %v1747 = vld [vmem:[%s1722 + $0xc0] sm:$0xff]
        %v1748 = vld [vmem:[%s1722 + $0xc8] sm:$0xff]
        %v1749 = vld [vmem:[%s1722 + $0xd0] sm:$0xff]
        %v1750 = vld [vmem:[%s1722 + $0xd8] sm:$0xff]
        %v1751 = vld [vmem:[%s1722 + $0xe0] sm:$0xff]
        %v1752 = vld [vmem:[%s1722 + $0xe8] sm:$0xff]
        %v1753 = vld [vmem:[%s1722 + $0xf0] sm:$0xff]
        %v1754 = vld [vmem:[%s1722 + $0xf8] sm:$0xff]
        %s1755 = sadd.s32 %s752, 2
        %s1756 = smul.u32 %s1755, 16
        %s1757 = smul.addr %s1756, 4
        %s1758 = scalar_lea.vmem %s1, %s1757
        %v1759 = vld [vmem:[%s1758] sm:$0xff]
        %v1760 = vld [vmem:[%s1758 + $0x8] sm:$0xff]
        %v1761 = vld [vmem:[%s1758 + $0x10] sm:$0xff]
        %v1762 = vld [vmem:[%s1758 + $0x18] sm:$0xff]
        %v1763 = vld [vmem:[%s1758 + $0x20] sm:$0xff]
        %v1764 = vld [vmem:[%s1758 + $0x28] sm:$0xff]
        %v1765 = vld [vmem:[%s1758 + $0x30] sm:$0xff]
        %v1766 = vld [vmem:[%s1758 + $0x38] sm:$0xff]
        %v1775 = vunpack.c.l.b16 %v1759
        %v1776 = vunpack.c.h.b16 %v1759
        %v1777 = vunpack.c.l.b16 %v1760
        %v1778 = vunpack.c.h.b16 %v1760
        %v1779 = vunpack.c.l.b16 %v1761
        %v1780 = vunpack.c.h.b16 %v1761
        %v1781 = vunpack.c.l.b16 %v1762
        %v1782 = vunpack.c.h.b16 %v1762
        %v1783 = vunpack.c.l.b16 %v1763
        %v1784 = vunpack.c.h.b16 %v1763
        %v1785 = vunpack.c.l.b16 %v1764
        %v1786 = vunpack.c.h.b16 %v1764
        %v1787 = vunpack.c.l.b16 %v1765
        %v1788 = vunpack.c.h.b16 %v1765
        %v1789 = vunpack.c.l.b16 %v1766
        %v1790 = vunpack.c.h.b16 %v1766
        %v1791 = vpack.c.b16 %v1777, %v1775
        %v1792 = vpack.c.b16 %v1778, %v1776
        %v1793 = vpack.c.b16 %v1781, %v1779
        %v1794 = vpack.c.b16 %v1782, %v1780
        %v1795 = vpack.c.b16 %v1785, %v1783
        %v1796 = vpack.c.b16 %v1786, %v1784
        %v1797 = vpack.c.b16 %v1789, %v1787
        %v1798 = vpack.c.b16 %v1790, %v1788
        %v1808 = vsel %vm199, %v1723, 0
        %v1811 = vsel %vm199, %v1724, 0
        %v1814 = vsel %vm199, %v1725, 0
        %v1817 = vsel %vm199, %v1726, 0
        %v1820 = vsel %vm199, %v1727, 0
        %v1823 = vsel %vm199, %v1728, 0
        %v1826 = vsel %vm199, %v1729, 0
        %v1829 = vsel %vm199, %v1730, 0
        %v1832 = vsel %vm199, %v1731, 0
        %v1835 = vsel %vm199, %v1732, 0
        %v1838 = vsel %vm199, %v1733, 0
        %v1841 = vsel %vm199, %v1734, 0
        %v1844 = vsel %vm199, %v1735, 0
        %v1847 = vsel %vm199, %v1736, 0
        %v1850 = vsel %vm199, %v1737, 0
        %v1853 = vsel %vm199, %v1738, 0
        %v1856 = vsel %vm199, %v1739, 0
        %v1859 = vsel %vm199, %v1740, 0
        %v1862 = vsel %vm199, %v1741, 0
        %v1865 = vsel %vm199, %v1742, 0
        %v1868 = vsel %vm199, %v1743, 0
        %v1871 = vsel %vm199, %v1744, 0
        %v1874 = vsel %vm199, %v1745, 0
        %v1877 = vsel %vm199, %v1746, 0
        %v1880 = vsel %vm199, %v1747, 0
        %v1883 = vsel %vm199, %v1748, 0
        %v1886 = vsel %vm199, %v1749, 0
        %v1889 = vsel %vm199, %v1750, 0
        %v1892 = vsel %vm199, %v1751, 0
        %v1895 = vsel %vm199, %v1752, 0
        %v1898 = vsel %vm199, %v1753, 0
        %v1901 = vsel %vm199, %v1754, 0
        %1903 = vmatprep.subr.bf16.mxu0 %v1792
        %1904 = vmatpush1.bf16.msra.mxu0 %v1791
        %1905 = vmatprep.subr.bf16.mxu0 %v1794
        %1906 = vmatpush1.bf16.msra.mxu0 %v1793
        %1907 = vmatprep.subr.bf16.mxu0 %v1796
        %1908 = vmatpush1.bf16.msra.mxu0 %v1795
        %1909 = vmatprep.subr.bf16.mxu0 %v1798
        %1910 = vmatpush1.bf16.msra.mxu0 %v1797
        %1911 = vmatprep.subr.bf16.mxu0 0
        %1912 = vmatpush1.bf16.msra.mxu0 0
        %1913 = vmatprep.subr.bf16.mxu0 0
        %1914 = vmatpush1.bf16.msra.mxu0 0
        %1915 = vmatprep.subr.bf16.mxu0 0
        %1916 = vmatpush1.bf16.msra.mxu0 0
        %1917 = vmatprep.subr.bf16.mxu0 0
        %1918 = vmatpush1.bf16.msra.mxu0 0
        %1919 = vmatprep.subr.bf16.mxu0 0
        %1920 = vmatpush1.bf16.msra.mxu0 0
        %1921 = vmatprep.subr.bf16.mxu0 0
        %1922 = vmatpush1.bf16.msra.mxu0 0
        %1923 = vmatprep.subr.bf16.mxu0 0
        %1924 = vmatpush1.bf16.msra.mxu0 0
        %1925 = vmatprep.subr.bf16.mxu0 0
        %1926 = vmatpush1.bf16.msra.mxu0 0
        %1927 = vmatprep.subr.bf16.mxu0 0
        %1928 = vmatpush1.bf16.msra.mxu0 0
        %1929 = vmatprep.subr.bf16.mxu0 0
        %1930 = vmatpush1.bf16.msra.mxu0 0
        %1931 = vmatprep.subr.bf16.mxu0 0
        %1932 = vmatpush1.bf16.msra.mxu0 0
        %1933 = vmatprep.subr.bf16.mxu0 0
        %1934 = vmatpush1.bf16.msra.mxu0 0
        %1935 = vmatprep.mubr.bf16.mxu0 0
        %1936 = vmatmul.mubr.bf16.gmra.mrb[0].mxu0 %v1808
        %v1937 = vpop.f32.mrb[0].mxu0
        %v1938 = vadd.f32 0.0, %v1937
        %v1939 = vpop.f32.mrb[0].mxu0
        %v1940 = vadd.f32 0.0, %v1939
        %v1941 = vpop.f32.mrb[0].mxu0
        %v1942 = vadd.f32 0.0, %v1941
        %v1943 = vpop.f32.mrb[0].mxu0
        %v1944 = vadd.f32 0.0, %v1943
        %1945 = vmatprep.mubr.bf16.mxu0 0
        %1946 = vmatmul.mubr.bf16.gmra.mrb[0].mxu0 %v1811
        %v1947 = vpop.f32.mrb[0].mxu0
        %v1948 = vadd.f32 0.0, %v1947
        %v1949 = vpop.f32.mrb[0].mxu0
        %v1950 = vadd.f32 0.0, %v1949
        %v1951 = vpop.f32.mrb[0].mxu0
        %v1952 = vpop.f32.mrb[0].mxu0
        %1953 = vmatprep.mubr.bf16.mxu0 0
        %1954 = vmatmul.mubr.bf16.gmra.mrb[0].mxu0 %v1814
        %v1955 = vpop.f32.mrb[0].mxu0
        %v1956 = vadd.f32 0.0, %v1955
        %v1957 = vpop.f32.mrb[0].mxu0
        %v1958 = vadd.f32 0.0, %v1957
        %v1959 = vpop.f32.mrb[0].mxu0
        %v1960 = vadd.f32 0.0, %v1959
        %v1961 = vpop.f32.mrb[0].mxu0
        %v1962 = vadd.f32 0.0, %v1961
        %1963 = vmatprep.mubr.bf16.mxu0 0
        %1964 = vmatmul.mubr.bf16.gmra.mrb[0].mxu0 %v1817
        %v1965 = vpop.f32.mrb[0].mxu0
        %v1966 = vadd.f32 0.0, %v1965
        %v1967 = vpop.f32.mrb[0].mxu0
        %v1968 = vadd.f32 0.0, %v1967
        %v1969 = vpop.f32.mrb[0].mxu0
        %v1970 = vpop.f32.mrb[0].mxu0
        %1971 = vmatprep.mubr.bf16.mxu0 0
        %1972 = vmatmul.mubr.bf16.gmra.mrb[0].mxu0 %v1820
        %v1973 = vpop.f32.mrb[0].mxu0
        %v1974 = vadd.f32 0.0, %v1973
        %v1975 = vpop.f32.mrb[0].mxu0
        %v1976 = vadd.f32 0.0, %v1975
        %v1977 = vpop.f32.mrb[0].mxu0
        %v1978 = vadd.f32 0.0, %v1977
        %v1979 = vpop.f32.mrb[0].mxu0
        %v1980 = vadd.f32 0.0, %v1979
        %1981 = vmatprep.mubr.bf16.mxu0 0
        %1982 = vmatmul.mubr.bf16.gmra.mrb[0].mxu0 %v1823
        %v1983 = vpop.f32.mrb[0].mxu0
        %v1984 = vadd.f32 0.0, %v1983
        %v1985 = vpop.f32.mrb[0].mxu0
        %v1986 = vadd.f32 0.0, %v1985
        %v1987 = vpop.f32.mrb[0].mxu0
        %v1988 = vpop.f32.mrb[0].mxu0
        %1989 = vmatprep.mubr.bf16.mxu0 0
        %1990 = vmatmul.mubr.bf16.gmra.mrb[0].mxu0 %v1826
        %v1991 = vpop.f32.mrb[0].mxu0
        %v1992 = vadd.f32 0.0, %v1991
        %v1993 = vpop.f32.mrb[0].mxu0
        %v1994 = vadd.f32 0.0, %v1993
        %v1995 = vpop.f32.mrb[0].mxu0
        %v1996 = vadd.f32 0.0, %v1995
        %v1997 = vpop.f32.mrb[0].mxu0
        %v1998 = vadd.f32 0.0, %v1997
        %1999 = vmatprep.mubr.bf16.mxu0 0
        %2000 = vmatmul.mubr.bf16.gmra.mrb[0].mxu0 %v1829
        %v2001 = vpop.f32.mrb[0].mxu0
        %v2002 = vadd.f32 0.0, %v2001
        %v2003 = vpop.f32.mrb[0].mxu0
        %v2004 = vadd.f32 0.0, %v2003
        %v2005 = vpop.f32.mrb[0].mxu0
        %v2006 = vpop.f32.mrb[0].mxu0
        %2007 = vmatprep.mubr.bf16.mxu0 0
        %2008 = vmatmul.mubr.bf16.gmra.mrb[0].mxu0 %v1832
        %v2009 = vpop.f32.mrb[0].mxu0
        %v2010 = vadd.f32 0.0, %v2009
        %v2011 = vpop.f32.mrb[0].mxu0
        %v2012 = vadd.f32 0.0, %v2011
        %v2013 = vpop.f32.mrb[0].mxu0
        %v2014 = vadd.f32 0.0, %v2013
        %v2015 = vpop.f32.mrb[0].mxu0
        %v2016 = vadd.f32 0.0, %v2015
        %2017 = vmatprep.mubr.bf16.mxu0 0
        %2018 = vmatmul.mubr.bf16.gmra.mrb[0].mxu0 %v1835
        %v2019 = vpop.f32.mrb[0].mxu0
        %v2020 = vadd.f32 0.0, %v2019
        %v2021 = vpop.f32.mrb[0].mxu0
        %v2022 = vadd.f32 0.0, %v2021
        %v2023 = vpop.f32.mrb[0].mxu0
        %v2024 = vpop.f32.mrb[0].mxu0
        %2025 = vmatprep.mubr.bf16.mxu0 0
        %2026 = vmatmul.mubr.bf16.gmra.mrb[0].mxu0 %v1838
        %v2027 = vpop.f32.mrb[0].mxu0
        %v2028 = vadd.f32 0.0, %v2027
        %v2029 = vpop.f32.mrb[0].mxu0
        %v2030 = vadd.f32 0.0, %v2029
        %v2031 = vpop.f32.mrb[0].mxu0
        %v2032 = vadd.f32 0.0, %v2031
        %v2033 = vpop.f32.mrb[0].mxu0
        %v2034 = vadd.f32 0.0, %v2033
        %2035 = vmatprep.mubr.bf16.mxu0 0
        %2036 = vmatmul.mubr.bf16.gmra.mrb[0].mxu0 %v1841
        %v2037 = vpop.f32.mrb[0].mxu0
        %v2038 = vadd.f32 0.0, %v2037
        %v2039 = vpop.f32.mrb[0].mxu0
        %v2040 = vadd.f32 0.0, %v2039
        %v2041 = vpop.f32.mrb[0].mxu0
        %v2042 = vpop.f32.mrb[0].mxu0
        %2043 = vmatprep.mubr.bf16.mxu0 0
        %2044 = vmatmul.mubr.bf16.gmra.mrb[0].mxu0 %v1844
        %v2045 = vpop.f32.mrb[0].mxu0
        %v2046 = vadd.f32 0.0, %v2045
        %v2047 = vpop.f32.mrb[0].mxu0
        %v2048 = vadd.f32 0.0, %v2047
        %v2049 = vpop.f32.mrb[0].mxu0
        %v2050 = vadd.f32 0.0, %v2049
        %v2051 = vpop.f32.mrb[0].mxu0
        %v2052 = vadd.f32 0.0, %v2051
        %2053 = vmatprep.mubr.bf16.mxu0 0
        %2054 = vmatmul.mubr.bf16.gmra.mrb[0].mxu0 %v1847
        %v2055 = vpop.f32.mrb[0].mxu0
        %v2056 = vadd.f32 0.0, %v2055
        %v2057 = vpop.f32.mrb[0].mxu0
        %v2058 = vadd.f32 0.0, %v2057
        %v2059 = vpop.f32.mrb[0].mxu0
        %v2060 = vpop.f32.mrb[0].mxu0
        %2061 = vmatprep.mubr.bf16.mxu0 0
        %2062 = vmatmul.mubr.bf16.gmra.mrb[0].mxu0 %v1850
        %v2063 = vpop.f32.mrb[0].mxu0
        %v2064 = vadd.f32 0.0, %v2063
        %v2065 = vpop.f32.mrb[0].mxu0
        %v2066 = vadd.f32 0.0, %v2065
        %v2067 = vpop.f32.mrb[0].mxu0
        %v2068 = vadd.f32 0.0, %v2067
        %v2069 = vpop.f32.mrb[0].mxu0
        %v2070 = vadd.f32 0.0, %v2069
        %2071 = vmatprep.mubr.bf16.mxu0 0
        %2072 = vmatmul.mubr.bf16.gmra.mrb[0].mxu0 %v1853
        %v2073 = vpop.f32.mrb[0].mxu0
        %v2074 = vadd.f32 0.0, %v2073
        %v2075 = vpop.f32.mrb[0].mxu0
        %v2076 = vadd.f32 0.0, %v2075
        %v2077 = vpop.f32.mrb[0].mxu0
        %v2078 = vpop.f32.mrb[0].mxu0
        %2079 = vmatprep.mubr.bf16.mxu0 0
        %2080 = vmatmul.mubr.bf16.gmra.mrb[0].mxu0 %v1856
        %v2081 = vpop.f32.mrb[0].mxu0
        %v2082 = vadd.f32 0.0, %v2081
        %v2083 = vpop.f32.mrb[0].mxu0
        %v2084 = vadd.f32 0.0, %v2083
        %v2085 = vpop.f32.mrb[0].mxu0
        %v2086 = vadd.f32 0.0, %v2085
        %v2087 = vpop.f32.mrb[0].mxu0
        %v2088 = vadd.f32 0.0, %v2087
        %2089 = vmatprep.mubr.bf16.mxu0 0
        %2090 = vmatmul.mubr.bf16.gmra.mrb[0].mxu0 %v1859
        %v2091 = vpop.f32.mrb[0].mxu0
        %v2092 = vadd.f32 0.0, %v2091
        %v2093 = vpop.f32.mrb[0].mxu0
        %v2094 = vadd.f32 0.0, %v2093
        %v2095 = vpop.f32.mrb[0].mxu0
        %v2096 = vpop.f32.mrb[0].mxu0
        %2097 = vmatprep.mubr.bf16.mxu0 0
        %2098 = vmatmul.mubr.bf16.gmra.mrb[0].mxu0 %v1862
        %v2099 = vpop.f32.mrb[0].mxu0
        %v2100 = vadd.f32 0.0, %v2099
        %v2101 = vpop.f32.mrb[0].mxu0
        %v2102 = vadd.f32 0.0, %v2101
        %v2103 = vpop.f32.mrb[0].mxu0
        %v2104 = vadd.f32 0.0, %v2103
        %v2105 = vpop.f32.mrb[0].mxu0
        %v2106 = vadd.f32 0.0, %v2105
        %2107 = vmatprep.mubr.bf16.mxu0 0
        %2108 = vmatmul.mubr.bf16.gmra.mrb[0].mxu0 %v1865
        %v2109 = vpop.f32.mrb[0].mxu0
        %v2110 = vadd.f32 0.0, %v2109
        %v2111 = vpop.f32.mrb[0].mxu0
        %v2112 = vadd.f32 0.0, %v2111
        %v2113 = vpop.f32.mrb[0].mxu0
        %v2114 = vpop.f32.mrb[0].mxu0
        %2115 = vmatprep.mubr.bf16.mxu0 0
        %2116 = vmatmul.mubr.bf16.gmra.mrb[0].mxu0 %v1868
        %v2117 = vpop.f32.mrb[0].mxu0
        %v2118 = vadd.f32 0.0, %v2117
        %v2119 = vpop.f32.mrb[0].mxu0
        %v2120 = vadd.f32 0.0, %v2119
        %v2121 = vpop.f32.mrb[0].mxu0
        %v2122 = vadd.f32 0.0, %v2121
        %v2123 = vpop.f32.mrb[0].mxu0
        %v2124 = vadd.f32 0.0, %v2123
        %2125 = vmatprep.mubr.bf16.mxu0 0
        %2126 = vmatmul.mubr.bf16.gmra.mrb[0].mxu0 %v1871
        %v2127 = vpop.f32.mrb[0].mxu0
        %v2128 = vadd.f32 0.0, %v2127
        %v2129 = vpop.f32.mrb[0].mxu0
        %v2130 = vadd.f32 0.0, %v2129
        %v2131 = vpop.f32.mrb[0].mxu0
        %v2132 = vpop.f32.mrb[0].mxu0
        %2133 = vmatprep.mubr.bf16.mxu0 0
        %2134 = vmatmul.mubr.bf16.gmra.mrb[0].mxu0 %v1874
        %v2135 = vpop.f32.mrb[0].mxu0
        %v2136 = vadd.f32 0.0, %v2135
        %v2137 = vpop.f32.mrb[0].mxu0
        %v2138 = vadd.f32 0.0, %v2137
        %v2139 = vpop.f32.mrb[0].mxu0
        %v2140 = vadd.f32 0.0, %v2139
        %v2141 = vpop.f32.mrb[0].mxu0
        %v2142 = vadd.f32 0.0, %v2141
        %2143 = vmatprep.mubr.bf16.mxu0 0
        %2144 = vmatmul.mubr.bf16.gmra.mrb[0].mxu0 %v1877
        %v2145 = vpop.f32.mrb[0].mxu0
        %v2146 = vadd.f32 0.0, %v2145
        %v2147 = vpop.f32.mrb[0].mxu0
        %v2148 = vadd.f32 0.0, %v2147
        %v2149 = vpop.f32.mrb[0].mxu0
        %v2150 = vpop.f32.mrb[0].mxu0
        %2151 = vmatprep.mubr.bf16.mxu0 0
        %2152 = vmatmul.mubr.bf16.gmra.mrb[0].mxu0 %v1880
        %v2153 = vpop.f32.mrb[0].mxu0
        %v2154 = vadd.f32 0.0, %v2153
        %v2155 = vpop.f32.mrb[0].mxu0
        %v2156 = vadd.f32 0.0, %v2155
        %v2157 = vpop.f32.mrb[0].mxu0
        %v2158 = vadd.f32 0.0, %v2157
        %v2159 = vpop.f32.mrb[0].mxu0
        %v2160 = vadd.f32 0.0, %v2159
        %2161 = vmatprep.mubr.bf16.mxu0 0
        %2162 = vmatmul.mubr.bf16.gmra.mrb[0].mxu0 %v1883
        %v2163 = vpop.f32.mrb[0].mxu0
        %v2164 = vadd.f32 0.0, %v2163
        %v2165 = vpop.f32.mrb[0].mxu0
        %v2166 = vadd.f32 0.0, %v2165
        %v2167 = vpop.f32.mrb[0].mxu0
        %v2168 = vpop.f32.mrb[0].mxu0
        %2169 = vmatprep.mubr.bf16.mxu0 0
        %2170 = vmatmul.mubr.bf16.gmra.mrb[0].mxu0 %v1886
        %v2171 = vpop.f32.mrb[0].mxu0
        %v2172 = vadd.f32 0.0, %v2171
        %v2173 = vpop.f32.mrb[0].mxu0
        %v2174 = vadd.f32 0.0, %v2173
        %v2175 = vpop.f32.mrb[0].mxu0
        %v2176 = vadd.f32 0.0, %v2175
        %v2177 = vpop.f32.mrb[0].mxu0
        %v2178 = vadd.f32 0.0, %v2177
        %2179 = vmatprep.mubr.bf16.mxu0 0
        %2180 = vmatmul.mubr.bf16.gmra.mrb[0].mxu0 %v1889
        %v2181 = vpop.f32.mrb[0].mxu0
        %v2182 = vadd.f32 0.0, %v2181
        %v2183 = vpop.f32.mrb[0].mxu0
        %v2184 = vadd.f32 0.0, %v2183
        %v2185 = vpop.f32.mrb[0].mxu0
        %v2186 = vpop.f32.mrb[0].mxu0
        %2187 = vmatprep.mubr.bf16.mxu0 0
        %2188 = vmatmul.mubr.bf16.gmra.mrb[0].mxu0 %v1892
        %v2189 = vpop.f32.mrb[0].mxu0
        %v2190 = vadd.f32 0.0, %v2189
        %v2191 = vpop.f32.mrb[0].mxu0
        %v2192 = vadd.f32 0.0, %v2191
        %v2193 = vpop.f32.mrb[0].mxu0
        %v2194 = vadd.f32 0.0, %v2193
        %v2195 = vpop.f32.mrb[0].mxu0
        %v2196 = vadd.f32 0.0, %v2195
        %2197 = vmatprep.mubr.bf16.mxu0 0
        %2198 = vmatmul.mubr.bf16.gmra.mrb[0].mxu0 %v1895
        %v2199 = vpop.f32.mrb[0].mxu0
        %v2200 = vadd.f32 0.0, %v2199
        %v2201 = vpop.f32.mrb[0].mxu0
        %v2202 = vadd.f32 0.0, %v2201
        %v2203 = vpop.f32.mrb[0].mxu0
        %v2204 = vpop.f32.mrb[0].mxu0
        %2205 = vmatprep.mubr.bf16.mxu0 0
        %2206 = vmatmul.mubr.bf16.gmra.mrb[0].mxu0 %v1898
        %v2207 = vpop.f32.mrb[0].mxu0
        %v2208 = vadd.f32 0.0, %v2207
        %v2209 = vpop.f32.mrb[0].mxu0
        %v2210 = vadd.f32 0.0, %v2209
        %v2211 = vpop.f32.mrb[0].mxu0
        %v2212 = vadd.f32 0.0, %v2211
        %v2213 = vpop.f32.mrb[0].mxu0
        %v2214 = vadd.f32 0.0, %v2213
        %2215 = vmatprep.mubr.bf16.mxu0 0
        %2216 = vmatmul.mubr.bf16.gmra.mrb[0].mxu0 %v1901
        %v2217 = vpop.f32.mrb[0].mxu0
        %v2218 = vadd.f32 0.0, %v2217
        %v2219 = vpop.f32.mrb[0].mxu0
        %v2220 = vadd.f32 0.0, %v2219
        %v2221 = vpop.f32.mrb[0].mxu0
        %v2222 = vpop.f32.mrb[0].mxu0
        %2223 = vdwg.mxu0
        %v2224 = vadd.f32 %v1436, %v1938
        %v2225 = vadd.f32 %v1438, %v1940
        %v2226 = vadd.f32 %v1440, %v1942
        %v2227 = vadd.f32 %v1442, %v1944
        %v2228 = vadd.f32 %v1446, %v1948
        %v2229 = vadd.f32 %v1448, %v1950
        %v2230 = vadd.f32 %v1454, %v1956
        %v2231 = vadd.f32 %v1456, %v1958
        %v2232 = vadd.f32 %v1458, %v1960
        %v2233 = vadd.f32 %v1460, %v1962
        %v2234 = vadd.f32 %v1464, %v1966
        %v2235 = vadd.f32 %v1466, %v1968
        %v2236 = vadd.f32 %v1472, %v1974
        %v2237 = vadd.f32 %v1474, %v1976
        %v2238 = vadd.f32 %v1476, %v1978
        %v2239 = vadd.f32 %v1478, %v1980
        %v2240 = vadd.f32 %v1482, %v1984
        %v2241 = vadd.f32 %v1484, %v1986
        %v2242 = vadd.f32 %v1490, %v1992
        %v2243 = vadd.f32 %v1492, %v1994
        %v2244 = vadd.f32 %v1494, %v1996
        %v2245 = vadd.f32 %v1496, %v1998
        %v2246 = vadd.f32 %v1500, %v2002
        %v2247 = vadd.f32 %v1502, %v2004
        %v2248 = vadd.f32 %v1508, %v2010
        %v2249 = vadd.f32 %v1510, %v2012
        %v2250 = vadd.f32 %v1512, %v2014
        %v2251 = vadd.f32 %v1514, %v2016
        %v2252 = vadd.f32 %v1518, %v2020
        %v2253 = vadd.f32 %v1520, %v2022
        %v2254 = vadd.f32 %v1526, %v2028
        %v2255 = vadd.f32 %v1528, %v2030
        %v2256 = vadd.f32 %v1530, %v2032
        %v2257 = vadd.f32 %v1532, %v2034
        %v2258 = vadd.f32 %v1536, %v2038
        %v2259 = vadd.f32 %v1538, %v2040
        %v2260 = vadd.f32 %v1544, %v2046
        %v2261 = vadd.f32 %v1546, %v2048
        %v2262 = vadd.f32 %v1548, %v2050
        %v2263 = vadd.f32 %v1550, %v2052
        %v2264 = vadd.f32 %v1554, %v2056
        %v2265 = vadd.f32 %v1556, %v2058
        %v2266 = vadd.f32 %v1562, %v2064
        %v2267 = vadd.f32 %v1564, %v2066
        %v2268 = vadd.f32 %v1566, %v2068
        %v2269 = vadd.f32 %v1568, %v2070
        %v2270 = vadd.f32 %v1572, %v2074
        %v2271 = vadd.f32 %v1574, %v2076
        %v2272 = vadd.f32 %v1580, %v2082
        %v2273 = vadd.f32 %v1582, %v2084
        %v2274 = vadd.f32 %v1584, %v2086
        %v2275 = vadd.f32 %v1586, %v2088
        %v2276 = vadd.f32 %v1590, %v2092
        %v2277 = vadd.f32 %v1592, %v2094
        %v2278 = vadd.f32 %v1598, %v2100
        %v2279 = vadd.f32 %v1600, %v2102
        %v2280 = vadd.f32 %v1602, %v2104
        %v2281 = vadd.f32 %v1604, %v2106
        %v2282 = vadd.f32 %v1608, %v2110
        %v2283 = vadd.f32 %v1610, %v2112
        %v2284 = vadd.f32 %v1616, %v2118
        %v2285 = vadd.f32 %v1618, %v2120
        %v2286 = vadd.f32 %v1620, %v2122
        %v2287 = vadd.f32 %v1622, %v2124
        %v2288 = vadd.f32 %v1626, %v2128
        %v2289 = vadd.f32 %v1628, %v2130
        %v2290 = vadd.f32 %v1634, %v2136
        %v2291 = vadd.f32 %v1636, %v2138
        %v2292 = vadd.f32 %v1638, %v2140
        %v2293 = vadd.f32 %v1640, %v2142
        %v2294 = vadd.f32 %v1644, %v2146
        %v2295 = vadd.f32 %v1646, %v2148
        %v2296 = vadd.f32 %v1652, %v2154
        %v2297 = vadd.f32 %v1654, %v2156
        %v2298 = vadd.f32 %v1656, %v2158
        %v2299 = vadd.f32 %v1658, %v2160
        %v2300 = vadd.f32 %v1662, %v2164
        %v2301 = vadd.f32 %v1664, %v2166
        %v2302 = vadd.f32 %v1670, %v2172
        %v2303 = vadd.f32 %v1672, %v2174
        %v2304 = vadd.f32 %v1674, %v2176
        %v2305 = vadd.f32 %v1676, %v2178
        %v2306 = vadd.f32 %v1680, %v2182
        %v2307 = vadd.f32 %v1682, %v2184
        %v2308 = vadd.f32 %v1688, %v2190
        %v2309 = vadd.f32 %v1690, %v2192
        %v2310 = vadd.f32 %v1692, %v2194
        %v2311 = vadd.f32 %v1694, %v2196
        %v2312 = vadd.f32 %v1698, %v2200
        %v2313 = vadd.f32 %v1700, %v2202
        %v2314 = vadd.f32 %v1706, %v2208
        %v2315 = vadd.f32 %v1708, %v2210
        %v2316 = vadd.f32 %v1710, %v2212
        %v2317 = vadd.f32 %v1712, %v2214
        %v2318 = vadd.f32 %v1716, %v2218
        %v2319 = vadd.f32 %v1718, %v2220
        %vm2368 = vcmask 1046528
        %v2369 = vrot.slane %v2224, 1
        %v2370 = vrot.slane %v2226, 1
        %v2371 = vsel %vm2368, %v2369, %v2370
        %v2372 = vrot.slane %v2228, 1
        %v2373 = vsel %vm2368, %v2370, %v2372
        %v2374 = vrot.slane %v2230, 1
        %v2375 = vrot.slane %v2232, 1
        %v2376 = vsel %vm2368, %v2374, %v2375
        %v2377 = vrot.slane %v2234, 1
        %v2378 = vsel %vm2368, %v2375, %v2377
        %v2379 = vrot.slane %v2236, 1
        %v2380 = vrot.slane %v2238, 1
        %v2381 = vsel %vm2368, %v2379, %v2380
        %v2382 = vrot.slane %v2240, 1
        %v2383 = vsel %vm2368, %v2380, %v2382
        %v2384 = vrot.slane %v2242, 1
        %v2385 = vrot.slane %v2244, 1
        %v2386 = vsel %vm2368, %v2384, %v2385
        %v2387 = vrot.slane %v2246, 1
        %v2388 = vsel %vm2368, %v2385, %v2387
        %v2389 = vrot.slane %v2248, 1
        %v2390 = vrot.slane %v2250, 1
        %v2391 = vsel %vm2368, %v2389, %v2390
        %v2392 = vrot.slane %v2252, 1
        %v2393 = vsel %vm2368, %v2390, %v2392
        %v2394 = vrot.slane %v2254, 1
        %v2395 = vrot.slane %v2256, 1
        %v2396 = vsel %vm2368, %v2394, %v2395
        %v2397 = vrot.slane %v2258, 1
        %v2398 = vsel %vm2368, %v2395, %v2397
        %v2399 = vrot.slane %v2260, 1
        %v2400 = vrot.slane %v2262, 1
        %v2401 = vsel %vm2368, %v2399, %v2400
        %v2402 = vrot.slane %v2264, 1
        %v2403 = vsel %vm2368, %v2400, %v2402
        %v2404 = vrot.slane %v2266, 1
        %v2405 = vrot.slane %v2268, 1
        %v2406 = vsel %vm2368, %v2404, %v2405
        %v2407 = vrot.slane %v2270, 1
        %v2408 = vsel %vm2368, %v2405, %v2407
        %v2409 = vrot.slane %v2272, 1
        %v2410 = vrot.slane %v2274, 1
        %v2411 = vsel %vm2368, %v2409, %v2410
        %v2412 = vrot.slane %v2276, 1
        %v2413 = vsel %vm2368, %v2410, %v2412
        %v2414 = vrot.slane %v2278, 1
        %v2415 = vrot.slane %v2280, 1
        %v2416 = vsel %vm2368, %v2414, %v2415
        %v2417 = vrot.slane %v2282, 1
        %v2418 = vsel %vm2368, %v2415, %v2417
        %v2419 = vrot.slane %v2284, 1
        %v2420 = vrot.slane %v2286, 1
        %v2421 = vsel %vm2368, %v2419, %v2420
        %v2422 = vrot.slane %v2288, 1
        %v2423 = vsel %vm2368, %v2420, %v2422
        %v2424 = vrot.slane %v2290, 1
        %v2425 = vrot.slane %v2292, 1
        %v2426 = vsel %vm2368, %v2424, %v2425
        %v2427 = vrot.slane %v2294, 1
        %v2428 = vsel %vm2368, %v2425, %v2427
        %v2429 = vrot.slane %v2296, 1
        %v2430 = vrot.slane %v2298, 1
        %v2431 = vsel %vm2368, %v2429, %v2430
        %v2432 = vrot.slane %v2300, 1
        %v2433 = vsel %vm2368, %v2430, %v2432
        %v2434 = vrot.slane %v2302, 1
        %v2435 = vrot.slane %v2304, 1
        %v2436 = vsel %vm2368, %v2434, %v2435
        %v2437 = vrot.slane %v2306, 1
        %v2438 = vsel %vm2368, %v2435, %v2437
        %v2439 = vrot.slane %v2308, 1
        %v2440 = vrot.slane %v2310, 1
        %v2441 = vsel %vm2368, %v2439, %v2440
        %v2442 = vrot.slane %v2312, 1
        %v2443 = vsel %vm2368, %v2440, %v2442
        %v2444 = vrot.slane %v2314, 1
        %v2445 = vrot.slane %v2316, 1
        %v2446 = vsel %vm2368, %v2444, %v2445
        %v2447 = vrot.slane %v2318, 1
        %v2448 = vsel %vm2368, %v2445, %v2447
        %2449 = vrot.lane.b32.xlu0 %v2371, 64
        %v2450 = vpop.permute.xlu0 %2449
        %2451 = vrot.lane.b32.xlu0 %v2373, 64
        %v2452 = vpop.permute.xlu0 %2451
        %2453 = vrot.lane.b32.xlu0 %v2376, 64
        %v2454 = vpop.permute.xlu0 %2453
        %2455 = vrot.lane.b32.xlu0 %v2378, 64
        %v2456 = vpop.permute.xlu0 %2455
        %2457 = vrot.lane.b32.xlu0 %v2381, 64
        %v2458 = vpop.permute.xlu0 %2457
        %2459 = vrot.lane.b32.xlu0 %v2383, 64
        %v2460 = vpop.permute.xlu0 %2459
        %2461 = vrot.lane.b32.xlu0 %v2386, 64
        %v2462 = vpop.permute.xlu0 %2461
        %2463 = vrot.lane.b32.xlu0 %v2388, 64
        %v2464 = vpop.permute.xlu0 %2463
        %2465 = vrot.lane.b32.xlu0 %v2391, 64
        %v2466 = vpop.permute.xlu0 %2465
        %2467 = vrot.lane.b32.xlu0 %v2393, 64
        %v2468 = vpop.permute.xlu0 %2467
        %2469 = vrot.lane.b32.xlu0 %v2396, 64
        %v2470 = vpop.permute.xlu0 %2469
        %2471 = vrot.lane.b32.xlu0 %v2398, 64
        %v2472 = vpop.permute.xlu0 %2471
        %2473 = vrot.lane.b32.xlu0 %v2401, 64
        %v2474 = vpop.permute.xlu0 %2473
        %2475 = vrot.lane.b32.xlu0 %v2403, 64
        %v2476 = vpop.permute.xlu0 %2475
        %2477 = vrot.lane.b32.xlu0 %v2406, 64
        %v2478 = vpop.permute.xlu0 %2477
        %2479 = vrot.lane.b32.xlu0 %v2408, 64
        %v2480 = vpop.permute.xlu0 %2479
        %2481 = vrot.lane.b32.xlu0 %v2411, 64
        %v2482 = vpop.permute.xlu0 %2481
        %2483 = vrot.lane.b32.xlu0 %v2413, 64
        %v2484 = vpop.permute.xlu0 %2483
        %2485 = vrot.lane.b32.xlu0 %v2416, 64
        %v2486 = vpop.permute.xlu0 %2485
        %2487 = vrot.lane.b32.xlu0 %v2418, 64
        %v2488 = vpop.permute.xlu0 %2487
        %2489 = vrot.lane.b32.xlu0 %v2421, 64
        %v2490 = vpop.permute.xlu0 %2489
        %2491 = vrot.lane.b32.xlu0 %v2423, 64
        %v2492 = vpop.permute.xlu0 %2491
        %2493 = vrot.lane.b32.xlu0 %v2426, 64
        %v2494 = vpop.permute.xlu0 %2493
        %2495 = vrot.lane.b32.xlu0 %v2428, 64
        %v2496 = vpop.permute.xlu0 %2495
        %2497 = vrot.lane.b32.xlu0 %v2431, 64
        %v2498 = vpop.permute.xlu0 %2497
        %2499 = vrot.lane.b32.xlu0 %v2433, 64
        %v2500 = vpop.permute.xlu0 %2499
        %2501 = vrot.lane.b32.xlu0 %v2436, 64
        %v2502 = vpop.permute.xlu0 %2501
        %2503 = vrot.lane.b32.xlu0 %v2438, 64
        %v2504 = vpop.permute.xlu0 %2503
        %2505 = vrot.lane.b32.xlu0 %v2441, 64
        %v2506 = vpop.permute.xlu0 %2505
        %2507 = vrot.lane.b32.xlu0 %v2443, 64
        %v2508 = vpop.permute.xlu0 %2507
        %2509 = vrot.lane.b32.xlu0 %v2446, 64
        %v2510 = vpop.permute.xlu0 %2509
        %2511 = vrot.lane.b32.xlu0 %v2448, 64
        %v2512 = vpop.permute.xlu0 %2511
        %v2545 = vadd.f32 %v2224, %v2450
        %v2546 = vadd.f32 %v2226, %v2452
        %v2547 = vadd.f32 %v2230, %v2454
        %v2548 = vadd.f32 %v2232, %v2456
        %v2549 = vadd.f32 %v2236, %v2458
        %v2550 = vadd.f32 %v2238, %v2460
        %v2551 = vadd.f32 %v2242, %v2462
        %v2552 = vadd.f32 %v2244, %v2464
        %v2553 = vadd.f32 %v2248, %v2466
        %v2554 = vadd.f32 %v2250, %v2468
        %v2555 = vadd.f32 %v2254, %v2470
        %v2556 = vadd.f32 %v2256, %v2472
        %v2557 = vadd.f32 %v2260, %v2474
        %v2558 = vadd.f32 %v2262, %v2476
        %v2559 = vadd.f32 %v2266, %v2478
        %v2560 = vadd.f32 %v2268, %v2480
        %v2561 = vadd.f32 %v2272, %v2482
        %v2562 = vadd.f32 %v2274, %v2484
        %v2563 = vadd.f32 %v2278, %v2486
        %v2564 = vadd.f32 %v2280, %v2488
        %v2565 = vadd.f32 %v2284, %v2490
        %v2566 = vadd.f32 %v2286, %v2492
        %v2567 = vadd.f32 %v2290, %v2494
        %v2568 = vadd.f32 %v2292, %v2496
        %v2569 = vadd.f32 %v2296, %v2498
        %v2570 = vadd.f32 %v2298, %v2500
        %v2571 = vadd.f32 %v2302, %v2502
        %v2572 = vadd.f32 %v2304, %v2504
        %v2573 = vadd.f32 %v2308, %v2506
        %v2574 = vadd.f32 %v2310, %v2508
        %v2575 = vadd.f32 %v2314, %v2510
        %v2576 = vadd.f32 %v2316, %v2512
        %vm2625 = vcmask 1045504
        %v2626 = vrot.slane %v2225, 2
        %v2627 = vrot.slane %v2227, 2
        %v2628 = vsel %vm2625, %v2626, %v2627
        %v2629 = vrot.slane %v2229, 2
        %v2630 = vsel %vm2625, %v2627, %v2629
        %v2631 = vrot.slane %v2231, 2
        %v2632 = vrot.slane %v2233, 2
        %v2633 = vsel %vm2625, %v2631, %v2632
        %v2634 = vrot.slane %v2235, 2
        %v2635 = vsel %vm2625, %v2632, %v2634
        %v2636 = vrot.slane %v2237, 2
        %v2637 = vrot.slane %v2239, 2
        %v2638 = vsel %vm2625, %v2636, %v2637
        %v2639 = vrot.slane %v2241, 2
        %v2640 = vsel %vm2625, %v2637, %v2639
        %v2641 = vrot.slane %v2243, 2
        %v2642 = vrot.slane %v2245, 2
        %v2643 = vsel %vm2625, %v2641, %v2642
        %v2644 = vrot.slane %v2247, 2
        %v2645 = vsel %vm2625, %v2642, %v2644
        %v2646 = vrot.slane %v2249, 2
        %v2647 = vrot.slane %v2251, 2
        %v2648 = vsel %vm2625, %v2646, %v2647
        %v2649 = vrot.slane %v2253, 2
        %v2650 = vsel %vm2625, %v2647, %v2649
        %v2651 = vrot.slane %v2255, 2
        %v2652 = vrot.slane %v2257, 2
        %v2653 = vsel %vm2625, %v2651, %v2652
        %v2654 = vrot.slane %v2259, 2
        %v2655 = vsel %vm2625, %v2652, %v2654
        %v2656 = vrot.slane %v2261, 2
        %v2657 = vrot.slane %v2263, 2
        %v2658 = vsel %vm2625, %v2656, %v2657
        %v2659 = vrot.slane %v2265, 2
        %v2660 = vsel %vm2625, %v2657, %v2659
        %v2661 = vrot.slane %v2267, 2
        %v2662 = vrot.slane %v2269, 2
        %v2663 = vsel %vm2625, %v2661, %v2662
        %v2664 = vrot.slane %v2271, 2
        %v2665 = vsel %vm2625, %v2662, %v2664
        %v2666 = vrot.slane %v2273, 2
        %v2667 = vrot.slane %v2275, 2
        %v2668 = vsel %vm2625, %v2666, %v2667
        %v2669 = vrot.slane %v2277, 2
        %v2670 = vsel %vm2625, %v2667, %v2669
        %v2671 = vrot.slane %v2279, 2
        %v2672 = vrot.slane %v2281, 2
        %v2673 = vsel %vm2625, %v2671, %v2672
        %v2674 = vrot.slane %v2283, 2
        %v2675 = vsel %vm2625, %v2672, %v2674
        %v2676 = vrot.slane %v2285, 2
        %v2677 = vrot.slane %v2287, 2
        %v2678 = vsel %vm2625, %v2676, %v2677
        %v2679 = vrot.slane %v2289, 2
        %v2680 = vsel %vm2625, %v2677, %v2679
        %v2681 = vrot.slane %v2291, 2
        %v2682 = vrot.slane %v2293, 2
        %v2683 = vsel %vm2625, %v2681, %v2682
        %v2684 = vrot.slane %v2295, 2
        %v2685 = vsel %vm2625, %v2682, %v2684
        %v2686 = vrot.slane %v2297, 2
        %v2687 = vrot.slane %v2299, 2
        %v2688 = vsel %vm2625, %v2686, %v2687
        %v2689 = vrot.slane %v2301, 2
        %v2690 = vsel %vm2625, %v2687, %v2689
        %v2691 = vrot.slane %v2303, 2
        %v2692 = vrot.slane %v2305, 2
        %v2693 = vsel %vm2625, %v2691, %v2692
        %v2694 = vrot.slane %v2307, 2
        %v2695 = vsel %vm2625, %v2692, %v2694
        %v2696 = vrot.slane %v2309, 2
        %v2697 = vrot.slane %v2311, 2
        %v2698 = vsel %vm2625, %v2696, %v2697
        %v2699 = vrot.slane %v2313, 2
        %v2700 = vsel %vm2625, %v2697, %v2699
        %v2701 = vrot.slane %v2315, 2
        %v2702 = vrot.slane %v2317, 2
        %v2703 = vsel %vm2625, %v2701, %v2702
        %v2704 = vrot.slane %v2319, 2
        %v2705 = vsel %vm2625, %v2702, %v2704
        %v2738 = vadd.f32 %v2545, %v2628
        %v2739 = vadd.f32 %v2546, %v2630
        %v2740 = vadd.f32 %v2547, %v2633
        %v2741 = vadd.f32 %v2548, %v2635
        %v2742 = vadd.f32 %v2549, %v2638
        %v2743 = vadd.f32 %v2550, %v2640
        %v2744 = vadd.f32 %v2551, %v2643
        %v2745 = vadd.f32 %v2552, %v2645
        %v2746 = vadd.f32 %v2553, %v2648
        %v2747 = vadd.f32 %v2554, %v2650
        %v2748 = vadd.f32 %v2555, %v2653
        %v2749 = vadd.f32 %v2556, %v2655
        %v2750 = vadd.f32 %v2557, %v2658
        %v2751 = vadd.f32 %v2558, %v2660
        %v2752 = vadd.f32 %v2559, %v2663
        %v2753 = vadd.f32 %v2560, %v2665
        %v2754 = vadd.f32 %v2561, %v2668
        %v2755 = vadd.f32 %v2562, %v2670
        %v2756 = vadd.f32 %v2563, %v2673
        %v2757 = vadd.f32 %v2564, %v2675
        %v2758 = vadd.f32 %v2565, %v2678
        %v2759 = vadd.f32 %v2566, %v2680
        %v2760 = vadd.f32 %v2567, %v2683
        %v2761 = vadd.f32 %v2568, %v2685
        %v2762 = vadd.f32 %v2569, %v2688
        %v2763 = vadd.f32 %v2570, %v2690
        %v2764 = vadd.f32 %v2571, %v2693
        %v2765 = vadd.f32 %v2572, %v2695
        %v2766 = vadd.f32 %v2573, %v2698
        %v2767 = vadd.f32 %v2574, %v2700
        %v2768 = vadd.f32 %v2575, %v2703
        %v2769 = vadd.f32 %v2576, %v2705
        %s2770 = scalar_lea.vmem %s2, %s719
        %v2771 = vld [vmem:[%s2770] sm:$0x1]
        %v2773 = vlaneseq
        %v2774 = vshrl.u32 %v2773, 7
        %v2775 = vsub.s32 0, %v2774
        %v2776 = vrot.slane %v2771, %v2775
        %v2778 = vmul.f32 %v2738, %v2776
        %v2779 = vmul.f32 %v2739, %v2776
        %v2780 = vmul.f32 %v2740, %v2776
        %v2781 = vmul.f32 %v2741, %v2776
        %v2782 = vmul.f32 %v2742, %v2776
        %v2783 = vmul.f32 %v2743, %v2776
        %v2784 = vmul.f32 %v2744, %v2776
        %v2785 = vmul.f32 %v2745, %v2776
        %v2786 = vmul.f32 %v2746, %v2776
        %v2787 = vmul.f32 %v2747, %v2776
        %v2788 = vmul.f32 %v2748, %v2776
        %v2789 = vmul.f32 %v2749, %v2776
        %v2790 = vmul.f32 %v2750, %v2776
        %v2791 = vmul.f32 %v2751, %v2776
        %v2792 = vmul.f32 %v2752, %v2776
        %v2793 = vmul.f32 %v2753, %v2776
        %v2794 = vmul.f32 %v2754, %v2776
        %v2795 = vmul.f32 %v2755, %v2776
        %v2796 = vmul.f32 %v2756, %v2776
        %v2797 = vmul.f32 %v2757, %v2776
        %v2798 = vmul.f32 %v2758, %v2776
        %v2799 = vmul.f32 %v2759, %v2776
        %v2800 = vmul.f32 %v2760, %v2776
        %v2801 = vmul.f32 %v2761, %v2776
        %v2802 = vmul.f32 %v2762, %v2776
        %v2803 = vmul.f32 %v2763, %v2776
        %v2804 = vmul.f32 %v2764, %v2776
        %v2805 = vmul.f32 %v2765, %v2776
        %v2806 = vmul.f32 %v2766, %v2776
        %v2807 = vmul.f32 %v2767, %v2776
        %v2808 = vmul.f32 %v2768, %v2776
        %v2809 = vmul.f32 %v2769, %v2776
        %s2810 = scalar_lea.vmem %s3, %s719
        %v2811 = vld [vmem:[%s2810] sm:$0x1]
        %v2813 = vlaneseq
        %v2814 = vshrl.u32 %v2813, 7
        %v2815 = vsub.s32 0, %v2814
        %v2816 = vrot.slane %v2811, %v2815
        %v2818 = vadd.f32 %v2778, %v2816
        %v2819 = vadd.f32 %v2779, %v2816
        %v2820 = vadd.f32 %v2780, %v2816
        %v2821 = vadd.f32 %v2781, %v2816
        %v2822 = vadd.f32 %v2782, %v2816
        %v2823 = vadd.f32 %v2783, %v2816
        %v2824 = vadd.f32 %v2784, %v2816
        %v2825 = vadd.f32 %v2785, %v2816
        %v2826 = vadd.f32 %v2786, %v2816
        %v2827 = vadd.f32 %v2787, %v2816
        %v2828 = vadd.f32 %v2788, %v2816
        %v2829 = vadd.f32 %v2789, %v2816
        %v2830 = vadd.f32 %v2790, %v2816
        %v2831 = vadd.f32 %v2791, %v2816
        %v2832 = vadd.f32 %v2792, %v2816
        %v2833 = vadd.f32 %v2793, %v2816
        %v2834 = vadd.f32 %v2794, %v2816
        %v2835 = vadd.f32 %v2795, %v2816
        %v2836 = vadd.f32 %v2796, %v2816
        %v2837 = vadd.f32 %v2797, %v2816
        %v2838 = vadd.f32 %v2798, %v2816
        %v2839 = vadd.f32 %v2799, %v2816
        %v2840 = vadd.f32 %v2800, %v2816
        %v2841 = vadd.f32 %v2801, %v2816
        %v2842 = vadd.f32 %v2802, %v2816
        %v2843 = vadd.f32 %v2803, %v2816
        %v2844 = vadd.f32 %v2804, %v2816
        %v2845 = vadd.f32 %v2805, %v2816
        %v2846 = vadd.f32 %v2806, %v2816
        %v2847 = vadd.f32 %v2807, %v2816
        %v2848 = vadd.f32 %v2808, %v2816
        %v2849 = vadd.f32 %v2809, %v2816
        %v2850 = vmax.f32 %v2818, 0.0
        %v2851 = vmax.f32 %v2819, 0.0
        %v2852 = vmax.f32 %v2820, 0.0
        %v2853 = vmax.f32 %v2821, 0.0
        %v2854 = vmax.f32 %v2822, 0.0
        %v2855 = vmax.f32 %v2823, 0.0
        %v2856 = vmax.f32 %v2824, 0.0
        %v2857 = vmax.f32 %v2825, 0.0
        %v2858 = vmax.f32 %v2826, 0.0
        %v2859 = vmax.f32 %v2827, 0.0
        %v2860 = vmax.f32 %v2828, 0.0
        %v2861 = vmax.f32 %v2829, 0.0
        %v2862 = vmax.f32 %v2830, 0.0
        %v2863 = vmax.f32 %v2831, 0.0
        %v2864 = vmax.f32 %v2832, 0.0
        %v2865 = vmax.f32 %v2833, 0.0
        %v2866 = vmax.f32 %v2834, 0.0
        %v2867 = vmax.f32 %v2835, 0.0
        %v2868 = vmax.f32 %v2836, 0.0
        %v2869 = vmax.f32 %v2837, 0.0
        %v2870 = vmax.f32 %v2838, 0.0
        %v2871 = vmax.f32 %v2839, 0.0
        %v2872 = vmax.f32 %v2840, 0.0
        %v2873 = vmax.f32 %v2841, 0.0
        %v2874 = vmax.f32 %v2842, 0.0
        %v2875 = vmax.f32 %v2843, 0.0
        %v2876 = vmax.f32 %v2844, 0.0
        %v2877 = vmax.f32 %v2845, 0.0
        %v2878 = vmax.f32 %v2846, 0.0
        %v2879 = vmax.f32 %v2847, 0.0
        %v2880 = vmax.f32 %v2848, 0.0
        %v2881 = vmax.f32 %v2849, 0.0
        %v2882 = vpack.c.bf16 %v2851, %v2850
        %v2883 = vpack.c.bf16 %v2853, %v2852
        %v2884 = vpack.c.bf16 %v2855, %v2854
        %v2885 = vpack.c.bf16 %v2857, %v2856
        %v2886 = vpack.c.bf16 %v2859, %v2858
        %v2887 = vpack.c.bf16 %v2861, %v2860
        %v2888 = vpack.c.bf16 %v2863, %v2862
        %v2889 = vpack.c.bf16 %v2865, %v2864
        %v2890 = vpack.c.bf16 %v2867, %v2866
        %v2891 = vpack.c.bf16 %v2869, %v2868
        %v2892 = vpack.c.bf16 %v2871, %v2870
        %v2893 = vpack.c.bf16 %v2873, %v2872
        %v2894 = vpack.c.bf16 %v2875, %v2874
        %v2895 = vpack.c.bf16 %v2877, %v2876
        %v2896 = vpack.c.bf16 %v2879, %v2878
        %v2897 = vpack.c.bf16 %v2881, %v2880
        %v2899 = vshrl.u32 %v2882, 16
        %v2901 = vrot.slane %v2899, 7
        %v2902 = vshll.u32 %v2882, 16
        %v2904 = vor.u32 %v2901, %v2902
        %v2906 = vshrl.u32 %v2883, 16
        %v2908 = vrot.slane %v2906, 7
        %v2909 = vshll.u32 %v2883, 16
        %v2911 = vor.u32 %v2908, %v2909
        %v2913 = vshrl.u32 %v2884, 16
        %v2915 = vrot.slane %v2913, 7
        %v2916 = vshll.u32 %v2884, 16
        %v2918 = vor.u32 %v2915, %v2916
        %v2920 = vshrl.u32 %v2885, 16
        %v2922 = vrot.slane %v2920, 7
        %v2923 = vshll.u32 %v2885, 16
        %v2925 = vor.u32 %v2922, %v2923
        %v2927 = vshrl.u32 %v2886, 16
        %v2929 = vrot.slane %v2927, 7
        %v2930 = vshll.u32 %v2886, 16
        %v2932 = vor.u32 %v2929, %v2930
        %v2934 = vshrl.u32 %v2887, 16
        %v2936 = vrot.slane %v2934, 7
        %v2937 = vshll.u32 %v2887, 16
        %v2939 = vor.u32 %v2936, %v2937
        %v2941 = vshrl.u32 %v2888, 16
        %v2943 = vrot.slane %v2941, 7
        %v2944 = vshll.u32 %v2888, 16
        %v2946 = vor.u32 %v2943, %v2944
        %v2948 = vshrl.u32 %v2889, 16
        %v2950 = vrot.slane %v2948, 7
        %v2951 = vshll.u32 %v2889, 16
        %v2953 = vor.u32 %v2950, %v2951
        %v2955 = vshrl.u32 %v2890, 16
        %v2957 = vrot.slane %v2955, 7
        %v2958 = vshll.u32 %v2890, 16
        %v2960 = vor.u32 %v2957, %v2958
        %v2962 = vshrl.u32 %v2891, 16
        %v2964 = vrot.slane %v2962, 7
        %v2965 = vshll.u32 %v2891, 16
        %v2967 = vor.u32 %v2964, %v2965
        %v2969 = vshrl.u32 %v2892, 16
        %v2971 = vrot.slane %v2969, 7
        %v2972 = vshll.u32 %v2892, 16
        %v2974 = vor.u32 %v2971, %v2972
        %v2976 = vshrl.u32 %v2893, 16
        %v2978 = vrot.slane %v2976, 7
        %v2979 = vshll.u32 %v2893, 16
        %v2981 = vor.u32 %v2978, %v2979
        %v2983 = vshrl.u32 %v2894, 16
        %v2985 = vrot.slane %v2983, 7
        %v2986 = vshll.u32 %v2894, 16
        %v2988 = vor.u32 %v2985, %v2986
        %v2990 = vshrl.u32 %v2895, 16
        %v2992 = vrot.slane %v2990, 7
        %v2993 = vshll.u32 %v2895, 16
        %v2995 = vor.u32 %v2992, %v2993
        %v2997 = vshrl.u32 %v2896, 16
        %v2999 = vrot.slane %v2997, 7
        %v3000 = vshll.u32 %v2896, 16
        %v3002 = vor.u32 %v2999, %v3000
        %v3004 = vshrl.u32 %v2897, 16
        %v3006 = vrot.slane %v3004, 7
        %v3007 = vshll.u32 %v2897, 16
        %v3009 = vor.u32 %v3006, %v3007
        %s3042 = scalar_lea.vmem [#allocation2], 304
        %v3043 = vld [vmem:[%s3042] sm:$0xff]
        %v3044 = vsel %vm301, %v2904, %v3043
        %3045 = vst [vmem:[%s3042] sm:$0xff] %v3044
        %v3046 = vld [vmem:[%s3042 + $0x8] sm:$0x1]
        %v3047 = vsel %vm244, %v2901, %v3046
        %3048 = vst [vmem:[%s3042 + $0x8] sm:$0x1] %v3047
        %v3049 = vld [vmem:[%s3042 + $0x10] sm:$0xff]
        %v3050 = vsel %vm301, %v2911, %v3049
        %3051 = vst [vmem:[%s3042 + $0x10] sm:$0xff] %v3050
        %v3052 = vld [vmem:[%s3042 + $0x18] sm:$0x1]
        %v3053 = vsel %vm244, %v2908, %v3052
        %3054 = vst [vmem:[%s3042 + $0x18] sm:$0x1] %v3053
        %v3055 = vld [vmem:[%s3042 + $0x20] sm:$0xff]
        %v3056 = vsel %vm301, %v2918, %v3055
        %3057 = vst [vmem:[%s3042 + $0x20] sm:$0xff] %v3056
        %v3058 = vld [vmem:[%s3042 + $0x28] sm:$0x1]
        %v3059 = vsel %vm244, %v2915, %v3058
        %3060 = vst [vmem:[%s3042 + $0x28] sm:$0x1] %v3059
        %v3061 = vld [vmem:[%s3042 + $0x30] sm:$0xff]
        %v3062 = vsel %vm301, %v2925, %v3061
        %3063 = vst [vmem:[%s3042 + $0x30] sm:$0xff] %v3062
        %v3064 = vld [vmem:[%s3042 + $0x38] sm:$0x1]
        %v3065 = vsel %vm244, %v2922, %v3064
        %3066 = vst [vmem:[%s3042 + $0x38] sm:$0x1] %v3065
        %v3067 = vld [vmem:[%s3042 + $0x40] sm:$0xff]
        %v3068 = vsel %vm301, %v2932, %v3067
        %3069 = vst [vmem:[%s3042 + $0x40] sm:$0xff] %v3068
        %v3070 = vld [vmem:[%s3042 + $0x48] sm:$0x1]
        %v3071 = vsel %vm244, %v2929, %v3070
        %3072 = vst [vmem:[%s3042 + $0x48] sm:$0x1] %v3071
        %v3073 = vld [vmem:[%s3042 + $0x50] sm:$0xff]
        %v3074 = vsel %vm301, %v2939, %v3073
        %3075 = vst [vmem:[%s3042 + $0x50] sm:$0xff] %v3074
        %v3076 = vld [vmem:[%s3042 + $0x58] sm:$0x1]
        %v3077 = vsel %vm244, %v2936, %v3076
        %3078 = vst [vmem:[%s3042 + $0x58] sm:$0x1] %v3077
        %v3079 = vld [vmem:[%s3042 + $0x60] sm:$0xff]
        %v3080 = vsel %vm301, %v2946, %v3079
        %3081 = vst [vmem:[%s3042 + $0x60] sm:$0xff] %v3080
        %v3082 = vld [vmem:[%s3042 + $0x68] sm:$0x1]
        %v3083 = vsel %vm244, %v2943, %v3082
        %3084 = vst [vmem:[%s3042 + $0x68] sm:$0x1] %v3083
        %v3085 = vld [vmem:[%s3042 + $0x70] sm:$0xff]
        %v3086 = vsel %vm301, %v2953, %v3085
        %3087 = vst [vmem:[%s3042 + $0x70] sm:$0xff] %v3086
        %v3088 = vld [vmem:[%s3042 + $0x78] sm:$0x1]
        %v3089 = vsel %vm244, %v2950, %v3088
        %3090 = vst [vmem:[%s3042 + $0x78] sm:$0x1] %v3089
        %v3091 = vld [vmem:[%s3042 + $0x80] sm:$0xff]
        %v3092 = vsel %vm301, %v2960, %v3091
        %3093 = vst [vmem:[%s3042 + $0x80] sm:$0xff] %v3092
        %v3094 = vld [vmem:[%s3042 + $0x88] sm:$0x1]
        %v3095 = vsel %vm244, %v2957, %v3094
        %3096 = vst [vmem:[%s3042 + $0x88] sm:$0x1] %v3095
        %v3097 = vld [vmem:[%s3042 + $0x90] sm:$0xff]
        %v3098 = vsel %vm301, %v2967, %v3097
        %3099 = vst [vmem:[%s3042 + $0x90] sm:$0xff] %v3098
        %v3100 = vld [vmem:[%s3042 + $0x98] sm:$0x1]
        %v3101 = vsel %vm244, %v2964, %v3100
        %3102 = vst [vmem:[%s3042 + $0x98] sm:$0x1] %v3101
        %v3103 = vld [vmem:[%s3042 + $0xa0] sm:$0xff]
        %v3104 = vsel %vm301, %v2974, %v3103
        %3105 = vst [vmem:[%s3042 + $0xa0] sm:$0xff] %v3104
        %v3106 = vld [vmem:[%s3042 + $0xa8] sm:$0x1]
        %v3107 = vsel %vm244, %v2971, %v3106
        %3108 = vst [vmem:[%s3042 + $0xa8] sm:$0x1] %v3107
        %v3109 = vld [vmem:[%s3042 + $0xb0] sm:$0xff]
        %v3110 = vsel %vm301, %v2981, %v3109
        %3111 = vst [vmem:[%s3042 + $0xb0] sm:$0xff] %v3110
        %v3112 = vld [vmem:[%s3042 + $0xb8] sm:$0x1]
        %v3113 = vsel %vm244, %v2978, %v3112
        %3114 = vst [vmem:[%s3042 + $0xb8] sm:$0x1] %v3113
        %v3115 = vld [vmem:[%s3042 + $0xc0] sm:$0xff]
        %v3116 = vsel %vm301, %v2988, %v3115
        %3117 = vst [vmem:[%s3042 + $0xc0] sm:$0xff] %v3116
        %v3118 = vld [vmem:[%s3042 + $0xc8] sm:$0x1]
        %v3119 = vsel %vm244, %v2985, %v3118
        %3120 = vst [vmem:[%s3042 + $0xc8] sm:$0x1] %v3119
        %v3121 = vld [vmem:[%s3042 + $0xd0] sm:$0xff]
        %v3122 = vsel %vm301, %v2995, %v3121
        %3123 = vst [vmem:[%s3042 + $0xd0] sm:$0xff] %v3122
        %v3124 = vld [vmem:[%s3042 + $0xd8] sm:$0x1]
        %v3125 = vsel %vm244, %v2992, %v3124
        %3126 = vst [vmem:[%s3042 + $0xd8] sm:$0x1] %v3125
        %v3127 = vld [vmem:[%s3042 + $0xe0] sm:$0xff]
        %v3128 = vsel %vm301, %v3002, %v3127
        %3129 = vst [vmem:[%s3042 + $0xe0] sm:$0xff] %v3128
        %v3130 = vld [vmem:[%s3042 + $0xe8] sm:$0x1]
        %v3131 = vsel %vm244, %v2999, %v3130
        %3132 = vst [vmem:[%s3042 + $0xe8] sm:$0x1] %v3131
        %v3133 = vld [vmem:[%s3042 + $0xf0] sm:$0xff]
        %v3134 = vsel %vm301, %v3009, %v3133
        %3135 = vst [vmem:[%s3042 + $0xf0] sm:$0xff] %v3134
        %v3136 = vld [vmem:[%s3042 + $0xf8] sm:$0x1]
        %v3137 = vsel %vm244, %v3006, %v3136
        %3138 = vst [vmem:[%s3042 + $0xf8] sm:$0x1] %v3137
        %s3139 = sadd.s32 %s719, 1
        %v3140 = vld [vmem:[%s236] sm:$0xff]
        %v3141 = vld [vmem:[%s236 + $0x8] sm:$0xff]
        %v3142 = vld [vmem:[%s236 + $0x10] sm:$0xff]
        %v3143 = vld [vmem:[%s236 + $0x18] sm:$0xff]
        %v3144 = vld [vmem:[%s236 + $0x20] sm:$0xff]
        %v3145 = vld [vmem:[%s236 + $0x28] sm:$0xff]
        %v3146 = vld [vmem:[%s236 + $0x30] sm:$0xff]
        %v3147 = vld [vmem:[%s236 + $0x38] sm:$0xff]
        %v3148 = vld [vmem:[%s236 + $0x40] sm:$0xff]
        %v3149 = vld [vmem:[%s236 + $0x48] sm:$0xff]
        %v3150 = vld [vmem:[%s236 + $0x50] sm:$0xff]
        %v3151 = vld [vmem:[%s236 + $0x58] sm:$0xff]
        %v3152 = vld [vmem:[%s236 + $0x60] sm:$0xff]
        %v3153 = vld [vmem:[%s236 + $0x68] sm:$0xff]
        %v3154 = vld [vmem:[%s236 + $0x70] sm:$0xff]
        %v3155 = vld [vmem:[%s236 + $0x78] sm:$0xff]
        %v3156 = vld [vmem:[%s236 + $0x80] sm:$0xff]
        %v3157 = vld [vmem:[%s236 + $0x88] sm:$0xff]
        %v3158 = vld [vmem:[%s236 + $0x90] sm:$0xff]
        %v3159 = vld [vmem:[%s236 + $0x98] sm:$0xff]
        %v3160 = vld [vmem:[%s236 + $0xa0] sm:$0xff]
        %v3161 = vld [vmem:[%s236 + $0xa8] sm:$0xff]
        %v3162 = vld [vmem:[%s236 + $0xb0] sm:$0xff]
        %v3163 = vld [vmem:[%s236 + $0xb8] sm:$0xff]
        %v3164 = vld [vmem:[%s236 + $0xc0] sm:$0xff]
        %v3165 = vld [vmem:[%s236 + $0xc8] sm:$0xff]
        %v3166 = vld [vmem:[%s236 + $0xd0] sm:$0xff]
        %v3167 = vld [vmem:[%s236 + $0xd8] sm:$0xff]
        %v3168 = vld [vmem:[%s236 + $0xe0] sm:$0xff]
        %v3169 = vld [vmem:[%s236 + $0xe8] sm:$0xff]
        %v3170 = vld [vmem:[%s236 + $0xf0] sm:$0xff]
        %v3171 = vld [vmem:[%s236 + $0xf8] sm:$0xff]
        %s3172 = smul.u32 %s3139, 3
        %s3173 = smul.u32 %s3172, 16
        %s3174 = smul.addr %s3173, 4
        %s3175 = scalar_lea.vmem %s1, %s3174
        %v3176 = vld [vmem:[%s3175] sm:$0xff]
        %v3177 = vld [vmem:[%s3175 + $0x8] sm:$0xff]
        %v3178 = vld [vmem:[%s3175 + $0x10] sm:$0xff]
        %v3179 = vld [vmem:[%s3175 + $0x18] sm:$0xff]
        %v3180 = vld [vmem:[%s3175 + $0x20] sm:$0xff]
        %v3181 = vld [vmem:[%s3175 + $0x28] sm:$0xff]
        %v3182 = vld [vmem:[%s3175 + $0x30] sm:$0xff]
        %v3183 = vld [vmem:[%s3175 + $0x38] sm:$0xff]
        %v3184 = vld [vmem:[%s3042] sm:$0xff]
        %v3185 = vld [vmem:[%s3042 + $0x8] sm:$0xff]
        %v3186 = vld [vmem:[%s3042 + $0x10] sm:$0xff]
        %v3187 = vld [vmem:[%s3042 + $0x18] sm:$0xff]
        %v3188 = vld [vmem:[%s3042 + $0x20] sm:$0xff]
        %v3189 = vld [vmem:[%s3042 + $0x28] sm:$0xff]
        %v3190 = vld [vmem:[%s3042 + $0x30] sm:$0xff]
        %v3191 = vld [vmem:[%s3042 + $0x38] sm:$0xff]
        %v3192 = vld [vmem:[%s3042 + $0x40] sm:$0xff]
        %v3193 = vld [vmem:[%s3042 + $0x48] sm:$0xff]
        %v3194 = vld [vmem:[%s3042 + $0x50] sm:$0xff]
        %v3195 = vld [vmem:[%s3042 + $0x58] sm:$0xff]
        %v3196 = vld [vmem:[%s3042 + $0x60] sm:$0xff]
        %v3197 = vld [vmem:[%s3042 + $0x68] sm:$0xff]
        %v3198 = vld [vmem:[%s3042 + $0x70] sm:$0xff]
        %v3199 = vld [vmem:[%s3042 + $0x78] sm:$0xff]
        %v3200 = vld [vmem:[%s3042 + $0x80] sm:$0xff]
        %v3201 = vld [vmem:[%s3042 + $0x88] sm:$0xff]
        %v3202 = vld [vmem:[%s3042 + $0x90] sm:$0xff]
        %v3203 = vld [vmem:[%s3042 + $0x98] sm:$0xff]
        %v3204 = vld [vmem:[%s3042 + $0xa0] sm:$0xff]
        %v3205 = vld [vmem:[%s3042 + $0xa8] sm:$0xff]
        %v3206 = vld [vmem:[%s3042 + $0xb0] sm:$0xff]
        %v3207 = vld [vmem:[%s3042 + $0xb8] sm:$0xff]
        %v3208 = vld [vmem:[%s3042 + $0xc0] sm:$0xff]
        %v3209 = vld [vmem:[%s3042 + $0xc8] sm:$0xff]
        %v3210 = vld [vmem:[%s3042 + $0xd0] sm:$0xff]
        %v3211 = vld [vmem:[%s3042 + $0xd8] sm:$0xff]
        %v3212 = vld [vmem:[%s3042 + $0xe0] sm:$0xff]
        %v3213 = vld [vmem:[%s3042 + $0xe8] sm:$0xff]
        %v3214 = vld [vmem:[%s3042 + $0xf0] sm:$0xff]
        %v3215 = vld [vmem:[%s3042 + $0xf8] sm:$0xff]
        %s3216 = sadd.s32 %s3172, 1
        %s3217 = smul.u32 %s3216, 16
        %s3218 = smul.addr %s3217, 4
        %s3219 = scalar_lea.vmem %s1, %s3218
        %v3220 = vld [vmem:[%s3219] sm:$0xff]
        %v3221 = vld [vmem:[%s3219 + $0x8] sm:$0xff]
        %v3222 = vld [vmem:[%s3219 + $0x10] sm:$0xff]
        %v3223 = vld [vmem:[%s3219 + $0x18] sm:$0xff]
        %v3224 = vld [vmem:[%s3219 + $0x20] sm:$0xff]
        %v3225 = vld [vmem:[%s3219 + $0x28] sm:$0xff]
        %v3226 = vld [vmem:[%s3219 + $0x30] sm:$0xff]
        %v3227 = vld [vmem:[%s3219 + $0x38] sm:$0xff]
        %v3236 = vunpack.c.l.b16 %v3220
        %v3237 = vunpack.c.h.b16 %v3220
        %v3238 = vunpack.c.l.b16 %v3221
        %v3239 = vunpack.c.h.b16 %v3221
        %v3240 = vunpack.c.l.b16 %v3222
        %v3241 = vunpack.c.h.b16 %v3222
        %v3242 = vunpack.c.l.b16 %v3223
        %v3243 = vunpack.c.h.b16 %v3223
        %v3244 = vunpack.c.l.b16 %v3224
        %v3245 = vunpack.c.h.b16 %v3224
        %v3246 = vunpack.c.l.b16 %v3225
        %v3247 = vunpack.c.h.b16 %v3225
        %v3248 = vunpack.c.l.b16 %v3226
        %v3249 = vunpack.c.h.b16 %v3226
        %v3250 = vunpack.c.l.b16 %v3227
        %v3251 = vunpack.c.h.b16 %v3227
        %v3252 = vpack.c.b16 %v3238, %v3236
        %v3253 = vpack.c.b16 %v3239, %v3237
        %v3254 = vpack.c.b16 %v3242, %v3240
        %v3255 = vpack.c.b16 %v3243, %v3241
        %v3256 = vpack.c.b16 %v3246, %v3244
        %v3257 = vpack.c.b16 %v3247, %v3245
        %v3258 = vpack.c.b16 %v3250, %v3248
        %v3259 = vpack.c.b16 %v3251, %v3249
        %v3269 = vsel %vm199, %v3184, 0
        %v3272 = vsel %vm199, %v3185, 0
        %v3275 = vsel %vm199, %v3186, 0
        %v3278 = vsel %vm199, %v3187, 0
        %v3281 = vsel %vm199, %v3188, 0
        %v3284 = vsel %vm199, %v3189, 0
        %v3287 = vsel %vm199, %v3190, 0
        %v3290 = vsel %vm199, %v3191, 0
        %v3293 = vsel %vm199, %v3192, 0
        %v3296 = vsel %vm199, %v3193, 0
        %v3299 = vsel %vm199, %v3194, 0
        %v3302 = vsel %vm199, %v3195, 0
        %v3305 = vsel %vm199, %v3196, 0
        %v3308 = vsel %vm199, %v3197, 0
        %v3311 = vsel %vm199, %v3198, 0
        %v3314 = vsel %vm199, %v3199, 0
        %v3317 = vsel %vm199, %v3200, 0
        %v3320 = vsel %vm199, %v3201, 0
        %v3323 = vsel %vm199, %v3202, 0
        %v3326 = vsel %vm199, %v3203, 0
        %v3329 = vsel %vm199, %v3204, 0
        %v3332 = vsel %vm199, %v3205, 0
        %v3335 = vsel %vm199, %v3206, 0
        %v3338 = vsel %vm199, %v3207, 0
        %v3341 = vsel %vm199, %v3208, 0
        %v3344 = vsel %vm199, %v3209, 0
        %v3347 = vsel %vm199, %v3210, 0
        %v3350 = vsel %vm199, %v3211, 0
        %v3353 = vsel %vm199, %v3212, 0
        %v3356 = vsel %vm199, %v3213, 0
        %v3359 = vsel %vm199, %v3214, 0
        %v3362 = vsel %vm199, %v3215, 0
        %3364 = vmatprep.subr.bf16.mxu0 %v3253
        %3365 = vmatpush1.bf16.msra.mxu0 %v3252
        %3366 = vmatprep.subr.bf16.mxu0 %v3255
        %3367 = vmatpush1.bf16.msra.mxu0 %v3254
        %3368 = vmatprep.subr.bf16.mxu0 %v3257
        %3369 = vmatpush1.bf16.msra.mxu0 %v3256
        %3370 = vmatprep.subr.bf16.mxu0 %v3259
        %3371 = vmatpush1.bf16.msra.mxu0 %v3258
        %3372 = vmatprep.subr.bf16.mxu0 0
        %3373 = vmatpush1.bf16.msra.mxu0 0
        %3374 = vmatprep.subr.bf16.mxu0 0
        %3375 = vmatpush1.bf16.msra.mxu0 0
        %3376 = vmatprep.subr.bf16.mxu0 0
        %3377 = vmatpush1.bf16.msra.mxu0 0
        %3378 = vmatprep.subr.bf16.mxu0 0
        %3379 = vmatpush1.bf16.msra.mxu0 0
        %3380 = vmatprep.subr.bf16.mxu0 0
        %3381 = vmatpush1.bf16.msra.mxu0 0
        %3382 = vmatprep.subr.bf16.mxu0 0
        %3383 = vmatpush1.bf16.msra.mxu0 0
        %3384 = vmatprep.subr.bf16.mxu0 0
        %3385 = vmatpush1.bf16.msra.mxu0 0
        %3386 = vmatprep.subr.bf16.mxu0 0
        %3387 = vmatpush1.bf16.msra.mxu0 0
        %3388 = vmatprep.subr.bf16.mxu0 0
        %3389 = vmatpush1.bf16.msra.mxu0 0
        %3390 = vmatprep.subr.bf16.mxu0 0
        %3391 = vmatpush1.bf16.msra.mxu0 0
        %3392 = vmatprep.subr.bf16.mxu0 0
        %3393 = vmatpush1.bf16.msra.mxu0 0
        %3394 = vmatprep.subr.bf16.mxu0 0
        %3395 = vmatpush1.bf16.msra.mxu0 0
        %3396 = vmatprep.mubr.bf16.mxu0 0
        %3397 = vmatmul.mubr.bf16.gmra.mrb[0].mxu0 %v3269
        %v3398 = vpop.f32.mrb[0].mxu0
        %v3399 = vadd.f32 0.0, %v3398
        %v3400 = vpop.f32.mrb[0].mxu0
        %v3401 = vadd.f32 0.0, %v3400
        %v3402 = vpop.f32.mrb[0].mxu0
        %v3403 = vadd.f32 0.0, %v3402
        %v3404 = vpop.f32.mrb[0].mxu0
        %v3405 = vadd.f32 0.0, %v3404
        %3406 = vmatprep.mubr.bf16.mxu0 0
        %3407 = vmatmul.mubr.bf16.gmra.mrb[0].mxu0 %v3272
        %v3408 = vpop.f32.mrb[0].mxu0
        %v3409 = vadd.f32 0.0, %v3408
        %v3410 = vpop.f32.mrb[0].mxu0
        %v3411 = vadd.f32 0.0, %v3410
        %v3412 = vpop.f32.mrb[0].mxu0
        %v3413 = vpop.f32.mrb[0].mxu0
        %3414 = vmatprep.mubr.bf16.mxu0 0
        %3415 = vmatmul.mubr.bf16.gmra.mrb[0].mxu0 %v3275
        %v3416 = vpop.f32.mrb[0].mxu0
        %v3417 = vadd.f32 0.0, %v3416
        %v3418 = vpop.f32.mrb[0].mxu0
        %v3419 = vadd.f32 0.0, %v3418
        %v3420 = vpop.f32.mrb[0].mxu0
        %v3421 = vadd.f32 0.0, %v3420
        %v3422 = vpop.f32.mrb[0].mxu0
        %v3423 = vadd.f32 0.0, %v3422
        %3424 = vmatprep.mubr.bf16.mxu0 0
        %3425 = vmatmul.mubr.bf16.gmra.mrb[0].mxu0 %v3278
        %v3426 = vpop.f32.mrb[0].mxu0
        %v3427 = vadd.f32 0.0, %v3426
        %v3428 = vpop.f32.mrb[0].mxu0
        %v3429 = vadd.f32 0.0, %v3428
        %v3430 = vpop.f32.mrb[0].mxu0
        %v3431 = vpop.f32.mrb[0].mxu0
        %3432 = vmatprep.mubr.bf16.mxu0 0
        %3433 = vmatmul.mubr.bf16.gmra.mrb[0].mxu0 %v3281
        %v3434 = vpop.f32.mrb[0].mxu0
        %v3435 = vadd.f32 0.0, %v3434
        %v3436 = vpop.f32.mrb[0].mxu0
        %v3437 = vadd.f32 0.0, %v3436
        %v3438 = vpop.f32.mrb[0].mxu0
        %v3439 = vadd.f32 0.0, %v3438
        %v3440 = vpop.f32.mrb[0].mxu0
        %v3441 = vadd.f32 0.0, %v3440
        %3442 = vmatprep.mubr.bf16.mxu0 0
        %3443 = vmatmul.mubr.bf16.gmra.mrb[0].mxu0 %v3284
        %v3444 = vpop.f32.mrb[0].mxu0
        %v3445 = vadd.f32 0.0, %v3444
        %v3446 = vpop.f32.mrb[0].mxu0
        %v3447 = vadd.f32 0.0, %v3446
        %v3448 = vpop.f32.mrb[0].mxu0
        %v3449 = vpop.f32.mrb[0].mxu0
        %3450 = vmatprep.mubr.bf16.mxu0 0
        %3451 = vmatmul.mubr.bf16.gmra.mrb[0].mxu0 %v3287
        %v3452 = vpop.f32.mrb[0].mxu0
        %v3453 = vadd.f32 0.0, %v3452
        %v3454 = vpop.f32.mrb[0].mxu0
        %v3455 = vadd.f32 0.0, %v3454
        %v3456 = vpop.f32.mrb[0].mxu0
        %v3457 = vadd.f32 0.0, %v3456
        %v3458 = vpop.f32.mrb[0].mxu0
        %v3459 = vadd.f32 0.0, %v3458
        %3460 = vmatprep.mubr.bf16.mxu0 0
        %3461 = vmatmul.mubr.bf16.gmra.mrb[0].mxu0 %v3290
        %v3462 = vpop.f32.mrb[0].mxu0
        %v3463 = vadd.f32 0.0, %v3462
        %v3464 = vpop.f32.mrb[0].mxu0
        %v3465 = vadd.f32 0.0, %v3464
        %v3466 = vpop.f32.mrb[0].mxu0
        %v3467 = vpop.f32.mrb[0].mxu0
        %3468 = vmatprep.mubr.bf16.mxu0 0
        %3469 = vmatmul.mubr.bf16.gmra.mrb[0].mxu0 %v3293
        %v3470 = vpop.f32.mrb[0].mxu0
        %v3471 = vadd.f32 0.0, %v3470
        %v3472 = vpop.f32.mrb[0].mxu0
        %v3473 = vadd.f32 0.0, %v3472
        %v3474 = vpop.f32.mrb[0].mxu0
        %v3475 = vadd.f32 0.0, %v3474
        %v3476 = vpop.f32.mrb[0].mxu0
        %v3477 = vadd.f32 0.0, %v3476
        %3478 = vmatprep.mubr.bf16.mxu0 0
        %3479 = vmatmul.mubr.bf16.gmra.mrb[0].mxu0 %v3296
        %v3480 = vpop.f32.mrb[0].mxu0
        %v3481 = vadd.f32 0.0, %v3480
        %v3482 = vpop.f32.mrb[0].mxu0
        %v3483 = vadd.f32 0.0, %v3482
        %v3484 = vpop.f32.mrb[0].mxu0
        %v3485 = vpop.f32.mrb[0].mxu0
        %3486 = vmatprep.mubr.bf16.mxu0 0
        %3487 = vmatmul.mubr.bf16.gmra.mrb[0].mxu0 %v3299
        %v3488 = vpop.f32.mrb[0].mxu0
        %v3489 = vadd.f32 0.0, %v3488
        %v3490 = vpop.f32.mrb[0].mxu0
        %v3491 = vadd.f32 0.0, %v3490
        %v3492 = vpop.f32.mrb[0].mxu0
        %v3493 = vadd.f32 0.0, %v3492
        %v3494 = vpop.f32.mrb[0].mxu0
        %v3495 = vadd.f32 0.0, %v3494
        %3496 = vmatprep.mubr.bf16.mxu0 0
        %3497 = vmatmul.mubr.bf16.gmra.mrb[0].mxu0 %v3302
        %v3498 = vpop.f32.mrb[0].mxu0
        %v3499 = vadd.f32 0.0, %v3498
        %v3500 = vpop.f32.mrb[0].mxu0
        %v3501 = vadd.f32 0.0, %v3500
        %v3502 = vpop.f32.mrb[0].mxu0
        %v3503 = vpop.f32.mrb[0].mxu0
        %3504 = vmatprep.mubr.bf16.mxu0 0
        %3505 = vmatmul.mubr.bf16.gmra.mrb[0].mxu0 %v3305
        %v3506 = vpop.f32.mrb[0].mxu0
        %v3507 = vadd.f32 0.0, %v3506
        %v3508 = vpop.f32.mrb[0].mxu0
        %v3509 = vadd.f32 0.0, %v3508
        %v3510 = vpop.f32.mrb[0].mxu0
        %v3511 = vadd.f32 0.0, %v3510
        %v3512 = vpop.f32.mrb[0].mxu0
        %v3513 = vadd.f32 0.0, %v3512
        %3514 = vmatprep.mubr.bf16.mxu0 0
        %3515 = vmatmul.mubr.bf16.gmra.mrb[0].mxu0 %v3308
        %v3516 = vpop.f32.mrb[0].mxu0
        %v3517 = vadd.f32 0.0, %v3516
        %v3518 = vpop.f32.mrb[0].mxu0
        %v3519 = vadd.f32 0.0, %v3518
        %v3520 = vpop.f32.mrb[0].mxu0
        %v3521 = vpop.f32.mrb[0].mxu0
        %3522 = vmatprep.mubr.bf16.mxu0 0
        %3523 = vmatmul.mubr.bf16.gmra.mrb[0].mxu0 %v3311
        %v3524 = vpop.f32.mrb[0].mxu0
        %v3525 = vadd.f32 0.0, %v3524
        %v3526 = vpop.f32.mrb[0].mxu0
        %v3527 = vadd.f32 0.0, %v3526
        %v3528 = vpop.f32.mrb[0].mxu0
        %v3529 = vadd.f32 0.0, %v3528
        %v3530 = vpop.f32.mrb[0].mxu0
        %v3531 = vadd.f32 0.0, %v3530
        %3532 = vmatprep.mubr.bf16.mxu0 0
        %3533 = vmatmul.mubr.bf16.gmra.mrb[0].mxu0 %v3314
        %v3534 = vpop.f32.mrb[0].mxu0
        %v3535 = vadd.f32 0.0, %v3534
        %v3536 = vpop.f32.mrb[0].mxu0
        %v3537 = vadd.f32 0.0, %v3536
        %v3538 = vpop.f32.mrb[0].mxu0
        %v3539 = vpop.f32.mrb[0].mxu0
        %3540 = vmatprep.mubr.bf16.mxu0 0
        %3541 = vmatmul.mubr.bf16.gmra.mrb[0].mxu0 %v3317
        %v3542 = vpop.f32.mrb[0].mxu0
        %v3543 = vadd.f32 0.0, %v3542
        %v3544 = vpop.f32.mrb[0].mxu0
        %v3545 = vadd.f32 0.0, %v3544
        %v3546 = vpop.f32.mrb[0].mxu0
        %v3547 = vadd.f32 0.0, %v3546
        %v3548 = vpop.f32.mrb[0].mxu0
        %v3549 = vadd.f32 0.0, %v3548
        %3550 = vmatprep.mubr.bf16.mxu0 0
        %3551 = vmatmul.mubr.bf16.gmra.mrb[0].mxu0 %v3320
        %v3552 = vpop.f32.mrb[0].mxu0
        %v3553 = vadd.f32 0.0, %v3552
        %v3554 = vpop.f32.mrb[0].mxu0
        %v3555 = vadd.f32 0.0, %v3554
        %v3556 = vpop.f32.mrb[0].mxu0
        %v3557 = vpop.f32.mrb[0].mxu0
        %3558 = vmatprep.mubr.bf16.mxu0 0
        %3559 = vmatmul.mubr.bf16.gmra.mrb[0].mxu0 %v3323
        %v3560 = vpop.f32.mrb[0].mxu0
        %v3561 = vadd.f32 0.0, %v3560
        %v3562 = vpop.f32.mrb[0].mxu0
        %v3563 = vadd.f32 0.0, %v3562
        %v3564 = vpop.f32.mrb[0].mxu0
        %v3565 = vadd.f32 0.0, %v3564
        %v3566 = vpop.f32.mrb[0].mxu0
        %v3567 = vadd.f32 0.0, %v3566
        %3568 = vmatprep.mubr.bf16.mxu0 0
        %3569 = vmatmul.mubr.bf16.gmra.mrb[0].mxu0 %v3326
        %v3570 = vpop.f32.mrb[0].mxu0
        %v3571 = vadd.f32 0.0, %v3570
        %v3572 = vpop.f32.mrb[0].mxu0
        %v3573 = vadd.f32 0.0, %v3572
        %v3574 = vpop.f32.mrb[0].mxu0
        %v3575 = vpop.f32.mrb[0].mxu0
        %3576 = vmatprep.mubr.bf16.mxu0 0
        %3577 = vmatmul.mubr.bf16.gmra.mrb[0].mxu0 %v3329
        %v3578 = vpop.f32.mrb[0].mxu0
        %v3579 = vadd.f32 0.0, %v3578
        %v3580 = vpop.f32.mrb[0].mxu0
        %v3581 = vadd.f32 0.0, %v3580
        %v3582 = vpop.f32.mrb[0].mxu0
        %v3583 = vadd.f32 0.0, %v3582
        %v3584 = vpop.f32.mrb[0].mxu0
        %v3585 = vadd.f32 0.0, %v3584
        %3586 = vmatprep.mubr.bf16.mxu0 0
        %3587 = vmatmul.mubr.bf16.gmra.mrb[0].mxu0 %v3332
        %v3588 = vpop.f32.mrb[0].mxu0
        %v3589 = vadd.f32 0.0, %v3588
        %v3590 = vpop.f32.mrb[0].mxu0
        %v3591 = vadd.f32 0.0, %v3590
        %v3592 = vpop.f32.mrb[0].mxu0
        %v3593 = vpop.f32.mrb[0].mxu0
        %3594 = vmatprep.mubr.bf16.mxu0 0
        %3595 = vmatmul.mubr.bf16.gmra.mrb[0].mxu0 %v3335
        %v3596 = vpop.f32.mrb[0].mxu0
        %v3597 = vadd.f32 0.0, %v3596
        %v3598 = vpop.f32.mrb[0].mxu0
        %v3599 = vadd.f32 0.0, %v3598
        %v3600 = vpop.f32.mrb[0].mxu0
        %v3601 = vadd.f32 0.0, %v3600
        %v3602 = vpop.f32.mrb[0].mxu0
        %v3603 = vadd.f32 0.0, %v3602
        %3604 = vmatprep.mubr.bf16.mxu0 0
        %3605 = vmatmul.mubr.bf16.gmra.mrb[0].mxu0 %v3338
        %v3606 = vpop.f32.mrb[0].mxu0
        %v3607 = vadd.f32 0.0, %v3606
        %v3608 = vpop.f32.mrb[0].mxu0
        %v3609 = vadd.f32 0.0, %v3608
        %v3610 = vpop.f32.mrb[0].mxu0
        %v3611 = vpop.f32.mrb[0].mxu0
        %3612 = vmatprep.mubr.bf16.mxu0 0
        %3613 = vmatmul.mubr.bf16.gmra.mrb[0].mxu0 %v3341
        %v3614 = vpop.f32.mrb[0].mxu0
        %v3615 = vadd.f32 0.0, %v3614
        %v3616 = vpop.f32.mrb[0].mxu0
        %v3617 = vadd.f32 0.0, %v3616
        %v3618 = vpop.f32.mrb[0].mxu0
        %v3619 = vadd.f32 0.0, %v3618
        %v3620 = vpop.f32.mrb[0].mxu0
        %v3621 = vadd.f32 0.0, %v3620
        %3622 = vmatprep.mubr.bf16.mxu0 0
        %3623 = vmatmul.mubr.bf16.gmra.mrb[0].mxu0 %v3344
        %v3624 = vpop.f32.mrb[0].mxu0
        %v3625 = vadd.f32 0.0, %v3624
        %v3626 = vpop.f32.mrb[0].mxu0
        %v3627 = vadd.f32 0.0, %v3626
        %v3628 = vpop.f32.mrb[0].mxu0
        %v3629 = vpop.f32.mrb[0].mxu0
        %3630 = vmatprep.mubr.bf16.mxu0 0
        %3631 = vmatmul.mubr.bf16.gmra.mrb[0].mxu0 %v3347
        %v3632 = vpop.f32.mrb[0].mxu0
        %v3633 = vadd.f32 0.0, %v3632
        %v3634 = vpop.f32.mrb[0].mxu0
        %v3635 = vadd.f32 0.0, %v3634
        %v3636 = vpop.f32.mrb[0].mxu0
        %v3637 = vadd.f32 0.0, %v3636
        %v3638 = vpop.f32.mrb[0].mxu0
        %v3639 = vadd.f32 0.0, %v3638
        %3640 = vmatprep.mubr.bf16.mxu0 0
        %3641 = vmatmul.mubr.bf16.gmra.mrb[0].mxu0 %v3350
        %v3642 = vpop.f32.mrb[0].mxu0
        %v3643 = vadd.f32 0.0, %v3642
        %v3644 = vpop.f32.mrb[0].mxu0
        %v3645 = vadd.f32 0.0, %v3644
        %v3646 = vpop.f32.mrb[0].mxu0
        %v3647 = vpop.f32.mrb[0].mxu0
        %3648 = vmatprep.mubr.bf16.mxu0 0
        %3649 = vmatmul.mubr.bf16.gmra.mrb[0].mxu0 %v3353
        %v3650 = vpop.f32.mrb[0].mxu0
        %v3651 = vadd.f32 0.0, %v3650
        %v3652 = vpop.f32.mrb[0].mxu0
        %v3653 = vadd.f32 0.0, %v3652
        %v3654 = vpop.f32.mrb[0].mxu0
        %v3655 = vadd.f32 0.0, %v3654
        %v3656 = vpop.f32.mrb[0].mxu0
        %v3657 = vadd.f32 0.0, %v3656
        %3658 = vmatprep.mubr.bf16.mxu0 0
        %3659 = vmatmul.mubr.bf16.gmra.mrb[0].mxu0 %v3356
        %v3660 = vpop.f32.mrb[0].mxu0
        %v3661 = vadd.f32 0.0, %v3660
        %v3662 = vpop.f32.mrb[0].mxu0
        %v3663 = vadd.f32 0.0, %v3662
        %v3664 = vpop.f32.mrb[0].mxu0
        %v3665 = vpop.f32.mrb[0].mxu0
        %3666 = vmatprep.mubr.bf16.mxu0 0
        %3667 = vmatmul.mubr.bf16.gmra.mrb[0].mxu0 %v3359
        %v3668 = vpop.f32.mrb[0].mxu0
        %v3669 = vadd.f32 0.0, %v3668
        %v3670 = vpop.f32.mrb[0].mxu0
        %v3671 = vadd.f32 0.0, %v3670
        %v3672 = vpop.f32.mrb[0].mxu0
        %v3673 = vadd.f32 0.0, %v3672
        %v3674 = vpop.f32.mrb[0].mxu0
        %v3675 = vadd.f32 0.0, %v3674
        %3676 = vmatprep.mubr.bf16.mxu0 0
        %3677 = vmatmul.mubr.bf16.gmra.mrb[0].mxu0 %v3362
        %v3678 = vpop.f32.mrb[0].mxu0
        %v3679 = vadd.f32 0.0, %v3678
        %v3680 = vpop.f32.mrb[0].mxu0
        %v3681 = vadd.f32 0.0, %v3680
        %v3682 = vpop.f32.mrb[0].mxu0
        %v3683 = vpop.f32.mrb[0].mxu0
        %3684 = vdwg.mxu0
        %v3693 = vunpack.c.l.b16 %v3176
        %v3694 = vunpack.c.h.b16 %v3176
        %v3695 = vunpack.c.l.b16 %v3177
        %v3696 = vunpack.c.h.b16 %v3177
        %v3697 = vunpack.c.l.b16 %v3178
        %v3698 = vunpack.c.h.b16 %v3178
        %v3699 = vunpack.c.l.b16 %v3179
        %v3700 = vunpack.c.h.b16 %v3179
        %v3701 = vunpack.c.l.b16 %v3180
        %v3702 = vunpack.c.h.b16 %v3180
        %v3703 = vunpack.c.l.b16 %v3181
        %v3704 = vunpack.c.h.b16 %v3181
        %v3705 = vunpack.c.l.b16 %v3182
        %v3706 = vunpack.c.h.b16 %v3182
        %v3707 = vunpack.c.l.b16 %v3183
        %v3708 = vunpack.c.h.b16 %v3183
        %v3709 = vpack.c.b16 %v3695, %v3693
        %v3710 = vpack.c.b16 %v3696, %v3694
        %v3711 = vpack.c.b16 %v3699, %v3697
        %v3712 = vpack.c.b16 %v3700, %v3698
        %v3713 = vpack.c.b16 %v3703, %v3701
        %v3714 = vpack.c.b16 %v3704, %v3702
        %v3715 = vpack.c.b16 %v3707, %v3705
        %v3716 = vpack.c.b16 %v3708, %v3706
        %v3726 = vsel %vm199, %v3140, 0
        %v3729 = vsel %vm199, %v3141, 0
        %v3732 = vsel %vm199, %v3142, 0
        %v3735 = vsel %vm199, %v3143, 0
        %v3738 = vsel %vm199, %v3144, 0
        %v3741 = vsel %vm199, %v3145, 0
        %v3744 = vsel %vm199, %v3146, 0
        %v3747 = vsel %vm199, %v3147, 0
        %v3750 = vsel %vm199, %v3148, 0
        %v3753 = vsel %vm199, %v3149, 0
        %v3756 = vsel %vm199, %v3150, 0
        %v3759 = vsel %vm199, %v3151, 0
        %v3762 = vsel %vm199, %v3152, 0
        %v3765 = vsel %vm199, %v3153, 0
        %v3768 = vsel %vm199, %v3154, 0
        %v3771 = vsel %vm199, %v3155, 0
        %v3774 = vsel %vm199, %v3156, 0
        %v3777 = vsel %vm199, %v3157, 0
        %v3780 = vsel %vm199, %v3158, 0
        %v3783 = vsel %vm199, %v3159, 0
        %v3786 = vsel %vm199, %v3160, 0
        %v3789 = vsel %vm199, %v3161, 0
        %v3792 = vsel %vm199, %v3162, 0
        %v3795 = vsel %vm199, %v3163, 0
        %v3798 = vsel %vm199, %v3164, 0
        %v3801 = vsel %vm199, %v3165, 0
        %v3804 = vsel %vm199, %v3166, 0
        %v3807 = vsel %vm199, %v3167, 0
        %v3810 = vsel %vm199, %v3168, 0
        %v3813 = vsel %vm199, %v3169, 0
        %v3816 = vsel %vm199, %v3170, 0
        %v3819 = vsel %vm199, %v3171, 0
        %3821 = vmatprep.subr.bf16.mxu0 %v3710
        %3822 = vmatpush1.bf16.msra.mxu0 %v3709
        %3823 = vmatprep.subr.bf16.mxu0 %v3712
        %3824 = vmatpush1.bf16.msra.mxu0 %v3711
        %3825 = vmatprep.subr.bf16.mxu0 %v3714
        %3826 = vmatpush1.bf16.msra.mxu0 %v3713
        %3827 = vmatprep.subr.bf16.mxu0 %v3716
        %3828 = vmatpush1.bf16.msra.mxu0 %v3715
        %3829 = vmatprep.subr.bf16.mxu0 0
        %3830 = vmatpush1.bf16.msra.mxu0 0
        %3831 = vmatprep.subr.bf16.mxu0 0
        %3832 = vmatpush1.bf16.msra.mxu0 0
        %3833 = vmatprep.subr.bf16.mxu0 0
        %3834 = vmatpush1.bf16.msra.mxu0 0
        %3835 = vmatprep.subr.bf16.mxu0 0
        %3836 = vmatpush1.bf16.msra.mxu0 0
        %3837 = vmatprep.subr.bf16.mxu0 0
        %3838 = vmatpush1.bf16.msra.mxu0 0
        %3839 = vmatprep.subr.bf16.mxu0 0
        %3840 = vmatpush1.bf16.msra.mxu0 0
        %3841 = vmatprep.subr.bf16.mxu0 0
        %3842 = vmatpush1.bf16.msra.mxu0 0
        %3843 = vmatprep.subr.bf16.mxu0 0
        %3844 = vmatpush1.bf16.msra.mxu0 0
        %3845 = vmatprep.subr.bf16.mxu0 0
        %3846 = vmatpush1.bf16.msra.mxu0 0
        %3847 = vmatprep.subr.bf16.mxu0 0
        %3848 = vmatpush1.bf16.msra.mxu0 0
        %3849 = vmatprep.subr.bf16.mxu0 0
        %3850 = vmatpush1.bf16.msra.mxu0 0
        %3851 = vmatprep.subr.bf16.mxu0 0
        %3852 = vmatpush1.bf16.msra.mxu0 0
        %3853 = vmatprep.mubr.bf16.mxu0 0
        %3854 = vmatmul.mubr.bf16.gmra.mrb[0].mxu0 %v3726
        %v3855 = vpop.f32.mrb[0].mxu0
        %v3856 = vadd.f32 %v3399, %v3855
        %v3857 = vpop.f32.mrb[0].mxu0
        %v3858 = vadd.f32 %v3401, %v3857
        %v3859 = vpop.f32.mrb[0].mxu0
        %v3860 = vadd.f32 %v3403, %v3859
        %v3861 = vpop.f32.mrb[0].mxu0
        %v3862 = vadd.f32 %v3405, %v3861
        %3863 = vmatprep.mubr.bf16.mxu0 0
        %3864 = vmatmul.mubr.bf16.gmra.mrb[0].mxu0 %v3729
        %v3865 = vpop.f32.mrb[0].mxu0
        %v3866 = vadd.f32 %v3409, %v3865
        %v3867 = vpop.f32.mrb[0].mxu0
        %v3868 = vadd.f32 %v3411, %v3867
        %v3869 = vpop.f32.mrb[0].mxu0
        %v3870 = vpop.f32.mrb[0].mxu0
        %3871 = vmatprep.mubr.bf16.mxu0 0
        %3872 = vmatmul.mubr.bf16.gmra.mrb[0].mxu0 %v3732
        %v3873 = vpop.f32.mrb[0].mxu0
        %v3874 = vadd.f32 %v3417, %v3873
        %v3875 = vpop.f32.mrb[0].mxu0
        %v3876 = vadd.f32 %v3419, %v3875
        %v3877 = vpop.f32.mrb[0].mxu0
        %v3878 = vadd.f32 %v3421, %v3877
        %v3879 = vpop.f32.mrb[0].mxu0
        %v3880 = vadd.f32 %v3423, %v3879
        %3881 = vmatprep.mubr.bf16.mxu0 0
        %3882 = vmatmul.mubr.bf16.gmra.mrb[0].mxu0 %v3735
        %v3883 = vpop.f32.mrb[0].mxu0
        %v3884 = vadd.f32 %v3427, %v3883
        %v3885 = vpop.f32.mrb[0].mxu0
        %v3886 = vadd.f32 %v3429, %v3885
        %v3887 = vpop.f32.mrb[0].mxu0
        %v3888 = vpop.f32.mrb[0].mxu0
        %3889 = vmatprep.mubr.bf16.mxu0 0
        %3890 = vmatmul.mubr.bf16.gmra.mrb[0].mxu0 %v3738
        %v3891 = vpop.f32.mrb[0].mxu0
        %v3892 = vadd.f32 %v3435, %v3891
        %v3893 = vpop.f32.mrb[0].mxu0
        %v3894 = vadd.f32 %v3437, %v3893
        %v3895 = vpop.f32.mrb[0].mxu0
        %v3896 = vadd.f32 %v3439, %v3895
        %v3897 = vpop.f32.mrb[0].mxu0
        %v3898 = vadd.f32 %v3441, %v3897
        %3899 = vmatprep.mubr.bf16.mxu0 0
        %3900 = vmatmul.mubr.bf16.gmra.mrb[0].mxu0 %v3741
        %v3901 = vpop.f32.mrb[0].mxu0
        %v3902 = vadd.f32 %v3445, %v3901
        %v3903 = vpop.f32.mrb[0].mxu0
        %v3904 = vadd.f32 %v3447, %v3903
        %v3905 = vpop.f32.mrb[0].mxu0
        %v3906 = vpop.f32.mrb[0].mxu0
        %3907 = vmatprep.mubr.bf16.mxu0 0
        %3908 = vmatmul.mubr.bf16.gmra.mrb[0].mxu0 %v3744
        %v3909 = vpop.f32.mrb[0].mxu0
        %v3910 = vadd.f32 %v3453, %v3909
        %v3911 = vpop.f32.mrb[0].mxu0
        %v3912 = vadd.f32 %v3455, %v3911
        %v3913 = vpop.f32.mrb[0].mxu0
        %v3914 = vadd.f32 %v3457, %v3913
        %v3915 = vpop.f32.mrb[0].mxu0
        %v3916 = vadd.f32 %v3459, %v3915
        %3917 = vmatprep.mubr.bf16.mxu0 0
        %3918 = vmatmul.mubr.bf16.gmra.mrb[0].mxu0 %v3747
        %v3919 = vpop.f32.mrb[0].mxu0
        %v3920 = vadd.f32 %v3463, %v3919
        %v3921 = vpop.f32.mrb[0].mxu0
        %v3922 = vadd.f32 %v3465, %v3921
        %v3923 = vpop.f32.mrb[0].mxu0
        %v3924 = vpop.f32.mrb[0].mxu0
        %3925 = vmatprep.mubr.bf16.mxu0 0
        %3926 = vmatmul.mubr.bf16.gmra.mrb[0].mxu0 %v3750
        %v3927 = vpop.f32.mrb[0].mxu0
        %v3928 = vadd.f32 %v3471, %v3927
        %v3929 = vpop.f32.mrb[0].mxu0
        %v3930 = vadd.f32 %v3473, %v3929
        %v3931 = vpop.f32.mrb[0].mxu0
        %v3932 = vadd.f32 %v3475, %v3931
        %v3933 = vpop.f32.mrb[0].mxu0
        %v3934 = vadd.f32 %v3477, %v3933
        %3935 = vmatprep.mubr.bf16.mxu0 0
        %3936 = vmatmul.mubr.bf16.gmra.mrb[0].mxu0 %v3753
        %v3937 = vpop.f32.mrb[0].mxu0
        %v3938 = vadd.f32 %v3481, %v3937
        %v3939 = vpop.f32.mrb[0].mxu0
        %v3940 = vadd.f32 %v3483, %v3939
        %v3941 = vpop.f32.mrb[0].mxu0
        %v3942 = vpop.f32.mrb[0].mxu0
        %3943 = vmatprep.mubr.bf16.mxu0 0
        %3944 = vmatmul.mubr.bf16.gmra.mrb[0].mxu0 %v3756
        %v3945 = vpop.f32.mrb[0].mxu0
        %v3946 = vadd.f32 %v3489, %v3945
        %v3947 = vpop.f32.mrb[0].mxu0
        %v3948 = vadd.f32 %v3491, %v3947
        %v3949 = vpop.f32.mrb[0].mxu0
        %v3950 = vadd.f32 %v3493, %v3949
        %v3951 = vpop.f32.mrb[0].mxu0
        %v3952 = vadd.f32 %v3495, %v3951
        %3953 = vmatprep.mubr.bf16.mxu0 0
        %3954 = vmatmul.mubr.bf16.gmra.mrb[0].mxu0 %v3759
        %v3955 = vpop.f32.mrb[0].mxu0
        %v3956 = vadd.f32 %v3499, %v3955
        %v3957 = vpop.f32.mrb[0].mxu0
        %v3958 = vadd.f32 %v3501, %v3957
        %v3959 = vpop.f32.mrb[0].mxu0
        %v3960 = vpop.f32.mrb[0].mxu0
        %3961 = vmatprep.mubr.bf16.mxu0 0
        %3962 = vmatmul.mubr.bf16.gmra.mrb[0].mxu0 %v3762
        %v3963 = vpop.f32.mrb[0].mxu0
        %v3964 = vadd.f32 %v3507, %v3963
        %v3965 = vpop.f32.mrb[0].mxu0
        %v3966 = vadd.f32 %v3509, %v3965
        %v3967 = vpop.f32.mrb[0].mxu0
        %v3968 = vadd.f32 %v3511, %v3967
        %v3969 = vpop.f32.mrb[0].mxu0
        %v3970 = vadd.f32 %v3513, %v3969
        %3971 = vmatprep.mubr.bf16.mxu0 0
        %3972 = vmatmul.mubr.bf16.gmra.mrb[0].mxu0 %v3765
        %v3973 = vpop.f32.mrb[0].mxu0
        %v3974 = vadd.f32 %v3517, %v3973
        %v3975 = vpop.f32.mrb[0].mxu0
        %v3976 = vadd.f32 %v3519, %v3975
        %v3977 = vpop.f32.mrb[0].mxu0
        %v3978 = vpop.f32.mrb[0].mxu0
        %3979 = vmatprep.mubr.bf16.mxu0 0
        %3980 = vmatmul.mubr.bf16.gmra.mrb[0].mxu0 %v3768
        %v3981 = vpop.f32.mrb[0].mxu0
        %v3982 = vadd.f32 %v3525, %v3981
        %v3983 = vpop.f32.mrb[0].mxu0
        %v3984 = vadd.f32 %v3527, %v3983
        %v3985 = vpop.f32.mrb[0].mxu0
        %v3986 = vadd.f32 %v3529, %v3985
        %v3987 = vpop.f32.mrb[0].mxu0
        %v3988 = vadd.f32 %v3531, %v3987
        %3989 = vmatprep.mubr.bf16.mxu0 0
        %3990 = vmatmul.mubr.bf16.gmra.mrb[0].mxu0 %v3771
        %v3991 = vpop.f32.mrb[0].mxu0
        %v3992 = vadd.f32 %v3535, %v3991
        %v3993 = vpop.f32.mrb[0].mxu0
        %v3994 = vadd.f32 %v3537, %v3993
        %v3995 = vpop.f32.mrb[0].mxu0
        %v3996 = vpop.f32.mrb[0].mxu0
        %3997 = vmatprep.mubr.bf16.mxu0 0
        %3998 = vmatmul.mubr.bf16.gmra.mrb[0].mxu0 %v3774
        %v3999 = vpop.f32.mrb[0].mxu0
        %v4000 = vadd.f32 %v3543, %v3999
        %v4001 = vpop.f32.mrb[0].mxu0
        %v4002 = vadd.f32 %v3545, %v4001
        %v4003 = vpop.f32.mrb[0].mxu0
        %v4004 = vadd.f32 %v3547, %v4003
        %v4005 = vpop.f32.mrb[0].mxu0
        %v4006 = vadd.f32 %v3549, %v4005
        %4007 = vmatprep.mubr.bf16.mxu0 0
        %4008 = vmatmul.mubr.bf16.gmra.mrb[0].mxu0 %v3777
        %v4009 = vpop.f32.mrb[0].mxu0
        %v4010 = vadd.f32 %v3553, %v4009
        %v4011 = vpop.f32.mrb[0].mxu0
        %v4012 = vadd.f32 %v3555, %v4011
        %v4013 = vpop.f32.mrb[0].mxu0
        %v4014 = vpop.f32.mrb[0].mxu0
        %4015 = vmatprep.mubr.bf16.mxu0 0
        %4016 = vmatmul.mubr.bf16.gmra.mrb[0].mxu0 %v3780
        %v4017 = vpop.f32.mrb[0].mxu0
        %v4018 = vadd.f32 %v3561, %v4017
        %v4019 = vpop.f32.mrb[0].mxu0
        %v4020 = vadd.f32 %v3563, %v4019
        %v4021 = vpop.f32.mrb[0].mxu0
        %v4022 = vadd.f32 %v3565, %v4021
        %v4023 = vpop.f32.mrb[0].mxu0
        %v4024 = vadd.f32 %v3567, %v4023
        %4025 = vmatprep.mubr.bf16.mxu0 0
        %4026 = vmatmul.mubr.bf16.gmra.mrb[0].mxu0 %v3783
        %v4027 = vpop.f32.mrb[0].mxu0
        %v4028 = vadd.f32 %v3571, %v4027
        %v4029 = vpop.f32.mrb[0].mxu0
        %v4030 = vadd.f32 %v3573, %v4029
        %v4031 = vpop.f32.mrb[0].mxu0
        %v4032 = vpop.f32.mrb[0].mxu0
        %4033 = vmatprep.mubr.bf16.mxu0 0
        %4034 = vmatmul.mubr.bf16.gmra.mrb[0].mxu0 %v3786
        %v4035 = vpop.f32.mrb[0].mxu0
        %v4036 = vadd.f32 %v3579, %v4035
        %v4037 = vpop.f32.mrb[0].mxu0
        %v4038 = vadd.f32 %v3581, %v4037
        %v4039 = vpop.f32.mrb[0].mxu0
        %v4040 = vadd.f32 %v3583, %v4039
        %v4041 = vpop.f32.mrb[0].mxu0
        %v4042 = vadd.f32 %v3585, %v4041
        %4043 = vmatprep.mubr.bf16.mxu0 0
        %4044 = vmatmul.mubr.bf16.gmra.mrb[0].mxu0 %v3789
        %v4045 = vpop.f32.mrb[0].mxu0
        %v4046 = vadd.f32 %v3589, %v4045
        %v4047 = vpop.f32.mrb[0].mxu0
        %v4048 = vadd.f32 %v3591, %v4047
        %v4049 = vpop.f32.mrb[0].mxu0
        %v4050 = vpop.f32.mrb[0].mxu0
        %4051 = vmatprep.mubr.bf16.mxu0 0
        %4052 = vmatmul.mubr.bf16.gmra.mrb[0].mxu0 %v3792
        %v4053 = vpop.f32.mrb[0].mxu0
        %v4054 = vadd.f32 %v3597, %v4053
        %v4055 = vpop.f32.mrb[0].mxu0
        %v4056 = vadd.f32 %v3599, %v4055
        %v4057 = vpop.f32.mrb[0].mxu0
        %v4058 = vadd.f32 %v3601, %v4057
        %v4059 = vpop.f32.mrb[0].mxu0
        %v4060 = vadd.f32 %v3603, %v4059
        %4061 = vmatprep.mubr.bf16.mxu0 0
        %4062 = vmatmul.mubr.bf16.gmra.mrb[0].mxu0 %v3795
        %v4063 = vpop.f32.mrb[0].mxu0
        %v4064 = vadd.f32 %v3607, %v4063
        %v4065 = vpop.f32.mrb[0].mxu0
        %v4066 = vadd.f32 %v3609, %v4065
        %v4067 = vpop.f32.mrb[0].mxu0
        %v4068 = vpop.f32.mrb[0].mxu0
        %4069 = vmatprep.mubr.bf16.mxu0 0
        %4070 = vmatmul.mubr.bf16.gmra.mrb[0].mxu0 %v3798
        %v4071 = vpop.f32.mrb[0].mxu0
        %v4072 = vadd.f32 %v3615, %v4071
        %v4073 = vpop.f32.mrb[0].mxu0
        %v4074 = vadd.f32 %v3617, %v4073
        %v4075 = vpop.f32.mrb[0].mxu0
        %v4076 = vadd.f32 %v3619, %v4075
        %v4077 = vpop.f32.mrb[0].mxu0
        %v4078 = vadd.f32 %v3621, %v4077
        %4079 = vmatprep.mubr.bf16.mxu0 0
        %4080 = vmatmul.mubr.bf16.gmra.mrb[0].mxu0 %v3801
        %v4081 = vpop.f32.mrb[0].mxu0
        %v4082 = vadd.f32 %v3625, %v4081
        %v4083 = vpop.f32.mrb[0].mxu0
        %v4084 = vadd.f32 %v3627, %v4083
        %v4085 = vpop.f32.mrb[0].mxu0
        %v4086 = vpop.f32.mrb[0].mxu0
        %4087 = vmatprep.mubr.bf16.mxu0 0
        %4088 = vmatmul.mubr.bf16.gmra.mrb[0].mxu0 %v3804
        %v4089 = vpop.f32.mrb[0].mxu0
        %v4090 = vadd.f32 %v3633, %v4089
        %v4091 = vpop.f32.mrb[0].mxu0
        %v4092 = vadd.f32 %v3635, %v4091
        %v4093 = vpop.f32.mrb[0].mxu0
        %v4094 = vadd.f32 %v3637, %v4093
        %v4095 = vpop.f32.mrb[0].mxu0
        %v4096 = vadd.f32 %v3639, %v4095
        %4097 = vmatprep.mubr.bf16.mxu0 0
        %4098 = vmatmul.mubr.bf16.gmra.mrb[0].mxu0 %v3807
        %v4099 = vpop.f32.mrb[0].mxu0
        %v4100 = vadd.f32 %v3643, %v4099
        %v4101 = vpop.f32.mrb[0].mxu0
        %v4102 = vadd.f32 %v3645, %v4101
        %v4103 = vpop.f32.mrb[0].mxu0
        %v4104 = vpop.f32.mrb[0].mxu0
        %4105 = vmatprep.mubr.bf16.mxu0 0
        %4106 = vmatmul.mubr.bf16.gmra.mrb[0].mxu0 %v3810
        %v4107 = vpop.f32.mrb[0].mxu0
        %v4108 = vadd.f32 %v3651, %v4107
        %v4109 = vpop.f32.mrb[0].mxu0
        %v4110 = vadd.f32 %v3653, %v4109
        %v4111 = vpop.f32.mrb[0].mxu0
        %v4112 = vadd.f32 %v3655, %v4111
        %v4113 = vpop.f32.mrb[0].mxu0
        %v4114 = vadd.f32 %v3657, %v4113
        %4115 = vmatprep.mubr.bf16.mxu0 0
        %4116 = vmatmul.mubr.bf16.gmra.mrb[0].mxu0 %v3813
        %v4117 = vpop.f32.mrb[0].mxu0
        %v4118 = vadd.f32 %v3661, %v4117
        %v4119 = vpop.f32.mrb[0].mxu0
        %v4120 = vadd.f32 %v3663, %v4119
        %v4121 = vpop.f32.mrb[0].mxu0
        %v4122 = vpop.f32.mrb[0].mxu0
        %4123 = vmatprep.mubr.bf16.mxu0 0
        %4124 = vmatmul.mubr.bf16.gmra.mrb[0].mxu0 %v3816
        %v4125 = vpop.f32.mrb[0].mxu0
        %v4126 = vadd.f32 %v3669, %v4125
        %v4127 = vpop.f32.mrb[0].mxu0
        %v4128 = vadd.f32 %v3671, %v4127
        %v4129 = vpop.f32.mrb[0].mxu0
        %v4130 = vadd.f32 %v3673, %v4129
        %v4131 = vpop.f32.mrb[0].mxu0
        %v4132 = vadd.f32 %v3675, %v4131
        %4133 = vmatprep.mubr.bf16.mxu0 0
        %4134 = vmatmul.mubr.bf16.gmra.mrb[0].mxu0 %v3819
        %v4135 = vpop.f32.mrb[0].mxu0
        %v4136 = vadd.f32 %v3679, %v4135
        %v4137 = vpop.f32.mrb[0].mxu0
        %v4138 = vadd.f32 %v3681, %v4137
        %v4139 = vpop.f32.mrb[0].mxu0
        %v4140 = vpop.f32.mrb[0].mxu0
        %4141 = vdwg.mxu0
        %s4142 = scalar_lea.vmem [#allocation2], 320
        %v4143 = vld [vmem:[%s4142] sm:$0xff]
        %v4144 = vld [vmem:[%s4142 + $0x8] sm:$0xff]
        %v4145 = vld [vmem:[%s4142 + $0x10] sm:$0xff]
        %v4146 = vld [vmem:[%s4142 + $0x18] sm:$0xff]
        %v4147 = vld [vmem:[%s4142 + $0x20] sm:$0xff]
        %v4148 = vld [vmem:[%s4142 + $0x28] sm:$0xff]
        %v4149 = vld [vmem:[%s4142 + $0x30] sm:$0xff]
        %v4150 = vld [vmem:[%s4142 + $0x38] sm:$0xff]
        %v4151 = vld [vmem:[%s4142 + $0x40] sm:$0xff]
        %v4152 = vld [vmem:[%s4142 + $0x48] sm:$0xff]
        %v4153 = vld [vmem:[%s4142 + $0x50] sm:$0xff]
        %v4154 = vld [vmem:[%s4142 + $0x58] sm:$0xff]
        %v4155 = vld [vmem:[%s4142 + $0x60] sm:$0xff]
        %v4156 = vld [vmem:[%s4142 + $0x68] sm:$0xff]
        %v4157 = vld [vmem:[%s4142 + $0x70] sm:$0xff]
        %v4158 = vld [vmem:[%s4142 + $0x78] sm:$0xff]
        %v4159 = vld [vmem:[%s4142 + $0x80] sm:$0xff]
        %v4160 = vld [vmem:[%s4142 + $0x88] sm:$0xff]
        %v4161 = vld [vmem:[%s4142 + $0x90] sm:$0xff]
        %v4162 = vld [vmem:[%s4142 + $0x98] sm:$0xff]
        %v4163 = vld [vmem:[%s4142 + $0xa0] sm:$0xff]
        %v4164 = vld [vmem:[%s4142 + $0xa8] sm:$0xff]
        %v4165 = vld [vmem:[%s4142 + $0xb0] sm:$0xff]
        %v4166 = vld [vmem:[%s4142 + $0xb8] sm:$0xff]
        %v4167 = vld [vmem:[%s4142 + $0xc0] sm:$0xff]
        %v4168 = vld [vmem:[%s4142 + $0xc8] sm:$0xff]
        %v4169 = vld [vmem:[%s4142 + $0xd0] sm:$0xff]
        %v4170 = vld [vmem:[%s4142 + $0xd8] sm:$0xff]
        %v4171 = vld [vmem:[%s4142 + $0xe0] sm:$0xff]
        %v4172 = vld [vmem:[%s4142 + $0xe8] sm:$0xff]
        %v4173 = vld [vmem:[%s4142 + $0xf0] sm:$0xff]
        %v4174 = vld [vmem:[%s4142 + $0xf8] sm:$0xff]
        %s4175 = sadd.s32 %s3172, 2
        %s4176 = smul.u32 %s4175, 16
        %s4177 = smul.addr %s4176, 4
        %s4178 = scalar_lea.vmem %s1, %s4177
        %v4179 = vld [vmem:[%s4178] sm:$0xff]
        %v4180 = vld [vmem:[%s4178 + $0x8] sm:$0xff]
        %v4181 = vld [vmem:[%s4178 + $0x10] sm:$0xff]
        %v4182 = vld [vmem:[%s4178 + $0x18] sm:$0xff]
        %v4183 = vld [vmem:[%s4178 + $0x20] sm:$0xff]
        %v4184 = vld [vmem:[%s4178 + $0x28] sm:$0xff]
        %v4185 = vld [vmem:[%s4178 + $0x30] sm:$0xff]
        %v4186 = vld [vmem:[%s4178 + $0x38] sm:$0xff]
        %v4195 = vunpack.c.l.b16 %v4179
        %v4196 = vunpack.c.h.b16 %v4179
        %v4197 = vunpack.c.l.b16 %v4180
        %v4198 = vunpack.c.h.b16 %v4180
        %v4199 = vunpack.c.l.b16 %v4181
        %v4200 = vunpack.c.h.b16 %v4181
        %v4201 = vunpack.c.l.b16 %v4182
        %v4202 = vunpack.c.h.b16 %v4182
        %v4203 = vunpack.c.l.b16 %v4183
        %v4204 = vunpack.c.h.b16 %v4183
        %v4205 = vunpack.c.l.b16 %v4184
        %v4206 = vunpack.c.h.b16 %v4184
        %v4207 = vunpack.c.l.b16 %v4185
        %v4208 = vunpack.c.h.b16 %v4185
        %v4209 = vunpack.c.l.b16 %v4186
        %v4210 = vunpack.c.h.b16 %v4186
        %v4211 = vpack.c.b16 %v4197, %v4195
        %v4212 = vpack.c.b16 %v4198, %v4196
        %v4213 = vpack.c.b16 %v4201, %v4199
        %v4214 = vpack.c.b16 %v4202, %v4200
        %v4215 = vpack.c.b16 %v4205, %v4203
        %v4216 = vpack.c.b16 %v4206, %v4204
        %v4217 = vpack.c.b16 %v4209, %v4207
        %v4218 = vpack.c.b16 %v4210, %v4208
        %v4228 = vsel %vm199, %v4143, 0
        %v4231 = vsel %vm199, %v4144, 0
        %v4234 = vsel %vm199, %v4145, 0
        %v4237 = vsel %vm199, %v4146, 0
        %v4240 = vsel %vm199, %v4147, 0
        %v4243 = vsel %vm199, %v4148, 0
        %v4246 = vsel %vm199, %v4149, 0
        %v4249 = vsel %vm199, %v4150, 0
        %v4252 = vsel %vm199, %v4151, 0
        %v4255 = vsel %vm199, %v4152, 0
        %v4258 = vsel %vm199, %v4153, 0
        %v4261 = vsel %vm199, %v4154, 0
        %v4264 = vsel %vm199, %v4155, 0
        %v4267 = vsel %vm199, %v4156, 0
        %v4270 = vsel %vm199, %v4157, 0
        %v4273 = vsel %vm199, %v4158, 0
        %v4276 = vsel %vm199, %v4159, 0
        %v4279 = vsel %vm199, %v4160, 0
        %v4282 = vsel %vm199, %v4161, 0
        %v4285 = vsel %vm199, %v4162, 0
        %v4288 = vsel %vm199, %v4163, 0
        %v4291 = vsel %vm199, %v4164, 0
        %v4294 = vsel %vm199, %v4165, 0
        %v4297 = vsel %vm199, %v4166, 0
        %v4300 = vsel %vm199, %v4167, 0
        %v4303 = vsel %vm199, %v4168, 0
        %v4306 = vsel %vm199, %v4169, 0
        %v4309 = vsel %vm199, %v4170, 0
        %v4312 = vsel %vm199, %v4171, 0
        %v4315 = vsel %vm199, %v4172, 0
        %v4318 = vsel %vm199, %v4173, 0
        %v4321 = vsel %vm199, %v4174, 0
        %4323 = vmatprep.subr.bf16.mxu0 %v4212
        %4324 = vmatpush1.bf16.msra.mxu0 %v4211
        %4325 = vmatprep.subr.bf16.mxu0 %v4214
        %4326 = vmatpush1.bf16.msra.mxu0 %v4213
        %4327 = vmatprep.subr.bf16.mxu0 %v4216
        %4328 = vmatpush1.bf16.msra.mxu0 %v4215
        %4329 = vmatprep.subr.bf16.mxu0 %v4218
        %4330 = vmatpush1.bf16.msra.mxu0 %v4217
        %4331 = vmatprep.subr.bf16.mxu0 0
        %4332 = vmatpush1.bf16.msra.mxu0 0
        %4333 = vmatprep.subr.bf16.mxu0 0
        %4334 = vmatpush1.bf16.msra.mxu0 0
        %4335 = vmatprep.subr.bf16.mxu0 0
        %4336 = vmatpush1.bf16.msra.mxu0 0
        %4337 = vmatprep.subr.bf16.mxu0 0
        %4338 = vmatpush1.bf16.msra.mxu0 0
        %4339 = vmatprep.subr.bf16.mxu0 0
        %4340 = vmatpush1.bf16.msra.mxu0 0
        %4341 = vmatprep.subr.bf16.mxu0 0
        %4342 = vmatpush1.bf16.msra.mxu0 0
        %4343 = vmatprep.subr.bf16.mxu0 0
        %4344 = vmatpush1.bf16.msra.mxu0 0
        %4345 = vmatprep.subr.bf16.mxu0 0
        %4346 = vmatpush1.bf16.msra.mxu0 0
        %4347 = vmatprep.subr.bf16.mxu0 0
        %4348 = vmatpush1.bf16.msra.mxu0 0
        %4349 = vmatprep.subr.bf16.mxu0 0
        %4350 = vmatpush1.bf16.msra.mxu0 0
        %4351 = vmatprep.subr.bf16.mxu0 0
        %4352 = vmatpush1.bf16.msra.mxu0 0
        %4353 = vmatprep.subr.bf16.mxu0 0
        %4354 = vmatpush1.bf16.msra.mxu0 0
        %4355 = vmatprep.mubr.bf16.mxu0 0
        %4356 = vmatmul.mubr.bf16.gmra.mrb[0].mxu0 %v4228
        %v4357 = vpop.f32.mrb[0].mxu0
        %v4358 = vadd.f32 0.0, %v4357
        %v4359 = vpop.f32.mrb[0].mxu0
        %v4360 = vadd.f32 0.0, %v4359
        %v4361 = vpop.f32.mrb[0].mxu0
        %v4362 = vadd.f32 0.0, %v4361
        %v4363 = vpop.f32.mrb[0].mxu0
        %v4364 = vadd.f32 0.0, %v4363
        %4365 = vmatprep.mubr.bf16.mxu0 0
        %4366 = vmatmul.mubr.bf16.gmra.mrb[0].mxu0 %v4231
        %v4367 = vpop.f32.mrb[0].mxu0
        %v4368 = vadd.f32 0.0, %v4367
        %v4369 = vpop.f32.mrb[0].mxu0
        %v4370 = vadd.f32 0.0, %v4369
        %v4371 = vpop.f32.mrb[0].mxu0
        %v4372 = vpop.f32.mrb[0].mxu0
        %4373 = vmatprep.mubr.bf16.mxu0 0
        %4374 = vmatmul.mubr.bf16.gmra.mrb[0].mxu0 %v4234
        %v4375 = vpop.f32.mrb[0].mxu0
        %v4376 = vadd.f32 0.0, %v4375
        %v4377 = vpop.f32.mrb[0].mxu0
        %v4378 = vadd.f32 0.0, %v4377
        %v4379 = vpop.f32.mrb[0].mxu0
        %v4380 = vadd.f32 0.0, %v4379
        %v4381 = vpop.f32.mrb[0].mxu0
        %v4382 = vadd.f32 0.0, %v4381
        %4383 = vmatprep.mubr.bf16.mxu0 0
        %4384 = vmatmul.mubr.bf16.gmra.mrb[0].mxu0 %v4237
        %v4385 = vpop.f32.mrb[0].mxu0
        %v4386 = vadd.f32 0.0, %v4385
        %v4387 = vpop.f32.mrb[0].mxu0
        %v4388 = vadd.f32 0.0, %v4387
        %v4389 = vpop.f32.mrb[0].mxu0
        %v4390 = vpop.f32.mrb[0].mxu0
        %4391 = vmatprep.mubr.bf16.mxu0 0
        %4392 = vmatmul.mubr.bf16.gmra.mrb[0].mxu0 %v4240
        %v4393 = vpop.f32.mrb[0].mxu0
        %v4394 = vadd.f32 0.0, %v4393
        %v4395 = vpop.f32.mrb[0].mxu0
        %v4396 = vadd.f32 0.0, %v4395
        %v4397 = vpop.f32.mrb[0].mxu0
        %v4398 = vadd.f32 0.0, %v4397
        %v4399 = vpop.f32.mrb[0].mxu0
        %v4400 = vadd.f32 0.0, %v4399
        %4401 = vmatprep.mubr.bf16.mxu0 0
        %4402 = vmatmul.mubr.bf16.gmra.mrb[0].mxu0 %v4243
        %v4403 = vpop.f32.mrb[0].mxu0
        %v4404 = vadd.f32 0.0, %v4403
        %v4405 = vpop.f32.mrb[0].mxu0
        %v4406 = vadd.f32 0.0, %v4405
        %v4407 = vpop.f32.mrb[0].mxu0
        %v4408 = vpop.f32.mrb[0].mxu0
        %4409 = vmatprep.mubr.bf16.mxu0 0
        %4410 = vmatmul.mubr.bf16.gmra.mrb[0].mxu0 %v4246
        %v4411 = vpop.f32.mrb[0].mxu0
        %v4412 = vadd.f32 0.0, %v4411
        %v4413 = vpop.f32.mrb[0].mxu0
        %v4414 = vadd.f32 0.0, %v4413
        %v4415 = vpop.f32.mrb[0].mxu0
        %v4416 = vadd.f32 0.0, %v4415
        %v4417 = vpop.f32.mrb[0].mxu0
        %v4418 = vadd.f32 0.0, %v4417
        %4419 = vmatprep.mubr.bf16.mxu0 0
        %4420 = vmatmul.mubr.bf16.gmra.mrb[0].mxu0 %v4249
        %v4421 = vpop.f32.mrb[0].mxu0
        %v4422 = vadd.f32 0.0, %v4421
        %v4423 = vpop.f32.mrb[0].mxu0
        %v4424 = vadd.f32 0.0, %v4423
        %v4425 = vpop.f32.mrb[0].mxu0
        %v4426 = vpop.f32.mrb[0].mxu0
        %4427 = vmatprep.mubr.bf16.mxu0 0
        %4428 = vmatmul.mubr.bf16.gmra.mrb[0].mxu0 %v4252
        %v4429 = vpop.f32.mrb[0].mxu0
        %v4430 = vadd.f32 0.0, %v4429
        %v4431 = vpop.f32.mrb[0].mxu0
        %v4432 = vadd.f32 0.0, %v4431
        %v4433 = vpop.f32.mrb[0].mxu0
        %v4434 = vadd.f32 0.0, %v4433
        %v4435 = vpop.f32.mrb[0].mxu0
        %v4436 = vadd.f32 0.0, %v4435
        %4437 = vmatprep.mubr.bf16.mxu0 0
        %4438 = vmatmul.mubr.bf16.gmra.mrb[0].mxu0 %v4255
        %v4439 = vpop.f32.mrb[0].mxu0
        %v4440 = vadd.f32 0.0, %v4439
        %v4441 = vpop.f32.mrb[0].mxu0
        %v4442 = vadd.f32 0.0, %v4441
        %v4443 = vpop.f32.mrb[0].mxu0
        %v4444 = vpop.f32.mrb[0].mxu0
        %4445 = vmatprep.mubr.bf16.mxu0 0
        %4446 = vmatmul.mubr.bf16.gmra.mrb[0].mxu0 %v4258
        %v4447 = vpop.f32.mrb[0].mxu0
        %v4448 = vadd.f32 0.0, %v4447
        %v4449 = vpop.f32.mrb[0].mxu0
        %v4450 = vadd.f32 0.0, %v4449
        %v4451 = vpop.f32.mrb[0].mxu0
        %v4452 = vadd.f32 0.0, %v4451
        %v4453 = vpop.f32.mrb[0].mxu0
        %v4454 = vadd.f32 0.0, %v4453
        %4455 = vmatprep.mubr.bf16.mxu0 0
        %4456 = vmatmul.mubr.bf16.gmra.mrb[0].mxu0 %v4261
        %v4457 = vpop.f32.mrb[0].mxu0
        %v4458 = vadd.f32 0.0, %v4457
        %v4459 = vpop.f32.mrb[0].mxu0
        %v4460 = vadd.f32 0.0, %v4459
        %v4461 = vpop.f32.mrb[0].mxu0
        %v4462 = vpop.f32.mrb[0].mxu0
        %4463 = vmatprep.mubr.bf16.mxu0 0
        %4464 = vmatmul.mubr.bf16.gmra.mrb[0].mxu0 %v4264
        %v4465 = vpop.f32.mrb[0].mxu0
        %v4466 = vadd.f32 0.0, %v4465
        %v4467 = vpop.f32.mrb[0].mxu0
        %v4468 = vadd.f32 0.0, %v4467
        %v4469 = vpop.f32.mrb[0].mxu0
        %v4470 = vadd.f32 0.0, %v4469
        %v4471 = vpop.f32.mrb[0].mxu0
        %v4472 = vadd.f32 0.0, %v4471
        %4473 = vmatprep.mubr.bf16.mxu0 0
        %4474 = vmatmul.mubr.bf16.gmra.mrb[0].mxu0 %v4267
        %v4475 = vpop.f32.mrb[0].mxu0
        %v4476 = vadd.f32 0.0, %v4475
        %v4477 = vpop.f32.mrb[0].mxu0
        %v4478 = vadd.f32 0.0, %v4477
        %v4479 = vpop.f32.mrb[0].mxu0
        %v4480 = vpop.f32.mrb[0].mxu0
        %4481 = vmatprep.mubr.bf16.mxu0 0
        %4482 = vmatmul.mubr.bf16.gmra.mrb[0].mxu0 %v4270
        %v4483 = vpop.f32.mrb[0].mxu0
        %v4484 = vadd.f32 0.0, %v4483
        %v4485 = vpop.f32.mrb[0].mxu0
        %v4486 = vadd.f32 0.0, %v4485
        %v4487 = vpop.f32.mrb[0].mxu0
        %v4488 = vadd.f32 0.0, %v4487
        %v4489 = vpop.f32.mrb[0].mxu0
        %v4490 = vadd.f32 0.0, %v4489
        %4491 = vmatprep.mubr.bf16.mxu0 0
        %4492 = vmatmul.mubr.bf16.gmra.mrb[0].mxu0 %v4273
        %v4493 = vpop.f32.mrb[0].mxu0
        %v4494 = vadd.f32 0.0, %v4493
        %v4495 = vpop.f32.mrb[0].mxu0
        %v4496 = vadd.f32 0.0, %v4495
        %v4497 = vpop.f32.mrb[0].mxu0
        %v4498 = vpop.f32.mrb[0].mxu0
        %4499 = vmatprep.mubr.bf16.mxu0 0
        %4500 = vmatmul.mubr.bf16.gmra.mrb[0].mxu0 %v4276
        %v4501 = vpop.f32.mrb[0].mxu0
        %v4502 = vadd.f32 0.0, %v4501
        %v4503 = vpop.f32.mrb[0].mxu0
        %v4504 = vadd.f32 0.0, %v4503
        %v4505 = vpop.f32.mrb[0].mxu0
        %v4506 = vadd.f32 0.0, %v4505
        %v4507 = vpop.f32.mrb[0].mxu0
        %v4508 = vadd.f32 0.0, %v4507
        %4509 = vmatprep.mubr.bf16.mxu0 0
        %4510 = vmatmul.mubr.bf16.gmra.mrb[0].mxu0 %v4279
        %v4511 = vpop.f32.mrb[0].mxu0
        %v4512 = vadd.f32 0.0, %v4511
        %v4513 = vpop.f32.mrb[0].mxu0
        %v4514 = vadd.f32 0.0, %v4513
        %v4515 = vpop.f32.mrb[0].mxu0
        %v4516 = vpop.f32.mrb[0].mxu0
        %4517 = vmatprep.mubr.bf16.mxu0 0
        %4518 = vmatmul.mubr.bf16.gmra.mrb[0].mxu0 %v4282
        %v4519 = vpop.f32.mrb[0].mxu0
        %v4520 = vadd.f32 0.0, %v4519
        %v4521 = vpop.f32.mrb[0].mxu0
        %v4522 = vadd.f32 0.0, %v4521
        %v4523 = vpop.f32.mrb[0].mxu0
        %v4524 = vadd.f32 0.0, %v4523
        %v4525 = vpop.f32.mrb[0].mxu0
        %v4526 = vadd.f32 0.0, %v4525
        %4527 = vmatprep.mubr.bf16.mxu0 0
        %4528 = vmatmul.mubr.bf16.gmra.mrb[0].mxu0 %v4285
        %v4529 = vpop.f32.mrb[0].mxu0
        %v4530 = vadd.f32 0.0, %v4529
        %v4531 = vpop.f32.mrb[0].mxu0
        %v4532 = vadd.f32 0.0, %v4531
        %v4533 = vpop.f32.mrb[0].mxu0
        %v4534 = vpop.f32.mrb[0].mxu0
        %4535 = vmatprep.mubr.bf16.mxu0 0
        %4536 = vmatmul.mubr.bf16.gmra.mrb[0].mxu0 %v4288
        %v4537 = vpop.f32.mrb[0].mxu0
        %v4538 = vadd.f32 0.0, %v4537
        %v4539 = vpop.f32.mrb[0].mxu0
        %v4540 = vadd.f32 0.0, %v4539
        %v4541 = vpop.f32.mrb[0].mxu0
        %v4542 = vadd.f32 0.0, %v4541
        %v4543 = vpop.f32.mrb[0].mxu0
        %v4544 = vadd.f32 0.0, %v4543
        %4545 = vmatprep.mubr.bf16.mxu0 0
        %4546 = vmatmul.mubr.bf16.gmra.mrb[0].mxu0 %v4291
        %v4547 = vpop.f32.mrb[0].mxu0
        %v4548 = vadd.f32 0.0, %v4547
        %v4549 = vpop.f32.mrb[0].mxu0
        %v4550 = vadd.f32 0.0, %v4549
        %v4551 = vpop.f32.mrb[0].mxu0
        %v4552 = vpop.f32.mrb[0].mxu0
        %4553 = vmatprep.mubr.bf16.mxu0 0
        %4554 = vmatmul.mubr.bf16.gmra.mrb[0].mxu0 %v4294
        %v4555 = vpop.f32.mrb[0].mxu0
        %v4556 = vadd.f32 0.0, %v4555
        %v4557 = vpop.f32.mrb[0].mxu0
        %v4558 = vadd.f32 0.0, %v4557
        %v4559 = vpop.f32.mrb[0].mxu0
        %v4560 = vadd.f32 0.0, %v4559
        %v4561 = vpop.f32.mrb[0].mxu0
        %v4562 = vadd.f32 0.0, %v4561
        %4563 = vmatprep.mubr.bf16.mxu0 0
        %4564 = vmatmul.mubr.bf16.gmra.mrb[0].mxu0 %v4297
        %v4565 = vpop.f32.mrb[0].mxu0
        %v4566 = vadd.f32 0.0, %v4565
        %v4567 = vpop.f32.mrb[0].mxu0
        %v4568 = vadd.f32 0.0, %v4567
        %v4569 = vpop.f32.mrb[0].mxu0
        %v4570 = vpop.f32.mrb[0].mxu0
        %4571 = vmatprep.mubr.bf16.mxu0 0
        %4572 = vmatmul.mubr.bf16.gmra.mrb[0].mxu0 %v4300
        %v4573 = vpop.f32.mrb[0].mxu0
        %v4574 = vadd.f32 0.0, %v4573
        %v4575 = vpop.f32.mrb[0].mxu0
        %v4576 = vadd.f32 0.0, %v4575
        %v4577 = vpop.f32.mrb[0].mxu0
        %v4578 = vadd.f32 0.0, %v4577
        %v4579 = vpop.f32.mrb[0].mxu0
        %v4580 = vadd.f32 0.0, %v4579
        %4581 = vmatprep.mubr.bf16.mxu0 0
        %4582 = vmatmul.mubr.bf16.gmra.mrb[0].mxu0 %v4303
        %v4583 = vpop.f32.mrb[0].mxu0
        %v4584 = vadd.f32 0.0, %v4583
        %v4585 = vpop.f32.mrb[0].mxu0
        %v4586 = vadd.f32 0.0, %v4585
        %v4587 = vpop.f32.mrb[0].mxu0
        %v4588 = vpop.f32.mrb[0].mxu0
        %4589 = vmatprep.mubr.bf16.mxu0 0
        %4590 = vmatmul.mubr.bf16.gmra.mrb[0].mxu0 %v4306
        %v4591 = vpop.f32.mrb[0].mxu0
        %v4592 = vadd.f32 0.0, %v4591
        %v4593 = vpop.f32.mrb[0].mxu0
        %v4594 = vadd.f32 0.0, %v4593
        %v4595 = vpop.f32.mrb[0].mxu0
        %v4596 = vadd.f32 0.0, %v4595
        %v4597 = vpop.f32.mrb[0].mxu0
        %v4598 = vadd.f32 0.0, %v4597
        %4599 = vmatprep.mubr.bf16.mxu0 0
        %4600 = vmatmul.mubr.bf16.gmra.mrb[0].mxu0 %v4309
        %v4601 = vpop.f32.mrb[0].mxu0
        %v4602 = vadd.f32 0.0, %v4601
        %v4603 = vpop.f32.mrb[0].mxu0
        %v4604 = vadd.f32 0.0, %v4603
        %v4605 = vpop.f32.mrb[0].mxu0
        %v4606 = vpop.f32.mrb[0].mxu0
        %4607 = vmatprep.mubr.bf16.mxu0 0
        %4608 = vmatmul.mubr.bf16.gmra.mrb[0].mxu0 %v4312
        %v4609 = vpop.f32.mrb[0].mxu0
        %v4610 = vadd.f32 0.0, %v4609
        %v4611 = vpop.f32.mrb[0].mxu0
        %v4612 = vadd.f32 0.0, %v4611
        %v4613 = vpop.f32.mrb[0].mxu0
        %v4614 = vadd.f32 0.0, %v4613
        %v4615 = vpop.f32.mrb[0].mxu0
        %v4616 = vadd.f32 0.0, %v4615
        %4617 = vmatprep.mubr.bf16.mxu0 0
        %4618 = vmatmul.mubr.bf16.gmra.mrb[0].mxu0 %v4315
        %v4619 = vpop.f32.mrb[0].mxu0
        %v4620 = vadd.f32 0.0, %v4619
        %v4621 = vpop.f32.mrb[0].mxu0
        %v4622 = vadd.f32 0.0, %v4621
        %v4623 = vpop.f32.mrb[0].mxu0
        %v4624 = vpop.f32.mrb[0].mxu0
        %4625 = vmatprep.mubr.bf16.mxu0 0
        %4626 = vmatmul.mubr.bf16.gmra.mrb[0].mxu0 %v4318
        %v4627 = vpop.f32.mrb[0].mxu0
        %v4628 = vadd.f32 0.0, %v4627
        %v4629 = vpop.f32.mrb[0].mxu0
        %v4630 = vadd.f32 0.0, %v4629
        %v4631 = vpop.f32.mrb[0].mxu0
        %v4632 = vadd.f32 0.0, %v4631
        %v4633 = vpop.f32.mrb[0].mxu0
        %v4634 = vadd.f32 0.0, %v4633
        %4635 = vmatprep.mubr.bf16.mxu0 0
        %4636 = vmatmul.mubr.bf16.gmra.mrb[0].mxu0 %v4321
        %v4637 = vpop.f32.mrb[0].mxu0
        %v4638 = vadd.f32 0.0, %v4637
        %v4639 = vpop.f32.mrb[0].mxu0
        %v4640 = vadd.f32 0.0, %v4639
        %v4641 = vpop.f32.mrb[0].mxu0
        %v4642 = vpop.f32.mrb[0].mxu0
        %4643 = vdwg.mxu0
        %v4644 = vadd.f32 %v3856, %v4358
        %v4645 = vadd.f32 %v3858, %v4360
        %v4646 = vadd.f32 %v3860, %v4362
        %v4647 = vadd.f32 %v3862, %v4364
        %v4648 = vadd.f32 %v3866, %v4368
        %v4649 = vadd.f32 %v3868, %v4370
        %v4650 = vadd.f32 %v3874, %v4376
        %v4651 = vadd.f32 %v3876, %v4378
        %v4652 = vadd.f32 %v3878, %v4380
        %v4653 = vadd.f32 %v3880, %v4382
        %v4654 = vadd.f32 %v3884, %v4386
        %v4655 = vadd.f32 %v3886, %v4388
        %v4656 = vadd.f32 %v3892, %v4394
        %v4657 = vadd.f32 %v3894, %v4396
        %v4658 = vadd.f32 %v3896, %v4398
        %v4659 = vadd.f32 %v3898, %v4400
        %v4660 = vadd.f32 %v3902, %v4404
        %v4661 = vadd.f32 %v3904, %v4406
        %v4662 = vadd.f32 %v3910, %v4412
        %v4663 = vadd.f32 %v3912, %v4414
        %v4664 = vadd.f32 %v3914, %v4416
        %v4665 = vadd.f32 %v3916, %v4418
        %v4666 = vadd.f32 %v3920, %v4422
        %v4667 = vadd.f32 %v3922, %v4424
        %v4668 = vadd.f32 %v3928, %v4430
        %v4669 = vadd.f32 %v3930, %v4432
        %v4670 = vadd.f32 %v3932, %v4434
        %v4671 = vadd.f32 %v3934, %v4436
        %v4672 = vadd.f32 %v3938, %v4440
        %v4673 = vadd.f32 %v3940, %v4442
        %v4674 = vadd.f32 %v3946, %v4448
        %v4675 = vadd.f32 %v3948, %v4450
        %v4676 = vadd.f32 %v3950, %v4452
        %v4677 = vadd.f32 %v3952, %v4454
        %v4678 = vadd.f32 %v3956, %v4458
        %v4679 = vadd.f32 %v3958, %v4460
        %v4680 = vadd.f32 %v3964, %v4466
        %v4681 = vadd.f32 %v3966, %v4468
        %v4682 = vadd.f32 %v3968, %v4470
        %v4683 = vadd.f32 %v3970, %v4472
        %v4684 = vadd.f32 %v3974, %v4476
        %v4685 = vadd.f32 %v3976, %v4478
        %v4686 = vadd.f32 %v3982, %v4484
        %v4687 = vadd.f32 %v3984, %v4486
        %v4688 = vadd.f32 %v3986, %v4488
        %v4689 = vadd.f32 %v3988, %v4490
        %v4690 = vadd.f32 %v3992, %v4494
        %v4691 = vadd.f32 %v3994, %v4496
        %v4692 = vadd.f32 %v4000, %v4502
        %v4693 = vadd.f32 %v4002, %v4504
        %v4694 = vadd.f32 %v4004, %v4506
        %v4695 = vadd.f32 %v4006, %v4508
        %v4696 = vadd.f32 %v4010, %v4512
        %v4697 = vadd.f32 %v4012, %v4514
        %v4698 = vadd.f32 %v4018, %v4520
        %v4699 = vadd.f32 %v4020, %v4522
        %v4700 = vadd.f32 %v4022, %v4524
        %v4701 = vadd.f32 %v4024, %v4526
        %v4702 = vadd.f32 %v4028, %v4530
        %v4703 = vadd.f32 %v4030, %v4532
        %v4704 = vadd.f32 %v4036, %v4538
        %v4705 = vadd.f32 %v4038, %v4540
        %v4706 = vadd.f32 %v4040, %v4542
        %v4707 = vadd.f32 %v4042, %v4544
        %v4708 = vadd.f32 %v4046, %v4548
        %v4709 = vadd.f32 %v4048, %v4550
        %v4710 = vadd.f32 %v4054, %v4556
        %v4711 = vadd.f32 %v4056, %v4558
        %v4712 = vadd.f32 %v4058, %v4560
        %v4713 = vadd.f32 %v4060, %v4562
        %v4714 = vadd.f32 %v4064, %v4566
        %v4715 = vadd.f32 %v4066, %v4568
        %v4716 = vadd.f32 %v4072, %v4574
        %v4717 = vadd.f32 %v4074, %v4576
        %v4718 = vadd.f32 %v4076, %v4578
        %v4719 = vadd.f32 %v4078, %v4580
        %v4720 = vadd.f32 %v4082, %v4584
        %v4721 = vadd.f32 %v4084, %v4586
        %v4722 = vadd.f32 %v4090, %v4592
        %v4723 = vadd.f32 %v4092, %v4594
        %v4724 = vadd.f32 %v4094, %v4596
        %v4725 = vadd.f32 %v4096, %v4598
        %v4726 = vadd.f32 %v4100, %v4602
        %v4727 = vadd.f32 %v4102, %v4604
        %v4728 = vadd.f32 %v4108, %v4610
        %v4729 = vadd.f32 %v4110, %v4612
        %v4730 = vadd.f32 %v4112, %v4614
        %v4731 = vadd.f32 %v4114, %v4616
        %v4732 = vadd.f32 %v4118, %v4620
        %v4733 = vadd.f32 %v4120, %v4622
        %v4734 = vadd.f32 %v4126, %v4628
        %v4735 = vadd.f32 %v4128, %v4630
        %v4736 = vadd.f32 %v4130, %v4632
        %v4737 = vadd.f32 %v4132, %v4634
        %v4738 = vadd.f32 %v4136, %v4638
        %v4739 = vadd.f32 %v4138, %v4640
        %v4788 = vrot.slane %v4644, 1
        %v4789 = vrot.slane %v4646, 1
        %v4790 = vsel %vm2368, %v4788, %v4789
        %v4791 = vrot.slane %v4648, 1
        %v4792 = vsel %vm2368, %v4789, %v4791
        %v4793 = vrot.slane %v4650, 1
        %v4794 = vrot.slane %v4652, 1
        %v4795 = vsel %vm2368, %v4793, %v4794
        %v4796 = vrot.slane %v4654, 1
        %v4797 = vsel %vm2368, %v4794, %v4796
        %v4798 = vrot.slane %v4656, 1
        %v4799 = vrot.slane %v4658, 1
        %v4800 = vsel %vm2368, %v4798, %v4799
        %v4801 = vrot.slane %v4660, 1
        %v4802 = vsel %vm2368, %v4799, %v4801
        %v4803 = vrot.slane %v4662, 1
        %v4804 = vrot.slane %v4664, 1
        %v4805 = vsel %vm2368, %v4803, %v4804
        %v4806 = vrot.slane %v4666, 1
        %v4807 = vsel %vm2368, %v4804, %v4806
        %v4808 = vrot.slane %v4668, 1
        %v4809 = vrot.slane %v4670, 1
        %v4810 = vsel %vm2368, %v4808, %v4809
        %v4811 = vrot.slane %v4672, 1
        %v4812 = vsel %vm2368, %v4809, %v4811
        %v4813 = vrot.slane %v4674, 1
        %v4814 = vrot.slane %v4676, 1
        %v4815 = vsel %vm2368, %v4813, %v4814
        %v4816 = vrot.slane %v4678, 1
        %v4817 = vsel %vm2368, %v4814, %v4816
        %v4818 = vrot.slane %v4680, 1
        %v4819 = vrot.slane %v4682, 1
        %v4820 = vsel %vm2368, %v4818, %v4819
        %v4821 = vrot.slane %v4684, 1
        %v4822 = vsel %vm2368, %v4819, %v4821
        %v4823 = vrot.slane %v4686, 1
        %v4824 = vrot.slane %v4688, 1
        %v4825 = vsel %vm2368, %v4823, %v4824
        %v4826 = vrot.slane %v4690, 1
        %v4827 = vsel %vm2368, %v4824, %v4826
        %v4828 = vrot.slane %v4692, 1
        %v4829 = vrot.slane %v4694, 1
        %v4830 = vsel %vm2368, %v4828, %v4829
        %v4831 = vrot.slane %v4696, 1
        %v4832 = vsel %vm2368, %v4829, %v4831
        %v4833 = vrot.slane %v4698, 1
        %v4834 = vrot.slane %v4700, 1
        %v4835 = vsel %vm2368, %v4833, %v4834
        %v4836 = vrot.slane %v4702, 1
        %v4837 = vsel %vm2368, %v4834, %v4836
        %v4838 = vrot.slane %v4704, 1
        %v4839 = vrot.slane %v4706, 1
        %v4840 = vsel %vm2368, %v4838, %v4839
        %v4841 = vrot.slane %v4708, 1
        %v4842 = vsel %vm2368, %v4839, %v4841
        %v4843 = vrot.slane %v4710, 1
        %v4844 = vrot.slane %v4712, 1
        %v4845 = vsel %vm2368, %v4843, %v4844
        %v4846 = vrot.slane %v4714, 1
        %v4847 = vsel %vm2368, %v4844, %v4846
        %v4848 = vrot.slane %v4716, 1
        %v4849 = vrot.slane %v4718, 1
        %v4850 = vsel %vm2368, %v4848, %v4849
        %v4851 = vrot.slane %v4720, 1
        %v4852 = vsel %vm2368, %v4849, %v4851
        %v4853 = vrot.slane %v4722, 1
        %v4854 = vrot.slane %v4724, 1
        %v4855 = vsel %vm2368, %v4853, %v4854
        %v4856 = vrot.slane %v4726, 1
        %v4857 = vsel %vm2368, %v4854, %v4856
        %v4858 = vrot.slane %v4728, 1
        %v4859 = vrot.slane %v4730, 1
        %v4860 = vsel %vm2368, %v4858, %v4859
        %v4861 = vrot.slane %v4732, 1
        %v4862 = vsel %vm2368, %v4859, %v4861
        %v4863 = vrot.slane %v4734, 1
        %v4864 = vrot.slane %v4736, 1
        %v4865 = vsel %vm2368, %v4863, %v4864
        %v4866 = vrot.slane %v4738, 1
        %v4867 = vsel %vm2368, %v4864, %v4866
        %4868 = vrot.lane.b32.xlu0 %v4790, 64
        %v4869 = vpop.permute.xlu0 %4868
        %4870 = vrot.lane.b32.xlu0 %v4792, 64
        %v4871 = vpop.permute.xlu0 %4870
        %4872 = vrot.lane.b32.xlu0 %v4795, 64
        %v4873 = vpop.permute.xlu0 %4872
        %4874 = vrot.lane.b32.xlu0 %v4797, 64
        %v4875 = vpop.permute.xlu0 %4874
        %4876 = vrot.lane.b32.xlu0 %v4800, 64
        %v4877 = vpop.permute.xlu0 %4876
        %4878 = vrot.lane.b32.xlu0 %v4802, 64
        %v4879 = vpop.permute.xlu0 %4878
        %4880 = vrot.lane.b32.xlu0 %v4805, 64
        %v4881 = vpop.permute.xlu0 %4880
        %4882 = vrot.lane.b32.xlu0 %v4807, 64
        %v4883 = vpop.permute.xlu0 %4882
        %4884 = vrot.lane.b32.xlu0 %v4810, 64
        %v4885 = vpop.permute.xlu0 %4884
        %4886 = vrot.lane.b32.xlu0 %v4812, 64
        %v4887 = vpop.permute.xlu0 %4886
        %4888 = vrot.lane.b32.xlu0 %v4815, 64
        %v4889 = vpop.permute.xlu0 %4888
        %4890 = vrot.lane.b32.xlu0 %v4817, 64
        %v4891 = vpop.permute.xlu0 %4890
        %4892 = vrot.lane.b32.xlu0 %v4820, 64
        %v4893 = vpop.permute.xlu0 %4892
        %4894 = vrot.lane.b32.xlu0 %v4822, 64
        %v4895 = vpop.permute.xlu0 %4894
        %4896 = vrot.lane.b32.xlu0 %v4825, 64
        %v4897 = vpop.permute.xlu0 %4896
        %4898 = vrot.lane.b32.xlu0 %v4827, 64
        %v4899 = vpop.permute.xlu0 %4898
        %4900 = vrot.lane.b32.xlu0 %v4830, 64
        %v4901 = vpop.permute.xlu0 %4900
        %4902 = vrot.lane.b32.xlu0 %v4832, 64
        %v4903 = vpop.permute.xlu0 %4902
        %4904 = vrot.lane.b32.xlu0 %v4835, 64
        %v4905 = vpop.permute.xlu0 %4904
        %4906 = vrot.lane.b32.xlu0 %v4837, 64
        %v4907 = vpop.permute.xlu0 %4906
        %4908 = vrot.lane.b32.xlu0 %v4840, 64
        %v4909 = vpop.permute.xlu0 %4908
        %4910 = vrot.lane.b32.xlu0 %v4842, 64
        %v4911 = vpop.permute.xlu0 %4910
        %4912 = vrot.lane.b32.xlu0 %v4845, 64
        %v4913 = vpop.permute.xlu0 %4912
        %4914 = vrot.lane.b32.xlu0 %v4847, 64
        %v4915 = vpop.permute.xlu0 %4914
        %4916 = vrot.lane.b32.xlu0 %v4850, 64
        %v4917 = vpop.permute.xlu0 %4916
        %4918 = vrot.lane.b32.xlu0 %v4852, 64
        %v4919 = vpop.permute.xlu0 %4918
        %4920 = vrot.lane.b32.xlu0 %v4855, 64
        %v4921 = vpop.permute.xlu0 %4920
        %4922 = vrot.lane.b32.xlu0 %v4857, 64
        %v4923 = vpop.permute.xlu0 %4922
        %4924 = vrot.lane.b32.xlu0 %v4860, 64
        %v4925 = vpop.permute.xlu0 %4924
        %4926 = vrot.lane.b32.xlu0 %v4862, 64
        %v4927 = vpop.permute.xlu0 %4926
        %4928 = vrot.lane.b32.xlu0 %v4865, 64
        %v4929 = vpop.permute.xlu0 %4928
        %4930 = vrot.lane.b32.xlu0 %v4867, 64
        %v4931 = vpop.permute.xlu0 %4930
        %v4964 = vadd.f32 %v4644, %v4869
        %v4965 = vadd.f32 %v4646, %v4871
        %v4966 = vadd.f32 %v4650, %v4873
        %v4967 = vadd.f32 %v4652, %v4875
        %v4968 = vadd.f32 %v4656, %v4877
        %v4969 = vadd.f32 %v4658, %v4879
        %v4970 = vadd.f32 %v4662, %v4881
        %v4971 = vadd.f32 %v4664, %v4883
        %v4972 = vadd.f32 %v4668, %v4885
        %v4973 = vadd.f32 %v4670, %v4887
        %v4974 = vadd.f32 %v4674, %v4889
        %v4975 = vadd.f32 %v4676, %v4891
        %v4976 = vadd.f32 %v4680, %v4893
        %v4977 = vadd.f32 %v4682, %v4895
        %v4978 = vadd.f32 %v4686, %v4897
        %v4979 = vadd.f32 %v4688, %v4899
        %v4980 = vadd.f32 %v4692, %v4901
        %v4981 = vadd.f32 %v4694, %v4903
        %v4982 = vadd.f32 %v4698, %v4905
        %v4983 = vadd.f32 %v4700, %v4907
        %v4984 = vadd.f32 %v4704, %v4909
        %v4985 = vadd.f32 %v4706, %v4911
        %v4986 = vadd.f32 %v4710, %v4913
        %v4987 = vadd.f32 %v4712, %v4915
        %v4988 = vadd.f32 %v4716, %v4917
        %v4989 = vadd.f32 %v4718, %v4919
        %v4990 = vadd.f32 %v4722, %v4921
        %v4991 = vadd.f32 %v4724, %v4923
        %v4992 = vadd.f32 %v4728, %v4925
        %v4993 = vadd.f32 %v4730, %v4927
        %v4994 = vadd.f32 %v4734, %v4929
        %v4995 = vadd.f32 %v4736, %v4931
        %v5044 = vrot.slane %v4645, 2
        %v5045 = vrot.slane %v4647, 2
        %v5046 = vsel %vm2625, %v5044, %v5045
        %v5047 = vrot.slane %v4649, 2
        %v5048 = vsel %vm2625, %v5045, %v5047
        %v5049 = vrot.slane %v4651, 2
        %v5050 = vrot.slane %v4653, 2
        %v5051 = vsel %vm2625, %v5049, %v5050
        %v5052 = vrot.slane %v4655, 2
        %v5053 = vsel %vm2625, %v5050, %v5052
        %v5054 = vrot.slane %v4657, 2
        %v5055 = vrot.slane %v4659, 2
        %v5056 = vsel %vm2625, %v5054, %v5055
        %v5057 = vrot.slane %v4661, 2
        %v5058 = vsel %vm2625, %v5055, %v5057
        %v5059 = vrot.slane %v4663, 2
        %v5060 = vrot.slane %v4665, 2
        %v5061 = vsel %vm2625, %v5059, %v5060
        %v5062 = vrot.slane %v4667, 2
        %v5063 = vsel %vm2625, %v5060, %v5062
        %v5064 = vrot.slane %v4669, 2
        %v5065 = vrot.slane %v4671, 2
        %v5066 = vsel %vm2625, %v5064, %v5065
        %v5067 = vrot.slane %v4673, 2
        %v5068 = vsel %vm2625, %v5065, %v5067
        %v5069 = vrot.slane %v4675, 2
        %v5070 = vrot.slane %v4677, 2
        %v5071 = vsel %vm2625, %v5069, %v5070
        %v5072 = vrot.slane %v4679, 2
        %v5073 = vsel %vm2625, %v5070, %v5072
        %v5074 = vrot.slane %v4681, 2
        %v5075 = vrot.slane %v4683, 2
        %v5076 = vsel %vm2625, %v5074, %v5075
        %v5077 = vrot.slane %v4685, 2
        %v5078 = vsel %vm2625, %v5075, %v5077
        %v5079 = vrot.slane %v4687, 2
        %v5080 = vrot.slane %v4689, 2
        %v5081 = vsel %vm2625, %v5079, %v5080
        %v5082 = vrot.slane %v4691, 2
        %v5083 = vsel %vm2625, %v5080, %v5082
        %v5084 = vrot.slane %v4693, 2
        %v5085 = vrot.slane %v4695, 2
        %v5086 = vsel %vm2625, %v5084, %v5085
        %v5087 = vrot.slane %v4697, 2
        %v5088 = vsel %vm2625, %v5085, %v5087
        %v5089 = vrot.slane %v4699, 2
        %v5090 = vrot.slane %v4701, 2
        %v5091 = vsel %vm2625, %v5089, %v5090
        %v5092 = vrot.slane %v4703, 2
        %v5093 = vsel %vm2625, %v5090, %v5092
        %v5094 = vrot.slane %v4705, 2
        %v5095 = vrot.slane %v4707, 2
        %v5096 = vsel %vm2625, %v5094, %v5095
        %v5097 = vrot.slane %v4709, 2
        %v5098 = vsel %vm2625, %v5095, %v5097
        %v5099 = vrot.slane %v4711, 2
        %v5100 = vrot.slane %v4713, 2
        %v5101 = vsel %vm2625, %v5099, %v5100
        %v5102 = vrot.slane %v4715, 2
        %v5103 = vsel %vm2625, %v5100, %v5102
        %v5104 = vrot.slane %v4717, 2
        %v5105 = vrot.slane %v4719, 2
        %v5106 = vsel %vm2625, %v5104, %v5105
        %v5107 = vrot.slane %v4721, 2
        %v5108 = vsel %vm2625, %v5105, %v5107
        %v5109 = vrot.slane %v4723, 2
        %v5110 = vrot.slane %v4725, 2
        %v5111 = vsel %vm2625, %v5109, %v5110
        %v5112 = vrot.slane %v4727, 2
        %v5113 = vsel %vm2625, %v5110, %v5112
        %v5114 = vrot.slane %v4729, 2
        %v5115 = vrot.slane %v4731, 2
        %v5116 = vsel %vm2625, %v5114, %v5115
        %v5117 = vrot.slane %v4733, 2
        %v5118 = vsel %vm2625, %v5115, %v5117
        %v5119 = vrot.slane %v4735, 2
        %v5120 = vrot.slane %v4737, 2
        %v5121 = vsel %vm2625, %v5119, %v5120
        %v5122 = vrot.slane %v4739, 2
        %v5123 = vsel %vm2625, %v5120, %v5122
        %v5156 = vadd.f32 %v4964, %v5046
        %v5157 = vadd.f32 %v4965, %v5048
        %v5158 = vadd.f32 %v4966, %v5051
        %v5159 = vadd.f32 %v4967, %v5053
        %v5160 = vadd.f32 %v4968, %v5056
        %v5161 = vadd.f32 %v4969, %v5058
        %v5162 = vadd.f32 %v4970, %v5061
        %v5163 = vadd.f32 %v4971, %v5063
        %v5164 = vadd.f32 %v4972, %v5066
        %v5165 = vadd.f32 %v4973, %v5068
        %v5166 = vadd.f32 %v4974, %v5071
        %v5167 = vadd.f32 %v4975, %v5073
        %v5168 = vadd.f32 %v4976, %v5076
        %v5169 = vadd.f32 %v4977, %v5078
        %v5170 = vadd.f32 %v4978, %v5081
        %v5171 = vadd.f32 %v4979, %v5083
        %v5172 = vadd.f32 %v4980, %v5086
        %v5173 = vadd.f32 %v4981, %v5088
        %v5174 = vadd.f32 %v4982, %v5091
        %v5175 = vadd.f32 %v4983, %v5093
        %v5176 = vadd.f32 %v4984, %v5096
        %v5177 = vadd.f32 %v4985, %v5098
        %v5178 = vadd.f32 %v4986, %v5101
        %v5179 = vadd.f32 %v4987, %v5103
        %v5180 = vadd.f32 %v4988, %v5106
        %v5181 = vadd.f32 %v4989, %v5108
        %v5182 = vadd.f32 %v4990, %v5111
        %v5183 = vadd.f32 %v4991, %v5113
        %v5184 = vadd.f32 %v4992, %v5116
        %v5185 = vadd.f32 %v4993, %v5118
        %v5186 = vadd.f32 %v4994, %v5121
        %v5187 = vadd.f32 %v4995, %v5123
        %s5188 = scalar_lea.vmem %s2, %s3139
        %v5189 = vld [vmem:[%s5188] sm:$0x1]
        %v5191 = vlaneseq
        %v5192 = vshrl.u32 %v5191, 7
        %v5193 = vsub.s32 0, %v5192
        %v5194 = vrot.slane %v5189, %v5193
        %v5196 = vmul.f32 %v5156, %v5194
        %v5197 = vmul.f32 %v5157, %v5194
        %v5198 = vmul.f32 %v5158, %v5194
        %v5199 = vmul.f32 %v5159, %v5194
        %v5200 = vmul.f32 %v5160, %v5194
        %v5201 = vmul.f32 %v5161, %v5194
        %v5202 = vmul.f32 %v5162, %v5194
        %v5203 = vmul.f32 %v5163, %v5194
        %v5204 = vmul.f32 %v5164, %v5194
        %v5205 = vmul.f32 %v5165, %v5194
        %v5206 = vmul.f32 %v5166, %v5194
        %v5207 = vmul.f32 %v5167, %v5194
        %v5208 = vmul.f32 %v5168, %v5194
        %v5209 = vmul.f32 %v5169, %v5194
        %v5210 = vmul.f32 %v5170, %v5194
        %v5211 = vmul.f32 %v5171, %v5194
        %v5212 = vmul.f32 %v5172, %v5194
        %v5213 = vmul.f32 %v5173, %v5194
        %v5214 = vmul.f32 %v5174, %v5194
        %v5215 = vmul.f32 %v5175, %v5194
        %v5216 = vmul.f32 %v5176, %v5194
        %v5217 = vmul.f32 %v5177, %v5194
        %v5218 = vmul.f32 %v5178, %v5194
        %v5219 = vmul.f32 %v5179, %v5194
        %v5220 = vmul.f32 %v5180, %v5194
        %v5221 = vmul.f32 %v5181, %v5194
        %v5222 = vmul.f32 %v5182, %v5194
        %v5223 = vmul.f32 %v5183, %v5194
        %v5224 = vmul.f32 %v5184, %v5194
        %v5225 = vmul.f32 %v5185, %v5194
        %v5226 = vmul.f32 %v5186, %v5194
        %v5227 = vmul.f32 %v5187, %v5194
        %s5228 = scalar_lea.vmem %s3, %s3139
        %v5229 = vld [vmem:[%s5228] sm:$0x1]
        %v5231 = vlaneseq
        %v5232 = vshrl.u32 %v5231, 7
        %v5233 = vsub.s32 0, %v5232
        %v5234 = vrot.slane %v5229, %v5233
        %v5236 = vadd.f32 %v5196, %v5234
        %v5237 = vadd.f32 %v5197, %v5234
        %v5238 = vadd.f32 %v5198, %v5234
        %v5239 = vadd.f32 %v5199, %v5234
        %v5240 = vadd.f32 %v5200, %v5234
        %v5241 = vadd.f32 %v5201, %v5234
        %v5242 = vadd.f32 %v5202, %v5234
        %v5243 = vadd.f32 %v5203, %v5234
        %v5244 = vadd.f32 %v5204, %v5234
        %v5245 = vadd.f32 %v5205, %v5234
        %v5246 = vadd.f32 %v5206, %v5234
        %v5247 = vadd.f32 %v5207, %v5234
        %v5248 = vadd.f32 %v5208, %v5234
        %v5249 = vadd.f32 %v5209, %v5234
        %v5250 = vadd.f32 %v5210, %v5234
        %v5251 = vadd.f32 %v5211, %v5234
        %v5252 = vadd.f32 %v5212, %v5234
        %v5253 = vadd.f32 %v5213, %v5234
        %v5254 = vadd.f32 %v5214, %v5234
        %v5255 = vadd.f32 %v5215, %v5234
        %v5256 = vadd.f32 %v5216, %v5234
        %v5257 = vadd.f32 %v5217, %v5234
        %v5258 = vadd.f32 %v5218, %v5234
        %v5259 = vadd.f32 %v5219, %v5234
        %v5260 = vadd.f32 %v5220, %v5234
        %v5261 = vadd.f32 %v5221, %v5234
        %v5262 = vadd.f32 %v5222, %v5234
        %v5263 = vadd.f32 %v5223, %v5234
        %v5264 = vadd.f32 %v5224, %v5234
        %v5265 = vadd.f32 %v5225, %v5234
        %v5266 = vadd.f32 %v5226, %v5234
        %v5267 = vadd.f32 %v5227, %v5234
        %v5268 = vmax.f32 %v5236, 0.0
        %v5269 = vmax.f32 %v5237, 0.0
        %v5270 = vmax.f32 %v5238, 0.0
        %v5271 = vmax.f32 %v5239, 0.0
        %v5272 = vmax.f32 %v5240, 0.0
        %v5273 = vmax.f32 %v5241, 0.0
        %v5274 = vmax.f32 %v5242, 0.0
        %v5275 = vmax.f32 %v5243, 0.0
        %v5276 = vmax.f32 %v5244, 0.0
        %v5277 = vmax.f32 %v5245, 0.0
        %v5278 = vmax.f32 %v5246, 0.0
        %v5279 = vmax.f32 %v5247, 0.0
        %v5280 = vmax.f32 %v5248, 0.0
        %v5281 = vmax.f32 %v5249, 0.0
        %v5282 = vmax.f32 %v5250, 0.0
        %v5283 = vmax.f32 %v5251, 0.0
        %v5284 = vmax.f32 %v5252, 0.0
        %v5285 = vmax.f32 %v5253, 0.0
        %v5286 = vmax.f32 %v5254, 0.0
        %v5287 = vmax.f32 %v5255, 0.0
        %v5288 = vmax.f32 %v5256, 0.0
        %v5289 = vmax.f32 %v5257, 0.0
        %v5290 = vmax.f32 %v5258, 0.0
        %v5291 = vmax.f32 %v5259, 0.0
        %v5292 = vmax.f32 %v5260, 0.0
        %v5293 = vmax.f32 %v5261, 0.0
        %v5294 = vmax.f32 %v5262, 0.0
        %v5295 = vmax.f32 %v5263, 0.0
        %v5296 = vmax.f32 %v5264, 0.0
        %v5297 = vmax.f32 %v5265, 0.0
        %v5298 = vmax.f32 %v5266, 0.0
        %v5299 = vmax.f32 %v5267, 0.0
        %v5300 = vpack.c.bf16 %v5269, %v5268
        %v5301 = vpack.c.bf16 %v5271, %v5270
        %v5302 = vpack.c.bf16 %v5273, %v5272
        %v5303 = vpack.c.bf16 %v5275, %v5274
        %v5304 = vpack.c.bf16 %v5277, %v5276
        %v5305 = vpack.c.bf16 %v5279, %v5278
        %v5306 = vpack.c.bf16 %v5281, %v5280
        %v5307 = vpack.c.bf16 %v5283, %v5282
        %v5308 = vpack.c.bf16 %v5285, %v5284
        %v5309 = vpack.c.bf16 %v5287, %v5286
        %v5310 = vpack.c.bf16 %v5289, %v5288
        %v5311 = vpack.c.bf16 %v5291, %v5290
        %v5312 = vpack.c.bf16 %v5293, %v5292
        %v5313 = vpack.c.bf16 %v5295, %v5294
        %v5314 = vpack.c.bf16 %v5297, %v5296
        %v5315 = vpack.c.bf16 %v5299, %v5298
        %v5317 = vshrl.u32 %v5300, 16
        %v5319 = vrot.slane %v5317, 7
        %v5320 = vshll.u32 %v5300, 16
        %v5322 = vor.u32 %v5319, %v5320
        %v5324 = vshrl.u32 %v5301, 16
        %v5326 = vrot.slane %v5324, 7
        %v5327 = vshll.u32 %v5301, 16
        %v5329 = vor.u32 %v5326, %v5327
        %v5331 = vshrl.u32 %v5302, 16
        %v5333 = vrot.slane %v5331, 7
        %v5334 = vshll.u32 %v5302, 16
        %v5336 = vor.u32 %v5333, %v5334
        %v5338 = vshrl.u32 %v5303, 16
        %v5340 = vrot.slane %v5338, 7
        %v5341 = vshll.u32 %v5303, 16
        %v5343 = vor.u32 %v5340, %v5341
        %v5345 = vshrl.u32 %v5304, 16
        %v5347 = vrot.slane %v5345, 7
        %v5348 = vshll.u32 %v5304, 16
        %v5350 = vor.u32 %v5347, %v5348
        %v5352 = vshrl.u32 %v5305, 16
        %v5354 = vrot.slane %v5352, 7
        %v5355 = vshll.u32 %v5305, 16
        %v5357 = vor.u32 %v5354, %v5355
        %v5359 = vshrl.u32 %v5306, 16
        %v5361 = vrot.slane %v5359, 7
        %v5362 = vshll.u32 %v5306, 16
        %v5364 = vor.u32 %v5361, %v5362
        %v5366 = vshrl.u32 %v5307, 16
        %v5368 = vrot.slane %v5366, 7
        %v5369 = vshll.u32 %v5307, 16
        %v5371 = vor.u32 %v5368, %v5369
        %v5373 = vshrl.u32 %v5308, 16
        %v5375 = vrot.slane %v5373, 7
        %v5376 = vshll.u32 %v5308, 16
        %v5378 = vor.u32 %v5375, %v5376
        %v5380 = vshrl.u32 %v5309, 16
        %v5382 = vrot.slane %v5380, 7
        %v5383 = vshll.u32 %v5309, 16
        %v5385 = vor.u32 %v5382, %v5383
        %v5387 = vshrl.u32 %v5310, 16
        %v5389 = vrot.slane %v5387, 7
        %v5390 = vshll.u32 %v5310, 16
        %v5392 = vor.u32 %v5389, %v5390
        %v5394 = vshrl.u32 %v5311, 16
        %v5396 = vrot.slane %v5394, 7
        %v5397 = vshll.u32 %v5311, 16
        %v5399 = vor.u32 %v5396, %v5397
        %v5401 = vshrl.u32 %v5312, 16
        %v5403 = vrot.slane %v5401, 7
        %v5404 = vshll.u32 %v5312, 16
        %v5406 = vor.u32 %v5403, %v5404
        %v5408 = vshrl.u32 %v5313, 16
        %v5410 = vrot.slane %v5408, 7
        %v5411 = vshll.u32 %v5313, 16
        %v5413 = vor.u32 %v5410, %v5411
        %v5415 = vshrl.u32 %v5314, 16
        %v5417 = vrot.slane %v5415, 7
        %v5418 = vshll.u32 %v5314, 16
        %v5420 = vor.u32 %v5417, %v5418
        %v5422 = vshrl.u32 %v5315, 16
        %v5424 = vrot.slane %v5422, 7
        %v5425 = vshll.u32 %v5315, 16
        %v5427 = vor.u32 %v5424, %v5425
        %v5460 = vld [vmem:[%s612] sm:$0xff]
        %v5461 = vsel %vm301, %v5322, %v5460
        %5462 = vst [vmem:[%s612] sm:$0xff] %v5461
        %v5463 = vld [vmem:[%s612 + $0x8] sm:$0x1]
        %v5464 = vsel %vm244, %v5319, %v5463
        %5465 = vst [vmem:[%s612 + $0x8] sm:$0x1] %v5464
        %v5466 = vld [vmem:[%s612 + $0x10] sm:$0xff]
        %v5467 = vsel %vm301, %v5329, %v5466
        %5468 = vst [vmem:[%s612 + $0x10] sm:$0xff] %v5467
        %v5469 = vld [vmem:[%s612 + $0x18] sm:$0x1]
        %v5470 = vsel %vm244, %v5326, %v5469
        %5471 = vst [vmem:[%s612 + $0x18] sm:$0x1] %v5470
        %v5472 = vld [vmem:[%s612 + $0x20] sm:$0xff]
        %v5473 = vsel %vm301, %v5336, %v5472
        %5474 = vst [vmem:[%s612 + $0x20] sm:$0xff] %v5473
        %v5475 = vld [vmem:[%s612 + $0x28] sm:$0x1]
        %v5476 = vsel %vm244, %v5333, %v5475
        %5477 = vst [vmem:[%s612 + $0x28] sm:$0x1] %v5476
        %v5478 = vld [vmem:[%s612 + $0x30] sm:$0xff]
        %v5479 = vsel %vm301, %v5343, %v5478
        %5480 = vst [vmem:[%s612 + $0x30] sm:$0xff] %v5479
        %v5481 = vld [vmem:[%s612 + $0x38] sm:$0x1]
        %v5482 = vsel %vm244, %v5340, %v5481
        %5483 = vst [vmem:[%s612 + $0x38] sm:$0x1] %v5482
        %v5484 = vld [vmem:[%s612 + $0x40] sm:$0xff]
        %v5485 = vsel %vm301, %v5350, %v5484
        %5486 = vst [vmem:[%s612 + $0x40] sm:$0xff] %v5485
        %v5487 = vld [vmem:[%s612 + $0x48] sm:$0x1]
        %v5488 = vsel %vm244, %v5347, %v5487
        %5489 = vst [vmem:[%s612 + $0x48] sm:$0x1] %v5488
        %v5490 = vld [vmem:[%s612 + $0x50] sm:$0xff]
        %v5491 = vsel %vm301, %v5357, %v5490
        %5492 = vst [vmem:[%s612 + $0x50] sm:$0xff] %v5491
        %v5493 = vld [vmem:[%s612 + $0x58] sm:$0x1]
        %v5494 = vsel %vm244, %v5354, %v5493
        %5495 = vst [vmem:[%s612 + $0x58] sm:$0x1] %v5494
        %v5496 = vld [vmem:[%s612 + $0x60] sm:$0xff]
        %v5497 = vsel %vm301, %v5364, %v5496
        %5498 = vst [vmem:[%s612 + $0x60] sm:$0xff] %v5497
        %v5499 = vld [vmem:[%s612 + $0x68] sm:$0x1]
        %v5500 = vsel %vm244, %v5361, %v5499
        %5501 = vst [vmem:[%s612 + $0x68] sm:$0x1] %v5500
        %v5502 = vld [vmem:[%s612 + $0x70] sm:$0xff]
        %v5503 = vsel %vm301, %v5371, %v5502
        %5504 = vst [vmem:[%s612 + $0x70] sm:$0xff] %v5503
        %v5505 = vld [vmem:[%s612 + $0x78] sm:$0x1]
        %v5506 = vsel %vm244, %v5368, %v5505
        %5507 = vst [vmem:[%s612 + $0x78] sm:$0x1] %v5506
        %v5508 = vld [vmem:[%s612 + $0x80] sm:$0xff]
        %v5509 = vsel %vm301, %v5378, %v5508
        %5510 = vst [vmem:[%s612 + $0x80] sm:$0xff] %v5509
        %v5511 = vld [vmem:[%s612 + $0x88] sm:$0x1]
        %v5512 = vsel %vm244, %v5375, %v5511
        %5513 = vst [vmem:[%s612 + $0x88] sm:$0x1] %v5512
        %v5514 = vld [vmem:[%s612 + $0x90] sm:$0xff]
        %v5515 = vsel %vm301, %v5385, %v5514
        %5516 = vst [vmem:[%s612 + $0x90] sm:$0xff] %v5515
        %v5517 = vld [vmem:[%s612 + $0x98] sm:$0x1]
        %v5518 = vsel %vm244, %v5382, %v5517
        %5519 = vst [vmem:[%s612 + $0x98] sm:$0x1] %v5518
        %v5520 = vld [vmem:[%s612 + $0xa0] sm:$0xff]
        %v5521 = vsel %vm301, %v5392, %v5520
        %5522 = vst [vmem:[%s612 + $0xa0] sm:$0xff] %v5521
        %v5523 = vld [vmem:[%s612 + $0xa8] sm:$0x1]
        %v5524 = vsel %vm244, %v5389, %v5523
        %5525 = vst [vmem:[%s612 + $0xa8] sm:$0x1] %v5524
        %v5526 = vld [vmem:[%s612 + $0xb0] sm:$0xff]
        %v5527 = vsel %vm301, %v5399, %v5526
        %5528 = vst [vmem:[%s612 + $0xb0] sm:$0xff] %v5527
        %v5529 = vld [vmem:[%s612 + $0xb8] sm:$0x1]
        %v5530 = vsel %vm244, %v5396, %v5529
        %5531 = vst [vmem:[%s612 + $0xb8] sm:$0x1] %v5530
        %v5532 = vld [vmem:[%s612 + $0xc0] sm:$0xff]
        %v5533 = vsel %vm301, %v5406, %v5532
        %5534 = vst [vmem:[%s612 + $0xc0] sm:$0xff] %v5533
        %v5535 = vld [vmem:[%s612 + $0xc8] sm:$0x1]
        %v5536 = vsel %vm244, %v5403, %v5535
        %5537 = vst [vmem:[%s612 + $0xc8] sm:$0x1] %v5536
        %v5538 = vld [vmem:[%s612 + $0xd0] sm:$0xff]
        %v5539 = vsel %vm301, %v5413, %v5538
        %5540 = vst [vmem:[%s612 + $0xd0] sm:$0xff] %v5539
        %v5541 = vld [vmem:[%s612 + $0xd8] sm:$0x1]
        %v5542 = vsel %vm244, %v5410, %v5541
        %5543 = vst [vmem:[%s612 + $0xd8] sm:$0x1] %v5542
        %v5544 = vld [vmem:[%s612 + $0xe0] sm:$0xff]
        %v5545 = vsel %vm301, %v5420, %v5544
        %5546 = vst [vmem:[%s612 + $0xe0] sm:$0xff] %v5545
        %v5547 = vld [vmem:[%s612 + $0xe8] sm:$0x1]
        %v5548 = vsel %vm244, %v5417, %v5547
        %5549 = vst [vmem:[%s612 + $0xe8] sm:$0x1] %v5548
        %v5550 = vld [vmem:[%s612 + $0xf0] sm:$0xff]
        %v5551 = vsel %vm301, %v5427, %v5550
        %5552 = vst [vmem:[%s612 + $0xf0] sm:$0xff] %v5551
        %v5553 = vld [vmem:[%s612 + $0xf8] sm:$0x1]
        %v5554 = vsel %vm244, %v5424, %v5553
        %5555 = vst [vmem:[%s612 + $0xf8] sm:$0x1] %v5554
      $region41: #{_lambda_.1} parent=35 // loop_footer
        %s718 = sadd.s32 1, %s714
      $region42: #{_lambda_.1} parent=35 // loop_footer_branch
        %713 = sbr.rel target = $region38
      $region43: #{_lambda_.1} parent=35 // loop_exit
        _
      %v5556 = vld [vmem:[#allocation2] sm:$0xff]
      %v5557 = vld [vmem:[#allocation2 + $0x8] sm:$0xff]
      %v5558 = vld [vmem:[#allocation2 + $0x10] sm:$0xff]
      %v5559 = vld [vmem:[#allocation2 + $0x18] sm:$0xff]
      %v5560 = vld [vmem:[#allocation2 + $0x20] sm:$0xff]
      %v5561 = vld [vmem:[#allocation2 + $0x28] sm:$0xff]
      %v5562 = vld [vmem:[#allocation2 + $0x30] sm:$0xff]
      %v5563 = vld [vmem:[#allocation2 + $0x38] sm:$0xff]
      %v5564 = vld [vmem:[#allocation2 + $0x40] sm:$0xff]
      %v5565 = vld [vmem:[#allocation2 + $0x48] sm:$0xff]
      %v5566 = vld [vmem:[#allocation2 + $0x50] sm:$0xff]
      %v5567 = vld [vmem:[#allocation2 + $0x58] sm:$0xff]
      %v5568 = vld [vmem:[#allocation2 + $0x60] sm:$0xff]
      %v5569 = vld [vmem:[#allocation2 + $0x68] sm:$0xff]
      %v5570 = vld [vmem:[#allocation2 + $0x70] sm:$0xff]
      %v5571 = vld [vmem:[#allocation2 + $0x78] sm:$0xff]
      %v5572 = vld [vmem:[#allocation2 + $0x80] sm:$0xff]
      %v5573 = vld [vmem:[#allocation2 + $0x88] sm:$0xff]
      %v5574 = vld [vmem:[#allocation2 + $0x90] sm:$0xff]
      %v5575 = vld [vmem:[#allocation2 + $0x98] sm:$0xff]
      %v5576 = vld [vmem:[#allocation2 + $0xa0] sm:$0xff]
      %v5577 = vld [vmem:[#allocation2 + $0xa8] sm:$0xff]
      %v5578 = vld [vmem:[#allocation2 + $0xb0] sm:$0xff]
      %v5579 = vld [vmem:[#allocation2 + $0xb8] sm:$0xff]
      %v5580 = vld [vmem:[#allocation2 + $0xc0] sm:$0xff]
      %v5581 = vld [vmem:[#allocation2 + $0xc8] sm:$0xff]
      %v5582 = vld [vmem:[#allocation2 + $0xd0] sm:$0xff]
      %v5583 = vld [vmem:[#allocation2 + $0xd8] sm:$0xff]
      %v5584 = vld [vmem:[#allocation2 + $0xe0] sm:$0xff]
      %v5585 = vld [vmem:[#allocation2 + $0xe8] sm:$0xff]
      %v5586 = vld [vmem:[#allocation2 + $0xf0] sm:$0xff]
      %v5587 = vld [vmem:[#allocation2 + $0xf8] sm:$0xff]
      %s5588 = scalar_lea.vmem %s1, 3072
      %v5589 = vld [vmem:[%s5588] sm:$0xff]
      %v5590 = vld [vmem:[%s5588 + $0x8] sm:$0xff]
      %v5591 = vld [vmem:[%s5588 + $0x10] sm:$0xff]
      %v5592 = vld [vmem:[%s5588 + $0x18] sm:$0xff]
      %v5593 = vld [vmem:[%s5588 + $0x20] sm:$0xff]
      %v5594 = vld [vmem:[%s5588 + $0x28] sm:$0xff]
      %v5595 = vld [vmem:[%s5588 + $0x30] sm:$0xff]
      %v5596 = vld [vmem:[%s5588 + $0x38] sm:$0xff]
      %v5597 = vld [vmem:[%s612] sm:$0xff]
      %v5598 = vld [vmem:[%s612 + $0x8] sm:$0xff]
      %v5599 = vld [vmem:[%s612 + $0x10] sm:$0xff]
      %v5600 = vld [vmem:[%s612 + $0x18] sm:$0xff]
      %v5601 = vld [vmem:[%s612 + $0x20] sm:$0xff]
      %v5602 = vld [vmem:[%s612 + $0x28] sm:$0xff]
      %v5603 = vld [vmem:[%s612 + $0x30] sm:$0xff]
      %v5604 = vld [vmem:[%s612 + $0x38] sm:$0xff]
      %v5605 = vld [vmem:[%s612 + $0x40] sm:$0xff]
      %v5606 = vld [vmem:[%s612 + $0x48] sm:$0xff]
      %v5607 = vld [vmem:[%s612 + $0x50] sm:$0xff]
      %v5608 = vld [vmem:[%s612 + $0x58] sm:$0xff]
      %v5609 = vld [vmem:[%s612 + $0x60] sm:$0xff]
      %v5610 = vld [vmem:[%s612 + $0x68] sm:$0xff]
      %v5611 = vld [vmem:[%s612 + $0x70] sm:$0xff]
      %v5612 = vld [vmem:[%s612 + $0x78] sm:$0xff]
      %v5613 = vld [vmem:[%s612 + $0x80] sm:$0xff]
      %v5614 = vld [vmem:[%s612 + $0x88] sm:$0xff]
      %v5615 = vld [vmem:[%s612 + $0x90] sm:$0xff]
      %v5616 = vld [vmem:[%s612 + $0x98] sm:$0xff]
      %v5617 = vld [vmem:[%s612 + $0xa0] sm:$0xff]
      %v5618 = vld [vmem:[%s612 + $0xa8] sm:$0xff]
      %v5619 = vld [vmem:[%s612 + $0xb0] sm:$0xff]
      %v5620 = vld [vmem:[%s612 + $0xb8] sm:$0xff]
      %v5621 = vld [vmem:[%s612 + $0xc0] sm:$0xff]
      %v5622 = vld [vmem:[%s612 + $0xc8] sm:$0xff]
      %v5623 = vld [vmem:[%s612 + $0xd0] sm:$0xff]
      %v5624 = vld [vmem:[%s612 + $0xd8] sm:$0xff]
      %v5625 = vld [vmem:[%s612 + $0xe0] sm:$0xff]
      %v5626 = vld [vmem:[%s612 + $0xe8] sm:$0xff]
      %v5627 = vld [vmem:[%s612 + $0xf0] sm:$0xff]
      %v5628 = vld [vmem:[%s612 + $0xf8] sm:$0xff]
      %s5629 = scalar_lea.vmem %s1, 3136
      %v5630 = vld [vmem:[%s5629] sm:$0xff]
      %v5631 = vld [vmem:[%s5629 + $0x8] sm:$0xff]
      %v5632 = vld [vmem:[%s5629 + $0x10] sm:$0xff]
      %v5633 = vld [vmem:[%s5629 + $0x18] sm:$0xff]
      %v5634 = vld [vmem:[%s5629 + $0x20] sm:$0xff]
      %v5635 = vld [vmem:[%s5629 + $0x28] sm:$0xff]
      %v5636 = vld [vmem:[%s5629 + $0x30] sm:$0xff]
      %v5637 = vld [vmem:[%s5629 + $0x38] sm:$0xff]
      %v5646 = vunpack.c.l.b16 %v5630
      %v5647 = vunpack.c.h.b16 %v5630
      %v5648 = vunpack.c.l.b16 %v5631
      %v5649 = vunpack.c.h.b16 %v5631
      %v5650 = vunpack.c.l.b16 %v5632
      %v5651 = vunpack.c.h.b16 %v5632
      %v5652 = vunpack.c.l.b16 %v5633
      %v5653 = vunpack.c.h.b16 %v5633
      %v5654 = vunpack.c.l.b16 %v5634
      %v5655 = vunpack.c.h.b16 %v5634
      %v5656 = vunpack.c.l.b16 %v5635
      %v5657 = vunpack.c.h.b16 %v5635
      %v5658 = vunpack.c.l.b16 %v5636
      %v5659 = vunpack.c.h.b16 %v5636
      %v5660 = vunpack.c.l.b16 %v5637
      %v5661 = vunpack.c.h.b16 %v5637
      %v5662 = vpack.c.b16 %v5648, %v5646
      %v5663 = vpack.c.b16 %v5649, %v5647
      %v5664 = vpack.c.b16 %v5652, %v5650
      %v5665 = vpack.c.b16 %v5653, %v5651
      %v5666 = vpack.c.b16 %v5656, %v5654
      %v5667 = vpack.c.b16 %v5657, %v5655
      %v5668 = vpack.c.b16 %v5660, %v5658
      %v5669 = vpack.c.b16 %v5661, %v5659
      %v5679 = vsel %vm199, %v5597, 0
      %v5682 = vsel %vm199, %v5598, 0
      %v5685 = vsel %vm199, %v5599, 0
      %v5688 = vsel %vm199, %v5600, 0
      %v5691 = vsel %vm199, %v5601, 0
      %v5694 = vsel %vm199, %v5602, 0
      %v5697 = vsel %vm199, %v5603, 0
      %v5700 = vsel %vm199, %v5604, 0
      %v5703 = vsel %vm199, %v5605, 0
      %v5706 = vsel %vm199, %v5606, 0
      %v5709 = vsel %vm199, %v5607, 0
      %v5712 = vsel %vm199, %v5608, 0
      %v5715 = vsel %vm199, %v5609, 0
      %v5718 = vsel %vm199, %v5610, 0
      %v5721 = vsel %vm199, %v5611, 0
      %v5724 = vsel %vm199, %v5612, 0
      %v5727 = vsel %vm199, %v5613, 0
      %v5730 = vsel %vm199, %v5614, 0
      %v5733 = vsel %vm199, %v5615, 0
      %v5736 = vsel %vm199, %v5616, 0
      %v5739 = vsel %vm199, %v5617, 0
      %v5742 = vsel %vm199, %v5618, 0
      %v5745 = vsel %vm199, %v5619, 0
      %v5748 = vsel %vm199, %v5620, 0
      %v5751 = vsel %vm199, %v5621, 0
      %v5754 = vsel %vm199, %v5622, 0
      %v5757 = vsel %vm199, %v5623, 0
      %v5760 = vsel %vm199, %v5624, 0
      %v5763 = vsel %vm199, %v5625, 0
      %v5766 = vsel %vm199, %v5626, 0
      %v5769 = vsel %vm199, %v5627, 0
      %v5772 = vsel %vm199, %v5628, 0
      %5774 = vmatprep.subr.bf16.mxu0 %v5663
      %5775 = vmatpush1.bf16.msra.mxu0 %v5662
      %5776 = vmatprep.subr.bf16.mxu0 %v5665
      %5777 = vmatpush1.bf16.msra.mxu0 %v5664
      %5778 = vmatprep.subr.bf16.mxu0 %v5667
      %5779 = vmatpush1.bf16.msra.mxu0 %v5666
      %5780 = vmatprep.subr.bf16.mxu0 %v5669
      %5781 = vmatpush1.bf16.msra.mxu0 %v5668
      %5782 = vmatprep.subr.bf16.mxu0 0
      %5783 = vmatpush1.bf16.msra.mxu0 0
      %5784 = vmatprep.subr.bf16.mxu0 0
      %5785 = vmatpush1.bf16.msra.mxu0 0
      %5786 = vmatprep.subr.bf16.mxu0 0
      %5787 = vmatpush1.bf16.msra.mxu0 0
      %5788 = vmatprep.subr.bf16.mxu0 0
      %5789 = vmatpush1.bf16.msra.mxu0 0
      %5790 = vmatprep.subr.bf16.mxu0 0
      %5791 = vmatpush1.bf16.msra.mxu0 0
      %5792 = vmatprep.subr.bf16.mxu0 0
      %5793 = vmatpush1.bf16.msra.mxu0 0
      %5794 = vmatprep.subr.bf16.mxu0 0
      %5795 = vmatpush1.bf16.msra.mxu0 0
      %5796 = vmatprep.subr.bf16.mxu0 0
      %5797 = vmatpush1.bf16.msra.mxu0 0
      %5798 = vmatprep.subr.bf16.mxu0 0
      %5799 = vmatpush1.bf16.msra.mxu0 0
      %5800 = vmatprep.subr.bf16.mxu0 0
      %5801 = vmatpush1.bf16.msra.mxu0 0
      %5802 = vmatprep.subr.bf16.mxu0 0
      %5803 = vmatpush1.bf16.msra.mxu0 0
      %5804 = vmatprep.subr.bf16.mxu0 0
      %5805 = vmatpush1.bf16.msra.mxu0 0
      %5806 = vmatprep.mubr.bf16.mxu0 0
      %5807 = vmatmul.mubr.bf16.gmra.mrb[0].mxu0 %v5679
      %v5808 = vpop.f32.mrb[0].mxu0
      %v5809 = vadd.f32 0.0, %v5808
      %v5810 = vpop.f32.mrb[0].mxu0
      %v5811 = vadd.f32 0.0, %v5810
      %v5812 = vpop.f32.mrb[0].mxu0
      %v5813 = vadd.f32 0.0, %v5812
      %v5814 = vpop.f32.mrb[0].mxu0
      %v5815 = vadd.f32 0.0, %v5814
      %5816 = vmatprep.mubr.bf16.mxu0 0
      %5817 = vmatmul.mubr.bf16.gmra.mrb[0].mxu0 %v5682
      %v5818 = vpop.f32.mrb[0].mxu0
      %v5819 = vadd.f32 0.0, %v5818
      %v5820 = vpop.f32.mrb[0].mxu0
      %v5821 = vadd.f32 0.0, %v5820
      %v5822 = vpop.f32.mrb[0].mxu0
      %v5823 = vpop.f32.mrb[0].mxu0
      %5824 = vmatprep.mubr.bf16.mxu0 0
      %5825 = vmatmul.mubr.bf16.gmra.mrb[0].mxu0 %v5685
      %v5826 = vpop.f32.mrb[0].mxu0
      %v5827 = vadd.f32 0.0, %v5826
      %v5828 = vpop.f32.mrb[0].mxu0
      %v5829 = vadd.f32 0.0, %v5828
      %v5830 = vpop.f32.mrb[0].mxu0
      %v5831 = vadd.f32 0.0, %v5830
      %v5832 = vpop.f32.mrb[0].mxu0
      %v5833 = vadd.f32 0.0, %v5832
      %5834 = vmatprep.mubr.bf16.mxu0 0
      %5835 = vmatmul.mubr.bf16.gmra.mrb[0].mxu0 %v5688
      %v5836 = vpop.f32.mrb[0].mxu0
      %v5837 = vadd.f32 0.0, %v5836
      %v5838 = vpop.f32.mrb[0].mxu0
      %v5839 = vadd.f32 0.0, %v5838
      %v5840 = vpop.f32.mrb[0].mxu0
      %v5841 = vpop.f32.mrb[0].mxu0
      %5842 = vmatprep.mubr.bf16.mxu0 0
      %5843 = vmatmul.mubr.bf16.gmra.mrb[0].mxu0 %v5691
      %v5844 = vpop.f32.mrb[0].mxu0
      %v5845 = vadd.f32 0.0, %v5844
      %v5846 = vpop.f32.mrb[0].mxu0
      %v5847 = vadd.f32 0.0, %v5846
      %v5848 = vpop.f32.mrb[0].mxu0
      %v5849 = vadd.f32 0.0, %v5848
      %v5850 = vpop.f32.mrb[0].mxu0
      %v5851 = vadd.f32 0.0, %v5850
      %5852 = vmatprep.mubr.bf16.mxu0 0
      %5853 = vmatmul.mubr.bf16.gmra.mrb[0].mxu0 %v5694
      %v5854 = vpop.f32.mrb[0].mxu0
      %v5855 = vadd.f32 0.0, %v5854
      %v5856 = vpop.f32.mrb[0].mxu0
      %v5857 = vadd.f32 0.0, %v5856
      %v5858 = vpop.f32.mrb[0].mxu0
      %v5859 = vpop.f32.mrb[0].mxu0
      %5860 = vmatprep.mubr.bf16.mxu0 0
      %5861 = vmatmul.mubr.bf16.gmra.mrb[0].mxu0 %v5697
      %v5862 = vpop.f32.mrb[0].mxu0
      %v5863 = vadd.f32 0.0, %v5862
      %v5864 = vpop.f32.mrb[0].mxu0
      %v5865 = vadd.f32 0.0, %v5864
      %v5866 = vpop.f32.mrb[0].mxu0
      %v5867 = vadd.f32 0.0, %v5866
      %v5868 = vpop.f32.mrb[0].mxu0
      %v5869 = vadd.f32 0.0, %v5868
      %5870 = vmatprep.mubr.bf16.mxu0 0
      %5871 = vmatmul.mubr.bf16.gmra.mrb[0].mxu0 %v5700
      %v5872 = vpop.f32.mrb[0].mxu0
      %v5873 = vadd.f32 0.0, %v5872
      %v5874 = vpop.f32.mrb[0].mxu0
      %v5875 = vadd.f32 0.0, %v5874
      %v5876 = vpop.f32.mrb[0].mxu0
      %v5877 = vpop.f32.mrb[0].mxu0
      %5878 = vmatprep.mubr.bf16.mxu0 0
      %5879 = vmatmul.mubr.bf16.gmra.mrb[0].mxu0 %v5703
      %v5880 = vpop.f32.mrb[0].mxu0
      %v5881 = vadd.f32 0.0, %v5880
      %v5882 = vpop.f32.mrb[0].mxu0
      %v5883 = vadd.f32 0.0, %v5882
      %v5884 = vpop.f32.mrb[0].mxu0
      %v5885 = vadd.f32 0.0, %v5884
      %v5886 = vpop.f32.mrb[0].mxu0
      %v5887 = vadd.f32 0.0, %v5886
      %5888 = vmatprep.mubr.bf16.mxu0 0
      %5889 = vmatmul.mubr.bf16.gmra.mrb[0].mxu0 %v5706
      %v5890 = vpop.f32.mrb[0].mxu0
      %v5891 = vadd.f32 0.0, %v5890
      %v5892 = vpop.f32.mrb[0].mxu0
      %v5893 = vadd.f32 0.0, %v5892
      %v5894 = vpop.f32.mrb[0].mxu0
      %v5895 = vpop.f32.mrb[0].mxu0
      %5896 = vmatprep.mubr.bf16.mxu0 0
      %5897 = vmatmul.mubr.bf16.gmra.mrb[0].mxu0 %v5709
      %v5898 = vpop.f32.mrb[0].mxu0
      %v5899 = vadd.f32 0.0, %v5898
      %v5900 = vpop.f32.mrb[0].mxu0
      %v5901 = vadd.f32 0.0, %v5900
      %v5902 = vpop.f32.mrb[0].mxu0
      %v5903 = vadd.f32 0.0, %v5902
      %v5904 = vpop.f32.mrb[0].mxu0
      %v5905 = vadd.f32 0.0, %v5904
      %5906 = vmatprep.mubr.bf16.mxu0 0
      %5907 = vmatmul.mubr.bf16.gmra.mrb[0].mxu0 %v5712
      %v5908 = vpop.f32.mrb[0].mxu0
      %v5909 = vadd.f32 0.0, %v5908
      %v5910 = vpop.f32.mrb[0].mxu0
      %v5911 = vadd.f32 0.0, %v5910
      %v5912 = vpop.f32.mrb[0].mxu0
      %v5913 = vpop.f32.mrb[0].mxu0
      %5914 = vmatprep.mubr.bf16.mxu0 0
      %5915 = vmatmul.mubr.bf16.gmra.mrb[0].mxu0 %v5715
      %v5916 = vpop.f32.mrb[0].mxu0
      %v5917 = vadd.f32 0.0, %v5916
      %v5918 = vpop.f32.mrb[0].mxu0
      %v5919 = vadd.f32 0.0, %v5918
      %v5920 = vpop.f32.mrb[0].mxu0
      %v5921 = vadd.f32 0.0, %v5920
      %v5922 = vpop.f32.mrb[0].mxu0
      %v5923 = vadd.f32 0.0, %v5922
      %5924 = vmatprep.mubr.bf16.mxu0 0
      %5925 = vmatmul.mubr.bf16.gmra.mrb[0].mxu0 %v5718
      %v5926 = vpop.f32.mrb[0].mxu0
      %v5927 = vadd.f32 0.0, %v5926
      %v5928 = vpop.f32.mrb[0].mxu0
      %v5929 = vadd.f32 0.0, %v5928
      %v5930 = vpop.f32.mrb[0].mxu0
      %v5931 = vpop.f32.mrb[0].mxu0
      %5932 = vmatprep.mubr.bf16.mxu0 0
      %5933 = vmatmul.mubr.bf16.gmra.mrb[0].mxu0 %v5721
      %v5934 = vpop.f32.mrb[0].mxu0
      %v5935 = vadd.f32 0.0, %v5934
      %v5936 = vpop.f32.mrb[0].mxu0
      %v5937 = vadd.f32 0.0, %v5936
      %v5938 = vpop.f32.mrb[0].mxu0
      %v5939 = vadd.f32 0.0, %v5938
      %v5940 = vpop.f32.mrb[0].mxu0
      %v5941 = vadd.f32 0.0, %v5940
      %5942 = vmatprep.mubr.bf16.mxu0 0
      %5943 = vmatmul.mubr.bf16.gmra.mrb[0].mxu0 %v5724
      %v5944 = vpop.f32.mrb[0].mxu0
      %v5945 = vadd.f32 0.0, %v5944
      %v5946 = vpop.f32.mrb[0].mxu0
      %v5947 = vadd.f32 0.0, %v5946
      %v5948 = vpop.f32.mrb[0].mxu0
      %v5949 = vpop.f32.mrb[0].mxu0
      %5950 = vmatprep.mubr.bf16.mxu0 0
      %5951 = vmatmul.mubr.bf16.gmra.mrb[0].mxu0 %v5727
      %v5952 = vpop.f32.mrb[0].mxu0
      %v5953 = vadd.f32 0.0, %v5952
      %v5954 = vpop.f32.mrb[0].mxu0
      %v5955 = vadd.f32 0.0, %v5954
      %v5956 = vpop.f32.mrb[0].mxu0
      %v5957 = vadd.f32 0.0, %v5956
      %v5958 = vpop.f32.mrb[0].mxu0
      %v5959 = vadd.f32 0.0, %v5958
      %5960 = vmatprep.mubr.bf16.mxu0 0
      %5961 = vmatmul.mubr.bf16.gmra.mrb[0].mxu0 %v5730
      %v5962 = vpop.f32.mrb[0].mxu0
      %v5963 = vadd.f32 0.0, %v5962
      %v5964 = vpop.f32.mrb[0].mxu0
      %v5965 = vadd.f32 0.0, %v5964
      %v5966 = vpop.f32.mrb[0].mxu0
      %v5967 = vpop.f32.mrb[0].mxu0
      %5968 = vmatprep.mubr.bf16.mxu0 0
      %5969 = vmatmul.mubr.bf16.gmra.mrb[0].mxu0 %v5733
      %v5970 = vpop.f32.mrb[0].mxu0
      %v5971 = vadd.f32 0.0, %v5970
      %v5972 = vpop.f32.mrb[0].mxu0
      %v5973 = vadd.f32 0.0, %v5972
      %v5974 = vpop.f32.mrb[0].mxu0
      %v5975 = vadd.f32 0.0, %v5974
      %v5976 = vpop.f32.mrb[0].mxu0
      %v5977 = vadd.f32 0.0, %v5976
      %5978 = vmatprep.mubr.bf16.mxu0 0
      %5979 = vmatmul.mubr.bf16.gmra.mrb[0].mxu0 %v5736
      %v5980 = vpop.f32.mrb[0].mxu0
      %v5981 = vadd.f32 0.0, %v5980
      %v5982 = vpop.f32.mrb[0].mxu0
      %v5983 = vadd.f32 0.0, %v5982
      %v5984 = vpop.f32.mrb[0].mxu0
      %v5985 = vpop.f32.mrb[0].mxu0
      %5986 = vmatprep.mubr.bf16.mxu0 0
      %5987 = vmatmul.mubr.bf16.gmra.mrb[0].mxu0 %v5739
      %v5988 = vpop.f32.mrb[0].mxu0
      %v5989 = vadd.f32 0.0, %v5988
      %v5990 = vpop.f32.mrb[0].mxu0
      %v5991 = vadd.f32 0.0, %v5990
      %v5992 = vpop.f32.mrb[0].mxu0
      %v5993 = vadd.f32 0.0, %v5992
      %v5994 = vpop.f32.mrb[0].mxu0
      %v5995 = vadd.f32 0.0, %v5994
      %5996 = vmatprep.mubr.bf16.mxu0 0
      %5997 = vmatmul.mubr.bf16.gmra.mrb[0].mxu0 %v5742
      %v5998 = vpop.f32.mrb[0].mxu0
      %v5999 = vadd.f32 0.0, %v5998
      %v6000 = vpop.f32.mrb[0].mxu0
      %v6001 = vadd.f32 0.0, %v6000
      %v6002 = vpop.f32.mrb[0].mxu0
      %v6003 = vpop.f32.mrb[0].mxu0
      %6004 = vmatprep.mubr.bf16.mxu0 0
      %6005 = vmatmul.mubr.bf16.gmra.mrb[0].mxu0 %v5745
      %v6006 = vpop.f32.mrb[0].mxu0
      %v6007 = vadd.f32 0.0, %v6006
      %v6008 = vpop.f32.mrb[0].mxu0
      %v6009 = vadd.f32 0.0, %v6008
      %v6010 = vpop.f32.mrb[0].mxu0
      %v6011 = vadd.f32 0.0, %v6010
      %v6012 = vpop.f32.mrb[0].mxu0
      %v6013 = vadd.f32 0.0, %v6012
      %6014 = vmatprep.mubr.bf16.mxu0 0
      %6015 = vmatmul.mubr.bf16.gmra.mrb[0].mxu0 %v5748
      %v6016 = vpop.f32.mrb[0].mxu0
      %v6017 = vadd.f32 0.0, %v6016
      %v6018 = vpop.f32.mrb[0].mxu0
      %v6019 = vadd.f32 0.0, %v6018
      %v6020 = vpop.f32.mrb[0].mxu0
      %v6021 = vpop.f32.mrb[0].mxu0
      %6022 = vmatprep.mubr.bf16.mxu0 0
      %6023 = vmatmul.mubr.bf16.gmra.mrb[0].mxu0 %v5751
      %v6024 = vpop.f32.mrb[0].mxu0
      %v6025 = vadd.f32 0.0, %v6024
      %v6026 = vpop.f32.mrb[0].mxu0
      %v6027 = vadd.f32 0.0, %v6026
      %v6028 = vpop.f32.mrb[0].mxu0
      %v6029 = vadd.f32 0.0, %v6028
      %v6030 = vpop.f32.mrb[0].mxu0
      %v6031 = vadd.f32 0.0, %v6030
      %6032 = vmatprep.mubr.bf16.mxu0 0
      %6033 = vmatmul.mubr.bf16.gmra.mrb[0].mxu0 %v5754
      %v6034 = vpop.f32.mrb[0].mxu0
      %v6035 = vadd.f32 0.0, %v6034
      %v6036 = vpop.f32.mrb[0].mxu0
      %v6037 = vadd.f32 0.0, %v6036
      %v6038 = vpop.f32.mrb[0].mxu0
      %v6039 = vpop.f32.mrb[0].mxu0
      %6040 = vmatprep.mubr.bf16.mxu0 0
      %6041 = vmatmul.mubr.bf16.gmra.mrb[0].mxu0 %v5757
      %v6042 = vpop.f32.mrb[0].mxu0
      %v6043 = vadd.f32 0.0, %v6042
      %v6044 = vpop.f32.mrb[0].mxu0
      %v6045 = vadd.f32 0.0, %v6044
      %v6046 = vpop.f32.mrb[0].mxu0
      %v6047 = vadd.f32 0.0, %v6046
      %v6048 = vpop.f32.mrb[0].mxu0
      %v6049 = vadd.f32 0.0, %v6048
      %6050 = vmatprep.mubr.bf16.mxu0 0
      %6051 = vmatmul.mubr.bf16.gmra.mrb[0].mxu0 %v5760
      %v6052 = vpop.f32.mrb[0].mxu0
      %v6053 = vadd.f32 0.0, %v6052
      %v6054 = vpop.f32.mrb[0].mxu0
      %v6055 = vadd.f32 0.0, %v6054
      %v6056 = vpop.f32.mrb[0].mxu0
      %v6057 = vpop.f32.mrb[0].mxu0
      %6058 = vmatprep.mubr.bf16.mxu0 0
      %6059 = vmatmul.mubr.bf16.gmra.mrb[0].mxu0 %v5763
      %v6060 = vpop.f32.mrb[0].mxu0
      %v6061 = vadd.f32 0.0, %v6060
      %v6062 = vpop.f32.mrb[0].mxu0
      %v6063 = vadd.f32 0.0, %v6062
      %v6064 = vpop.f32.mrb[0].mxu0
      %v6065 = vadd.f32 0.0, %v6064
      %v6066 = vpop.f32.mrb[0].mxu0
      %v6067 = vadd.f32 0.0, %v6066
      %6068 = vmatprep.mubr.bf16.mxu0 0
      %6069 = vmatmul.mubr.bf16.gmra.mrb[0].mxu0 %v5766
      %v6070 = vpop.f32.mrb[0].mxu0
      %v6071 = vadd.f32 0.0, %v6070
      %v6072 = vpop.f32.mrb[0].mxu0
      %v6073 = vadd.f32 0.0, %v6072
      %v6074 = vpop.f32.mrb[0].mxu0
      %v6075 = vpop.f32.mrb[0].mxu0
      %6076 = vmatprep.mubr.bf16.mxu0 0
      %6077 = vmatmul.mubr.bf16.gmra.mrb[0].mxu0 %v5769
      %v6078 = vpop.f32.mrb[0].mxu0
      %v6079 = vadd.f32 0.0, %v6078
      %v6080 = vpop.f32.mrb[0].mxu0
      %v6081 = vadd.f32 0.0, %v6080
      %v6082 = vpop.f32.mrb[0].mxu0
      %v6083 = vadd.f32 0.0, %v6082
      %v6084 = vpop.f32.mrb[0].mxu0
      %v6085 = vadd.f32 0.0, %v6084
      %6086 = vmatprep.mubr.bf16.mxu0 0
      %6087 = vmatmul.mubr.bf16.gmra.mrb[0].mxu0 %v5772
      %v6088 = vpop.f32.mrb[0].mxu0
      %v6089 = vadd.f32 0.0, %v6088
      %v6090 = vpop.f32.mrb[0].mxu0
      %v6091 = vadd.f32 0.0, %v6090
      %v6092 = vpop.f32.mrb[0].mxu0
      %v6093 = vpop.f32.mrb[0].mxu0
      %6094 = vdwg.mxu0
      %v6103 = vunpack.c.l.b16 %v5589
      %v6104 = vunpack.c.h.b16 %v5589
      %v6105 = vunpack.c.l.b16 %v5590
      %v6106 = vunpack.c.h.b16 %v5590
      %v6107 = vunpack.c.l.b16 %v5591
      %v6108 = vunpack.c.h.b16 %v5591
      %v6109 = vunpack.c.l.b16 %v5592
      %v6110 = vunpack.c.h.b16 %v5592
      %v6111 = vunpack.c.l.b16 %v5593
      %v6112 = vunpack.c.h.b16 %v5593
      %v6113 = vunpack.c.l.b16 %v5594
      %v6114 = vunpack.c.h.b16 %v5594
      %v6115 = vunpack.c.l.b16 %v5595
      %v6116 = vunpack.c.h.b16 %v5595
      %v6117 = vunpack.c.l.b16 %v5596
      %v6118 = vunpack.c.h.b16 %v5596
      %v6119 = vpack.c.b16 %v6105, %v6103
      %v6120 = vpack.c.b16 %v6106, %v6104
      %v6121 = vpack.c.b16 %v6109, %v6107
      %v6122 = vpack.c.b16 %v6110, %v6108
      %v6123 = vpack.c.b16 %v6113, %v6111
      %v6124 = vpack.c.b16 %v6114, %v6112
      %v6125 = vpack.c.b16 %v6117, %v6115
      %v6126 = vpack.c.b16 %v6118, %v6116
      %v6136 = vsel %vm199, %v5556, 0
      %v6139 = vsel %vm199, %v5557, 0
      %v6142 = vsel %vm199, %v5558, 0
      %v6145 = vsel %vm199, %v5559, 0
      %v6148 = vsel %vm199, %v5560, 0
      %v6151 = vsel %vm199, %v5561, 0
      %v6154 = vsel %vm199, %v5562, 0
      %v6157 = vsel %vm199, %v5563, 0
      %v6160 = vsel %vm199, %v5564, 0
      %v6163 = vsel %vm199, %v5565, 0
      %v6166 = vsel %vm199, %v5566, 0
      %v6169 = vsel %vm199, %v5567, 0
      %v6172 = vsel %vm199, %v5568, 0
      %v6175 = vsel %vm199, %v5569, 0
      %v6178 = vsel %vm199, %v5570, 0
      %v6181 = vsel %vm199, %v5571, 0
      %v6184 = vsel %vm199, %v5572, 0
      %v6187 = vsel %vm199, %v5573, 0
      %v6190 = vsel %vm199, %v5574, 0
      %v6193 = vsel %vm199, %v5575, 0
      %v6196 = vsel %vm199, %v5576, 0
      %v6199 = vsel %vm199, %v5577, 0
      %v6202 = vsel %vm199, %v5578, 0
      %v6205 = vsel %vm199, %v5579, 0
      %v6208 = vsel %vm199, %v5580, 0
      %v6211 = vsel %vm199, %v5581, 0
      %v6214 = vsel %vm199, %v5582, 0
      %v6217 = vsel %vm199, %v5583, 0
      %v6220 = vsel %vm199, %v5584, 0
      %v6223 = vsel %vm199, %v5585, 0
      %v6226 = vsel %vm199, %v5586, 0
      %v6229 = vsel %vm199, %v5587, 0
      %6231 = vmatprep.subr.bf16.mxu0 %v6120
      %6232 = vmatpush1.bf16.msra.mxu0 %v6119
      %6233 = vmatprep.subr.bf16.mxu0 %v6122
      %6234 = vmatpush1.bf16.msra.mxu0 %v6121
      %6235 = vmatprep.subr.bf16.mxu0 %v6124
      %6236 = vmatpush1.bf16.msra.mxu0 %v6123
      %6237 = vmatprep.subr.bf16.mxu0 %v6126
      %6238 = vmatpush1.bf16.msra.mxu0 %v6125
      %6239 = vmatprep.subr.bf16.mxu0 0
      %6240 = vmatpush1.bf16.msra.mxu0 0
      %6241 = vmatprep.subr.bf16.mxu0 0
      %6242 = vmatpush1.bf16.msra.mxu0 0
      %6243 = vmatprep.subr.bf16.mxu0 0
      %6244 = vmatpush1.bf16.msra.mxu0 0
      %6245 = vmatprep.subr.bf16.mxu0 0
      %6246 = vmatpush1.bf16.msra.mxu0 0
      %6247 = vmatprep.subr.bf16.mxu0 0
      %6248 = vmatpush1.bf16.msra.mxu0 0
      %6249 = vmatprep.subr.bf16.mxu0 0
      %6250 = vmatpush1.bf16.msra.mxu0 0
      %6251 = vmatprep.subr.bf16.mxu0 0
      %6252 = vmatpush1.bf16.msra.mxu0 0
      %6253 = vmatprep.subr.bf16.mxu0 0
      %6254 = vmatpush1.bf16.msra.mxu0 0
      %6255 = vmatprep.subr.bf16.mxu0 0
      %6256 = vmatpush1.bf16.msra.mxu0 0
      %6257 = vmatprep.subr.bf16.mxu0 0
      %6258 = vmatpush1.bf16.msra.mxu0 0
      %6259 = vmatprep.subr.bf16.mxu0 0
      %6260 = vmatpush1.bf16.msra.mxu0 0
      %6261 = vmatprep.subr.bf16.mxu0 0
      %6262 = vmatpush1.bf16.msra.mxu0 0
      %6263 = vmatprep.mubr.bf16.mxu0 0
      %6264 = vmatmul.mubr.bf16.gmra.mrb[0].mxu0 %v6136
      %v6265 = vpop.f32.mrb[0].mxu0
      %v6266 = vadd.f32 %v5809, %v6265
      %v6267 = vpop.f32.mrb[0].mxu0
      %v6268 = vadd.f32 %v5811, %v6267
      %v6269 = vpop.f32.mrb[0].mxu0
      %v6270 = vadd.f32 %v5813, %v6269
      %v6271 = vpop.f32.mrb[0].mxu0
      %v6272 = vadd.f32 %v5815, %v6271
      %6273 = vmatprep.mubr.bf16.mxu0 0
      %6274 = vmatmul.mubr.bf16.gmra.mrb[0].mxu0 %v6139
      %v6275 = vpop.f32.mrb[0].mxu0
      %v6276 = vadd.f32 %v5819, %v6275
      %v6277 = vpop.f32.mrb[0].mxu0
      %v6278 = vadd.f32 %v5821, %v6277
      %v6279 = vpop.f32.mrb[0].mxu0
      %v6280 = vpop.f32.mrb[0].mxu0
      %6281 = vmatprep.mubr.bf16.mxu0 0
      %6282 = vmatmul.mubr.bf16.gmra.mrb[0].mxu0 %v6142
      %v6283 = vpop.f32.mrb[0].mxu0
      %v6284 = vadd.f32 %v5827, %v6283
      %v6285 = vpop.f32.mrb[0].mxu0
      %v6286 = vadd.f32 %v5829, %v6285
      %v6287 = vpop.f32.mrb[0].mxu0
      %v6288 = vadd.f32 %v5831, %v6287
      %v6289 = vpop.f32.mrb[0].mxu0
      %v6290 = vadd.f32 %v5833, %v6289
      %6291 = vmatprep.mubr.bf16.mxu0 0
      %6292 = vmatmul.mubr.bf16.gmra.mrb[0].mxu0 %v6145
      %v6293 = vpop.f32.mrb[0].mxu0
      %v6294 = vadd.f32 %v5837, %v6293
      %v6295 = vpop.f32.mrb[0].mxu0
      %v6296 = vadd.f32 %v5839, %v6295
      %v6297 = vpop.f32.mrb[0].mxu0
      %v6298 = vpop.f32.mrb[0].mxu0
      %6299 = vmatprep.mubr.bf16.mxu0 0
      %6300 = vmatmul.mubr.bf16.gmra.mrb[0].mxu0 %v6148
      %v6301 = vpop.f32.mrb[0].mxu0
      %v6302 = vadd.f32 %v5845, %v6301
      %v6303 = vpop.f32.mrb[0].mxu0
      %v6304 = vadd.f32 %v5847, %v6303
      %v6305 = vpop.f32.mrb[0].mxu0
      %v6306 = vadd.f32 %v5849, %v6305
      %v6307 = vpop.f32.mrb[0].mxu0
      %v6308 = vadd.f32 %v5851, %v6307
      %6309 = vmatprep.mubr.bf16.mxu0 0
      %6310 = vmatmul.mubr.bf16.gmra.mrb[0].mxu0 %v6151
      %v6311 = vpop.f32.mrb[0].mxu0
      %v6312 = vadd.f32 %v5855, %v6311
      %v6313 = vpop.f32.mrb[0].mxu0
      %v6314 = vadd.f32 %v5857, %v6313
      %v6315 = vpop.f32.mrb[0].mxu0
      %v6316 = vpop.f32.mrb[0].mxu0
      %6317 = vmatprep.mubr.bf16.mxu0 0
      %6318 = vmatmul.mubr.bf16.gmra.mrb[0].mxu0 %v6154
      %v6319 = vpop.f32.mrb[0].mxu0
      %v6320 = vadd.f32 %v5863, %v6319
      %v6321 = vpop.f32.mrb[0].mxu0
      %v6322 = vadd.f32 %v5865, %v6321
      %v6323 = vpop.f32.mrb[0].mxu0
      %v6324 = vadd.f32 %v5867, %v6323
      %v6325 = vpop.f32.mrb[0].mxu0
      %v6326 = vadd.f32 %v5869, %v6325
      %6327 = vmatprep.mubr.bf16.mxu0 0
      %6328 = vmatmul.mubr.bf16.gmra.mrb[0].mxu0 %v6157
      %v6329 = vpop.f32.mrb[0].mxu0
      %v6330 = vadd.f32 %v5873, %v6329
      %v6331 = vpop.f32.mrb[0].mxu0
      %v6332 = vadd.f32 %v5875, %v6331
      %v6333 = vpop.f32.mrb[0].mxu0
      %v6334 = vpop.f32.mrb[0].mxu0
      %6335 = vmatprep.mubr.bf16.mxu0 0
      %6336 = vmatmul.mubr.bf16.gmra.mrb[0].mxu0 %v6160
      %v6337 = vpop.f32.mrb[0].mxu0
      %v6338 = vadd.f32 %v5881, %v6337
      %v6339 = vpop.f32.mrb[0].mxu0
      %v6340 = vadd.f32 %v5883, %v6339
      %v6341 = vpop.f32.mrb[0].mxu0
      %v6342 = vadd.f32 %v5885, %v6341
      %v6343 = vpop.f32.mrb[0].mxu0
      %v6344 = vadd.f32 %v5887, %v6343
      %6345 = vmatprep.mubr.bf16.mxu0 0
      %6346 = vmatmul.mubr.bf16.gmra.mrb[0].mxu0 %v6163
      %v6347 = vpop.f32.mrb[0].mxu0
      %v6348 = vadd.f32 %v5891, %v6347
      %v6349 = vpop.f32.mrb[0].mxu0
      %v6350 = vadd.f32 %v5893, %v6349
      %v6351 = vpop.f32.mrb[0].mxu0
      %v6352 = vpop.f32.mrb[0].mxu0
      %6353 = vmatprep.mubr.bf16.mxu0 0
      %6354 = vmatmul.mubr.bf16.gmra.mrb[0].mxu0 %v6166
      %v6355 = vpop.f32.mrb[0].mxu0
      %v6356 = vadd.f32 %v5899, %v6355
      %v6357 = vpop.f32.mrb[0].mxu0
      %v6358 = vadd.f32 %v5901, %v6357
      %v6359 = vpop.f32.mrb[0].mxu0
      %v6360 = vadd.f32 %v5903, %v6359
      %v6361 = vpop.f32.mrb[0].mxu0
      %v6362 = vadd.f32 %v5905, %v6361
      %6363 = vmatprep.mubr.bf16.mxu0 0
      %6364 = vmatmul.mubr.bf16.gmra.mrb[0].mxu0 %v6169
      %v6365 = vpop.f32.mrb[0].mxu0
      %v6366 = vadd.f32 %v5909, %v6365
      %v6367 = vpop.f32.mrb[0].mxu0
      %v6368 = vadd.f32 %v5911, %v6367
      %v6369 = vpop.f32.mrb[0].mxu0
      %v6370 = vpop.f32.mrb[0].mxu0
      %6371 = vmatprep.mubr.bf16.mxu0 0
      %6372 = vmatmul.mubr.bf16.gmra.mrb[0].mxu0 %v6172
      %v6373 = vpop.f32.mrb[0].mxu0
      %v6374 = vadd.f32 %v5917, %v6373
      %v6375 = vpop.f32.mrb[0].mxu0
      %v6376 = vadd.f32 %v5919, %v6375
      %v6377 = vpop.f32.mrb[0].mxu0
      %v6378 = vadd.f32 %v5921, %v6377
      %v6379 = vpop.f32.mrb[0].mxu0
      %v6380 = vadd.f32 %v5923, %v6379
      %6381 = vmatprep.mubr.bf16.mxu0 0
      %6382 = vmatmul.mubr.bf16.gmra.mrb[0].mxu0 %v6175
      %v6383 = vpop.f32.mrb[0].mxu0
      %v6384 = vadd.f32 %v5927, %v6383
      %v6385 = vpop.f32.mrb[0].mxu0
      %v6386 = vadd.f32 %v5929, %v6385
      %v6387 = vpop.f32.mrb[0].mxu0
      %v6388 = vpop.f32.mrb[0].mxu0
      %6389 = vmatprep.mubr.bf16.mxu0 0
      %6390 = vmatmul.mubr.bf16.gmra.mrb[0].mxu0 %v6178
      %v6391 = vpop.f32.mrb[0].mxu0
      %v6392 = vadd.f32 %v5935, %v6391
      %v6393 = vpop.f32.mrb[0].mxu0
      %v6394 = vadd.f32 %v5937, %v6393
      %v6395 = vpop.f32.mrb[0].mxu0
      %v6396 = vadd.f32 %v5939, %v6395
      %v6397 = vpop.f32.mrb[0].mxu0
      %v6398 = vadd.f32 %v5941, %v6397
      %6399 = vmatprep.mubr.bf16.mxu0 0
      %6400 = vmatmul.mubr.bf16.gmra.mrb[0].mxu0 %v6181
      %v6401 = vpop.f32.mrb[0].mxu0
      %v6402 = vadd.f32 %v5945, %v6401
      %v6403 = vpop.f32.mrb[0].mxu0
      %v6404 = vadd.f32 %v5947, %v6403
      %v6405 = vpop.f32.mrb[0].mxu0
      %v6406 = vpop.f32.mrb[0].mxu0
      %6407 = vmatprep.mubr.bf16.mxu0 0
      %6408 = vmatmul.mubr.bf16.gmra.mrb[0].mxu0 %v6184
      %v6409 = vpop.f32.mrb[0].mxu0
      %v6410 = vadd.f32 %v5953, %v6409
      %v6411 = vpop.f32.mrb[0].mxu0
      %v6412 = vadd.f32 %v5955, %v6411
      %v6413 = vpop.f32.mrb[0].mxu0
      %v6414 = vadd.f32 %v5957, %v6413
      %v6415 = vpop.f32.mrb[0].mxu0
      %v6416 = vadd.f32 %v5959, %v6415
      %6417 = vmatprep.mubr.bf16.mxu0 0
      %6418 = vmatmul.mubr.bf16.gmra.mrb[0].mxu0 %v6187
      %v6419 = vpop.f32.mrb[0].mxu0
      %v6420 = vadd.f32 %v5963, %v6419
      %v6421 = vpop.f32.mrb[0].mxu0
      %v6422 = vadd.f32 %v5965, %v6421
      %v6423 = vpop.f32.mrb[0].mxu0
      %v6424 = vpop.f32.mrb[0].mxu0
      %6425 = vmatprep.mubr.bf16.mxu0 0
      %6426 = vmatmul.mubr.bf16.gmra.mrb[0].mxu0 %v6190
      %v6427 = vpop.f32.mrb[0].mxu0
      %v6428 = vadd.f32 %v5971, %v6427
      %v6429 = vpop.f32.mrb[0].mxu0
      %v6430 = vadd.f32 %v5973, %v6429
      %v6431 = vpop.f32.mrb[0].mxu0
      %v6432 = vadd.f32 %v5975, %v6431
      %v6433 = vpop.f32.mrb[0].mxu0
      %v6434 = vadd.f32 %v5977, %v6433
      %6435 = vmatprep.mubr.bf16.mxu0 0
      %6436 = vmatmul.mubr.bf16.gmra.mrb[0].mxu0 %v6193
      %v6437 = vpop.f32.mrb[0].mxu0
      %v6438 = vadd.f32 %v5981, %v6437
      %v6439 = vpop.f32.mrb[0].mxu0
      %v6440 = vadd.f32 %v5983, %v6439
      %v6441 = vpop.f32.mrb[0].mxu0
      %v6442 = vpop.f32.mrb[0].mxu0
      %6443 = vmatprep.mubr.bf16.mxu0 0
      %6444 = vmatmul.mubr.bf16.gmra.mrb[0].mxu0 %v6196
      %v6445 = vpop.f32.mrb[0].mxu0
      %v6446 = vadd.f32 %v5989, %v6445
      %v6447 = vpop.f32.mrb[0].mxu0
      %v6448 = vadd.f32 %v5991, %v6447
      %v6449 = vpop.f32.mrb[0].mxu0
      %v6450 = vadd.f32 %v5993, %v6449
      %v6451 = vpop.f32.mrb[0].mxu0
      %v6452 = vadd.f32 %v5995, %v6451
      %6453 = vmatprep.mubr.bf16.mxu0 0
      %6454 = vmatmul.mubr.bf16.gmra.mrb[0].mxu0 %v6199
      %v6455 = vpop.f32.mrb[0].mxu0
      %v6456 = vadd.f32 %v5999, %v6455
      %v6457 = vpop.f32.mrb[0].mxu0
      %v6458 = vadd.f32 %v6001, %v6457
      %v6459 = vpop.f32.mrb[0].mxu0
      %v6460 = vpop.f32.mrb[0].mxu0
      %6461 = vmatprep.mubr.bf16.mxu0 0
      %6462 = vmatmul.mubr.bf16.gmra.mrb[0].mxu0 %v6202
      %v6463 = vpop.f32.mrb[0].mxu0
      %v6464 = vadd.f32 %v6007, %v6463
      %v6465 = vpop.f32.mrb[0].mxu0
      %v6466 = vadd.f32 %v6009, %v6465
      %v6467 = vpop.f32.mrb[0].mxu0
      %v6468 = vadd.f32 %v6011, %v6467
      %v6469 = vpop.f32.mrb[0].mxu0
      %v6470 = vadd.f32 %v6013, %v6469
      %6471 = vmatprep.mubr.bf16.mxu0 0
      %6472 = vmatmul.mubr.bf16.gmra.mrb[0].mxu0 %v6205
      %v6473 = vpop.f32.mrb[0].mxu0
      %v6474 = vadd.f32 %v6017, %v6473
      %v6475 = vpop.f32.mrb[0].mxu0
      %v6476 = vadd.f32 %v6019, %v6475
      %v6477 = vpop.f32.mrb[0].mxu0
      %v6478 = vpop.f32.mrb[0].mxu0
      %6479 = vmatprep.mubr.bf16.mxu0 0
      %6480 = vmatmul.mubr.bf16.gmra.mrb[0].mxu0 %v6208
      %v6481 = vpop.f32.mrb[0].mxu0
      %v6482 = vadd.f32 %v6025, %v6481
      %v6483 = vpop.f32.mrb[0].mxu0
      %v6484 = vadd.f32 %v6027, %v6483
      %v6485 = vpop.f32.mrb[0].mxu0
      %v6486 = vadd.f32 %v6029, %v6485
      %v6487 = vpop.f32.mrb[0].mxu0
      %v6488 = vadd.f32 %v6031, %v6487
      %6489 = vmatprep.mubr.bf16.mxu0 0
      %6490 = vmatmul.mubr.bf16.gmra.mrb[0].mxu0 %v6211
      %v6491 = vpop.f32.mrb[0].mxu0
      %v6492 = vadd.f32 %v6035, %v6491
      %v6493 = vpop.f32.mrb[0].mxu0
      %v6494 = vadd.f32 %v6037, %v6493
      %v6495 = vpop.f32.mrb[0].mxu0
      %v6496 = vpop.f32.mrb[0].mxu0
      %6497 = vmatprep.mubr.bf16.mxu0 0
      %6498 = vmatmul.mubr.bf16.gmra.mrb[0].mxu0 %v6214
      %v6499 = vpop.f32.mrb[0].mxu0
      %v6500 = vadd.f32 %v6043, %v6499
      %v6501 = vpop.f32.mrb[0].mxu0
      %v6502 = vadd.f32 %v6045, %v6501
      %v6503 = vpop.f32.mrb[0].mxu0
      %v6504 = vadd.f32 %v6047, %v6503
      %v6505 = vpop.f32.mrb[0].mxu0
      %v6506 = vadd.f32 %v6049, %v6505
      %6507 = vmatprep.mubr.bf16.mxu0 0
      %6508 = vmatmul.mubr.bf16.gmra.mrb[0].mxu0 %v6217
      %v6509 = vpop.f32.mrb[0].mxu0
      %v6510 = vadd.f32 %v6053, %v6509
      %v6511 = vpop.f32.mrb[0].mxu0
      %v6512 = vadd.f32 %v6055, %v6511
      %v6513 = vpop.f32.mrb[0].mxu0
      %v6514 = vpop.f32.mrb[0].mxu0
      %6515 = vmatprep.mubr.bf16.mxu0 0
      %6516 = vmatmul.mubr.bf16.gmra.mrb[0].mxu0 %v6220
      %v6517 = vpop.f32.mrb[0].mxu0
      %v6518 = vadd.f32 %v6061, %v6517
      %v6519 = vpop.f32.mrb[0].mxu0
      %v6520 = vadd.f32 %v6063, %v6519
      %v6521 = vpop.f32.mrb[0].mxu0
      %v6522 = vadd.f32 %v6065, %v6521
      %v6523 = vpop.f32.mrb[0].mxu0
      %v6524 = vadd.f32 %v6067, %v6523
      %6525 = vmatprep.mubr.bf16.mxu0 0
      %6526 = vmatmul.mubr.bf16.gmra.mrb[0].mxu0 %v6223
      %v6527 = vpop.f32.mrb[0].mxu0
      %v6528 = vadd.f32 %v6071, %v6527
      %v6529 = vpop.f32.mrb[0].mxu0
      %v6530 = vadd.f32 %v6073, %v6529
      %v6531 = vpop.f32.mrb[0].mxu0
      %v6532 = vpop.f32.mrb[0].mxu0
      %6533 = vmatprep.mubr.bf16.mxu0 0
      %6534 = vmatmul.mubr.bf16.gmra.mrb[0].mxu0 %v6226
      %v6535 = vpop.f32.mrb[0].mxu0
      %v6536 = vadd.f32 %v6079, %v6535
      %v6537 = vpop.f32.mrb[0].mxu0
      %v6538 = vadd.f32 %v6081, %v6537
      %v6539 = vpop.f32.mrb[0].mxu0
      %v6540 = vadd.f32 %v6083, %v6539
      %v6541 = vpop.f32.mrb[0].mxu0
      %v6542 = vadd.f32 %v6085, %v6541
      %6543 = vmatprep.mubr.bf16.mxu0 0
      %6544 = vmatmul.mubr.bf16.gmra.mrb[0].mxu0 %v6229
      %v6545 = vpop.f32.mrb[0].mxu0
      %v6546 = vadd.f32 %v6089, %v6545
      %v6547 = vpop.f32.mrb[0].mxu0
      %v6548 = vadd.f32 %v6091, %v6547
      %v6549 = vpop.f32.mrb[0].mxu0
      %v6550 = vpop.f32.mrb[0].mxu0
      %6551 = vdwg.mxu0
      %s6552 = scalar_lea.vmem [#allocation2], 32
      %v6553 = vld [vmem:[%s6552] sm:$0xff]
      %v6554 = vld [vmem:[%s6552 + $0x8] sm:$0xff]
      %v6555 = vld [vmem:[%s6552 + $0x10] sm:$0xff]
      %v6556 = vld [vmem:[%s6552 + $0x18] sm:$0xff]
      %v6557 = vld [vmem:[%s6552 + $0x20] sm:$0xff]
      %v6558 = vld [vmem:[%s6552 + $0x28] sm:$0xff]
      %v6559 = vld [vmem:[%s6552 + $0x30] sm:$0xff]
      %v6560 = vld [vmem:[%s6552 + $0x38] sm:$0xff]
      %v6561 = vld [vmem:[%s6552 + $0x40] sm:$0xff]
      %v6562 = vld [vmem:[%s6552 + $0x48] sm:$0xff]
      %v6563 = vld [vmem:[%s6552 + $0x50] sm:$0xff]
      %v6564 = vld [vmem:[%s6552 + $0x58] sm:$0xff]
      %v6565 = vld [vmem:[%s6552 + $0x60] sm:$0xff]
      %v6566 = vld [vmem:[%s6552 + $0x68] sm:$0xff]
      %v6567 = vld [vmem:[%s6552 + $0x70] sm:$0xff]
      %v6568 = vld [vmem:[%s6552 + $0x78] sm:$0xff]
      %v6569 = vld [vmem:[%s6552 + $0x80] sm:$0xff]
      %v6570 = vld [vmem:[%s6552 + $0x88] sm:$0xff]
      %v6571 = vld [vmem:[%s6552 + $0x90] sm:$0xff]
      %v6572 = vld [vmem:[%s6552 + $0x98] sm:$0xff]
      %v6573 = vld [vmem:[%s6552 + $0xa0] sm:$0xff]
      %v6574 = vld [vmem:[%s6552 + $0xa8] sm:$0xff]
      %v6575 = vld [vmem:[%s6552 + $0xb0] sm:$0xff]
      %v6576 = vld [vmem:[%s6552 + $0xb8] sm:$0xff]
      %v6577 = vld [vmem:[%s6552 + $0xc0] sm:$0xff]
      %v6578 = vld [vmem:[%s6552 + $0xc8] sm:$0xff]
      %v6579 = vld [vmem:[%s6552 + $0xd0] sm:$0xff]
      %v6580 = vld [vmem:[%s6552 + $0xd8] sm:$0xff]
      %v6581 = vld [vmem:[%s6552 + $0xe0] sm:$0xff]
      %v6582 = vld [vmem:[%s6552 + $0xe8] sm:$0xff]
      %v6583 = vld [vmem:[%s6552 + $0xf0] sm:$0xff]
      %v6584 = vld [vmem:[%s6552 + $0xf8] sm:$0xff]
      %s6585 = scalar_lea.vmem %s1, 3200
      %v6586 = vld [vmem:[%s6585] sm:$0xff]
      %v6587 = vld [vmem:[%s6585 + $0x8] sm:$0xff]
      %v6588 = vld [vmem:[%s6585 + $0x10] sm:$0xff]
      %v6589 = vld [vmem:[%s6585 + $0x18] sm:$0xff]
      %v6590 = vld [vmem:[%s6585 + $0x20] sm:$0xff]
      %v6591 = vld [vmem:[%s6585 + $0x28] sm:$0xff]
      %v6592 = vld [vmem:[%s6585 + $0x30] sm:$0xff]
      %v6593 = vld [vmem:[%s6585 + $0x38] sm:$0xff]
      %v6602 = vunpack.c.l.b16 %v6586
      %v6603 = vunpack.c.h.b16 %v6586
      %v6604 = vunpack.c.l.b16 %v6587
      %v6605 = vunpack.c.h.b16 %v6587
      %v6606 = vunpack.c.l.b16 %v6588
      %v6607 = vunpack.c.h.b16 %v6588
      %v6608 = vunpack.c.l.b16 %v6589
      %v6609 = vunpack.c.h.b16 %v6589
      %v6610 = vunpack.c.l.b16 %v6590
      %v6611 = vunpack.c.h.b16 %v6590
      %v6612 = vunpack.c.l.b16 %v6591
      %v6613 = vunpack.c.h.b16 %v6591
      %v6614 = vunpack.c.l.b16 %v6592
      %v6615 = vunpack.c.h.b16 %v6592
      %v6616 = vunpack.c.l.b16 %v6593
      %v6617 = vunpack.c.h.b16 %v6593
      %v6618 = vpack.c.b16 %v6604, %v6602
      %v6619 = vpack.c.b16 %v6605, %v6603
      %v6620 = vpack.c.b16 %v6608, %v6606
      %v6621 = vpack.c.b16 %v6609, %v6607
      %v6622 = vpack.c.b16 %v6612, %v6610
      %v6623 = vpack.c.b16 %v6613, %v6611
      %v6624 = vpack.c.b16 %v6616, %v6614
      %v6625 = vpack.c.b16 %v6617, %v6615
      %v6635 = vsel %vm199, %v6553, 0
      %v6638 = vsel %vm199, %v6554, 0
      %v6641 = vsel %vm199, %v6555, 0
      %v6644 = vsel %vm199, %v6556, 0
      %v6647 = vsel %vm199, %v6557, 0
      %v6650 = vsel %vm199, %v6558, 0
      %v6653 = vsel %vm199, %v6559, 0
      %v6656 = vsel %vm199, %v6560, 0
      %v6659 = vsel %vm199, %v6561, 0
      %v6662 = vsel %vm199, %v6562, 0
      %v6665 = vsel %vm199, %v6563, 0
      %v6668 = vsel %vm199, %v6564, 0
      %v6671 = vsel %vm199, %v6565, 0
      %v6674 = vsel %vm199, %v6566, 0
      %v6677 = vsel %vm199, %v6567, 0
      %v6680 = vsel %vm199, %v6568, 0
      %v6683 = vsel %vm199, %v6569, 0
      %v6686 = vsel %vm199, %v6570, 0
      %v6689 = vsel %vm199, %v6571, 0
      %v6692 = vsel %vm199, %v6572, 0
      %v6695 = vsel %vm199, %v6573, 0
      %v6698 = vsel %vm199, %v6574, 0
      %v6701 = vsel %vm199, %v6575, 0
      %v6704 = vsel %vm199, %v6576, 0
      %v6707 = vsel %vm199, %v6577, 0
      %v6710 = vsel %vm199, %v6578, 0
      %v6713 = vsel %vm199, %v6579, 0
      %v6716 = vsel %vm199, %v6580, 0
      %v6719 = vsel %vm199, %v6581, 0
      %v6722 = vsel %vm199, %v6582, 0
      %v6725 = vsel %vm199, %v6583, 0
      %v6728 = vsel %vm199, %v6584, 0
      %6730 = vmatprep.subr.bf16.mxu0 %v6619
      %6731 = vmatpush1.bf16.msra.mxu0 %v6618
      %6732 = vmatprep.subr.bf16.mxu0 %v6621
      %6733 = vmatpush1.bf16.msra.mxu0 %v6620
      %6734 = vmatprep.subr.bf16.mxu0 %v6623
      %6735 = vmatpush1.bf16.msra.mxu0 %v6622
      %6736 = vmatprep.subr.bf16.mxu0 %v6625
      %6737 = vmatpush1.bf16.msra.mxu0 %v6624
      %6738 = vmatprep.subr.bf16.mxu0 0
      %6739 = vmatpush1.bf16.msra.mxu0 0
      %6740 = vmatprep.subr.bf16.mxu0 0
      %6741 = vmatpush1.bf16.msra.mxu0 0
      %6742 = vmatprep.subr.bf16.mxu0 0
      %6743 = vmatpush1.bf16.msra.mxu0 0
      %6744 = vmatprep.subr.bf16.mxu0 0
      %6745 = vmatpush1.bf16.msra.mxu0 0
      %6746 = vmatprep.subr.bf16.mxu0 0
      %6747 = vmatpush1.bf16.msra.mxu0 0
      %6748 = vmatprep.subr.bf16.mxu0 0
      %6749 = vmatpush1.bf16.msra.mxu0 0
      %6750 = vmatprep.subr.bf16.mxu0 0
      %6751 = vmatpush1.bf16.msra.mxu0 0
      %6752 = vmatprep.subr.bf16.mxu0 0
      %6753 = vmatpush1.bf16.msra.mxu0 0
      %6754 = vmatprep.subr.bf16.mxu0 0
      %6755 = vmatpush1.bf16.msra.mxu0 0
      %6756 = vmatprep.subr.bf16.mxu0 0
      %6757 = vmatpush1.bf16.msra.mxu0 0
      %6758 = vmatprep.subr.bf16.mxu0 0
      %6759 = vmatpush1.bf16.msra.mxu0 0
      %6760 = vmatprep.subr.bf16.mxu0 0
      %6761 = vmatpush1.bf16.msra.mxu0 0
      %6762 = vmatprep.mubr.bf16.mxu0 0
      %6763 = vmatmul.mubr.bf16.gmra.mrb[0].mxu0 %v6635
      %v6764 = vpop.f32.mrb[0].mxu0
      %v6765 = vadd.f32 0.0, %v6764
      %v6766 = vpop.f32.mrb[0].mxu0
      %v6767 = vadd.f32 0.0, %v6766
      %v6768 = vpop.f32.mrb[0].mxu0
      %v6769 = vadd.f32 0.0, %v6768
      %v6770 = vpop.f32.mrb[0].mxu0
      %v6771 = vadd.f32 0.0, %v6770
      %6772 = vmatprep.mubr.bf16.mxu0 0
      %6773 = vmatmul.mubr.bf16.gmra.mrb[0].mxu0 %v6638
      %v6774 = vpop.f32.mrb[0].mxu0
      %v6775 = vadd.f32 0.0, %v6774
      %v6776 = vpop.f32.mrb[0].mxu0
      %v6777 = vadd.f32 0.0, %v6776
      %v6778 = vpop.f32.mrb[0].mxu0
      %v6779 = vpop.f32.mrb[0].mxu0
      %6780 = vmatprep.mubr.bf16.mxu0 0
      %6781 = vmatmul.mubr.bf16.gmra.mrb[0].mxu0 %v6641
      %v6782 = vpop.f32.mrb[0].mxu0
      %v6783 = vadd.f32 0.0, %v6782
      %v6784 = vpop.f32.mrb[0].mxu0
      %v6785 = vadd.f32 0.0, %v6784
      %v6786 = vpop.f32.mrb[0].mxu0
      %v6787 = vadd.f32 0.0, %v6786
      %v6788 = vpop.f32.mrb[0].mxu0
      %v6789 = vadd.f32 0.0, %v6788
      %6790 = vmatprep.mubr.bf16.mxu0 0
      %6791 = vmatmul.mubr.bf16.gmra.mrb[0].mxu0 %v6644
      %v6792 = vpop.f32.mrb[0].mxu0
      %v6793 = vadd.f32 0.0, %v6792
      %v6794 = vpop.f32.mrb[0].mxu0
      %v6795 = vadd.f32 0.0, %v6794
      %v6796 = vpop.f32.mrb[0].mxu0
      %v6797 = vpop.f32.mrb[0].mxu0
      %6798 = vmatprep.mubr.bf16.mxu0 0
      %6799 = vmatmul.mubr.bf16.gmra.mrb[0].mxu0 %v6647
      %v6800 = vpop.f32.mrb[0].mxu0
      %v6801 = vadd.f32 0.0, %v6800
      %v6802 = vpop.f32.mrb[0].mxu0
      %v6803 = vadd.f32 0.0, %v6802
      %v6804 = vpop.f32.mrb[0].mxu0
      %v6805 = vadd.f32 0.0, %v6804
      %v6806 = vpop.f32.mrb[0].mxu0
      %v6807 = vadd.f32 0.0, %v6806
      %6808 = vmatprep.mubr.bf16.mxu0 0
      %6809 = vmatmul.mubr.bf16.gmra.mrb[0].mxu0 %v6650
      %v6810 = vpop.f32.mrb[0].mxu0
      %v6811 = vadd.f32 0.0, %v6810
      %v6812 = vpop.f32.mrb[0].mxu0
      %v6813 = vadd.f32 0.0, %v6812
      %v6814 = vpop.f32.mrb[0].mxu0
      %v6815 = vpop.f32.mrb[0].mxu0
      %6816 = vmatprep.mubr.bf16.mxu0 0
      %6817 = vmatmul.mubr.bf16.gmra.mrb[0].mxu0 %v6653
      %v6818 = vpop.f32.mrb[0].mxu0
      %v6819 = vadd.f32 0.0, %v6818
      %v6820 = vpop.f32.mrb[0].mxu0
      %v6821 = vadd.f32 0.0, %v6820
      %v6822 = vpop.f32.mrb[0].mxu0
      %v6823 = vadd.f32 0.0, %v6822
      %v6824 = vpop.f32.mrb[0].mxu0
      %v6825 = vadd.f32 0.0, %v6824
      %6826 = vmatprep.mubr.bf16.mxu0 0
      %6827 = vmatmul.mubr.bf16.gmra.mrb[0].mxu0 %v6656
      %v6828 = vpop.f32.mrb[0].mxu0
      %v6829 = vadd.f32 0.0, %v6828
      %v6830 = vpop.f32.mrb[0].mxu0
      %v6831 = vadd.f32 0.0, %v6830
      %v6832 = vpop.f32.mrb[0].mxu0
      %v6833 = vpop.f32.mrb[0].mxu0
      %6834 = vmatprep.mubr.bf16.mxu0 0
      %6835 = vmatmul.mubr.bf16.gmra.mrb[0].mxu0 %v6659
      %v6836 = vpop.f32.mrb[0].mxu0
      %v6837 = vadd.f32 0.0, %v6836
      %v6838 = vpop.f32.mrb[0].mxu0
      %v6839 = vadd.f32 0.0, %v6838
      %v6840 = vpop.f32.mrb[0].mxu0
      %v6841 = vadd.f32 0.0, %v6840
      %v6842 = vpop.f32.mrb[0].mxu0
      %v6843 = vadd.f32 0.0, %v6842
      %6844 = vmatprep.mubr.bf16.mxu0 0
      %6845 = vmatmul.mubr.bf16.gmra.mrb[0].mxu0 %v6662
      %v6846 = vpop.f32.mrb[0].mxu0
      %v6847 = vadd.f32 0.0, %v6846
      %v6848 = vpop.f32.mrb[0].mxu0
      %v6849 = vadd.f32 0.0, %v6848
      %v6850 = vpop.f32.mrb[0].mxu0
      %v6851 = vpop.f32.mrb[0].mxu0
      %6852 = vmatprep.mubr.bf16.mxu0 0
      %6853 = vmatmul.mubr.bf16.gmra.mrb[0].mxu0 %v6665
      %v6854 = vpop.f32.mrb[0].mxu0
      %v6855 = vadd.f32 0.0, %v6854
      %v6856 = vpop.f32.mrb[0].mxu0
      %v6857 = vadd.f32 0.0, %v6856
      %v6858 = vpop.f32.mrb[0].mxu0
      %v6859 = vadd.f32 0.0, %v6858
      %v6860 = vpop.f32.mrb[0].mxu0
      %v6861 = vadd.f32 0.0, %v6860
      %6862 = vmatprep.mubr.bf16.mxu0 0
      %6863 = vmatmul.mubr.bf16.gmra.mrb[0].mxu0 %v6668
      %v6864 = vpop.f32.mrb[0].mxu0
      %v6865 = vadd.f32 0.0, %v6864
      %v6866 = vpop.f32.mrb[0].mxu0
      %v6867 = vadd.f32 0.0, %v6866
      %v6868 = vpop.f32.mrb[0].mxu0
      %v6869 = vpop.f32.mrb[0].mxu0
      %6870 = vmatprep.mubr.bf16.mxu0 0
      %6871 = vmatmul.mubr.bf16.gmra.mrb[0].mxu0 %v6671
      %v6872 = vpop.f32.mrb[0].mxu0
      %v6873 = vadd.f32 0.0, %v6872
      %v6874 = vpop.f32.mrb[0].mxu0
      %v6875 = vadd.f32 0.0, %v6874
      %v6876 = vpop.f32.mrb[0].mxu0
      %v6877 = vadd.f32 0.0, %v6876
      %v6878 = vpop.f32.mrb[0].mxu0
      %v6879 = vadd.f32 0.0, %v6878
      %6880 = vmatprep.mubr.bf16.mxu0 0
      %6881 = vmatmul.mubr.bf16.gmra.mrb[0].mxu0 %v6674
      %v6882 = vpop.f32.mrb[0].mxu0
      %v6883 = vadd.f32 0.0, %v6882
      %v6884 = vpop.f32.mrb[0].mxu0
      %v6885 = vadd.f32 0.0, %v6884
      %v6886 = vpop.f32.mrb[0].mxu0
      %v6887 = vpop.f32.mrb[0].mxu0
      %6888 = vmatprep.mubr.bf16.mxu0 0
      %6889 = vmatmul.mubr.bf16.gmra.mrb[0].mxu0 %v6677
      %v6890 = vpop.f32.mrb[0].mxu0
      %v6891 = vadd.f32 0.0, %v6890
      %v6892 = vpop.f32.mrb[0].mxu0
      %v6893 = vadd.f32 0.0, %v6892
      %v6894 = vpop.f32.mrb[0].mxu0
      %v6895 = vadd.f32 0.0, %v6894
      %v6896 = vpop.f32.mrb[0].mxu0
      %v6897 = vadd.f32 0.0, %v6896
      %6898 = vmatprep.mubr.bf16.mxu0 0
      %6899 = vmatmul.mubr.bf16.gmra.mrb[0].mxu0 %v6680
      %v6900 = vpop.f32.mrb[0].mxu0
      %v6901 = vadd.f32 0.0, %v6900
      %v6902 = vpop.f32.mrb[0].mxu0
      %v6903 = vadd.f32 0.0, %v6902
      %v6904 = vpop.f32.mrb[0].mxu0
      %v6905 = vpop.f32.mrb[0].mxu0
      %6906 = vmatprep.mubr.bf16.mxu0 0
      %6907 = vmatmul.mubr.bf16.gmra.mrb[0].mxu0 %v6683
      %v6908 = vpop.f32.mrb[0].mxu0
      %v6909 = vadd.f32 0.0, %v6908
      %v6910 = vpop.f32.mrb[0].mxu0
      %v6911 = vadd.f32 0.0, %v6910
      %v6912 = vpop.f32.mrb[0].mxu0
      %v6913 = vadd.f32 0.0, %v6912
      %v6914 = vpop.f32.mrb[0].mxu0
      %v6915 = vadd.f32 0.0, %v6914
      %6916 = vmatprep.mubr.bf16.mxu0 0
      %6917 = vmatmul.mubr.bf16.gmra.mrb[0].mxu0 %v6686
      %v6918 = vpop.f32.mrb[0].mxu0
      %v6919 = vadd.f32 0.0, %v6918
      %v6920 = vpop.f32.mrb[0].mxu0
      %v6921 = vadd.f32 0.0, %v6920
      %v6922 = vpop.f32.mrb[0].mxu0
      %v6923 = vpop.f32.mrb[0].mxu0
      %6924 = vmatprep.mubr.bf16.mxu0 0
      %6925 = vmatmul.mubr.bf16.gmra.mrb[0].mxu0 %v6689
      %v6926 = vpop.f32.mrb[0].mxu0
      %v6927 = vadd.f32 0.0, %v6926
      %v6928 = vpop.f32.mrb[0].mxu0
      %v6929 = vadd.f32 0.0, %v6928
      %v6930 = vpop.f32.mrb[0].mxu0
      %v6931 = vadd.f32 0.0, %v6930
      %v6932 = vpop.f32.mrb[0].mxu0
      %v6933 = vadd.f32 0.0, %v6932
      %6934 = vmatprep.mubr.bf16.mxu0 0
      %6935 = vmatmul.mubr.bf16.gmra.mrb[0].mxu0 %v6692
      %v6936 = vpop.f32.mrb[0].mxu0
      %v6937 = vadd.f32 0.0, %v6936
      %v6938 = vpop.f32.mrb[0].mxu0
      %v6939 = vadd.f32 0.0, %v6938
      %v6940 = vpop.f32.mrb[0].mxu0
      %v6941 = vpop.f32.mrb[0].mxu0
      %6942 = vmatprep.mubr.bf16.mxu0 0
      %6943 = vmatmul.mubr.bf16.gmra.mrb[0].mxu0 %v6695
      %v6944 = vpop.f32.mrb[0].mxu0
      %v6945 = vadd.f32 0.0, %v6944
      %v6946 = vpop.f32.mrb[0].mxu0
      %v6947 = vadd.f32 0.0, %v6946
      %v6948 = vpop.f32.mrb[0].mxu0
      %v6949 = vadd.f32 0.0, %v6948
      %v6950 = vpop.f32.mrb[0].mxu0
      %v6951 = vadd.f32 0.0, %v6950
      %6952 = vmatprep.mubr.bf16.mxu0 0
      %6953 = vmatmul.mubr.bf16.gmra.mrb[0].mxu0 %v6698
      %v6954 = vpop.f32.mrb[0].mxu0
      %v6955 = vadd.f32 0.0, %v6954
      %v6956 = vpop.f32.mrb[0].mxu0
      %v6957 = vadd.f32 0.0, %v6956
      %v6958 = vpop.f32.mrb[0].mxu0
      %v6959 = vpop.f32.mrb[0].mxu0
      %6960 = vmatprep.mubr.bf16.mxu0 0
      %6961 = vmatmul.mubr.bf16.gmra.mrb[0].mxu0 %v6701
      %v6962 = vpop.f32.mrb[0].mxu0
      %v6963 = vadd.f32 0.0, %v6962
      %v6964 = vpop.f32.mrb[0].mxu0
      %v6965 = vadd.f32 0.0, %v6964
      %v6966 = vpop.f32.mrb[0].mxu0
      %v6967 = vadd.f32 0.0, %v6966
      %v6968 = vpop.f32.mrb[0].mxu0
      %v6969 = vadd.f32 0.0, %v6968
      %6970 = vmatprep.mubr.bf16.mxu0 0
      %6971 = vmatmul.mubr.bf16.gmra.mrb[0].mxu0 %v6704
      %v6972 = vpop.f32.mrb[0].mxu0
      %v6973 = vadd.f32 0.0, %v6972
      %v6974 = vpop.f32.mrb[0].mxu0
      %v6975 = vadd.f32 0.0, %v6974
      %v6976 = vpop.f32.mrb[0].mxu0
      %v6977 = vpop.f32.mrb[0].mxu0
      %6978 = vmatprep.mubr.bf16.mxu0 0
      %6979 = vmatmul.mubr.bf16.gmra.mrb[0].mxu0 %v6707
      %v6980 = vpop.f32.mrb[0].mxu0
      %v6981 = vadd.f32 0.0, %v6980
      %v6982 = vpop.f32.mrb[0].mxu0
      %v6983 = vadd.f32 0.0, %v6982
      %v6984 = vpop.f32.mrb[0].mxu0
      %v6985 = vadd.f32 0.0, %v6984
      %v6986 = vpop.f32.mrb[0].mxu0
      %v6987 = vadd.f32 0.0, %v6986
      %6988 = vmatprep.mubr.bf16.mxu0 0
      %6989 = vmatmul.mubr.bf16.gmra.mrb[0].mxu0 %v6710
      %v6990 = vpop.f32.mrb[0].mxu0
      %v6991 = vadd.f32 0.0, %v6990
      %v6992 = vpop.f32.mrb[0].mxu0
      %v6993 = vadd.f32 0.0, %v6992
      %v6994 = vpop.f32.mrb[0].mxu0
      %v6995 = vpop.f32.mrb[0].mxu0
      %6996 = vmatprep.mubr.bf16.mxu0 0
      %6997 = vmatmul.mubr.bf16.gmra.mrb[0].mxu0 %v6713
      %v6998 = vpop.f32.mrb[0].mxu0
      %v6999 = vadd.f32 0.0, %v6998
      %v7000 = vpop.f32.mrb[0].mxu0
      %v7001 = vadd.f32 0.0, %v7000
      %v7002 = vpop.f32.mrb[0].mxu0
      %v7003 = vadd.f32 0.0, %v7002
      %v7004 = vpop.f32.mrb[0].mxu0
      %v7005 = vadd.f32 0.0, %v7004
      %7006 = vmatprep.mubr.bf16.mxu0 0
      %7007 = vmatmul.mubr.bf16.gmra.mrb[0].mxu0 %v6716
      %v7008 = vpop.f32.mrb[0].mxu0
      %v7009 = vadd.f32 0.0, %v7008
      %v7010 = vpop.f32.mrb[0].mxu0
      %v7011 = vadd.f32 0.0, %v7010
      %v7012 = vpop.f32.mrb[0].mxu0
      %v7013 = vpop.f32.mrb[0].mxu0
      %7014 = vmatprep.mubr.bf16.mxu0 0
      %7015 = vmatmul.mubr.bf16.gmra.mrb[0].mxu0 %v6719
      %v7016 = vpop.f32.mrb[0].mxu0
      %v7017 = vadd.f32 0.0, %v7016
      %v7018 = vpop.f32.mrb[0].mxu0
      %v7019 = vadd.f32 0.0, %v7018
      %v7020 = vpop.f32.mrb[0].mxu0
      %v7021 = vadd.f32 0.0, %v7020
      %v7022 = vpop.f32.mrb[0].mxu0
      %v7023 = vadd.f32 0.0, %v7022
      %7024 = vmatprep.mubr.bf16.mxu0 0
      %7025 = vmatmul.mubr.bf16.gmra.mrb[0].mxu0 %v6722
      %v7026 = vpop.f32.mrb[0].mxu0
      %v7027 = vadd.f32 0.0, %v7026
      %v7028 = vpop.f32.mrb[0].mxu0
      %v7029 = vadd.f32 0.0, %v7028
      %v7030 = vpop.f32.mrb[0].mxu0
      %v7031 = vpop.f32.mrb[0].mxu0
      %7032 = vmatprep.mubr.bf16.mxu0 0
      %7033 = vmatmul.mubr.bf16.gmra.mrb[0].mxu0 %v6725
      %v7034 = vpop.f32.mrb[0].mxu0
      %v7035 = vadd.f32 0.0, %v7034
      %v7036 = vpop.f32.mrb[0].mxu0
      %v7037 = vadd.f32 0.0, %v7036
      %v7038 = vpop.f32.mrb[0].mxu0
      %v7039 = vadd.f32 0.0, %v7038
      %v7040 = vpop.f32.mrb[0].mxu0
      %v7041 = vadd.f32 0.0, %v7040
      %7042 = vmatprep.mubr.bf16.mxu0 0
      %7043 = vmatmul.mubr.bf16.gmra.mrb[0].mxu0 %v6728
      %v7044 = vpop.f32.mrb[0].mxu0
      %v7045 = vadd.f32 0.0, %v7044
      %v7046 = vpop.f32.mrb[0].mxu0
      %v7047 = vadd.f32 0.0, %v7046
      %v7048 = vpop.f32.mrb[0].mxu0
      %v7049 = vpop.f32.mrb[0].mxu0
      %7050 = vdwg.mxu0
      %v7051 = vadd.f32 %v6266, %v6765
      %v7052 = vadd.f32 %v6268, %v6767
      %v7053 = vadd.f32 %v6270, %v6769
      %v7054 = vadd.f32 %v6272, %v6771
      %v7055 = vadd.f32 %v6276, %v6775
      %v7056 = vadd.f32 %v6278, %v6777
      %v7057 = vadd.f32 %v6284, %v6783
      %v7058 = vadd.f32 %v6286, %v6785
      %v7059 = vadd.f32 %v6288, %v6787
      %v7060 = vadd.f32 %v6290, %v6789
      %v7061 = vadd.f32 %v6294, %v6793
      %v7062 = vadd.f32 %v6296, %v6795
      %v7063 = vadd.f32 %v6302, %v6801
      %v7064 = vadd.f32 %v6304, %v6803
      %v7065 = vadd.f32 %v6306, %v6805
      %v7066 = vadd.f32 %v6308, %v6807
      %v7067 = vadd.f32 %v6312, %v6811
      %v7068 = vadd.f32 %v6314, %v6813
      %v7069 = vadd.f32 %v6320, %v6819
      %v7070 = vadd.f32 %v6322, %v6821
      %v7071 = vadd.f32 %v6324, %v6823
      %v7072 = vadd.f32 %v6326, %v6825
      %v7073 = vadd.f32 %v6330, %v6829
      %v7074 = vadd.f32 %v6332, %v6831
      %v7075 = vadd.f32 %v6338, %v6837
      %v7076 = vadd.f32 %v6340, %v6839
      %v7077 = vadd.f32 %v6342, %v6841
      %v7078 = vadd.f32 %v6344, %v6843
      %v7079 = vadd.f32 %v6348, %v6847
      %v7080 = vadd.f32 %v6350, %v6849
      %v7081 = vadd.f32 %v6356, %v6855
      %v7082 = vadd.f32 %v6358, %v6857
      %v7083 = vadd.f32 %v6360, %v6859
      %v7084 = vadd.f32 %v6362, %v6861
      %v7085 = vadd.f32 %v6366, %v6865
      %v7086 = vadd.f32 %v6368, %v6867
      %v7087 = vadd.f32 %v6374, %v6873
      %v7088 = vadd.f32 %v6376, %v6875
      %v7089 = vadd.f32 %v6378, %v6877
      %v7090 = vadd.f32 %v6380, %v6879
      %v7091 = vadd.f32 %v6384, %v6883
      %v7092 = vadd.f32 %v6386, %v6885
      %v7093 = vadd.f32 %v6392, %v6891
      %v7094 = vadd.f32 %v6394, %v6893
      %v7095 = vadd.f32 %v6396, %v6895
      %v7096 = vadd.f32 %v6398, %v6897
      %v7097 = vadd.f32 %v6402, %v6901
      %v7098 = vadd.f32 %v6404, %v6903
      %v7099 = vadd.f32 %v6410, %v6909
      %v7100 = vadd.f32 %v6412, %v6911
      %v7101 = vadd.f32 %v6414, %v6913
      %v7102 = vadd.f32 %v6416, %v6915
      %v7103 = vadd.f32 %v6420, %v6919
      %v7104 = vadd.f32 %v6422, %v6921
      %v7105 = vadd.f32 %v6428, %v6927
      %v7106 = vadd.f32 %v6430, %v6929
      %v7107 = vadd.f32 %v6432, %v6931
      %v7108 = vadd.f32 %v6434, %v6933
      %v7109 = vadd.f32 %v6438, %v6937
      %v7110 = vadd.f32 %v6440, %v6939
      %v7111 = vadd.f32 %v6446, %v6945
      %v7112 = vadd.f32 %v6448, %v6947
      %v7113 = vadd.f32 %v6450, %v6949
      %v7114 = vadd.f32 %v6452, %v6951
      %v7115 = vadd.f32 %v6456, %v6955
      %v7116 = vadd.f32 %v6458, %v6957
      %v7117 = vadd.f32 %v6464, %v6963
      %v7118 = vadd.f32 %v6466, %v6965
      %v7119 = vadd.f32 %v6468, %v6967
      %v7120 = vadd.f32 %v6470, %v6969
      %v7121 = vadd.f32 %v6474, %v6973
      %v7122 = vadd.f32 %v6476, %v6975
      %v7123 = vadd.f32 %v6482, %v6981
      %v7124 = vadd.f32 %v6484, %v6983
      %v7125 = vadd.f32 %v6486, %v6985
      %v7126 = vadd.f32 %v6488, %v6987
      %v7127 = vadd.f32 %v6492, %v6991
      %v7128 = vadd.f32 %v6494, %v6993
      %v7129 = vadd.f32 %v6500, %v6999
      %v7130 = vadd.f32 %v6502, %v7001
      %v7131 = vadd.f32 %v6504, %v7003
      %v7132 = vadd.f32 %v6506, %v7005
      %v7133 = vadd.f32 %v6510, %v7009
      %v7134 = vadd.f32 %v6512, %v7011
      %v7135 = vadd.f32 %v6518, %v7017
      %v7136 = vadd.f32 %v6520, %v7019
      %v7137 = vadd.f32 %v6522, %v7021
      %v7138 = vadd.f32 %v6524, %v7023
      %v7139 = vadd.f32 %v6528, %v7027
      %v7140 = vadd.f32 %v6530, %v7029
      %v7141 = vadd.f32 %v6536, %v7035
      %v7142 = vadd.f32 %v6538, %v7037
      %v7143 = vadd.f32 %v6540, %v7039
      %v7144 = vadd.f32 %v6542, %v7041
      %v7145 = vadd.f32 %v6546, %v7045
      %v7146 = vadd.f32 %v6548, %v7047
      %vm7195 = vcmask 1046528
      %v7196 = vrot.slane %v7051, 1
      %v7197 = vrot.slane %v7053, 1
      %v7198 = vsel %vm7195, %v7196, %v7197
      %v7199 = vrot.slane %v7055, 1
      %v7200 = vsel %vm7195, %v7197, %v7199
      %v7201 = vrot.slane %v7057, 1
      %v7202 = vrot.slane %v7059, 1
      %v7203 = vsel %vm7195, %v7201, %v7202
      %v7204 = vrot.slane %v7061, 1
      %v7205 = vsel %vm7195, %v7202, %v7204
      %v7206 = vrot.slane %v7063, 1
      %v7207 = vrot.slane %v7065, 1
      %v7208 = vsel %vm7195, %v7206, %v7207
      %v7209 = vrot.slane %v7067, 1
      %v7210 = vsel %vm7195, %v7207, %v7209
      %v7211 = vrot.slane %v7069, 1
      %v7212 = vrot.slane %v7071, 1
      %v7213 = vsel %vm7195, %v7211, %v7212
      %v7214 = vrot.slane %v7073, 1
      %v7215 = vsel %vm7195, %v7212, %v7214
      %v7216 = vrot.slane %v7075, 1
      %v7217 = vrot.slane %v7077, 1
      %v7218 = vsel %vm7195, %v7216, %v7217
      %v7219 = vrot.slane %v7079, 1
      %v7220 = vsel %vm7195, %v7217, %v7219
      %v7221 = vrot.slane %v7081, 1
      %v7222 = vrot.slane %v7083, 1
      %v7223 = vsel %vm7195, %v7221, %v7222
      %v7224 = vrot.slane %v7085, 1
      %v7225 = vsel %vm7195, %v7222, %v7224
      %v7226 = vrot.slane %v7087, 1
      %v7227 = vrot.slane %v7089, 1
      %v7228 = vsel %vm7195, %v7226, %v7227
      %v7229 = vrot.slane %v7091, 1
      %v7230 = vsel %vm7195, %v7227, %v7229
      %v7231 = vrot.slane %v7093, 1
      %v7232 = vrot.slane %v7095, 1
      %v7233 = vsel %vm7195, %v7231, %v7232
      %v7234 = vrot.slane %v7097, 1
      %v7235 = vsel %vm7195, %v7232, %v7234
      %v7236 = vrot.slane %v7099, 1
      %v7237 = vrot.slane %v7101, 1
      %v7238 = vsel %vm7195, %v7236, %v7237
      %v7239 = vrot.slane %v7103, 1
      %v7240 = vsel %vm7195, %v7237, %v7239
      %v7241 = vrot.slane %v7105, 1
      %v7242 = vrot.slane %v7107, 1
      %v7243 = vsel %vm7195, %v7241, %v7242
      %v7244 = vrot.slane %v7109, 1
      %v7245 = vsel %vm7195, %v7242, %v7244
      %v7246 = vrot.slane %v7111, 1
      %v7247 = vrot.slane %v7113, 1
      %v7248 = vsel %vm7195, %v7246, %v7247
      %v7249 = vrot.slane %v7115, 1
      %v7250 = vsel %vm7195, %v7247, %v7249
      %v7251 = vrot.slane %v7117, 1
      %v7252 = vrot.slane %v7119, 1
      %v7253 = vsel %vm7195, %v7251, %v7252
      %v7254 = vrot.slane %v7121, 1
      %v7255 = vsel %vm7195, %v7252, %v7254
      %v7256 = vrot.slane %v7123, 1
      %v7257 = vrot.slane %v7125, 1
      %v7258 = vsel %vm7195, %v7256, %v7257
      %v7259 = vrot.slane %v7127, 1
      %v7260 = vsel %vm7195, %v7257, %v7259
      %v7261 = vrot.slane %v7129, 1
      %v7262 = vrot.slane %v7131, 1
      %v7263 = vsel %vm7195, %v7261, %v7262
      %v7264 = vrot.slane %v7133, 1
      %v7265 = vsel %vm7195, %v7262, %v7264
      %v7266 = vrot.slane %v7135, 1
      %v7267 = vrot.slane %v7137, 1
      %v7268 = vsel %vm7195, %v7266, %v7267
      %v7269 = vrot.slane %v7139, 1
      %v7270 = vsel %vm7195, %v7267, %v7269
      %v7271 = vrot.slane %v7141, 1
      %v7272 = vrot.slane %v7143, 1
      %v7273 = vsel %vm7195, %v7271, %v7272
      %v7274 = vrot.slane %v7145, 1
      %v7275 = vsel %vm7195, %v7272, %v7274
      %7276 = vrot.lane.b32.xlu0 %v7198, 64
      %v7277 = vpop.permute.xlu0 %7276
      %7278 = vrot.lane.b32.xlu0 %v7200, 64
      %v7279 = vpop.permute.xlu0 %7278
      %7280 = vrot.lane.b32.xlu0 %v7203, 64
      %v7281 = vpop.permute.xlu0 %7280
      %7282 = vrot.lane.b32.xlu0 %v7205, 64
      %v7283 = vpop.permute.xlu0 %7282
      %7284 = vrot.lane.b32.xlu0 %v7208, 64
      %v7285 = vpop.permute.xlu0 %7284
      %7286 = vrot.lane.b32.xlu0 %v7210, 64
      %v7287 = vpop.permute.xlu0 %7286
      %7288 = vrot.lane.b32.xlu0 %v7213, 64
      %v7289 = vpop.permute.xlu0 %7288
      %7290 = vrot.lane.b32.xlu0 %v7215, 64
      %v7291 = vpop.permute.xlu0 %7290
      %7292 = vrot.lane.b32.xlu0 %v7218, 64
      %v7293 = vpop.permute.xlu0 %7292
      %7294 = vrot.lane.b32.xlu0 %v7220, 64
      %v7295 = vpop.permute.xlu0 %7294
      %7296 = vrot.lane.b32.xlu0 %v7223, 64
      %v7297 = vpop.permute.xlu0 %7296
      %7298 = vrot.lane.b32.xlu0 %v7225, 64
      %v7299 = vpop.permute.xlu0 %7298
      %7300 = vrot.lane.b32.xlu0 %v7228, 64
      %v7301 = vpop.permute.xlu0 %7300
      %7302 = vrot.lane.b32.xlu0 %v7230, 64
      %v7303 = vpop.permute.xlu0 %7302
      %7304 = vrot.lane.b32.xlu0 %v7233, 64
      %v7305 = vpop.permute.xlu0 %7304
      %7306 = vrot.lane.b32.xlu0 %v7235, 64
      %v7307 = vpop.permute.xlu0 %7306
      %7308 = vrot.lane.b32.xlu0 %v7238, 64
      %v7309 = vpop.permute.xlu0 %7308
      %7310 = vrot.lane.b32.xlu0 %v7240, 64
      %v7311 = vpop.permute.xlu0 %7310
      %7312 = vrot.lane.b32.xlu0 %v7243, 64
      %v7313 = vpop.permute.xlu0 %7312
      %7314 = vrot.lane.b32.xlu0 %v7245, 64
      %v7315 = vpop.permute.xlu0 %7314
      %7316 = vrot.lane.b32.xlu0 %v7248, 64
      %v7317 = vpop.permute.xlu0 %7316
      %7318 = vrot.lane.b32.xlu0 %v7250, 64
      %v7319 = vpop.permute.xlu0 %7318
      %7320 = vrot.lane.b32.xlu0 %v7253, 64
      %v7321 = vpop.permute.xlu0 %7320
      %7322 = vrot.lane.b32.xlu0 %v7255, 64
      %v7323 = vpop.permute.xlu0 %7322
      %7324 = vrot.lane.b32.xlu0 %v7258, 64
      %v7325 = vpop.permute.xlu0 %7324
      %7326 = vrot.lane.b32.xlu0 %v7260, 64
      %v7327 = vpop.permute.xlu0 %7326
      %7328 = vrot.lane.b32.xlu0 %v7263, 64
      %v7329 = vpop.permute.xlu0 %7328
      %7330 = vrot.lane.b32.xlu0 %v7265, 64
      %v7331 = vpop.permute.xlu0 %7330
      %7332 = vrot.lane.b32.xlu0 %v7268, 64
      %v7333 = vpop.permute.xlu0 %7332
      %7334 = vrot.lane.b32.xlu0 %v7270, 64
      %v7335 = vpop.permute.xlu0 %7334
      %7336 = vrot.lane.b32.xlu0 %v7273, 64
      %v7337 = vpop.permute.xlu0 %7336
      %7338 = vrot.lane.b32.xlu0 %v7275, 64
      %v7339 = vpop.permute.xlu0 %7338
      %v7372 = vadd.f32 %v7051, %v7277
      %v7373 = vadd.f32 %v7053, %v7279
      %v7374 = vadd.f32 %v7057, %v7281
      %v7375 = vadd.f32 %v7059, %v7283
      %v7376 = vadd.f32 %v7063, %v7285
      %v7377 = vadd.f32 %v7065, %v7287
      %v7378 = vadd.f32 %v7069, %v7289
      %v7379 = vadd.f32 %v7071, %v7291
      %v7380 = vadd.f32 %v7075, %v7293
      %v7381 = vadd.f32 %v7077, %v7295
      %v7382 = vadd.f32 %v7081, %v7297
      %v7383 = vadd.f32 %v7083, %v7299
      %v7384 = vadd.f32 %v7087, %v7301
      %v7385 = vadd.f32 %v7089, %v7303
      %v7386 = vadd.f32 %v7093, %v7305
      %v7387 = vadd.f32 %v7095, %v7307
      %v7388 = vadd.f32 %v7099, %v7309
      %v7389 = vadd.f32 %v7101, %v7311
      %v7390 = vadd.f32 %v7105, %v7313
      %v7391 = vadd.f32 %v7107, %v7315
      %v7392 = vadd.f32 %v7111, %v7317
      %v7393 = vadd.f32 %v7113, %v7319
      %v7394 = vadd.f32 %v7117, %v7321
      %v7395 = vadd.f32 %v7119, %v7323
      %v7396 = vadd.f32 %v7123, %v7325
      %v7397 = vadd.f32 %v7125, %v7327
      %v7398 = vadd.f32 %v7129, %v7329
      %v7399 = vadd.f32 %v7131, %v7331
      %v7400 = vadd.f32 %v7135, %v7333
      %v7401 = vadd.f32 %v7137, %v7335
      %v7402 = vadd.f32 %v7141, %v7337
      %v7403 = vadd.f32 %v7143, %v7339
      %vm7452 = vcmask 1045504
      %v7453 = vrot.slane %v7052, 2
      %v7454 = vrot.slane %v7054, 2
      %v7455 = vsel %vm7452, %v7453, %v7454
      %v7456 = vrot.slane %v7056, 2
      %v7457 = vsel %vm7452, %v7454, %v7456
      %v7458 = vrot.slane %v7058, 2
      %v7459 = vrot.slane %v7060, 2
      %v7460 = vsel %vm7452, %v7458, %v7459
      %v7461 = vrot.slane %v7062, 2
      %v7462 = vsel %vm7452, %v7459, %v7461
      %v7463 = vrot.slane %v7064, 2
      %v7464 = vrot.slane %v7066, 2
      %v7465 = vsel %vm7452, %v7463, %v7464
      %v7466 = vrot.slane %v7068, 2
      %v7467 = vsel %vm7452, %v7464, %v7466
      %v7468 = vrot.slane %v7070, 2
      %v7469 = vrot.slane %v7072, 2
      %v7470 = vsel %vm7452, %v7468, %v7469
      %v7471 = vrot.slane %v7074, 2
      %v7472 = vsel %vm7452, %v7469, %v7471
      %v7473 = vrot.slane %v7076, 2
      %v7474 = vrot.slane %v7078, 2
      %v7475 = vsel %vm7452, %v7473, %v7474
      %v7476 = vrot.slane %v7080, 2
      %v7477 = vsel %vm7452, %v7474, %v7476
      %v7478 = vrot.slane %v7082, 2
      %v7479 = vrot.slane %v7084, 2
      %v7480 = vsel %vm7452, %v7478, %v7479
      %v7481 = vrot.slane %v7086, 2
      %v7482 = vsel %vm7452, %v7479, %v7481
      %v7483 = vrot.slane %v7088, 2
      %v7484 = vrot.slane %v7090, 2
      %v7485 = vsel %vm7452, %v7483, %v7484
      %v7486 = vrot.slane %v7092, 2
      %v7487 = vsel %vm7452, %v7484, %v7486
      %v7488 = vrot.slane %v7094, 2
      %v7489 = vrot.slane %v7096, 2
      %v7490 = vsel %vm7452, %v7488, %v7489
      %v7491 = vrot.slane %v7098, 2
      %v7492 = vsel %vm7452, %v7489, %v7491
      %v7493 = vrot.slane %v7100, 2
      %v7494 = vrot.slane %v7102, 2
      %v7495 = vsel %vm7452, %v7493, %v7494
      %v7496 = vrot.slane %v7104, 2
      %v7497 = vsel %vm7452, %v7494, %v7496
      %v7498 = vrot.slane %v7106, 2
      %v7499 = vrot.slane %v7108, 2
      %v7500 = vsel %vm7452, %v7498, %v7499
      %v7501 = vrot.slane %v7110, 2
      %v7502 = vsel %vm7452, %v7499, %v7501
      %v7503 = vrot.slane %v7112, 2
      %v7504 = vrot.slane %v7114, 2
      %v7505 = vsel %vm7452, %v7503, %v7504
      %v7506 = vrot.slane %v7116, 2
      %v7507 = vsel %vm7452, %v7504, %v7506
      %v7508 = vrot.slane %v7118, 2
      %v7509 = vrot.slane %v7120, 2
      %v7510 = vsel %vm7452, %v7508, %v7509
      %v7511 = vrot.slane %v7122, 2
      %v7512 = vsel %vm7452, %v7509, %v7511
      %v7513 = vrot.slane %v7124, 2
      %v7514 = vrot.slane %v7126, 2
      %v7515 = vsel %vm7452, %v7513, %v7514
      %v7516 = vrot.slane %v7128, 2
      %v7517 = vsel %vm7452, %v7514, %v7516
      %v7518 = vrot.slane %v7130, 2
      %v7519 = vrot.slane %v7132, 2
      %v7520 = vsel %vm7452, %v7518, %v7519
      %v7521 = vrot.slane %v7134, 2
      %v7522 = vsel %vm7452, %v7519, %v7521
      %v7523 = vrot.slane %v7136, 2
      %v7524 = vrot.slane %v7138, 2
      %v7525 = vsel %vm7452, %v7523, %v7524
      %v7526 = vrot.slane %v7140, 2
      %v7527 = vsel %vm7452, %v7524, %v7526
      %v7528 = vrot.slane %v7142, 2
      %v7529 = vrot.slane %v7144, 2
      %v7530 = vsel %vm7452, %v7528, %v7529
      %v7531 = vrot.slane %v7146, 2
      %v7532 = vsel %vm7452, %v7529, %v7531
      %v7565 = vadd.f32 %v7372, %v7455
      %v7566 = vadd.f32 %v7373, %v7457
      %v7567 = vadd.f32 %v7374, %v7460
      %v7568 = vadd.f32 %v7375, %v7462
      %v7569 = vadd.f32 %v7376, %v7465
      %v7570 = vadd.f32 %v7377, %v7467
      %v7571 = vadd.f32 %v7378, %v7470
      %v7572 = vadd.f32 %v7379, %v7472
      %v7573 = vadd.f32 %v7380, %v7475
      %v7574 = vadd.f32 %v7381, %v7477
      %v7575 = vadd.f32 %v7382, %v7480
      %v7576 = vadd.f32 %v7383, %v7482
      %v7577 = vadd.f32 %v7384, %v7485
      %v7578 = vadd.f32 %v7385, %v7487
      %v7579 = vadd.f32 %v7386, %v7490
      %v7580 = vadd.f32 %v7387, %v7492
      %v7581 = vadd.f32 %v7388, %v7495
      %v7582 = vadd.f32 %v7389, %v7497
      %v7583 = vadd.f32 %v7390, %v7500
      %v7584 = vadd.f32 %v7391, %v7502
      %v7585 = vadd.f32 %v7392, %v7505
      %v7586 = vadd.f32 %v7393, %v7507
      %v7587 = vadd.f32 %v7394, %v7510
      %v7588 = vadd.f32 %v7395, %v7512
      %v7589 = vadd.f32 %v7396, %v7515
      %v7590 = vadd.f32 %v7397, %v7517
      %v7591 = vadd.f32 %v7398, %v7520
      %v7592 = vadd.f32 %v7399, %v7522
      %v7593 = vadd.f32 %v7400, %v7525
      %v7594 = vadd.f32 %v7401, %v7527
      %v7595 = vadd.f32 %v7402, %v7530
      %v7596 = vadd.f32 %v7403, %v7532
      %s7597 = scalar_lea.vmem %s2, 16
      %v7598 = vld [vmem:[%s7597] sm:$0x1]
      %v7600 = vlaneseq
      %v7601 = vshrl.u32 %v7600, 7
      %v7602 = vsub.s32 0, %v7601
      %v7603 = vrot.slane %v7598, %v7602
      %v7605 = vmul.f32 %v7565, %v7603
      %v7606 = vmul.f32 %v7566, %v7603
      %v7607 = vmul.f32 %v7567, %v7603
      %v7608 = vmul.f32 %v7568, %v7603
      %v7609 = vmul.f32 %v7569, %v7603
      %v7610 = vmul.f32 %v7570, %v7603
      %v7611 = vmul.f32 %v7571, %v7603
      %v7612 = vmul.f32 %v7572, %v7603
      %v7613 = vmul.f32 %v7573, %v7603
      %v7614 = vmul.f32 %v7574, %v7603
      %v7615 = vmul.f32 %v7575, %v7603
      %v7616 = vmul.f32 %v7576, %v7603
      %v7617 = vmul.f32 %v7577, %v7603
      %v7618 = vmul.f32 %v7578, %v7603
      %v7619 = vmul.f32 %v7579, %v7603
      %v7620 = vmul.f32 %v7580, %v7603
      %v7621 = vmul.f32 %v7581, %v7603
      %v7622 = vmul.f32 %v7582, %v7603
      %v7623 = vmul.f32 %v7583, %v7603
      %v7624 = vmul.f32 %v7584, %v7603
      %v7625 = vmul.f32 %v7585, %v7603
      %v7626 = vmul.f32 %v7586, %v7603
      %v7627 = vmul.f32 %v7587, %v7603
      %v7628 = vmul.f32 %v7588, %v7603
      %v7629 = vmul.f32 %v7589, %v7603
      %v7630 = vmul.f32 %v7590, %v7603
      %v7631 = vmul.f32 %v7591, %v7603
      %v7632 = vmul.f32 %v7592, %v7603
      %v7633 = vmul.f32 %v7593, %v7603
      %v7634 = vmul.f32 %v7594, %v7603
      %v7635 = vmul.f32 %v7595, %v7603
      %v7636 = vmul.f32 %v7596, %v7603
      %s7637 = scalar_lea.vmem %s3, 16
      %v7638 = vld [vmem:[%s7637] sm:$0x1]
      %v7640 = vlaneseq
      %v7641 = vshrl.u32 %v7640, 7
      %v7642 = vsub.s32 0, %v7641
      %v7643 = vrot.slane %v7638, %v7642
      %v7645 = vadd.f32 %v7605, %v7643
      %v7646 = vadd.f32 %v7606, %v7643
      %v7647 = vadd.f32 %v7607, %v7643
      %v7648 = vadd.f32 %v7608, %v7643
      %v7649 = vadd.f32 %v7609, %v7643
      %v7650 = vadd.f32 %v7610, %v7643
      %v7651 = vadd.f32 %v7611, %v7643
      %v7652 = vadd.f32 %v7612, %v7643
      %v7653 = vadd.f32 %v7613, %v7643
      %v7654 = vadd.f32 %v7614, %v7643
      %v7655 = vadd.f32 %v7615, %v7643
      %v7656 = vadd.f32 %v7616, %v7643
      %v7657 = vadd.f32 %v7617, %v7643
      %v7658 = vadd.f32 %v7618, %v7643
      %v7659 = vadd.f32 %v7619, %v7643
      %v7660 = vadd.f32 %v7620, %v7643
      %v7661 = vadd.f32 %v7621, %v7643
      %v7662 = vadd.f32 %v7622, %v7643
      %v7663 = vadd.f32 %v7623, %v7643
      %v7664 = vadd.f32 %v7624, %v7643
      %v7665 = vadd.f32 %v7625, %v7643
      %v7666 = vadd.f32 %v7626, %v7643
      %v7667 = vadd.f32 %v7627, %v7643
      %v7668 = vadd.f32 %v7628, %v7643
      %v7669 = vadd.f32 %v7629, %v7643
      %v7670 = vadd.f32 %v7630, %v7643
      %v7671 = vadd.f32 %v7631, %v7643
      %v7672 = vadd.f32 %v7632, %v7643
      %v7673 = vadd.f32 %v7633, %v7643
      %v7674 = vadd.f32 %v7634, %v7643
      %v7675 = vadd.f32 %v7635, %v7643
      %v7676 = vadd.f32 %v7636, %v7643
      %vm7677 = vcmask 7168
      %7678 = vst.msk [vmem:[%s197] sm:$0xff] %vm7677, %v7645
      %7679 = vst.msk [vmem:[%s197 + $0x8] sm:$0xff] %vm7677, %v7646
      %7680 = vst.msk [vmem:[%s197 + $0x10] sm:$0xff] %vm7677, %v7647
      %7681 = vst.msk [vmem:[%s197 + $0x18] sm:$0xff] %vm7677, %v7648
      %7682 = vst.msk [vmem:[%s197 + $0x20] sm:$0xff] %vm7677, %v7649
      %7683 = vst.msk [vmem:[%s197 + $0x28] sm:$0xff] %vm7677, %v7650
      %7684 = vst.msk [vmem:[%s197 + $0x30] sm:$0xff] %vm7677, %v7651
      %7685 = vst.msk [vmem:[%s197 + $0x38] sm:$0xff] %vm7677, %v7652
      %7686 = vst.msk [vmem:[%s197 + $0x40] sm:$0xff] %vm7677, %v7653
      %7687 = vst.msk [vmem:[%s197 + $0x48] sm:$0xff] %vm7677, %v7654
      %7688 = vst.msk [vmem:[%s197 + $0x50] sm:$0xff] %vm7677, %v7655
      %7689 = vst.msk [vmem:[%s197 + $0x58] sm:$0xff] %vm7677, %v7656
      %7690 = vst.msk [vmem:[%s197 + $0x60] sm:$0xff] %vm7677, %v7657
      %7691 = vst.msk [vmem:[%s197 + $0x68] sm:$0xff] %vm7677, %v7658
      %7692 = vst.msk [vmem:[%s197 + $0x70] sm:$0xff] %vm7677, %v7659
      %7693 = vst.msk [vmem:[%s197 + $0x78] sm:$0xff] %vm7677, %v7660
      %7694 = vst.msk [vmem:[%s197 + $0x80] sm:$0xff] %vm7677, %v7661
      %7695 = vst.msk [vmem:[%s197 + $0x88] sm:$0xff] %vm7677, %v7662
      %7696 = vst.msk [vmem:[%s197 + $0x90] sm:$0xff] %vm7677, %v7663
      %7697 = vst.msk [vmem:[%s197 + $0x98] sm:$0xff] %vm7677, %v7664
      %7698 = vst.msk [vmem:[%s197 + $0xa0] sm:$0xff] %vm7677, %v7665
      %7699 = vst.msk [vmem:[%s197 + $0xa8] sm:$0xff] %vm7677, %v7666
      %7700 = vst.msk [vmem:[%s197 + $0xb0] sm:$0xff] %vm7677, %v7667
      %7701 = vst.msk [vmem:[%s197 + $0xb8] sm:$0xff] %vm7677, %v7668
      %7702 = vst.msk [vmem:[%s197 + $0xc0] sm:$0xff] %vm7677, %v7669
      %7703 = vst.msk [vmem:[%s197 + $0xc8] sm:$0xff] %vm7677, %v7670
      %7704 = vst.msk [vmem:[%s197 + $0xd0] sm:$0xff] %vm7677, %v7671
      %7705 = vst.msk [vmem:[%s197 + $0xd8] sm:$0xff] %vm7677, %v7672
      %7706 = vst.msk [vmem:[%s197 + $0xe0] sm:$0xff] %vm7677, %v7673
      %7707 = vst.msk [vmem:[%s197 + $0xe8] sm:$0xff] %vm7677, %v7674
      %7708 = vst.msk [vmem:[%s197 + $0xf0] sm:$0xff] %vm7677, %v7675
      %7709 = vst.msk [vmem:[%s197 + $0xf8] sm:$0xff] %vm7677, %v7676
      %p7710 = scmp.lt.s32.totalorder %s15, 1
      %s7711 = scalar_select %p7710, %s15, 1
      %s7712 = smul.addr %s7711, 32
      %s7713 = smul.addr %s7712, 8
      %s7714 = scalar_lea.vmem %s4, %s7713
      // Predicated region
      $region44: #{_lambda_.1} parent=35 // pred_check
        %p7715 = pneg %p122
      $region45: #{_lambda_.1} parent=35 // pred_check_branch
        %7717 = sbr.rel (%p7715) target = $region47
      $region46: #{_lambda_.1} parent=35 // pred_region
        _
      $region47: #{_lambda_.1} parent=35 // pred_fallthru
        _
    $region36: #{_lambda_.1} parent=5 // pred_fallthru
      _
    %p7718 = scmp.le.s32.totalorder 2, %s10
    // Predicated region
    $region48: #{_lambda_.1} parent=5 // pred_check
      %p7719 = pneg %p7718
    $region49: #{_lambda_.1} parent=5 // pred_check_branch
      %7721 = sbr.rel (%p7719) target = $region51
    $region50: #{_lambda_.1} parent=5 // pred_region
      %s7722 = ssub.s32 %s10, 2
      // Predicated region
      $region52: #{_lambda_.1} parent=50 // pred_check
        %p7723 = pneg %p128
      $region53: #{_lambda_.1} parent=50 // pred_check_branch
        %7725 = sbr.rel (%p7723) target = $region55
      $region54: #{_lambda_.1} parent=50 // pred_region
        %p7726 = scmp.lt.s32.totalorder %s16, 1
        %s7727 = scalar_select %p7726, %s16, 1
        %s7728 = smul.addr %s7727, 32
        %s7729 = smul.addr %s7728, 8
        %s7730 = scalar_lea.vmem %s4, %s7729
      $region55: #{_lambda_.1} parent=50 // pred_fallthru
        _
    $region51: #{_lambda_.1} parent=5 // pred_fallthru
      _
  $region6: #{_lambda_.1} parent=0 // loop_footer
    %s14 = sadd.s32 1, %s10
  $region7: #{_lambda_.1} parent=0 // loop_footer_branch
    %9 = sbr.rel target = $region3
  $region8: #{_lambda_.1} parent=0 // loop_exit
    _

</llo_original>
